<compile_context>
chip_gen: v7x
topology: tpu7x:2x2x1
jax: 0.10.0
libtpu: 0.0.40
codegen_flags: <defaults>
</compile_context>

<pallas_src>
import jax
import jax.numpy as jnp
from jax.experimental import pallas as pl
from jax.experimental.pallas import tpu as pltpu


# ---------------------------------------------------------------------------
# Fused forward kernel: one grid step == one image.
# ---------------------------------------------------------------------------
def simnet_kernel(x_ref, w1t_ref, w2t_ref, b1_ref, b2_ref, out_ref):
    # x_ref   : (4, 7, 128) f32   input rows split mod 4, cols zero-padded 28->128
    # w1t_ref : (2, 640, 384) bf16  conv1 Toeplitz weights (even/odd output col)
    # w2t_ref : (2, 1920, 256) bf16 conv2 Toeplitz weights (even/odd output col)
    # b1_ref  : (1, 384) f32      conv1 bias tiled over the 12 pooled columns
    # b2_ref  : (1, 256) f32      conv2 bias tiled over the 4 pooled columns
    # out_ref : (4, 256) f32      pool2 output, rows = qy, cols = (qx, channel)
    xq = [x_ref[m] for m in range(4)]          # (7, 128) each
    w1t = [w1t_ref[p] for p in range(2)]       # (640, 384)
    w2t = [w2t_ref[p] for p in range(2)]       # (1920, 256)

    # ---- stage 1: conv1 (5x5, 1->32) + relu + 2x2 maxpool --------------------
    # p1[a][qy, px*32 + c] == pool1 activation at (channel c, row 2*qy+a, col px)
    p1 = []
    for a in range(2):                          # pool1 output-row parity
        acc = None
        for dy in range(2):                     # pool-window row
            pieces = []
            for ky in range(5):                 # conv kernel row
                t = 2 * a + dy + ky             # input row = 4*qy + t
                pieces.append(xq[t % 4][(t // 4):(t // 4) + 6, :])     # (6, 128)
            lhs = jnp.concatenate(pieces, axis=1).astype(jnp.bfloat16)  # (6, 640)
            for p in range(2):                  # pool-window col (even/odd conv col)
                z = jnp.dot(lhs, w1t[p], preferred_element_type=jnp.float32)
                acc = z if acc is None else jnp.maximum(acc, z)
        p1.append(jnp.maximum(acc + b1_ref[...], 0.0))                  # (6, 384) f32

    # ---- stage 2: conv2 (5x5, 32->64) + relu + 2x2 maxpool -------------------
    acc2 = None
    for dy in range(2):                         # pool-window row
        pieces = []
        for ky in range(5):                     # conv kernel row
            t = dy + ky                         # pool1 row = 2*qy + t
            pieces.append(p1[t % 2][(t // 2):(t // 2) + 4, :])          # (4, 384)
        lhs2 = jnp.concatenate(pieces, axis=1).astype(jnp.bfloat16)     # (4, 1920)
        for p in range(2):                      # pool-window col
            z = jnp.dot(lhs2, w2t[p], preferred_element_type=jnp.float32)
            acc2 = z if acc2 is None else jnp.maximum(acc2, z)
    out_ref[...] = jnp.maximum(acc2 + b2_ref[...], 0.0)                 # (4, 256)


# ---------------------------------------------------------------------------
# Host-side (tiny, one-time) weight rearrangement into Toeplitz matmul form.
# ---------------------------------------------------------------------------
def _build_w1_toeplitz(w1, p):
    """(640, 384): [ky*128 + j, px*32 + c] = w1[c,0,ky, j-(2px+p)] if in [0,5)."""
    w = jnp.transpose(w1[:, 0, :, :], (1, 2, 0))           # (ky, kx, c)
    ky_blocks = []
    for ky in range(5):
        cols = []
        for px in range(12):
            top = 2 * px + p
            cols.append(jnp.pad(w[ky], ((top, 128 - top - 5), (0, 0))))  # (128, 32)
        ky_blocks.append(jnp.concatenate(cols, axis=1))     # (128, 384)
    return jnp.concatenate(ky_blocks, axis=0)               # (640, 384)


def _build_w2_toeplitz(w2, p):
    """(1920, 256): [ky*384 + px*32 + c, qx*64 + d] = w2[d,c,ky, px-(2qx+p)]."""
    w = jnp.transpose(w2, (2, 3, 1, 0))                     # (ky, kx, c, d)
    ky_blocks = []
    for ky in range(5):
        wk = w[ky].reshape(5 * 32, 64)                      # rows = (kx, c)
        cols = []
        for qx in range(4):
            top = (2 * qx + p) * 32
            cols.append(jnp.pad(wk, ((top, 384 - top - 160), (0, 0))))   # (384, 64)
        ky_blocks.append(jnp.concatenate(cols, axis=1))     # (384, 256)
    return jnp.concatenate(ky_blocks, axis=0)               # (1920, 256)


# ---------------------------------------------------------------------------
# Forward pass
# ---------------------------------------------------------------------------
@jax.jit
def simnet_forward(x_nchw, params):
    w1, b1, w2, b2 = params
    N = x_nchw.shape[0]

    # tiny layout prep on the 3 KB/image input: split rows mod 4, pad cols to 128
    x = x_nchw[:, 0, :, :]                                  # (N, 28, 28)
    xr = x.reshape(N, 7, 4, 28).transpose(0, 2, 1, 3)       # (N, 4, 7, 28)
    xr = jnp.pad(xr, ((0, 0), (0, 0), (0, 0), (0, 100)))    # (N, 4, 7, 128) f32

    w1t = jnp.stack([_build_w1_toeplitz(w1, 0),
                     _build_w1_toeplitz(w1, 1)]).astype(jnp.bfloat16)
    w2t = jnp.stack([_build_w2_toeplitz(w2, 0),
                     _build_w2_toeplitz(w2, 1)]).astype(jnp.bfloat16)
    b1t = jnp.tile(b1, 12).reshape(1, 384).astype(jnp.float32)
    b2t = jnp.tile(b2, 4).reshape(1, 256).astype(jnp.float32)

    out = pl.pallas_call(
        simnet_kernel,
        out_shape=jax.ShapeDtypeStruct((N, 4, 256), jnp.float32),
        grid=(N,),
        in_specs=[
            pl.BlockSpec((None, 4, 7, 128), lambda n: (n, 0, 0, 0)),
            pl.BlockSpec((2, 640, 384), lambda n: (0, 0, 0)),
            pl.BlockSpec((2, 1920, 256), lambda n: (0, 0, 0)),
            pl.BlockSpec((1, 384), lambda n: (0, 0)),
            pl.BlockSpec((1, 256), lambda n: (0, 0)),
        ],
        out_specs=pl.BlockSpec((None, 4, 256), lambda n: (n, 0, 0)),
        compiler_params=pltpu.CompilerParams(
            dimension_semantics=("parallel",),
            vmem_limit_bytes=32 * 1024 * 1024),
    )(xr, w1t, w2t, b1t, b2t)

    # kernel output is [n, qy, qx*64 + c]; torch.flatten order is (c, qy, qx).
    out = out.reshape(N, 4, 4, 64).transpose(0, 3, 1, 2)
    return out.reshape(N, 64 * 4 * 4)


# ---------------------------------------------------------------------------
# Pure-JAX reference (matches the PyTorch module) + driver
# ---------------------------------------------------------------------------
def simnet_reference(x_nchw, params):
    w1, b1, w2, b2 = params

    def conv_relu(x, w, b):
        y = jax.lax.conv_general_dilated(
            x, w, window_strides=(1, 1), padding='VALID',
            dimension_numbers=('NCHW', 'OIHW', 'NCHW'))
        return jax.nn.relu(y + b[None, :, None, None])

    def pool(x):
        return jax.lax.reduce_window(x, -jnp.inf, jax.lax.max,
                                     (1, 1, 2, 2), (1, 1, 2, 2), 'VALID')

    x = pool(conv_relu(x_nchw, w1, b1))
    x = pool(conv_relu(x, w2, b2))
    return x.reshape(x.shape[0], -1)


def init_params(key):
    k1, k2, k3, k4 = jax.random.split(key, 4)
    # Shapes match nn.Conv2d(1, 32, 5) and nn.Conv2d(32, 64, 5).
    w1 = jax.random.normal(k1, (32, 1, 5, 5), jnp.float32) * 0.1
    b1 = jax.random.normal(k2, (32,), jnp.float32) * 0.1
    w2 = jax.random.normal(k3, (64, 32, 5, 5), jnp.float32) * 0.05
    b2 = jax.random.normal(k4, (64,), jnp.float32) * 0.1
    return (w1, b1, w2, b2)


if __name__ == "__main__":
    key = jax.random.PRNGKey(0)
    pkey, xkey = jax.random.split(key)
    params = init_params(pkey)
    # MNIST-like input: 28 -> conv5 -> 24 -> pool -> 12 -> conv5 -> 8 -> pool -> 4
    x = jax.random.normal(xkey, (2, 1, 28, 28), jnp.float32)

    out = jax.block_until_ready(simnet_forward(x, params))
    assert out.shape == (2, 64 * 4 * 4), out.shape

    ref = jax.block_until_ready(simnet_reference(x, params))
    assert jnp.allclose(out, ref, atol=3e-2, rtol=3e-2), (
        "max abs err = %f" % float(jnp.max(jnp.abs(out - ref))))

    print("KERNEL_OK")
</pallas_src>

<mosaic_0001>
module attributes {stable_mosaic.version = 11 : i64} {
  func.func @simnet_kernel(%arg0: i32, %arg1: memref<1x4x7x128xf32, #tpu.memory_space<vmem>>, %arg2: memref<2x640x384xbf16, #tpu.memory_space<vmem>>, %arg3: memref<2x1920x256xbf16, #tpu.memory_space<vmem>>, %arg4: memref<1x384xf32, #tpu.memory_space<vmem>>, %arg5: memref<1x256xf32, #tpu.memory_space<vmem>>, %arg6: memref<1x4x256xf32, #tpu.memory_space<vmem>>) attributes {dimension_semantics = [#tpu.dimension_semantics<parallel>], iteration_bounds = array<i64: 2>, scalar_prefetch = 0 : i64, scratch_operands = 0 : i64, tpu.core_type = #tpu.core_type<tc>, window_params = [{transform_indices = @transform_0, window_bounds = array<i64: 1, 4, 7, 128>}, {pipeline_mode = #tpu.pipeline_mode<synchronous>, transform_indices = @transform_1, window_bounds = array<i64: 2, 640, 384>}, {pipeline_mode = #tpu.pipeline_mode<synchronous>, transform_indices = @transform_2, window_bounds = array<i64: 2, 1920, 256>}, {pipeline_mode = #tpu.pipeline_mode<synchronous>, transform_indices = @transform_3, window_bounds = array<i64: 1, 384>}, {pipeline_mode = #tpu.pipeline_mode<synchronous>, transform_indices = @transform_4, window_bounds = array<i64: 1, 256>}, {transform_indices = @transform_5, window_bounds = array<i64: 1, 4, 256>}]} {
    %c0 = arith.constant 0 : index
    %c0_0 = arith.constant 0 : index
    %c0_1 = arith.constant 0 : index
    %c0_2 = arith.constant 0 : index
    %0 = vector.load %arg1[%c0, %c0_0, %c0_1, %c0_2] : memref<1x4x7x128xf32, #tpu.memory_space<vmem>>, vector<1x1x7x128xf32>
    %1 = vector.shape_cast %0 : vector<1x1x7x128xf32> to vector<7x128xf32>
    %c0_3 = arith.constant 0 : index
    %c1 = arith.constant 1 : index
    %c0_4 = arith.constant 0 : index
    %c0_5 = arith.constant 0 : index
    %2 = vector.load %arg1[%c0_3, %c1, %c0_4, %c0_5] : memref<1x4x7x128xf32, #tpu.memory_space<vmem>>, vector<1x1x7x128xf32>
    %3 = vector.shape_cast %2 : vector<1x1x7x128xf32> to vector<7x128xf32>
    %c0_6 = arith.constant 0 : index
    %c2 = arith.constant 2 : index
    %c0_7 = arith.constant 0 : index
    %c0_8 = arith.constant 0 : index
    %4 = vector.load %arg1[%c0_6, %c2, %c0_7, %c0_8] : memref<1x4x7x128xf32, #tpu.memory_space<vmem>>, vector<1x1x7x128xf32>
    %5 = vector.shape_cast %4 : vector<1x1x7x128xf32> to vector<7x128xf32>
    %c0_9 = arith.constant 0 : index
    %c3 = arith.constant 3 : index
    %c0_10 = arith.constant 0 : index
    %c0_11 = arith.constant 0 : index
    %6 = vector.load %arg1[%c0_9, %c3, %c0_10, %c0_11] : memref<1x4x7x128xf32, #tpu.memory_space<vmem>>, vector<1x1x7x128xf32>
    %7 = vector.shape_cast %6 : vector<1x1x7x128xf32> to vector<7x128xf32>
    %c0_12 = arith.constant 0 : index
    %c0_13 = arith.constant 0 : index
    %c0_14 = arith.constant 0 : index
    %8 = vector.load %arg2[%c0_12, %c0_13, %c0_14] : memref<2x640x384xbf16, #tpu.memory_space<vmem>>, vector<1x640x384xbf16>
    %9 = vector.shape_cast %8 : vector<1x640x384xbf16> to vector<640x384xbf16>
    %c1_15 = arith.constant 1 : index
    %c0_16 = arith.constant 0 : index
    %c0_17 = arith.constant 0 : index
    %10 = vector.load %arg2[%c1_15, %c0_16, %c0_17] : memref<2x640x384xbf16, #tpu.memory_space<vmem>>, vector<1x640x384xbf16>
    %11 = vector.shape_cast %10 : vector<1x640x384xbf16> to vector<640x384xbf16>
    %c0_18 = arith.constant 0 : index
    %c0_19 = arith.constant 0 : index
    %c0_20 = arith.constant 0 : index
    %12 = vector.load %arg3[%c0_18, %c0_19, %c0_20] : memref<2x1920x256xbf16, #tpu.memory_space<vmem>>, vector<1x1920x256xbf16>
    %13 = vector.shape_cast %12 : vector<1x1920x256xbf16> to vector<1920x256xbf16>
    %c1_21 = arith.constant 1 : index
    %c0_22 = arith.constant 0 : index
    %c0_23 = arith.constant 0 : index
    %14 = vector.load %arg3[%c1_21, %c0_22, %c0_23] : memref<2x1920x256xbf16, #tpu.memory_space<vmem>>, vector<1x1920x256xbf16>
    %15 = vector.shape_cast %14 : vector<1x1920x256xbf16> to vector<1920x256xbf16>
    %16 = vector.extract_strided_slice %1 {offsets = [0, 0], sizes = [6, 128], strides = [1, 1]} : vector<7x128xf32> to vector<6x128xf32>
    %17 = vector.extract_strided_slice %3 {offsets = [0, 0], sizes = [6, 128], strides = [1, 1]} : vector<7x128xf32> to vector<6x128xf32>
    %18 = vector.extract_strided_slice %5 {offsets = [0, 0], sizes = [6, 128], strides = [1, 1]} : vector<7x128xf32> to vector<6x128xf32>
    %19 = vector.extract_strided_slice %7 {offsets = [0, 0], sizes = [6, 128], strides = [1, 1]} : vector<7x128xf32> to vector<6x128xf32>
    %20 = vector.extract_strided_slice %1 {offsets = [1, 0], sizes = [6, 128], strides = [1, 1]} : vector<7x128xf32> to vector<6x128xf32>
    %21 = tpu.concatenate %16, %17, %18, %19, %20 in 1 : vector<6x128xf32>, vector<6x128xf32>, vector<6x128xf32>, vector<6x128xf32>, vector<6x128xf32> -> vector<6x640xf32>
    %22 = arith.truncf %21 : vector<6x640xf32> to vector<6x640xbf16>
    %cst = arith.constant dense<0.000000e+00> : vector<6x384xf32>
    %23 = tpu.matmul %22, %9, %cst {dimension_numbers = #tpu.dot_dimension_numbers<[1], [0], [0], [1], [0, 0, 1, 1], [], []>} : vector<6x640xbf16>, vector<640x384xbf16>, vector<6x384xf32> -> vector<6x384xf32>
    %cst_24 = arith.constant dense<0.000000e+00> : vector<6x384xf32>
    %24 = tpu.matmul %22, %11, %cst_24 {dimension_numbers = #tpu.dot_dimension_numbers<[1], [0], [0], [1], [0, 0, 1, 1], [], []>} : vector<6x640xbf16>, vector<640x384xbf16>, vector<6x384xf32> -> vector<6x384xf32>
    %25 = arith.maximumf %23, %24 : vector<6x384xf32>
    %26 = vector.extract_strided_slice %3 {offsets = [0, 0], sizes = [6, 128], strides = [1, 1]} : vector<7x128xf32> to vector<6x128xf32>
    %27 = vector.extract_strided_slice %5 {offsets = [0, 0], sizes = [6, 128], strides = [1, 1]} : vector<7x128xf32> to vector<6x128xf32>
    %28 = vector.extract_strided_slice %7 {offsets = [0, 0], sizes = [6, 128], strides = [1, 1]} : vector<7x128xf32> to vector<6x128xf32>
    %29 = vector.extract_strided_slice %1 {offsets = [1, 0], sizes = [6, 128], strides = [1, 1]} : vector<7x128xf32> to vector<6x128xf32>
    %30 = vector.extract_strided_slice %3 {offsets = [1, 0], sizes = [6, 128], strides = [1, 1]} : vector<7x128xf32> to vector<6x128xf32>
    %31 = tpu.concatenate %26, %27, %28, %29, %30 in 1 : vector<6x128xf32>, vector<6x128xf32>, vector<6x128xf32>, vector<6x128xf32>, vector<6x128xf32> -> vector<6x640xf32>
    %32 = arith.truncf %31 : vector<6x640xf32> to vector<6x640xbf16>
    %cst_25 = arith.constant dense<0.000000e+00> : vector<6x384xf32>
    %33 = tpu.matmul %32, %9, %cst_25 {dimension_numbers = #tpu.dot_dimension_numbers<[1], [0], [0], [1], [0, 0, 1, 1], [], []>} : vector<6x640xbf16>, vector<640x384xbf16>, vector<6x384xf32> -> vector<6x384xf32>
    %34 = arith.maximumf %25, %33 : vector<6x384xf32>
    %cst_26 = arith.constant dense<0.000000e+00> : vector<6x384xf32>
    %35 = tpu.matmul %32, %11, %cst_26 {dimension_numbers = #tpu.dot_dimension_numbers<[1], [0], [0], [1], [0, 0, 1, 1], [], []>} : vector<6x640xbf16>, vector<640x384xbf16>, vector<6x384xf32> -> vector<6x384xf32>
    %36 = arith.maximumf %34, %35 : vector<6x384xf32>
    %c0_27 = arith.constant 0 : index
    %c0_28 = arith.constant 0 : index
    %37 = vector.load %arg4[%c0_27, %c0_28] : memref<1x384xf32, #tpu.memory_space<vmem>>, vector<1x384xf32>
    %38 = vector.broadcast %37 : vector<1x384xf32> to vector<6x384xf32>
    %39 = arith.addf %36, %38 : vector<6x384xf32>
    %cst_29 = arith.constant 0.000000e+00 : f32
    %40 = vector.broadcast %cst_29 : f32 to vector<6x384xf32>
    %41 = arith.maximumf %39, %40 : vector<6x384xf32>
    %42 = vector.extract_strided_slice %5 {offsets = [0, 0], sizes = [6, 128], strides = [1, 1]} : vector<7x128xf32> to vector<6x128xf32>
    %43 = vector.extract_strided_slice %7 {offsets = [0, 0], sizes = [6, 128], strides = [1, 1]} : vector<7x128xf32> to vector<6x128xf32>
    %44 = vector.extract_strided_slice %1 {offsets = [1, 0], sizes = [6, 128], strides = [1, 1]} : vector<7x128xf32> to vector<6x128xf32>
    %45 = vector.extract_strided_slice %3 {offsets = [1, 0], sizes = [6, 128], strides = [1, 1]} : vector<7x128xf32> to vector<6x128xf32>
    %46 = vector.extract_strided_slice %5 {offsets = [1, 0], sizes = [6, 128], strides = [1, 1]} : vector<7x128xf32> to vector<6x128xf32>
    %47 = tpu.concatenate %42, %43, %44, %45, %46 in 1 : vector<6x128xf32>, vector<6x128xf32>, vector<6x128xf32>, vector<6x128xf32>, vector<6x128xf32> -> vector<6x640xf32>
    %48 = arith.truncf %47 : vector<6x640xf32> to vector<6x640xbf16>
    %cst_30 = arith.constant dense<0.000000e+00> : vector<6x384xf32>
    %49 = tpu.matmul %48, %9, %cst_30 {dimension_numbers = #tpu.dot_dimension_numbers<[1], [0], [0], [1], [0, 0, 1, 1], [], []>} : vector<6x640xbf16>, vector<640x384xbf16>, vector<6x384xf32> -> vector<6x384xf32>
    %cst_31 = arith.constant dense<0.000000e+00> : vector<6x384xf32>
    %50 = tpu.matmul %48, %11, %cst_31 {dimension_numbers = #tpu.dot_dimension_numbers<[1], [0], [0], [1], [0, 0, 1, 1], [], []>} : vector<6x640xbf16>, vector<640x384xbf16>, vector<6x384xf32> -> vector<6x384xf32>
    %51 = arith.maximumf %49, %50 : vector<6x384xf32>
    %52 = vector.extract_strided_slice %7 {offsets = [0, 0], sizes = [6, 128], strides = [1, 1]} : vector<7x128xf32> to vector<6x128xf32>
    %53 = vector.extract_strided_slice %1 {offsets = [1, 0], sizes = [6, 128], strides = [1, 1]} : vector<7x128xf32> to vector<6x128xf32>
    %54 = vector.extract_strided_slice %3 {offsets = [1, 0], sizes = [6, 128], strides = [1, 1]} : vector<7x128xf32> to vector<6x128xf32>
    %55 = vector.extract_strided_slice %5 {offsets = [1, 0], sizes = [6, 128], strides = [1, 1]} : vector<7x128xf32> to vector<6x128xf32>
    %56 = vector.extract_strided_slice %7 {offsets = [1, 0], sizes = [6, 128], strides = [1, 1]} : vector<7x128xf32> to vector<6x128xf32>
    %57 = tpu.concatenate %52, %53, %54, %55, %56 in 1 : vector<6x128xf32>, vector<6x128xf32>, vector<6x128xf32>, vector<6x128xf32>, vector<6x128xf32> -> vector<6x640xf32>
    %58 = arith.truncf %57 : vector<6x640xf32> to vector<6x640xbf16>
    %cst_32 = arith.constant dense<0.000000e+00> : vector<6x384xf32>
    %59 = tpu.matmul %58, %9, %cst_32 {dimension_numbers = #tpu.dot_dimension_numbers<[1], [0], [0], [1], [0, 0, 1, 1], [], []>} : vector<6x640xbf16>, vector<640x384xbf16>, vector<6x384xf32> -> vector<6x384xf32>
    %60 = arith.maximumf %51, %59 : vector<6x384xf32>
    %cst_33 = arith.constant dense<0.000000e+00> : vector<6x384xf32>
    %61 = tpu.matmul %58, %11, %cst_33 {dimension_numbers = #tpu.dot_dimension_numbers<[1], [0], [0], [1], [0, 0, 1, 1], [], []>} : vector<6x640xbf16>, vector<640x384xbf16>, vector<6x384xf32> -> vector<6x384xf32>
    %62 = arith.maximumf %60, %61 : vector<6x384xf32>
    %c0_34 = arith.constant 0 : index
    %c0_35 = arith.constant 0 : index
    %63 = vector.load %arg4[%c0_34, %c0_35] : memref<1x384xf32, #tpu.memory_space<vmem>>, vector<1x384xf32>
    %64 = vector.broadcast %63 : vector<1x384xf32> to vector<6x384xf32>
    %65 = arith.addf %62, %64 : vector<6x384xf32>
    %cst_36 = arith.constant 0.000000e+00 : f32
    %66 = vector.broadcast %cst_36 : f32 to vector<6x384xf32>
    %67 = arith.maximumf %65, %66 : vector<6x384xf32>
    %68 = vector.extract_strided_slice %41 {offsets = [0, 0], sizes = [4, 384], strides = [1, 1]} : vector<6x384xf32> to vector<4x384xf32>
    %69 = vector.extract_strided_slice %67 {offsets = [0, 0], sizes = [4, 384], strides = [1, 1]} : vector<6x384xf32> to vector<4x384xf32>
    %70 = vector.extract_strided_slice %41 {offsets = [1, 0], sizes = [4, 384], strides = [1, 1]} : vector<6x384xf32> to vector<4x384xf32>
    %71 = vector.extract_strided_slice %67 {offsets = [1, 0], sizes = [4, 384], strides = [1, 1]} : vector<6x384xf32> to vector<4x384xf32>
    %72 = vector.extract_strided_slice %41 {offsets = [2, 0], sizes = [4, 384], strides = [1, 1]} : vector<6x384xf32> to vector<4x384xf32>
    %73 = tpu.concatenate %68, %69, %70, %71, %72 in 1 : vector<4x384xf32>, vector<4x384xf32>, vector<4x384xf32>, vector<4x384xf32>, vector<4x384xf32> -> vector<4x1920xf32>
    %74 = arith.truncf %73 : vector<4x1920xf32> to vector<4x1920xbf16>
    %cst_37 = arith.constant dense<0.000000e+00> : vector<4x256xf32>
    %75 = tpu.matmul %74, %13, %cst_37 {dimension_numbers = #tpu.dot_dimension_numbers<[1], [0], [0], [1], [0, 0, 1, 1], [], []>} : vector<4x1920xbf16>, vector<1920x256xbf16>, vector<4x256xf32> -> vector<4x256xf32>
    %cst_38 = arith.constant dense<0.000000e+00> : vector<4x256xf32>
    %76 = tpu.matmul %74, %15, %cst_38 {dimension_numbers = #tpu.dot_dimension_numbers<[1], [0], [0], [1], [0, 0, 1, 1], [], []>} : vector<4x1920xbf16>, vector<1920x256xbf16>, vector<4x256xf32> -> vector<4x256xf32>
    %77 = arith.maximumf %75, %76 : vector<4x256xf32>
    %78 = vector.extract_strided_slice %67 {offsets = [0, 0], sizes = [4, 384], strides = [1, 1]} : vector<6x384xf32> to vector<4x384xf32>
    %79 = vector.extract_strided_slice %41 {offsets = [1, 0], sizes = [4, 384], strides = [1, 1]} : vector<6x384xf32> to vector<4x384xf32>
    %80 = vector.extract_strided_slice %67 {offsets = [1, 0], sizes = [4, 384], strides = [1, 1]} : vector<6x384xf32> to vector<4x384xf32>
    %81 = vector.extract_strided_slice %41 {offsets = [2, 0], sizes = [4, 384], strides = [1, 1]} : vector<6x384xf32> to vector<4x384xf32>
    %82 = vector.extract_strided_slice %67 {offsets = [2, 0], sizes = [4, 384], strides = [1, 1]} : vector<6x384xf32> to vector<4x384xf32>
    %83 = tpu.concatenate %78, %79, %80, %81, %82 in 1 : vector<4x384xf32>, vector<4x384xf32>, vector<4x384xf32>, vector<4x384xf32>, vector<4x384xf32> -> vector<4x1920xf32>
    %84 = arith.truncf %83 : vector<4x1920xf32> to vector<4x1920xbf16>
    %cst_39 = arith.constant dense<0.000000e+00> : vector<4x256xf32>
    %85 = tpu.matmul %84, %13, %cst_39 {dimension_numbers = #tpu.dot_dimension_numbers<[1], [0], [0], [1], [0, 0, 1, 1], [], []>} : vector<4x1920xbf16>, vector<1920x256xbf16>, vector<4x256xf32> -> vector<4x256xf32>
    %86 = arith.maximumf %77, %85 : vector<4x256xf32>
    %cst_40 = arith.constant dense<0.000000e+00> : vector<4x256xf32>
    %87 = tpu.matmul %84, %15, %cst_40 {dimension_numbers = #tpu.dot_dimension_numbers<[1], [0], [0], [1], [0, 0, 1, 1], [], []>} : vector<4x1920xbf16>, vector<1920x256xbf16>, vector<4x256xf32> -> vector<4x256xf32>
    %88 = arith.maximumf %86, %87 : vector<4x256xf32>
    %c0_41 = arith.constant 0 : index
    %c0_42 = arith.constant 0 : index
    %89 = vector.load %arg5[%c0_41, %c0_42] : memref<1x256xf32, #tpu.memory_space<vmem>>, vector<1x256xf32>
    %90 = vector.broadcast %89 : vector<1x256xf32> to vector<4x256xf32>
    %91 = arith.addf %88, %90 : vector<4x256xf32>
    %cst_43 = arith.constant 0.000000e+00 : f32
    %92 = vector.broadcast %cst_43 : f32 to vector<4x256xf32>
    %93 = arith.maximumf %91, %92 : vector<4x256xf32>
    %c0_44 = arith.constant 0 : index
    %c0_45 = arith.constant 0 : index
    %c0_46 = arith.constant 0 : index
    %94 = vector.load %arg6[%c0_44, %c0_45, %c0_46] : memref<1x4x256xf32, #tpu.memory_space<vmem>>, vector<1x4x256xf32>
    %95 = vector.shape_cast %94 : vector<1x4x256xf32> to vector<4x256xf32>
    %96 = vector.shape_cast %93 : vector<4x256xf32> to vector<1x4x256xf32>
    tpu.vector_store %arg6[%c0_44, %c0_45, %c0_46], %96 {strides = array<i32>} : memref<1x4x256xf32, #tpu.memory_space<vmem>>, vector<1x4x256xf32>,
    return
  }
  func.func @transform_0(%arg0: i32) -> (i32, i32, i32, i32) {
    %c0_i32 = arith.constant 0 : i32
    %c0_i32_0 = arith.constant 0 : i32
    %c0_i32_1 = arith.constant 0 : i32
    %c0_i32_2 = arith.constant 0 : i32
    return %arg0, %c0_i32, %c0_i32_0, %c0_i32_1 : i32, i32, i32, i32
  }
  func.func @transform_1(%arg0: i32) -> (i32, i32, i32) {
    %c0_i32 = arith.constant 0 : i32
    %c0_i32_0 = arith.constant 0 : i32
    %c0_i32_1 = arith.constant 0 : i32
    %c0_i32_2 = arith.constant 0 : i32
    return %c0_i32, %c0_i32_0, %c0_i32_1 : i32, i32, i32
  }
  func.func @transform_2(%arg0: i32) -> (i32, i32, i32) {
    %c0_i32 = arith.constant 0 : i32
    %c0_i32_0 = arith.constant 0 : i32
    %c0_i32_1 = arith.constant 0 : i32
    %c0_i32_2 = arith.constant 0 : i32
    return %c0_i32, %c0_i32_0, %c0_i32_1 : i32, i32, i32
  }
  func.func @transform_3(%arg0: i32) -> (i32, i32) {
    %c0_i32 = arith.constant 0 : i32
    %c0_i32_0 = arith.constant 0 : i32
    %c0_i32_1 = arith.constant 0 : i32
    return %c0_i32, %c0_i32_0 : i32, i32
  }
  func.func @transform_4(%arg0: i32) -> (i32, i32) {
    %c0_i32 = arith.constant 0 : i32
    %c0_i32_0 = arith.constant 0 : i32
    %c0_i32_1 = arith.constant 0 : i32
    return %c0_i32, %c0_i32_0 : i32, i32
  }
  func.func @transform_5(%arg0: i32) -> (i32, i32, i32) {
    %c0_i32 = arith.constant 0 : i32
    %c0_i32_0 = arith.constant 0 : i32
    %c0_i32_1 = arith.constant 0 : i32
    return %arg0, %c0_i32, %c0_i32_0 : i32, i32, i32
  }
}

</mosaic_0001>

<llo_original>
// kernel: tile.13
$region0: #{tile.13}
  #allocation0 [shape = 's32[1]{0}', space=sflag, size = 0x4, scoped, tag = 'scoped memory for tile.13']
  %s0 = inlined_call_operand.vmem [shape: f32[32], index: 0, kind: input, shape index: {}]
  %s1 = inlined_call_operand.vmem [shape: f32[12,32], index: 1, kind: output, shape index: {}]
  // Predicated region
  $region2: #{tile.13} parent=0 // pred_check
    _
  $region3: #{tile.13} parent=0 // pred_check_branch
    %3 = sbr.rel (0) target = $region5
  $region4: #{tile.13} parent=0 // pred_region
    _
  $region5: #{tile.13} parent=0 // pred_fallthru
    _
  %v4 = vld [vmem:[%s0] ss:$0 sm:$0xff]
  %5 = vst [vmem:[%s1] sm:$0xff] %v4
  %s6 = scalar_lea.vmem %s1, 8
  %7 = vst [vmem:[%s6] sm:$0xff] %v4

// kernel: tile.14
$region0: #{tile.14}
  %s0 = inlined_call_operand.vmem [shape: f32[12,32], index: 0, kind: input, shape index: {}]
  %s1 = inlined_call_operand.vmem [shape: f32[1,384], index: 1, kind: output, shape index: {}]
  $region1: #{tile.14} parent=0
    #allocation0 [shape = 'u8[12288]{0}', space=vmem, size = 0x3000, scoped, tag = 'scoped mem for output reshape']
    %v2 = vld [vmem:[%s0] ss:$4 sm:$0x7]
    %vm3 = vcmask 261120
    %4 = vst.msk [vmem:[#allocation0] ss:$8 sm:$0x7] %vm3, %v2
    %s5 = scalar_lea.vmem %s0, 3
    %v6 = vld [vmem:[%s5] ss:$4 sm:$0x7]
    %7 = vrot.lane.b32.xlu0 %v6, 96
    %v8 = vpop.permute.xlu0 %7
    %vm9 = vcmask 1048320
    %10 = vst.msk [vmem:[#allocation0] ss:$8 sm:$0x7] %vm9, %v8
    %s11 = scalar_lea.vmem %s0, 2
    %v12 = vld [vmem:[%s11] ss:$4 sm:$0x7]
    %13 = vrot.lane.b32.xlu0 %v12, 64
    %v14 = vpop.permute.xlu0 %13
    %vm15 = vcmask 785920
    %16 = vst.msk [vmem:[#allocation0] ss:$8 sm:$0x7] %vm15, %v14
    %s17 = scalar_lea.vmem %s0, 1
    %v18 = vld [vmem:[%s17] ss:$4 sm:$0x7]
    %19 = vrot.lane.b32.xlu0 %v18, 32
    %v20 = vpop.permute.xlu0 %19
    %vm21 = vcmask 523520
    %22 = vst.msk [vmem:[#allocation0] ss:$8 sm:$0x7] %vm21, %v20
    %s24 = sshllo.u32 0, 1
    %v26 = vld [vmem:[#allocation0] sm:%s24]
    %s27 = sshllo.u32 0, 1
    %28 = vst [vmem:[%s1] sm:%s27] %v26
    %s29 = scalar_lea.vmem [#allocation0], 8
    %v30 = vld [vmem:[%s29] sm:%s24]
    %s31 = sshllo.u32 0, 1
    %s32 = scalar_lea.vmem %s1, 1
    %33 = vst [vmem:[%s32] sm:%s31] %v30
    %s34 = scalar_lea.vmem [#allocation0], 16
    %v35 = vld [vmem:[%s34] sm:%s24]
    %s36 = sshllo.u32 0, 1
    %s37 = smul.addr 1, 2
    %s38 = scalar_lea.vmem %s1, %s37
    %39 = vst [vmem:[%s38] sm:%s36] %v35

// kernel: tile.18
$region0: #{tile.18}
  #allocation0 [shape = 's32[1]{0}', space=sflag, size = 0x4, scoped, tag = 'scoped memory for tile.18']
  %s0 = inlined_call_operand.vmem [shape: f32[64], index: 0, kind: input, shape index: {}]
  %s1 = inlined_call_operand.vmem [shape: f32[4,64], index: 1, kind: output, shape index: {}]
  // Predicated region
  $region2: #{tile.18} parent=0 // pred_check
    _
  $region3: #{tile.18} parent=0 // pred_check_branch
    %3 = sbr.rel (0) target = $region5
  $region4: #{tile.18} parent=0 // pred_region
    _
  $region5: #{tile.18} parent=0 // pred_fallthru
    _
  %v4 = vld [vmem:[%s0] ss:$0 sm:$0xff]
  %5 = vst [vmem:[%s1] sm:$0xf] %v4

// kernel: tile.19
$region0: #{tile.19}
  %s0 = inlined_call_operand.vmem [shape: f32[4,64], index: 0, kind: input, shape index: {}]
  %s1 = inlined_call_operand.vmem [shape: f32[1,256], index: 1, kind: output, shape index: {}]
  $region1: #{tile.19} parent=0
    #allocation0 [shape = 'u8[8192]{0}', space=vmem, size = 0x2000, scoped, tag = 'scoped mem for output reshape']
    #allocation1 [shape = 'u8[4096]{0}', space=vmem, size = 0x1000, scoped, tag = 'scoped mem for input reshape']
    %s3 = sshllo.u32 0, 4
    %v4 = vld [vmem:[%s0] sm:%s3]
    %5 = vst [vmem:[#allocation1] sm:%s3] %v4
    %s6 = smov 3
    %v7 = vld [vmem:[#allocation1] ss:$2 sm:%s6]
    %vm8 = vcmask 523264
    %9 = vst.msk [vmem:[#allocation0] ss:$8 sm:$0x3] %vm8, %v7
    %s10 = scalar_lea.vmem [#allocation1], 1
    %s11 = smov 3
    %v12 = vld [vmem:[%s10] ss:$2 sm:%s11]
    %13 = vrot.lane.b32.xlu0 %v12, 64
    %v14 = vpop.permute.xlu0 %13
    %vm15 = vcmask 1048064
    %16 = vst.msk [vmem:[#allocation0] ss:$8 sm:$0x3] %vm15, %v14
    %s18 = sshllo.u32 0, 1
    %v20 = vld [vmem:[#allocation0] sm:%s18]
    %s21 = sshllo.u32 0, 1
    %22 = vst [vmem:[%s1] sm:%s21] %v20
    %s23 = scalar_lea.vmem [#allocation0], 8
    %v24 = vld [vmem:[%s23] sm:%s18]
    %s25 = sshllo.u32 0, 1
    %s26 = scalar_lea.vmem %s1, 1
    %27 = vst [vmem:[%s26] sm:%s25] %v24

// kernel: simnet_forward.1
$region0: #{simnet_forward.1}
  #allocation0 [shape = 'u32[]', space=smem, size = 0x4, offset = 0x4, fixed_abs, tag = 'smem constant byte address 0x4 - core index']
  #allocation1 [shape = 'u32[144,128]{1,0:T(1,128)}', space=vmem, size = 0x12000, scoped, tag = 'internal scratch']
  %s0 = inlined_call_operand.vmem [shape: f32[2,4,7,128], index: 0, kind: input, shape index: {}]
  %s1 = inlined_call_operand.vmem [shape: bf16[2,640,384], index: 1, kind: input, shape index: {}]
  %s2 = inlined_call_operand.vmem [shape: bf16[2,1920,256], index: 2, kind: input, shape index: {}]
  %s3 = inlined_call_operand.vmem [shape: f32[1,384], index: 3, kind: input, shape index: {}]
  %s4 = inlined_call_operand.vmem [shape: f32[1,256], index: 4, kind: input, shape index: {}]
  %s5 = inlined_call_operand.vmem [shape: f32[2,4,256], index: 5, kind: output, shape index: {}]
  %s6 = sld [smem:[#allocation0]]
  $region53: #{simnet_forward.1} parent=0
    _
  %s8 = ssub.s32 1, %s6
  %s9 = scalar_select 0, %s8, %s6
  loop: start=0, step=1, limit=4
  $region2: #{simnet_forward.1} parent=0 // loop_pre_header
    _
  $region3: #{simnet_forward.1} parent=0 // loop_header
    %s11 = sphi 0, %s15
    %p12 = scmp.ge.s32.totalorder %s11, 4
    %s21 = sphi 0, %s23
    %s24 = sphi 0, %s21
    %s25 = sphi 0, %s24
    %s41 = sphi 0, %s25
    %s45 = sphi 0, %s45
    %s47 = sphi 0, %s45
    %s48 = sphi 0, %s47
    %s62 = sphi 0, %s48
    %s66 = sphi 0, %s66
    %s68 = sphi 0, %s66
    %s69 = sphi 0, %s68
    %s83 = sphi 0, %s69
    %s87 = sphi 0, %s87
    %s89 = sphi 0, %s87
    %s90 = sphi 0, %s89
    %s104 = sphi 0, %s90
    %s108 = sphi 0, %s108
    %s110 = sphi 0, %s108
    %s111 = sphi 0, %s110
    %s125 = sphi 0, %s111
    %s131 = sphi 0, %s133
    %s134 = sphi 0, %s131
    %s135 = sphi 0, %s134
    %s151 = sphi 0, %s135
  $region4: #{simnet_forward.1} parent=0 // loop_header_branch
    %14 = sbr.rel (%p12) target = $region8
  $region5: #{simnet_forward.1} parent=0 // loop_body
    %s16 = ssub.s32 %s11, 1
    %s17 = ssub.s32 %s11, 2
    %s18 = sadd.s32 %s11, 1
    %s19 = ssub.s32 %s11, %s18
    %p20 = scmp.eq.s32.totalorder %s19, 0
    %s22 = sadd.s32 %s21, 1
    %s23 = scalar_select %p20, %s21, %s22
    %p26 = pneg %p20
    %p27 = scmp.eq.s32.totalorder %s11, 1
    %p28 = por %p26, %p27
    %p29 = scmp.ne.s32.totalorder %s21, %s24
    %p30 = scmp.eq.s32.totalorder %s11, 0
    %p31 = por %p29, %p30
    %p32 = scmp.ne.s32.totalorder %s21, %s24
    %p33 = scmp.eq.s32.totalorder %s16, 1
    %p34 = por %p32, %p33
    %p35 = scmp.ne.s32.totalorder %s24, %s25
    %p36 = scmp.eq.s32.totalorder %s16, 0
    %p37 = por %p35, %p36
    %p38 = scmp.ne.s32.totalorder %s24, %s25
    %p39 = scmp.eq.s32.totalorder %s17, 1
    %p40 = por %p38, %p39
    %p42 = scmp.ne.s32.totalorder %s25, %s41
    %p43 = scmp.eq.s32.totalorder %s17, 0
    %p44 = por %p42, %p43
    %s46 = sadd.s32 %s45, 1
    %p49 = scmp.eq.s32.totalorder %s11, 1
    %p50 = scmp.ne.s32.totalorder %s45, %s47
    %p51 = scmp.eq.s32.totalorder %s11, 0
    %p52 = por %p50, %p51
    %p53 = scmp.ne.s32.totalorder %s45, %s47
    %p54 = scmp.eq.s32.totalorder %s16, 1
    %p55 = por %p53, %p54
    %p56 = scmp.ne.s32.totalorder %s47, %s48
    %p57 = scmp.eq.s32.totalorder %s16, 0
    %p58 = por %p56, %p57
    %p59 = scmp.ne.s32.totalorder %s47, %s48
    %p60 = scmp.eq.s32.totalorder %s17, 1
    %p61 = por %p59, %p60
    %p63 = scmp.ne.s32.totalorder %s48, %s62
    %p64 = scmp.eq.s32.totalorder %s17, 0
    %p65 = por %p63, %p64
    %s67 = sadd.s32 %s66, 1
    %p70 = scmp.eq.s32.totalorder %s11, 1
    %p71 = scmp.ne.s32.totalorder %s66, %s68
    %p72 = scmp.eq.s32.totalorder %s11, 0
    %p73 = por %p71, %p72
    %p74 = scmp.ne.s32.totalorder %s66, %s68
    %p75 = scmp.eq.s32.totalorder %s16, 1
    %p76 = por %p74, %p75
    %p77 = scmp.ne.s32.totalorder %s68, %s69
    %p78 = scmp.eq.s32.totalorder %s16, 0
    %p79 = por %p77, %p78
    %p80 = scmp.ne.s32.totalorder %s68, %s69
    %p81 = scmp.eq.s32.totalorder %s17, 1
    %p82 = por %p80, %p81
    %p84 = scmp.ne.s32.totalorder %s69, %s83
    %p85 = scmp.eq.s32.totalorder %s17, 0
    %p86 = por %p84, %p85
    %s88 = sadd.s32 %s87, 1
    %p91 = scmp.eq.s32.totalorder %s11, 1
    %p92 = scmp.ne.s32.totalorder %s87, %s89
    %p93 = scmp.eq.s32.totalorder %s11, 0
    %p94 = por %p92, %p93
    %p95 = scmp.ne.s32.totalorder %s87, %s89
    %p96 = scmp.eq.s32.totalorder %s16, 1
    %p97 = por %p95, %p96
    %p98 = scmp.ne.s32.totalorder %s89, %s90
    %p99 = scmp.eq.s32.totalorder %s16, 0
    %p100 = por %p98, %p99
    %p101 = scmp.ne.s32.totalorder %s89, %s90
    %p102 = scmp.eq.s32.totalorder %s17, 1
    %p103 = por %p101, %p102
    %p105 = scmp.ne.s32.totalorder %s90, %s104
    %p106 = scmp.eq.s32.totalorder %s17, 0
    %p107 = por %p105, %p106
    %s109 = sadd.s32 %s108, 1
    %p112 = scmp.eq.s32.totalorder %s11, 1
    %p113 = scmp.ne.s32.totalorder %s108, %s110
    %p114 = scmp.eq.s32.totalorder %s11, 0
    %p115 = por %p113, %p114
    %p116 = scmp.ne.s32.totalorder %s108, %s110
    %p117 = scmp.eq.s32.totalorder %s16, 1
    %p118 = por %p116, %p117
    %p119 = scmp.ne.s32.totalorder %s110, %s111
    %p120 = scmp.eq.s32.totalorder %s16, 0
    %p121 = por %p119, %p120
    %p122 = scmp.ne.s32.totalorder %s110, %s111
    %p123 = scmp.eq.s32.totalorder %s17, 1
    %p124 = por %p122, %p123
    %p126 = scmp.ne.s32.totalorder %s111, %s125
    %p127 = scmp.eq.s32.totalorder %s17, 0
    %p128 = por %p126, %p127
    %s129 = ssub.s32 %s11, %s18
    %p130 = scmp.eq.s32.totalorder %s129, 0
    %s132 = sadd.s32 %s131, 1
    %s133 = scalar_select %p130, %s131, %s132
    %p136 = pneg %p130
    %p137 = scmp.eq.s32.totalorder %s11, 1
    %p138 = por %p136, %p137
    %p139 = scmp.ne.s32.totalorder %s131, %s134
    %p140 = scmp.eq.s32.totalorder %s11, 0
    %p141 = por %p139, %p140
    %p142 = scmp.ne.s32.totalorder %s131, %s134
    %p143 = scmp.eq.s32.totalorder %s16, 1
    %p144 = por %p142, %p143
    %p145 = scmp.ne.s32.totalorder %s134, %s135
    %p146 = scmp.eq.s32.totalorder %s16, 0
    %p147 = por %p145, %p146
    %p148 = scmp.ne.s32.totalorder %s134, %s135
    %p149 = scmp.eq.s32.totalorder %s17, 1
    %p150 = por %p148, %p149
    %p152 = scmp.ne.s32.totalorder %s135, %s151
    %p153 = scmp.eq.s32.totalorder %s17, 0
    %p154 = por %p152, %p153
    %p155 = scmp.le.s32.totalorder 1, %s11
    %p156 = scmp.lt.s32.totalorder %s11, 3
    %p157 = pnand %p155, %p156
    %p158 = pneg %p157
    // Predicated region
    $region9: #{simnet_forward.1} parent=5 // pred_check
      _
    $region10: #{simnet_forward.1} parent=5 // pred_check_branch
      %160 = sbr.rel (%p157) target = $region12
    $region11: #{simnet_forward.1} parent=5 // pred_region
      %s161 = ssub.s32 %s11, 1
      // Predicated region
      $region13: #{simnet_forward.1} parent=11 // pred_check
        %p162 = pneg %p58
      $region14: #{simnet_forward.1} parent=11 // pred_check_branch
        %164 = sbr.rel (%p162) target = $region16
      $region15: #{simnet_forward.1} parent=11 // pred_region
        _
      $region16: #{simnet_forward.1} parent=11 // pred_fallthru
        _
      // Predicated region
      $region17: #{simnet_forward.1} parent=11 // pred_check
        %p165 = pneg %p79
      $region18: #{simnet_forward.1} parent=11 // pred_check_branch
        %167 = sbr.rel (%p165) target = $region20
      $region19: #{simnet_forward.1} parent=11 // pred_region
        _
      $region20: #{simnet_forward.1} parent=11 // pred_fallthru
        _
      // Predicated region
      $region21: #{simnet_forward.1} parent=11 // pred_check
        %p168 = pneg %p100
      $region22: #{simnet_forward.1} parent=11 // pred_check_branch
        %170 = sbr.rel (%p168) target = $region24
      $region23: #{simnet_forward.1} parent=11 // pred_region
        _
      $region24: #{simnet_forward.1} parent=11 // pred_fallthru
        _
      // Predicated region
      $region25: #{simnet_forward.1} parent=11 // pred_check
        %p171 = pneg %p121
      $region26: #{simnet_forward.1} parent=11 // pred_check_branch
        %173 = sbr.rel (%p171) target = $region28
      $region27: #{simnet_forward.1} parent=11 // pred_region
        _
      $region28: #{simnet_forward.1} parent=11 // pred_fallthru
        _
    $region12: #{simnet_forward.1} parent=5 // pred_fallthru
      _
    %p174 = scmp.lt.s32.totalorder %s11, 2
    // Predicated region
    $region29: #{simnet_forward.1} parent=5 // pred_check
      %p175 = pneg %p174
    $region30: #{simnet_forward.1} parent=5 // pred_check_branch
      %177 = sbr.rel (%p175) target = $region32
    $region31: #{simnet_forward.1} parent=5 // pred_region
      // Predicated region
      $region33: #{simnet_forward.1} parent=31 // pred_check
        %p178 = pneg %p31
      $region34: #{simnet_forward.1} parent=31 // pred_check_branch
        %180 = sbr.rel (%p178) target = $region36
      $region35: #{simnet_forward.1} parent=31 // pred_region
        %p181 = scmp.lt.s32.totalorder %s11, 1
        %s182 = scalar_select %p181, %s11, 1
        %s183 = smul.addr %s182, 4
        %s184 = smul.addr %s183, 8
        %s185 = scalar_lea.vmem %s0, %s184
      $region36: #{simnet_forward.1} parent=31 // pred_fallthru
        _
    $region32: #{simnet_forward.1} parent=5 // pred_fallthru
      _
    %p186 = scmp.le.s32.totalorder 1, %s11
    %p187 = scmp.lt.s32.totalorder %s11, 3
    %p188 = pnand %p186, %p187
    %p189 = pneg %p188
    // Predicated region
    $region37: #{simnet_forward.1} parent=5 // pred_check
      _
    $region38: #{simnet_forward.1} parent=5 // pred_check_branch
      %191 = sbr.rel (%p188) target = $region40
    $region39: #{simnet_forward.1} parent=5 // pred_region
      %s192 = ssub.s32 %s11, 1
      %p193 = scmp.lt.s32.totalorder %s16, 1
      %s194 = scalar_select %p193, %s16, 1
      %s195 = smul.addr %s194, 4
      %s196 = smul.addr %s195, 8
      %s197 = scalar_lea.vmem %s0, %s196
      %p198 = pneg %p37
      %p199 = pneg %p34
      %p200 = pneg %p58
      %p201 = pneg %p55
      %p202 = pneg %p79
      %p203 = pneg %p76
      %p204 = pneg %p100
      %p205 = pneg %p97
      %p206 = pneg %p121
      %p207 = pneg %p118
      %p208 = pneg %p147
      %p209 = pneg %p144
      %p210 = scmp.lt.s32.totalorder %s16, 1
      %s211 = scalar_select %p210, %s16, 1
      %s212 = smul.addr %s211, 2
      %s213 = smul.addr %s212, 4
      %s214 = scalar_lea.vmem %s5, %s213
      %p215 = scmp.lt.s32.totalorder %s16, 1
      %s216 = scalar_select %p215, %s16, 1
      %s217 = smul.addr %s216, 4
      %s218 = smul.addr %s217, 8
      %s219 = scalar_lea.vmem %s0, %s218
      %p220 = scmp.lt.s32.totalorder %s16, 1
      %s221 = scalar_select %p220, %s16, 1
      %s222 = smul.addr %s221, 2
      %s223 = smul.addr %s222, 4
      %s224 = scalar_lea.vmem %s5, %s223
      %v226 = vld [vmem:[%s219] sm:$0x7f]
      %s227 = scalar_lea.vmem %s219, 8
      %v228 = vld [vmem:[%s227] sm:$0x7f]
      %s229 = scalar_lea.vmem %s219, 16
      %v230 = vld [vmem:[%s229] sm:$0x7f]
      %s231 = scalar_lea.vmem %s219, 24
      %v232 = vld [vmem:[%s231] sm:$0x7f]
      %v233 = vld [vmem:[%s1] sm:$0xff]
      %v234 = vld [vmem:[%s1 + $0x8] sm:$0xf]
      %v235 = vld [vmem:[%s1 + $0xc] sm:$0xff]
      %v236 = vld [vmem:[%s1 + $0x14] sm:$0xf]
      %v237 = vld [vmem:[%s1 + $0x18] sm:$0xff]
      %v238 = vld [vmem:[%s1 + $0x20] sm:$0xf]
      %v239 = vld [vmem:[%s1 + $0x24] sm:$0xff]
      %v240 = vld [vmem:[%s1 + $0x2c] sm:$0xf]
      %v241 = vld [vmem:[%s1 + $0x30] sm:$0xff]
      %v242 = vld [vmem:[%s1 + $0x38] sm:$0xf]
      %v243 = vld [vmem:[%s1 + $0x3c] sm:$0xff]
      %v244 = vld [vmem:[%s1 + $0x44] sm:$0xf]
      %v245 = vld [vmem:[%s1 + $0x48] sm:$0xff]
      %v246 = vld [vmem:[%s1 + $0x50] sm:$0xf]
      %v247 = vld [vmem:[%s1 + $0x54] sm:$0xff]
      %v248 = vld [vmem:[%s1 + $0x5c] sm:$0xf]
      %v249 = vld [vmem:[%s1 + $0x60] sm:$0xff]
      %v250 = vld [vmem:[%s1 + $0x68] sm:$0xf]
      %v251 = vld [vmem:[%s1 + $0x6c] sm:$0xff]
      %v252 = vld [vmem:[%s1 + $0x74] sm:$0xf]
      %v253 = vld [vmem:[%s1 + $0x78] sm:$0xff]
      %v254 = vld [vmem:[%s1 + $0x80] sm:$0xf]
      %v255 = vld [vmem:[%s1 + $0x84] sm:$0xff]
      %v256 = vld [vmem:[%s1 + $0x8c] sm:$0xf]
      %v257 = vld [vmem:[%s1 + $0x90] sm:$0xff]
      %v258 = vld [vmem:[%s1 + $0x98] sm:$0xf]
      %v259 = vld [vmem:[%s1 + $0x9c] sm:$0xff]
      %v260 = vld [vmem:[%s1 + $0xa4] sm:$0xf]
      %v261 = vld [vmem:[%s1 + $0xa8] sm:$0xff]
      %v262 = vld [vmem:[%s1 + $0xb0] sm:$0xf]
      %v263 = vld [vmem:[%s1 + $0xb4] sm:$0xff]
      %v264 = vld [vmem:[%s1 + $0xbc] sm:$0xf]
      %v265 = vld [vmem:[%s1 + $0xc0] sm:$0xff]
      %v266 = vld [vmem:[%s1 + $0xc8] sm:$0xf]
      %v267 = vld [vmem:[%s1 + $0xcc] sm:$0xff]
      %v268 = vld [vmem:[%s1 + $0xd4] sm:$0xf]
      %v269 = vld [vmem:[%s1 + $0xd8] sm:$0xff]
      %v270 = vld [vmem:[%s1 + $0xe0] sm:$0xf]
      %v271 = vld [vmem:[%s1 + $0xe4] sm:$0xff]
      %v272 = vld [vmem:[%s1 + $0xec] sm:$0xf]
      %v273 = vld [vmem:[%s1 + $0xf0] sm:$0xff]
      %v274 = vld [vmem:[%s1 + $0xf8] sm:$0xf]
      %v275 = vld [vmem:[%s1 + $0xfc] sm:$0xff]
      %v276 = vld [vmem:[%s1 + $0x104] sm:$0xf]
      %v277 = vld [vmem:[%s1 + $0x108] sm:$0xff]
      %v278 = vld [vmem:[%s1 + $0x110] sm:$0xf]
      %v279 = vld [vmem:[%s1 + $0x114] sm:$0xff]
      %v280 = vld [vmem:[%s1 + $0x11c] sm:$0xf]
      %v281 = vld [vmem:[%s1 + $0x120] sm:$0xff]
      %v282 = vld [vmem:[%s1 + $0x128] sm:$0xf]
      %v283 = vld [vmem:[%s1 + $0x12c] sm:$0xff]
      %v284 = vld [vmem:[%s1 + $0x134] sm:$0xf]
      %v285 = vld [vmem:[%s1 + $0x138] sm:$0xff]
      %v286 = vld [vmem:[%s1 + $0x140] sm:$0xf]
      %v287 = vld [vmem:[%s1 + $0x144] sm:$0xff]
      %v288 = vld [vmem:[%s1 + $0x14c] sm:$0xf]
      %v289 = vld [vmem:[%s1 + $0x150] sm:$0xff]
      %v290 = vld [vmem:[%s1 + $0x158] sm:$0xf]
      %v291 = vld [vmem:[%s1 + $0x15c] sm:$0xff]
      %v292 = vld [vmem:[%s1 + $0x164] sm:$0xf]
      %v293 = vld [vmem:[%s1 + $0x168] sm:$0xff]
      %v294 = vld [vmem:[%s1 + $0x170] sm:$0xf]
      %v295 = vld [vmem:[%s1 + $0x174] sm:$0xff]
      %v296 = vld [vmem:[%s1 + $0x17c] sm:$0xf]
      %v297 = vld [vmem:[%s1 + $0x180] sm:$0xff]
      %v298 = vld [vmem:[%s1 + $0x188] sm:$0xf]
      %v299 = vld [vmem:[%s1 + $0x18c] sm:$0xff]
      %v300 = vld [vmem:[%s1 + $0x194] sm:$0xf]
      %v301 = vld [vmem:[%s1 + $0x198] sm:$0xff]
      %v302 = vld [vmem:[%s1 + $0x1a0] sm:$0xf]
      %v303 = vld [vmem:[%s1 + $0x1a4] sm:$0xff]
      %v304 = vld [vmem:[%s1 + $0x1ac] sm:$0xf]
      %v305 = vld [vmem:[%s1 + $0x1b0] sm:$0xff]
      %v306 = vld [vmem:[%s1 + $0x1b8] sm:$0xf]
      %v307 = vld [vmem:[%s1 + $0x1bc] sm:$0xff]
      %v308 = vld [vmem:[%s1 + $0x1c4] sm:$0xf]
      %v309 = vld [vmem:[%s1 + $0x1c8] sm:$0xff]
      %v310 = vld [vmem:[%s1 + $0x1d0] sm:$0xf]
      %v311 = vld [vmem:[%s1 + $0x1d4] sm:$0xff]
      %v312 = vld [vmem:[%s1 + $0x1dc] sm:$0xf]
      %v313 = vld [vmem:[%s1 + $0x1e0] sm:$0xff]
      %v314 = vld [vmem:[%s1 + $0x1e8] sm:$0xf]
      %v315 = vld [vmem:[%s1 + $0x1ec] sm:$0xff]
      %v316 = vld [vmem:[%s1 + $0x1f4] sm:$0xf]
      %v317 = vld [vmem:[%s1 + $0x1f8] sm:$0xff]
      %v318 = vld [vmem:[%s1 + $0x200] sm:$0xf]
      %v319 = vld [vmem:[%s1 + $0x204] sm:$0xff]
      %v320 = vld [vmem:[%s1 + $0x20c] sm:$0xf]
      %v321 = vld [vmem:[%s1 + $0x210] sm:$0xff]
      %v322 = vld [vmem:[%s1 + $0x218] sm:$0xf]
      %v323 = vld [vmem:[%s1 + $0x21c] sm:$0xff]
      %v324 = vld [vmem:[%s1 + $0x224] sm:$0xf]
      %v325 = vld [vmem:[%s1 + $0x228] sm:$0xff]
      %v326 = vld [vmem:[%s1 + $0x230] sm:$0xf]
      %v327 = vld [vmem:[%s1 + $0x234] sm:$0xff]
      %v328 = vld [vmem:[%s1 + $0x23c] sm:$0xf]
      %v329 = vld [vmem:[%s1 + $0x240] sm:$0xff]
      %v330 = vld [vmem:[%s1 + $0x248] sm:$0xf]
      %v331 = vld [vmem:[%s1 + $0x24c] sm:$0xff]
      %v332 = vld [vmem:[%s1 + $0x254] sm:$0xf]
      %v333 = vld [vmem:[%s1 + $0x258] sm:$0xff]
      %v334 = vld [vmem:[%s1 + $0x260] sm:$0xf]
      %v335 = vld [vmem:[%s1 + $0x264] sm:$0xff]
      %v336 = vld [vmem:[%s1 + $0x26c] sm:$0xf]
      %v337 = vld [vmem:[%s1 + $0x270] sm:$0xff]
      %v338 = vld [vmem:[%s1 + $0x278] sm:$0xf]
      %v339 = vld [vmem:[%s1 + $0x27c] sm:$0xff]
      %v340 = vld [vmem:[%s1 + $0x284] sm:$0xf]
      %v341 = vld [vmem:[%s1 + $0x288] sm:$0xff]
      %v342 = vld [vmem:[%s1 + $0x290] sm:$0xf]
      %v343 = vld [vmem:[%s1 + $0x294] sm:$0xff]
      %v344 = vld [vmem:[%s1 + $0x29c] sm:$0xf]
      %v345 = vld [vmem:[%s1 + $0x2a0] sm:$0xff]
      %v346 = vld [vmem:[%s1 + $0x2a8] sm:$0xf]
      %v347 = vld [vmem:[%s1 + $0x2ac] sm:$0xff]
      %v348 = vld [vmem:[%s1 + $0x2b4] sm:$0xf]
      %v349 = vld [vmem:[%s1 + $0x2b8] sm:$0xff]
      %v350 = vld [vmem:[%s1 + $0x2c0] sm:$0xf]
      %v351 = vld [vmem:[%s1 + $0x2c4] sm:$0xff]
      %v352 = vld [vmem:[%s1 + $0x2cc] sm:$0xf]
      %v353 = vld [vmem:[%s1 + $0x2d0] sm:$0xff]
      %v354 = vld [vmem:[%s1 + $0x2d8] sm:$0xf]
      %v355 = vld [vmem:[%s1 + $0x2dc] sm:$0xff]
      %v356 = vld [vmem:[%s1 + $0x2e4] sm:$0xf]
      %v357 = vld [vmem:[%s1 + $0x2e8] sm:$0xff]
      %v358 = vld [vmem:[%s1 + $0x2f0] sm:$0xf]
      %v359 = vld [vmem:[%s1 + $0x2f4] sm:$0xff]
      %v360 = vld [vmem:[%s1 + $0x2fc] sm:$0xf]
      %v361 = vld [vmem:[%s1 + $0x300] sm:$0xff]
      %v362 = vld [vmem:[%s1 + $0x308] sm:$0xf]
      %v363 = vld [vmem:[%s1 + $0x30c] sm:$0xff]
      %v364 = vld [vmem:[%s1 + $0x314] sm:$0xf]
      %v365 = vld [vmem:[%s1 + $0x318] sm:$0xff]
      %v366 = vld [vmem:[%s1 + $0x320] sm:$0xf]
      %v367 = vld [vmem:[%s1 + $0x324] sm:$0xff]
      %v368 = vld [vmem:[%s1 + $0x32c] sm:$0xf]
      %v369 = vld [vmem:[%s1 + $0x330] sm:$0xff]
      %v370 = vld [vmem:[%s1 + $0x338] sm:$0xf]
      %v371 = vld [vmem:[%s1 + $0x33c] sm:$0xff]
      %v372 = vld [vmem:[%s1 + $0x344] sm:$0xf]
      %v373 = vld [vmem:[%s1 + $0x348] sm:$0xff]
      %v374 = vld [vmem:[%s1 + $0x350] sm:$0xf]
      %v375 = vld [vmem:[%s1 + $0x354] sm:$0xff]
      %v376 = vld [vmem:[%s1 + $0x35c] sm:$0xf]
      %v377 = vld [vmem:[%s1 + $0x360] sm:$0xff]
      %v378 = vld [vmem:[%s1 + $0x368] sm:$0xf]
      %v379 = vld [vmem:[%s1 + $0x36c] sm:$0xff]
      %v380 = vld [vmem:[%s1 + $0x374] sm:$0xf]
      %v381 = vld [vmem:[%s1 + $0x378] sm:$0xff]
      %v382 = vld [vmem:[%s1 + $0x380] sm:$0xf]
      %v383 = vld [vmem:[%s1 + $0x384] sm:$0xff]
      %v384 = vld [vmem:[%s1 + $0x38c] sm:$0xf]
      %v385 = vld [vmem:[%s1 + $0x390] sm:$0xff]
      %v386 = vld [vmem:[%s1 + $0x398] sm:$0xf]
      %v387 = vld [vmem:[%s1 + $0x39c] sm:$0xff]
      %v388 = vld [vmem:[%s1 + $0x3a4] sm:$0xf]
      %v389 = vld [vmem:[%s1 + $0x3a8] sm:$0xff]
      %v390 = vld [vmem:[%s1 + $0x3b0] sm:$0xf]
      %v391 = vld [vmem:[%s1 + $0x3b4] sm:$0xff]
      %v392 = vld [vmem:[%s1 + $0x3bc] sm:$0xf]
      %s393 = scalar_lea.vmem %s1, 960
      %v394 = vld [vmem:[%s393] sm:$0xff]
      %v395 = vld [vmem:[%s393 + $0x8] sm:$0xf]
      %v396 = vld [vmem:[%s393 + $0xc] sm:$0xff]
      %v397 = vld [vmem:[%s393 + $0x14] sm:$0xf]
      %v398 = vld [vmem:[%s393 + $0x18] sm:$0xff]
      %v399 = vld [vmem:[%s393 + $0x20] sm:$0xf]
      %v400 = vld [vmem:[%s393 + $0x24] sm:$0xff]
      %v401 = vld [vmem:[%s393 + $0x2c] sm:$0xf]
      %v402 = vld [vmem:[%s393 + $0x30] sm:$0xff]
      %v403 = vld [vmem:[%s393 + $0x38] sm:$0xf]
      %v404 = vld [vmem:[%s393 + $0x3c] sm:$0xff]
      %v405 = vld [vmem:[%s393 + $0x44] sm:$0xf]
      %v406 = vld [vmem:[%s393 + $0x48] sm:$0xff]
      %v407 = vld [vmem:[%s393 + $0x50] sm:$0xf]
      %v408 = vld [vmem:[%s393 + $0x54] sm:$0xff]
      %v409 = vld [vmem:[%s393 + $0x5c] sm:$0xf]
      %v410 = vld [vmem:[%s393 + $0x60] sm:$0xff]
      %v411 = vld [vmem:[%s393 + $0x68] sm:$0xf]
      %v412 = vld [vmem:[%s393 + $0x6c] sm:$0xff]
      %v413 = vld [vmem:[%s393 + $0x74] sm:$0xf]
      %v414 = vld [vmem:[%s393 + $0x78] sm:$0xff]
      %v415 = vld [vmem:[%s393 + $0x80] sm:$0xf]
      %v416 = vld [vmem:[%s393 + $0x84] sm:$0xff]
      %v417 = vld [vmem:[%s393 + $0x8c] sm:$0xf]
      %v418 = vld [vmem:[%s393 + $0x90] sm:$0xff]
      %v419 = vld [vmem:[%s393 + $0x98] sm:$0xf]
      %v420 = vld [vmem:[%s393 + $0x9c] sm:$0xff]
      %v421 = vld [vmem:[%s393 + $0xa4] sm:$0xf]
      %v422 = vld [vmem:[%s393 + $0xa8] sm:$0xff]
      %v423 = vld [vmem:[%s393 + $0xb0] sm:$0xf]
      %v424 = vld [vmem:[%s393 + $0xb4] sm:$0xff]
      %v425 = vld [vmem:[%s393 + $0xbc] sm:$0xf]
      %v426 = vld [vmem:[%s393 + $0xc0] sm:$0xff]
      %v427 = vld [vmem:[%s393 + $0xc8] sm:$0xf]
      %v428 = vld [vmem:[%s393 + $0xcc] sm:$0xff]
      %v429 = vld [vmem:[%s393 + $0xd4] sm:$0xf]
      %v430 = vld [vmem:[%s393 + $0xd8] sm:$0xff]
      %v431 = vld [vmem:[%s393 + $0xe0] sm:$0xf]
      %v432 = vld [vmem:[%s393 + $0xe4] sm:$0xff]
      %v433 = vld [vmem:[%s393 + $0xec] sm:$0xf]
      %v434 = vld [vmem:[%s393 + $0xf0] sm:$0xff]
      %v435 = vld [vmem:[%s393 + $0xf8] sm:$0xf]
      %v436 = vld [vmem:[%s393 + $0xfc] sm:$0xff]
      %v437 = vld [vmem:[%s393 + $0x104] sm:$0xf]
      %v438 = vld [vmem:[%s393 + $0x108] sm:$0xff]
      %v439 = vld [vmem:[%s393 + $0x110] sm:$0xf]
      %v440 = vld [vmem:[%s393 + $0x114] sm:$0xff]
      %v441 = vld [vmem:[%s393 + $0x11c] sm:$0xf]
      %v442 = vld [vmem:[%s393 + $0x120] sm:$0xff]
      %v443 = vld [vmem:[%s393 + $0x128] sm:$0xf]
      %v444 = vld [vmem:[%s393 + $0x12c] sm:$0xff]
      %v445 = vld [vmem:[%s393 + $0x134] sm:$0xf]
      %v446 = vld [vmem:[%s393 + $0x138] sm:$0xff]
      %v447 = vld [vmem:[%s393 + $0x140] sm:$0xf]
      %v448 = vld [vmem:[%s393 + $0x144] sm:$0xff]
      %v449 = vld [vmem:[%s393 + $0x14c] sm:$0xf]
      %v450 = vld [vmem:[%s393 + $0x150] sm:$0xff]
      %v451 = vld [vmem:[%s393 + $0x158] sm:$0xf]
      %v452 = vld [vmem:[%s393 + $0x15c] sm:$0xff]
      %v453 = vld [vmem:[%s393 + $0x164] sm:$0xf]
      %v454 = vld [vmem:[%s393 + $0x168] sm:$0xff]
      %v455 = vld [vmem:[%s393 + $0x170] sm:$0xf]
      %v456 = vld [vmem:[%s393 + $0x174] sm:$0xff]
      %v457 = vld [vmem:[%s393 + $0x17c] sm:$0xf]
      %v458 = vld [vmem:[%s393 + $0x180] sm:$0xff]
      %v459 = vld [vmem:[%s393 + $0x188] sm:$0xf]
      %v460 = vld [vmem:[%s393 + $0x18c] sm:$0xff]
      %v461 = vld [vmem:[%s393 + $0x194] sm:$0xf]
      %v462 = vld [vmem:[%s393 + $0x198] sm:$0xff]
      %v463 = vld [vmem:[%s393 + $0x1a0] sm:$0xf]
      %v464 = vld [vmem:[%s393 + $0x1a4] sm:$0xff]
      %v465 = vld [vmem:[%s393 + $0x1ac] sm:$0xf]
      %v466 = vld [vmem:[%s393 + $0x1b0] sm:$0xff]
      %v467 = vld [vmem:[%s393 + $0x1b8] sm:$0xf]
      %v468 = vld [vmem:[%s393 + $0x1bc] sm:$0xff]
      %v469 = vld [vmem:[%s393 + $0x1c4] sm:$0xf]
      %v470 = vld [vmem:[%s393 + $0x1c8] sm:$0xff]
      %v471 = vld [vmem:[%s393 + $0x1d0] sm:$0xf]
      %v472 = vld [vmem:[%s393 + $0x1d4] sm:$0xff]
      %v473 = vld [vmem:[%s393 + $0x1dc] sm:$0xf]
      %v474 = vld [vmem:[%s393 + $0x1e0] sm:$0xff]
      %v475 = vld [vmem:[%s393 + $0x1e8] sm:$0xf]
      %v476 = vld [vmem:[%s393 + $0x1ec] sm:$0xff]
      %v477 = vld [vmem:[%s393 + $0x1f4] sm:$0xf]
      %v478 = vld [vmem:[%s393 + $0x1f8] sm:$0xff]
      %v479 = vld [vmem:[%s393 + $0x200] sm:$0xf]
      %v480 = vld [vmem:[%s393 + $0x204] sm:$0xff]
      %v481 = vld [vmem:[%s393 + $0x20c] sm:$0xf]
      %v482 = vld [vmem:[%s393 + $0x210] sm:$0xff]
      %v483 = vld [vmem:[%s393 + $0x218] sm:$0xf]
      %v484 = vld [vmem:[%s393 + $0x21c] sm:$0xff]
      %v485 = vld [vmem:[%s393 + $0x224] sm:$0xf]
      %v486 = vld [vmem:[%s393 + $0x228] sm:$0xff]
      %v487 = vld [vmem:[%s393 + $0x230] sm:$0xf]
      %v488 = vld [vmem:[%s393 + $0x234] sm:$0xff]
      %v489 = vld [vmem:[%s393 + $0x23c] sm:$0xf]
      %v490 = vld [vmem:[%s393 + $0x240] sm:$0xff]
      %v491 = vld [vmem:[%s393 + $0x248] sm:$0xf]
      %v492 = vld [vmem:[%s393 + $0x24c] sm:$0xff]
      %v493 = vld [vmem:[%s393 + $0x254] sm:$0xf]
      %v494 = vld [vmem:[%s393 + $0x258] sm:$0xff]
      %v495 = vld [vmem:[%s393 + $0x260] sm:$0xf]
      %v496 = vld [vmem:[%s393 + $0x264] sm:$0xff]
      %v497 = vld [vmem:[%s393 + $0x26c] sm:$0xf]
      %v498 = vld [vmem:[%s393 + $0x270] sm:$0xff]
      %v499 = vld [vmem:[%s393 + $0x278] sm:$0xf]
      %v500 = vld [vmem:[%s393 + $0x27c] sm:$0xff]
      %v501 = vld [vmem:[%s393 + $0x284] sm:$0xf]
      %v502 = vld [vmem:[%s393 + $0x288] sm:$0xff]
      %v503 = vld [vmem:[%s393 + $0x290] sm:$0xf]
      %v504 = vld [vmem:[%s393 + $0x294] sm:$0xff]
      %v505 = vld [vmem:[%s393 + $0x29c] sm:$0xf]
      %v506 = vld [vmem:[%s393 + $0x2a0] sm:$0xff]
      %v507 = vld [vmem:[%s393 + $0x2a8] sm:$0xf]
      %v508 = vld [vmem:[%s393 + $0x2ac] sm:$0xff]
      %v509 = vld [vmem:[%s393 + $0x2b4] sm:$0xf]
      %v510 = vld [vmem:[%s393 + $0x2b8] sm:$0xff]
      %v511 = vld [vmem:[%s393 + $0x2c0] sm:$0xf]
      %v512 = vld [vmem:[%s393 + $0x2c4] sm:$0xff]
      %v513 = vld [vmem:[%s393 + $0x2cc] sm:$0xf]
      %v514 = vld [vmem:[%s393 + $0x2d0] sm:$0xff]
      %v515 = vld [vmem:[%s393 + $0x2d8] sm:$0xf]
      %v516 = vld [vmem:[%s393 + $0x2dc] sm:$0xff]
      %v517 = vld [vmem:[%s393 + $0x2e4] sm:$0xf]
      %v518 = vld [vmem:[%s393 + $0x2e8] sm:$0xff]
      %v519 = vld [vmem:[%s393 + $0x2f0] sm:$0xf]
      %v520 = vld [vmem:[%s393 + $0x2f4] sm:$0xff]
      %v521 = vld [vmem:[%s393 + $0x2fc] sm:$0xf]
      %v522 = vld [vmem:[%s393 + $0x300] sm:$0xff]
      %v523 = vld [vmem:[%s393 + $0x308] sm:$0xf]
      %v524 = vld [vmem:[%s393 + $0x30c] sm:$0xff]
      %v525 = vld [vmem:[%s393 + $0x314] sm:$0xf]
      %v526 = vld [vmem:[%s393 + $0x318] sm:$0xff]
      %v527 = vld [vmem:[%s393 + $0x320] sm:$0xf]
      %v528 = vld [vmem:[%s393 + $0x324] sm:$0xff]
      %v529 = vld [vmem:[%s393 + $0x32c] sm:$0xf]
      %v530 = vld [vmem:[%s393 + $0x330] sm:$0xff]
      %v531 = vld [vmem:[%s393 + $0x338] sm:$0xf]
      %v532 = vld [vmem:[%s393 + $0x33c] sm:$0xff]
      %v533 = vld [vmem:[%s393 + $0x344] sm:$0xf]
      %v534 = vld [vmem:[%s393 + $0x348] sm:$0xff]
      %v535 = vld [vmem:[%s393 + $0x350] sm:$0xf]
      %v536 = vld [vmem:[%s393 + $0x354] sm:$0xff]
      %v537 = vld [vmem:[%s393 + $0x35c] sm:$0xf]
      %v538 = vld [vmem:[%s393 + $0x360] sm:$0xff]
      %v539 = vld [vmem:[%s393 + $0x368] sm:$0xf]
      %v540 = vld [vmem:[%s393 + $0x36c] sm:$0xff]
      %v541 = vld [vmem:[%s393 + $0x374] sm:$0xf]
      %v542 = vld [vmem:[%s393 + $0x378] sm:$0xff]
      %v543 = vld [vmem:[%s393 + $0x380] sm:$0xf]
      %v544 = vld [vmem:[%s393 + $0x384] sm:$0xff]
      %v545 = vld [vmem:[%s393 + $0x38c] sm:$0xf]
      %v546 = vld [vmem:[%s393 + $0x390] sm:$0xff]
      %v547 = vld [vmem:[%s393 + $0x398] sm:$0xf]
      %v548 = vld [vmem:[%s393 + $0x39c] sm:$0xff]
      %v549 = vld [vmem:[%s393 + $0x3a4] sm:$0xf]
      %v550 = vld [vmem:[%s393 + $0x3a8] sm:$0xff]
      %v551 = vld [vmem:[%s393 + $0x3b0] sm:$0xf]
      %v552 = vld [vmem:[%s393 + $0x3b4] sm:$0xff]
      %v553 = vld [vmem:[%s393 + $0x3bc] sm:$0xf]
      %v554 = vld [vmem:[%s2] sm:$0xff]
      %v555 = vld [vmem:[%s2 + $0x8] sm:$0xff]
      %v556 = vld [vmem:[%s2 + $0x10] sm:$0xff]
      %v557 = vld [vmem:[%s2 + $0x18] sm:$0xff]
      %v558 = vld [vmem:[%s2 + $0x20] sm:$0xff]
      %v559 = vld [vmem:[%s2 + $0x28] sm:$0xff]
      %v560 = vld [vmem:[%s2 + $0x30] sm:$0xff]
      %v561 = vld [vmem:[%s2 + $0x38] sm:$0xff]
      %v562 = vld [vmem:[%s2 + $0x40] sm:$0xff]
      %v563 = vld [vmem:[%s2 + $0x48] sm:$0xff]
      %v564 = vld [vmem:[%s2 + $0x50] sm:$0xff]
      %v565 = vld [vmem:[%s2 + $0x58] sm:$0xff]
      %v566 = vld [vmem:[%s2 + $0x60] sm:$0xff]
      %v567 = vld [vmem:[%s2 + $0x68] sm:$0xff]
      %v568 = vld [vmem:[%s2 + $0x70] sm:$0xff]
      %v569 = vld [vmem:[%s2 + $0x78] sm:$0xff]
      %v570 = vld [vmem:[%s2 + $0x80] sm:$0xff]
      %v571 = vld [vmem:[%s2 + $0x88] sm:$0xff]
      %v572 = vld [vmem:[%s2 + $0x90] sm:$0xff]
      %v573 = vld [vmem:[%s2 + $0x98] sm:$0xff]
      %v574 = vld [vmem:[%s2 + $0xa0] sm:$0xff]
      %v575 = vld [vmem:[%s2 + $0xa8] sm:$0xff]
      %v576 = vld [vmem:[%s2 + $0xb0] sm:$0xff]
      %v577 = vld [vmem:[%s2 + $0xb8] sm:$0xff]
      %v578 = vld [vmem:[%s2 + $0xc0] sm:$0xff]
      %v579 = vld [vmem:[%s2 + $0xc8] sm:$0xff]
      %v580 = vld [vmem:[%s2 + $0xd0] sm:$0xff]
      %v581 = vld [vmem:[%s2 + $0xd8] sm:$0xff]
      %v582 = vld [vmem:[%s2 + $0xe0] sm:$0xff]
      %v583 = vld [vmem:[%s2 + $0xe8] sm:$0xff]
      %v584 = vld [vmem:[%s2 + $0xf0] sm:$0xff]
      %v585 = vld [vmem:[%s2 + $0xf8] sm:$0xff]
      %v586 = vld [vmem:[%s2 + $0x100] sm:$0xff]
      %v587 = vld [vmem:[%s2 + $0x108] sm:$0xff]
      %v588 = vld [vmem:[%s2 + $0x110] sm:$0xff]
      %v589 = vld [vmem:[%s2 + $0x118] sm:$0xff]
      %v590 = vld [vmem:[%s2 + $0x120] sm:$0xff]
      %v591 = vld [vmem:[%s2 + $0x128] sm:$0xff]
      %v592 = vld [vmem:[%s2 + $0x130] sm:$0xff]
      %v593 = vld [vmem:[%s2 + $0x138] sm:$0xff]
      %v594 = vld [vmem:[%s2 + $0x140] sm:$0xff]
      %v595 = vld [vmem:[%s2 + $0x148] sm:$0xff]
      %v596 = vld [vmem:[%s2 + $0x150] sm:$0xff]
      %v597 = vld [vmem:[%s2 + $0x158] sm:$0xff]
      %v598 = vld [vmem:[%s2 + $0x160] sm:$0xff]
      %v599 = vld [vmem:[%s2 + $0x168] sm:$0xff]
      %v600 = vld [vmem:[%s2 + $0x170] sm:$0xff]
      %v601 = vld [vmem:[%s2 + $0x178] sm:$0xff]
      %v602 = vld [vmem:[%s2 + $0x180] sm:$0xff]
      %v603 = vld [vmem:[%s2 + $0x188] sm:$0xff]
      %v604 = vld [vmem:[%s2 + $0x190] sm:$0xff]
      %v605 = vld [vmem:[%s2 + $0x198] sm:$0xff]
      %v606 = vld [vmem:[%s2 + $0x1a0] sm:$0xff]
      %v607 = vld [vmem:[%s2 + $0x1a8] sm:$0xff]
      %v608 = vld [vmem:[%s2 + $0x1b0] sm:$0xff]
      %v609 = vld [vmem:[%s2 + $0x1b8] sm:$0xff]
      %v610 = vld [vmem:[%s2 + $0x1c0] sm:$0xff]
      %v611 = vld [vmem:[%s2 + $0x1c8] sm:$0xff]
      %v612 = vld [vmem:[%s2 + $0x1d0] sm:$0xff]
      %v613 = vld [vmem:[%s2 + $0x1d8] sm:$0xff]
      %v614 = vld [vmem:[%s2 + $0x1e0] sm:$0xff]
      %v615 = vld [vmem:[%s2 + $0x1e8] sm:$0xff]
      %v616 = vld [vmem:[%s2 + $0x1f0] sm:$0xff]
      %v617 = vld [vmem:[%s2 + $0x1f8] sm:$0xff]
      %v618 = vld [vmem:[%s2 + $0x200] sm:$0xff]
      %v619 = vld [vmem:[%s2 + $0x208] sm:$0xff]
      %v620 = vld [vmem:[%s2 + $0x210] sm:$0xff]
      %v621 = vld [vmem:[%s2 + $0x218] sm:$0xff]
      %v622 = vld [vmem:[%s2 + $0x220] sm:$0xff]
      %v623 = vld [vmem:[%s2 + $0x228] sm:$0xff]
      %v624 = vld [vmem:[%s2 + $0x230] sm:$0xff]
      %v625 = vld [vmem:[%s2 + $0x238] sm:$0xff]
      %v626 = vld [vmem:[%s2 + $0x240] sm:$0xff]
      %v627 = vld [vmem:[%s2 + $0x248] sm:$0xff]
      %v628 = vld [vmem:[%s2 + $0x250] sm:$0xff]
      %v629 = vld [vmem:[%s2 + $0x258] sm:$0xff]
      %v630 = vld [vmem:[%s2 + $0x260] sm:$0xff]
      %v631 = vld [vmem:[%s2 + $0x268] sm:$0xff]
      %v632 = vld [vmem:[%s2 + $0x270] sm:$0xff]
      %v633 = vld [vmem:[%s2 + $0x278] sm:$0xff]
      %v634 = vld [vmem:[%s2 + $0x280] sm:$0xff]
      %v635 = vld [vmem:[%s2 + $0x288] sm:$0xff]
      %v636 = vld [vmem:[%s2 + $0x290] sm:$0xff]
      %v637 = vld [vmem:[%s2 + $0x298] sm:$0xff]
      %v638 = vld [vmem:[%s2 + $0x2a0] sm:$0xff]
      %v639 = vld [vmem:[%s2 + $0x2a8] sm:$0xff]
      %v640 = vld [vmem:[%s2 + $0x2b0] sm:$0xff]
      %v641 = vld [vmem:[%s2 + $0x2b8] sm:$0xff]
      %v642 = vld [vmem:[%s2 + $0x2c0] sm:$0xff]
      %v643 = vld [vmem:[%s2 + $0x2c8] sm:$0xff]
      %v644 = vld [vmem:[%s2 + $0x2d0] sm:$0xff]
      %v645 = vld [vmem:[%s2 + $0x2d8] sm:$0xff]
      %v646 = vld [vmem:[%s2 + $0x2e0] sm:$0xff]
      %v647 = vld [vmem:[%s2 + $0x2e8] sm:$0xff]
      %v648 = vld [vmem:[%s2 + $0x2f0] sm:$0xff]
      %v649 = vld [vmem:[%s2 + $0x2f8] sm:$0xff]
      %v650 = vld [vmem:[%s2 + $0x300] sm:$0xff]
      %v651 = vld [vmem:[%s2 + $0x308] sm:$0xff]
      %v652 = vld [vmem:[%s2 + $0x310] sm:$0xff]
      %v653 = vld [vmem:[%s2 + $0x318] sm:$0xff]
      %v654 = vld [vmem:[%s2 + $0x320] sm:$0xff]
      %v655 = vld [vmem:[%s2 + $0x328] sm:$0xff]
      %v656 = vld [vmem:[%s2 + $0x330] sm:$0xff]
      %v657 = vld [vmem:[%s2 + $0x338] sm:$0xff]
      %v658 = vld [vmem:[%s2 + $0x340] sm:$0xff]
      %v659 = vld [vmem:[%s2 + $0x348] sm:$0xff]
      %v660 = vld [vmem:[%s2 + $0x350] sm:$0xff]
      %v661 = vld [vmem:[%s2 + $0x358] sm:$0xff]
      %v662 = vld [vmem:[%s2 + $0x360] sm:$0xff]
      %v663 = vld [vmem:[%s2 + $0x368] sm:$0xff]
      %v664 = vld [vmem:[%s2 + $0x370] sm:$0xff]
      %v665 = vld [vmem:[%s2 + $0x378] sm:$0xff]
      %v666 = vld [vmem:[%s2 + $0x380] sm:$0xff]
      %v667 = vld [vmem:[%s2 + $0x388] sm:$0xff]
      %v668 = vld [vmem:[%s2 + $0x390] sm:$0xff]
      %v669 = vld [vmem:[%s2 + $0x398] sm:$0xff]
      %v670 = vld [vmem:[%s2 + $0x3a0] sm:$0xff]
      %v671 = vld [vmem:[%s2 + $0x3a8] sm:$0xff]
      %v672 = vld [vmem:[%s2 + $0x3b0] sm:$0xff]
      %v673 = vld [vmem:[%s2 + $0x3b8] sm:$0xff]
      %v674 = vld [vmem:[%s2 + $0x3c0] sm:$0xff]
      %v675 = vld [vmem:[%s2 + $0x3c8] sm:$0xff]
      %v676 = vld [vmem:[%s2 + $0x3d0] sm:$0xff]
      %v677 = vld [vmem:[%s2 + $0x3d8] sm:$0xff]
      %v678 = vld [vmem:[%s2 + $0x3e0] sm:$0xff]
      %v679 = vld [vmem:[%s2 + $0x3e8] sm:$0xff]
      %v680 = vld [vmem:[%s2 + $0x3f0] sm:$0xff]
      %v681 = vld [vmem:[%s2 + $0x3f8] sm:$0xff]
      %v682 = vld [vmem:[%s2 + $0x400] sm:$0xff]
      %v683 = vld [vmem:[%s2 + $0x408] sm:$0xff]
      %v684 = vld [vmem:[%s2 + $0x410] sm:$0xff]
      %v685 = vld [vmem:[%s2 + $0x418] sm:$0xff]
      %v686 = vld [vmem:[%s2 + $0x420] sm:$0xff]
      %v687 = vld [vmem:[%s2 + $0x428] sm:$0xff]
      %v688 = vld [vmem:[%s2 + $0x430] sm:$0xff]
      %v689 = vld [vmem:[%s2 + $0x438] sm:$0xff]
      %v690 = vld [vmem:[%s2 + $0x440] sm:$0xff]
      %v691 = vld [vmem:[%s2 + $0x448] sm:$0xff]
      %v692 = vld [vmem:[%s2 + $0x450] sm:$0xff]
      %v693 = vld [vmem:[%s2 + $0x458] sm:$0xff]
      %v694 = vld [vmem:[%s2 + $0x460] sm:$0xff]
      %v695 = vld [vmem:[%s2 + $0x468] sm:$0xff]
      %v696 = vld [vmem:[%s2 + $0x470] sm:$0xff]
      %v697 = vld [vmem:[%s2 + $0x478] sm:$0xff]
      %v698 = vld [vmem:[%s2 + $0x480] sm:$0xff]
      %v699 = vld [vmem:[%s2 + $0x488] sm:$0xff]
      %v700 = vld [vmem:[%s2 + $0x490] sm:$0xff]
      %v701 = vld [vmem:[%s2 + $0x498] sm:$0xff]
      %v702 = vld [vmem:[%s2 + $0x4a0] sm:$0xff]
      %v703 = vld [vmem:[%s2 + $0x4a8] sm:$0xff]
      %v704 = vld [vmem:[%s2 + $0x4b0] sm:$0xff]
      %v705 = vld [vmem:[%s2 + $0x4b8] sm:$0xff]
      %v706 = vld [vmem:[%s2 + $0x4c0] sm:$0xff]
      %v707 = vld [vmem:[%s2 + $0x4c8] sm:$0xff]
      %v708 = vld [vmem:[%s2 + $0x4d0] sm:$0xff]
      %v709 = vld [vmem:[%s2 + $0x4d8] sm:$0xff]
      %v710 = vld [vmem:[%s2 + $0x4e0] sm:$0xff]
      %v711 = vld [vmem:[%s2 + $0x4e8] sm:$0xff]
      %v712 = vld [vmem:[%s2 + $0x4f0] sm:$0xff]
      %v713 = vld [vmem:[%s2 + $0x4f8] sm:$0xff]
      %v714 = vld [vmem:[%s2 + $0x500] sm:$0xff]
      %v715 = vld [vmem:[%s2 + $0x508] sm:$0xff]
      %v716 = vld [vmem:[%s2 + $0x510] sm:$0xff]
      %v717 = vld [vmem:[%s2 + $0x518] sm:$0xff]
      %v718 = vld [vmem:[%s2 + $0x520] sm:$0xff]
      %v719 = vld [vmem:[%s2 + $0x528] sm:$0xff]
      %v720 = vld [vmem:[%s2 + $0x530] sm:$0xff]
      %v721 = vld [vmem:[%s2 + $0x538] sm:$0xff]
      %v722 = vld [vmem:[%s2 + $0x540] sm:$0xff]
      %v723 = vld [vmem:[%s2 + $0x548] sm:$0xff]
      %v724 = vld [vmem:[%s2 + $0x550] sm:$0xff]
      %v725 = vld [vmem:[%s2 + $0x558] sm:$0xff]
      %v726 = vld [vmem:[%s2 + $0x560] sm:$0xff]
      %v727 = vld [vmem:[%s2 + $0x568] sm:$0xff]
      %v728 = vld [vmem:[%s2 + $0x570] sm:$0xff]
      %v729 = vld [vmem:[%s2 + $0x578] sm:$0xff]
      %v730 = vld [vmem:[%s2 + $0x580] sm:$0xff]
      %v731 = vld [vmem:[%s2 + $0x588] sm:$0xff]
      %v732 = vld [vmem:[%s2 + $0x590] sm:$0xff]
      %v733 = vld [vmem:[%s2 + $0x598] sm:$0xff]
      %v734 = vld [vmem:[%s2 + $0x5a0] sm:$0xff]
      %v735 = vld [vmem:[%s2 + $0x5a8] sm:$0xff]
      %v736 = vld [vmem:[%s2 + $0x5b0] sm:$0xff]
      %v737 = vld [vmem:[%s2 + $0x5b8] sm:$0xff]
      %v738 = vld [vmem:[%s2 + $0x5c0] sm:$0xff]
      %v739 = vld [vmem:[%s2 + $0x5c8] sm:$0xff]
      %v740 = vld [vmem:[%s2 + $0x5d0] sm:$0xff]
      %v741 = vld [vmem:[%s2 + $0x5d8] sm:$0xff]
      %v742 = vld [vmem:[%s2 + $0x5e0] sm:$0xff]
      %v743 = vld [vmem:[%s2 + $0x5e8] sm:$0xff]
      %v744 = vld [vmem:[%s2 + $0x5f0] sm:$0xff]
      %v745 = vld [vmem:[%s2 + $0x5f8] sm:$0xff]
      %v746 = vld [vmem:[%s2 + $0x600] sm:$0xff]
      %v747 = vld [vmem:[%s2 + $0x608] sm:$0xff]
      %v748 = vld [vmem:[%s2 + $0x610] sm:$0xff]
      %v749 = vld [vmem:[%s2 + $0x618] sm:$0xff]
      %v750 = vld [vmem:[%s2 + $0x620] sm:$0xff]
      %v751 = vld [vmem:[%s2 + $0x628] sm:$0xff]
      %v752 = vld [vmem:[%s2 + $0x630] sm:$0xff]
      %v753 = vld [vmem:[%s2 + $0x638] sm:$0xff]
      %v754 = vld [vmem:[%s2 + $0x640] sm:$0xff]
      %v755 = vld [vmem:[%s2 + $0x648] sm:$0xff]
      %v756 = vld [vmem:[%s2 + $0x650] sm:$0xff]
      %v757 = vld [vmem:[%s2 + $0x658] sm:$0xff]
      %v758 = vld [vmem:[%s2 + $0x660] sm:$0xff]
      %v759 = vld [vmem:[%s2 + $0x668] sm:$0xff]
      %v760 = vld [vmem:[%s2 + $0x670] sm:$0xff]
      %v761 = vld [vmem:[%s2 + $0x678] sm:$0xff]
      %v762 = vld [vmem:[%s2 + $0x680] sm:$0xff]
      %v763 = vld [vmem:[%s2 + $0x688] sm:$0xff]
      %v764 = vld [vmem:[%s2 + $0x690] sm:$0xff]
      %v765 = vld [vmem:[%s2 + $0x698] sm:$0xff]
      %v766 = vld [vmem:[%s2 + $0x6a0] sm:$0xff]
      %v767 = vld [vmem:[%s2 + $0x6a8] sm:$0xff]
      %v768 = vld [vmem:[%s2 + $0x6b0] sm:$0xff]
      %v769 = vld [vmem:[%s2 + $0x6b8] sm:$0xff]
      %v770 = vld [vmem:[%s2 + $0x6c0] sm:$0xff]
      %v771 = vld [vmem:[%s2 + $0x6c8] sm:$0xff]
      %v772 = vld [vmem:[%s2 + $0x6d0] sm:$0xff]
      %v773 = vld [vmem:[%s2 + $0x6d8] sm:$0xff]
      %v774 = vld [vmem:[%s2 + $0x6e0] sm:$0xff]
      %v775 = vld [vmem:[%s2 + $0x6e8] sm:$0xff]
      %v776 = vld [vmem:[%s2 + $0x6f0] sm:$0xff]
      %v777 = vld [vmem:[%s2 + $0x6f8] sm:$0xff]
      %v778 = vld [vmem:[%s2 + $0x700] sm:$0xff]
      %v779 = vld [vmem:[%s2 + $0x708] sm:$0xff]
      %v780 = vld [vmem:[%s2 + $0x710] sm:$0xff]
      %v781 = vld [vmem:[%s2 + $0x718] sm:$0xff]
      %v782 = vld [vmem:[%s2 + $0x720] sm:$0xff]
      %v783 = vld [vmem:[%s2 + $0x728] sm:$0xff]
      %v784 = vld [vmem:[%s2 + $0x730] sm:$0xff]
      %v785 = vld [vmem:[%s2 + $0x738] sm:$0xff]
      %v786 = vld [vmem:[%s2 + $0x740] sm:$0xff]
      %v787 = vld [vmem:[%s2 + $0x748] sm:$0xff]
      %v788 = vld [vmem:[%s2 + $0x750] sm:$0xff]
      %v789 = vld [vmem:[%s2 + $0x758] sm:$0xff]
      %v790 = vld [vmem:[%s2 + $0x760] sm:$0xff]
      %v791 = vld [vmem:[%s2 + $0x768] sm:$0xff]
      %v792 = vld [vmem:[%s2 + $0x770] sm:$0xff]
      %v793 = vld [vmem:[%s2 + $0x778] sm:$0xff]
      %s794 = scalar_lea.vmem %s2, 1920
      %v795 = vld [vmem:[%s794] sm:$0xff]
      %v796 = vld [vmem:[%s794 + $0x8] sm:$0xff]
      %v797 = vld [vmem:[%s794 + $0x10] sm:$0xff]
      %v798 = vld [vmem:[%s794 + $0x18] sm:$0xff]
      %v799 = vld [vmem:[%s794 + $0x20] sm:$0xff]
      %v800 = vld [vmem:[%s794 + $0x28] sm:$0xff]
      %v801 = vld [vmem:[%s794 + $0x30] sm:$0xff]
      %v802 = vld [vmem:[%s794 + $0x38] sm:$0xff]
      %v803 = vld [vmem:[%s794 + $0x40] sm:$0xff]
      %v804 = vld [vmem:[%s794 + $0x48] sm:$0xff]
      %v805 = vld [vmem:[%s794 + $0x50] sm:$0xff]
      %v806 = vld [vmem:[%s794 + $0x58] sm:$0xff]
      %v807 = vld [vmem:[%s794 + $0x60] sm:$0xff]
      %v808 = vld [vmem:[%s794 + $0x68] sm:$0xff]
      %v809 = vld [vmem:[%s794 + $0x70] sm:$0xff]
      %v810 = vld [vmem:[%s794 + $0x78] sm:$0xff]
      %v811 = vld [vmem:[%s794 + $0x80] sm:$0xff]
      %v812 = vld [vmem:[%s794 + $0x88] sm:$0xff]
      %v813 = vld [vmem:[%s794 + $0x90] sm:$0xff]
      %v814 = vld [vmem:[%s794 + $0x98] sm:$0xff]
      %v815 = vld [vmem:[%s794 + $0xa0] sm:$0xff]
      %v816 = vld [vmem:[%s794 + $0xa8] sm:$0xff]
      %v817 = vld [vmem:[%s794 + $0xb0] sm:$0xff]
      %v818 = vld [vmem:[%s794 + $0xb8] sm:$0xff]
      %v819 = vld [vmem:[%s794 + $0xc0] sm:$0xff]
      %v820 = vld [vmem:[%s794 + $0xc8] sm:$0xff]
      %v821 = vld [vmem:[%s794 + $0xd0] sm:$0xff]
      %v822 = vld [vmem:[%s794 + $0xd8] sm:$0xff]
      %v823 = vld [vmem:[%s794 + $0xe0] sm:$0xff]
      %v824 = vld [vmem:[%s794 + $0xe8] sm:$0xff]
      %v825 = vld [vmem:[%s794 + $0xf0] sm:$0xff]
      %v826 = vld [vmem:[%s794 + $0xf8] sm:$0xff]
      %v827 = vld [vmem:[%s794 + $0x100] sm:$0xff]
      %v828 = vld [vmem:[%s794 + $0x108] sm:$0xff]
      %v829 = vld [vmem:[%s794 + $0x110] sm:$0xff]
      %v830 = vld [vmem:[%s794 + $0x118] sm:$0xff]
      %v831 = vld [vmem:[%s794 + $0x120] sm:$0xff]
      %v832 = vld [vmem:[%s794 + $0x128] sm:$0xff]
      %v833 = vld [vmem:[%s794 + $0x130] sm:$0xff]
      %v834 = vld [vmem:[%s794 + $0x138] sm:$0xff]
      %v835 = vld [vmem:[%s794 + $0x140] sm:$0xff]
      %v836 = vld [vmem:[%s794 + $0x148] sm:$0xff]
      %v837 = vld [vmem:[%s794 + $0x150] sm:$0xff]
      %v838 = vld [vmem:[%s794 + $0x158] sm:$0xff]
      %v839 = vld [vmem:[%s794 + $0x160] sm:$0xff]
      %v840 = vld [vmem:[%s794 + $0x168] sm:$0xff]
      %v841 = vld [vmem:[%s794 + $0x170] sm:$0xff]
      %v842 = vld [vmem:[%s794 + $0x178] sm:$0xff]
      %v843 = vld [vmem:[%s794 + $0x180] sm:$0xff]
      %v844 = vld [vmem:[%s794 + $0x188] sm:$0xff]
      %v845 = vld [vmem:[%s794 + $0x190] sm:$0xff]
      %v846 = vld [vmem:[%s794 + $0x198] sm:$0xff]
      %v847 = vld [vmem:[%s794 + $0x1a0] sm:$0xff]
      %v848 = vld [vmem:[%s794 + $0x1a8] sm:$0xff]
      %v849 = vld [vmem:[%s794 + $0x1b0] sm:$0xff]
      %v850 = vld [vmem:[%s794 + $0x1b8] sm:$0xff]
      %v851 = vld [vmem:[%s794 + $0x1c0] sm:$0xff]
      %v852 = vld [vmem:[%s794 + $0x1c8] sm:$0xff]
      %v853 = vld [vmem:[%s794 + $0x1d0] sm:$0xff]
      %v854 = vld [vmem:[%s794 + $0x1d8] sm:$0xff]
      %v855 = vld [vmem:[%s794 + $0x1e0] sm:$0xff]
      %v856 = vld [vmem:[%s794 + $0x1e8] sm:$0xff]
      %v857 = vld [vmem:[%s794 + $0x1f0] sm:$0xff]
      %v858 = vld [vmem:[%s794 + $0x1f8] sm:$0xff]
      %v859 = vld [vmem:[%s794 + $0x200] sm:$0xff]
      %v860 = vld [vmem:[%s794 + $0x208] sm:$0xff]
      %v861 = vld [vmem:[%s794 + $0x210] sm:$0xff]
      %v862 = vld [vmem:[%s794 + $0x218] sm:$0xff]
      %v863 = vld [vmem:[%s794 + $0x220] sm:$0xff]
      %v864 = vld [vmem:[%s794 + $0x228] sm:$0xff]
      %v865 = vld [vmem:[%s794 + $0x230] sm:$0xff]
      %v866 = vld [vmem:[%s794 + $0x238] sm:$0xff]
      %v867 = vld [vmem:[%s794 + $0x240] sm:$0xff]
      %v868 = vld [vmem:[%s794 + $0x248] sm:$0xff]
      %v869 = vld [vmem:[%s794 + $0x250] sm:$0xff]
      %v870 = vld [vmem:[%s794 + $0x258] sm:$0xff]
      %v871 = vld [vmem:[%s794 + $0x260] sm:$0xff]
      %v872 = vld [vmem:[%s794 + $0x268] sm:$0xff]
      %v873 = vld [vmem:[%s794 + $0x270] sm:$0xff]
      %v874 = vld [vmem:[%s794 + $0x278] sm:$0xff]
      %v875 = vld [vmem:[%s794 + $0x280] sm:$0xff]
      %v876 = vld [vmem:[%s794 + $0x288] sm:$0xff]
      %v877 = vld [vmem:[%s794 + $0x290] sm:$0xff]
      %v878 = vld [vmem:[%s794 + $0x298] sm:$0xff]
      %v879 = vld [vmem:[%s794 + $0x2a0] sm:$0xff]
      %v880 = vld [vmem:[%s794 + $0x2a8] sm:$0xff]
      %v881 = vld [vmem:[%s794 + $0x2b0] sm:$0xff]
      %v882 = vld [vmem:[%s794 + $0x2b8] sm:$0xff]
      %v883 = vld [vmem:[%s794 + $0x2c0] sm:$0xff]
      %v884 = vld [vmem:[%s794 + $0x2c8] sm:$0xff]
      %v885 = vld [vmem:[%s794 + $0x2d0] sm:$0xff]
      %v886 = vld [vmem:[%s794 + $0x2d8] sm:$0xff]
      %v887 = vld [vmem:[%s794 + $0x2e0] sm:$0xff]
      %v888 = vld [vmem:[%s794 + $0x2e8] sm:$0xff]
      %v889 = vld [vmem:[%s794 + $0x2f0] sm:$0xff]
      %v890 = vld [vmem:[%s794 + $0x2f8] sm:$0xff]
      %v891 = vld [vmem:[%s794 + $0x300] sm:$0xff]
      %v892 = vld [vmem:[%s794 + $0x308] sm:$0xff]
      %v893 = vld [vmem:[%s794 + $0x310] sm:$0xff]
      %v894 = vld [vmem:[%s794 + $0x318] sm:$0xff]
      %v895 = vld [vmem:[%s794 + $0x320] sm:$0xff]
      %v896 = vld [vmem:[%s794 + $0x328] sm:$0xff]
      %v897 = vld [vmem:[%s794 + $0x330] sm:$0xff]
      %v898 = vld [vmem:[%s794 + $0x338] sm:$0xff]
      %v899 = vld [vmem:[%s794 + $0x340] sm:$0xff]
      %v900 = vld [vmem:[%s794 + $0x348] sm:$0xff]
      %v901 = vld [vmem:[%s794 + $0x350] sm:$0xff]
      %v902 = vld [vmem:[%s794 + $0x358] sm:$0xff]
      %v903 = vld [vmem:[%s794 + $0x360] sm:$0xff]
      %v904 = vld [vmem:[%s794 + $0x368] sm:$0xff]
      %v905 = vld [vmem:[%s794 + $0x370] sm:$0xff]
      %v906 = vld [vmem:[%s794 + $0x378] sm:$0xff]
      %v907 = vld [vmem:[%s794 + $0x380] sm:$0xff]
      %v908 = vld [vmem:[%s794 + $0x388] sm:$0xff]
      %v909 = vld [vmem:[%s794 + $0x390] sm:$0xff]
      %v910 = vld [vmem:[%s794 + $0x398] sm:$0xff]
      %v911 = vld [vmem:[%s794 + $0x3a0] sm:$0xff]
      %v912 = vld [vmem:[%s794 + $0x3a8] sm:$0xff]
      %v913 = vld [vmem:[%s794 + $0x3b0] sm:$0xff]
      %v914 = vld [vmem:[%s794 + $0x3b8] sm:$0xff]
      %v915 = vld [vmem:[%s794 + $0x3c0] sm:$0xff]
      %v916 = vld [vmem:[%s794 + $0x3c8] sm:$0xff]
      %v917 = vld [vmem:[%s794 + $0x3d0] sm:$0xff]
      %v918 = vld [vmem:[%s794 + $0x3d8] sm:$0xff]
      %v919 = vld [vmem:[%s794 + $0x3e0] sm:$0xff]
      %v920 = vld [vmem:[%s794 + $0x3e8] sm:$0xff]
      %v921 = vld [vmem:[%s794 + $0x3f0] sm:$0xff]
      %v922 = vld [vmem:[%s794 + $0x3f8] sm:$0xff]
      %v923 = vld [vmem:[%s794 + $0x400] sm:$0xff]
      %v924 = vld [vmem:[%s794 + $0x408] sm:$0xff]
      %v925 = vld [vmem:[%s794 + $0x410] sm:$0xff]
      %v926 = vld [vmem:[%s794 + $0x418] sm:$0xff]
      %v927 = vld [vmem:[%s794 + $0x420] sm:$0xff]
      %v928 = vld [vmem:[%s794 + $0x428] sm:$0xff]
      %v929 = vld [vmem:[%s794 + $0x430] sm:$0xff]
      %v930 = vld [vmem:[%s794 + $0x438] sm:$0xff]
      %v931 = vld [vmem:[%s794 + $0x440] sm:$0xff]
      %v932 = vld [vmem:[%s794 + $0x448] sm:$0xff]
      %v933 = vld [vmem:[%s794 + $0x450] sm:$0xff]
      %v934 = vld [vmem:[%s794 + $0x458] sm:$0xff]
      %v935 = vld [vmem:[%s794 + $0x460] sm:$0xff]
      %v936 = vld [vmem:[%s794 + $0x468] sm:$0xff]
      %v937 = vld [vmem:[%s794 + $0x470] sm:$0xff]
      %v938 = vld [vmem:[%s794 + $0x478] sm:$0xff]
      %v939 = vld [vmem:[%s794 + $0x480] sm:$0xff]
      %v940 = vld [vmem:[%s794 + $0x488] sm:$0xff]
      %v941 = vld [vmem:[%s794 + $0x490] sm:$0xff]
      %v942 = vld [vmem:[%s794 + $0x498] sm:$0xff]
      %v943 = vld [vmem:[%s794 + $0x4a0] sm:$0xff]
      %v944 = vld [vmem:[%s794 + $0x4a8] sm:$0xff]
      %v945 = vld [vmem:[%s794 + $0x4b0] sm:$0xff]
      %v946 = vld [vmem:[%s794 + $0x4b8] sm:$0xff]
      %v947 = vld [vmem:[%s794 + $0x4c0] sm:$0xff]
      %v948 = vld [vmem:[%s794 + $0x4c8] sm:$0xff]
      %v949 = vld [vmem:[%s794 + $0x4d0] sm:$0xff]
      %v950 = vld [vmem:[%s794 + $0x4d8] sm:$0xff]
      %v951 = vld [vmem:[%s794 + $0x4e0] sm:$0xff]
      %v952 = vld [vmem:[%s794 + $0x4e8] sm:$0xff]
      %v953 = vld [vmem:[%s794 + $0x4f0] sm:$0xff]
      %v954 = vld [vmem:[%s794 + $0x4f8] sm:$0xff]
      %v955 = vld [vmem:[%s794 + $0x500] sm:$0xff]
      %v956 = vld [vmem:[%s794 + $0x508] sm:$0xff]
      %v957 = vld [vmem:[%s794 + $0x510] sm:$0xff]
      %v958 = vld [vmem:[%s794 + $0x518] sm:$0xff]
      %v959 = vld [vmem:[%s794 + $0x520] sm:$0xff]
      %v960 = vld [vmem:[%s794 + $0x528] sm:$0xff]
      %v961 = vld [vmem:[%s794 + $0x530] sm:$0xff]
      %v962 = vld [vmem:[%s794 + $0x538] sm:$0xff]
      %v963 = vld [vmem:[%s794 + $0x540] sm:$0xff]
      %v964 = vld [vmem:[%s794 + $0x548] sm:$0xff]
      %v965 = vld [vmem:[%s794 + $0x550] sm:$0xff]
      %v966 = vld [vmem:[%s794 + $0x558] sm:$0xff]
      %v967 = vld [vmem:[%s794 + $0x560] sm:$0xff]
      %v968 = vld [vmem:[%s794 + $0x568] sm:$0xff]
      %v969 = vld [vmem:[%s794 + $0x570] sm:$0xff]
      %v970 = vld [vmem:[%s794 + $0x578] sm:$0xff]
      %v971 = vld [vmem:[%s794 + $0x580] sm:$0xff]
      %v972 = vld [vmem:[%s794 + $0x588] sm:$0xff]
      %v973 = vld [vmem:[%s794 + $0x590] sm:$0xff]
      %v974 = vld [vmem:[%s794 + $0x598] sm:$0xff]
      %v975 = vld [vmem:[%s794 + $0x5a0] sm:$0xff]
      %v976 = vld [vmem:[%s794 + $0x5a8] sm:$0xff]
      %v977 = vld [vmem:[%s794 + $0x5b0] sm:$0xff]
      %v978 = vld [vmem:[%s794 + $0x5b8] sm:$0xff]
      %v979 = vld [vmem:[%s794 + $0x5c0] sm:$0xff]
      %v980 = vld [vmem:[%s794 + $0x5c8] sm:$0xff]
      %v981 = vld [vmem:[%s794 + $0x5d0] sm:$0xff]
      %v982 = vld [vmem:[%s794 + $0x5d8] sm:$0xff]
      %v983 = vld [vmem:[%s794 + $0x5e0] sm:$0xff]
      %v984 = vld [vmem:[%s794 + $0x5e8] sm:$0xff]
      %v985 = vld [vmem:[%s794 + $0x5f0] sm:$0xff]
      %v986 = vld [vmem:[%s794 + $0x5f8] sm:$0xff]
      %v987 = vld [vmem:[%s794 + $0x600] sm:$0xff]
      %v988 = vld [vmem:[%s794 + $0x608] sm:$0xff]
      %v989 = vld [vmem:[%s794 + $0x610] sm:$0xff]
      %v990 = vld [vmem:[%s794 + $0x618] sm:$0xff]
      %v991 = vld [vmem:[%s794 + $0x620] sm:$0xff]
      %v992 = vld [vmem:[%s794 + $0x628] sm:$0xff]
      %v993 = vld [vmem:[%s794 + $0x630] sm:$0xff]
      %v994 = vld [vmem:[%s794 + $0x638] sm:$0xff]
      %v995 = vld [vmem:[%s794 + $0x640] sm:$0xff]
      %v996 = vld [vmem:[%s794 + $0x648] sm:$0xff]
      %v997 = vld [vmem:[%s794 + $0x650] sm:$0xff]
      %v998 = vld [vmem:[%s794 + $0x658] sm:$0xff]
      %v999 = vld [vmem:[%s794 + $0x660] sm:$0xff]
      %v1000 = vld [vmem:[%s794 + $0x668] sm:$0xff]
      %v1001 = vld [vmem:[%s794 + $0x670] sm:$0xff]
      %v1002 = vld [vmem:[%s794 + $0x678] sm:$0xff]
      %v1003 = vld [vmem:[%s794 + $0x680] sm:$0xff]
      %v1004 = vld [vmem:[%s794 + $0x688] sm:$0xff]
      %v1005 = vld [vmem:[%s794 + $0x690] sm:$0xff]
      %v1006 = vld [vmem:[%s794 + $0x698] sm:$0xff]
      %v1007 = vld [vmem:[%s794 + $0x6a0] sm:$0xff]
      %v1008 = vld [vmem:[%s794 + $0x6a8] sm:$0xff]
      %v1009 = vld [vmem:[%s794 + $0x6b0] sm:$0xff]
      %v1010 = vld [vmem:[%s794 + $0x6b8] sm:$0xff]
      %v1011 = vld [vmem:[%s794 + $0x6c0] sm:$0xff]
      %v1012 = vld [vmem:[%s794 + $0x6c8] sm:$0xff]
      %v1013 = vld [vmem:[%s794 + $0x6d0] sm:$0xff]
      %v1014 = vld [vmem:[%s794 + $0x6d8] sm:$0xff]
      %v1015 = vld [vmem:[%s794 + $0x6e0] sm:$0xff]
      %v1016 = vld [vmem:[%s794 + $0x6e8] sm:$0xff]
      %v1017 = vld [vmem:[%s794 + $0x6f0] sm:$0xff]
      %v1018 = vld [vmem:[%s794 + $0x6f8] sm:$0xff]
      %v1019 = vld [vmem:[%s794 + $0x700] sm:$0xff]
      %v1020 = vld [vmem:[%s794 + $0x708] sm:$0xff]
      %v1021 = vld [vmem:[%s794 + $0x710] sm:$0xff]
      %v1022 = vld [vmem:[%s794 + $0x718] sm:$0xff]
      %v1023 = vld [vmem:[%s794 + $0x720] sm:$0xff]
      %v1024 = vld [vmem:[%s794 + $0x728] sm:$0xff]
      %v1025 = vld [vmem:[%s794 + $0x730] sm:$0xff]
      %v1026 = vld [vmem:[%s794 + $0x738] sm:$0xff]
      %v1027 = vld [vmem:[%s794 + $0x740] sm:$0xff]
      %v1028 = vld [vmem:[%s794 + $0x748] sm:$0xff]
      %v1029 = vld [vmem:[%s794 + $0x750] sm:$0xff]
      %v1030 = vld [vmem:[%s794 + $0x758] sm:$0xff]
      %v1031 = vld [vmem:[%s794 + $0x760] sm:$0xff]
      %v1032 = vld [vmem:[%s794 + $0x768] sm:$0xff]
      %v1033 = vld [vmem:[%s794 + $0x770] sm:$0xff]
      %v1034 = vld [vmem:[%s794 + $0x778] sm:$0xff]
      %v1036 = vrot.slane %v226, 1
      %v1038 = vpack.c.bf16 %v226, %v226
      %v1039 = vpack.c.bf16 %v228, %v228
      %v1040 = vpack.c.bf16 %v230, %v230
      %v1041 = vpack.c.bf16 %v232, %v232
      %v1042 = vpack.c.bf16 %v1036, %v1036
      %v1203 = vunpack.c.l.b16 %v233
      %v1204 = vunpack.c.h.b16 %v233
      %v1205 = vunpack.c.l.b16 %v234
      %v1206 = vunpack.c.l.b16 %v235
      %v1207 = vunpack.c.h.b16 %v235
      %v1208 = vunpack.c.l.b16 %v236
      %v1209 = vunpack.c.l.b16 %v237
      %v1210 = vunpack.c.h.b16 %v237
      %v1211 = vunpack.c.l.b16 %v238
      %v1212 = vunpack.c.l.b16 %v239
      %v1213 = vunpack.c.h.b16 %v239
      %v1214 = vunpack.c.l.b16 %v240
      %v1215 = vunpack.c.l.b16 %v241
      %v1216 = vunpack.c.h.b16 %v241
      %v1217 = vunpack.c.l.b16 %v242
      %v1218 = vunpack.c.l.b16 %v243
      %v1219 = vunpack.c.h.b16 %v243
      %v1220 = vunpack.c.l.b16 %v244
      %v1221 = vunpack.c.l.b16 %v245
      %v1222 = vunpack.c.h.b16 %v245
      %v1223 = vunpack.c.l.b16 %v246
      %v1224 = vunpack.c.l.b16 %v247
      %v1225 = vunpack.c.h.b16 %v247
      %v1226 = vunpack.c.l.b16 %v248
      %v1227 = vunpack.c.l.b16 %v249
      %v1228 = vunpack.c.h.b16 %v249
      %v1229 = vunpack.c.l.b16 %v250
      %v1230 = vunpack.c.l.b16 %v251
      %v1231 = vunpack.c.h.b16 %v251
      %v1232 = vunpack.c.l.b16 %v252
      %v1233 = vunpack.c.l.b16 %v253
      %v1234 = vunpack.c.h.b16 %v253
      %v1235 = vunpack.c.l.b16 %v254
      %v1236 = vunpack.c.l.b16 %v255
      %v1237 = vunpack.c.h.b16 %v255
      %v1238 = vunpack.c.l.b16 %v256
      %v1239 = vunpack.c.l.b16 %v257
      %v1240 = vunpack.c.h.b16 %v257
      %v1241 = vunpack.c.l.b16 %v258
      %v1242 = vunpack.c.l.b16 %v259
      %v1243 = vunpack.c.h.b16 %v259
      %v1244 = vunpack.c.l.b16 %v260
      %v1245 = vunpack.c.l.b16 %v261
      %v1246 = vunpack.c.h.b16 %v261
      %v1247 = vunpack.c.l.b16 %v262
      %v1248 = vunpack.c.l.b16 %v263
      %v1249 = vunpack.c.h.b16 %v263
      %v1250 = vunpack.c.l.b16 %v264
      %v1251 = vunpack.c.l.b16 %v265
      %v1252 = vunpack.c.h.b16 %v265
      %v1253 = vunpack.c.l.b16 %v266
      %v1254 = vunpack.c.l.b16 %v267
      %v1255 = vunpack.c.h.b16 %v267
      %v1256 = vunpack.c.l.b16 %v268
      %v1257 = vunpack.c.l.b16 %v269
      %v1258 = vunpack.c.h.b16 %v269
      %v1259 = vunpack.c.l.b16 %v270
      %v1260 = vunpack.c.l.b16 %v271
      %v1261 = vunpack.c.h.b16 %v271
      %v1262 = vunpack.c.l.b16 %v272
      %v1263 = vunpack.c.l.b16 %v273
      %v1264 = vunpack.c.h.b16 %v273
      %v1265 = vunpack.c.l.b16 %v274
      %v1266 = vunpack.c.l.b16 %v275
      %v1267 = vunpack.c.h.b16 %v275
      %v1268 = vunpack.c.l.b16 %v276
      %v1269 = vunpack.c.l.b16 %v277
      %v1270 = vunpack.c.h.b16 %v277
      %v1271 = vunpack.c.l.b16 %v278
      %v1272 = vunpack.c.l.b16 %v279
      %v1273 = vunpack.c.h.b16 %v279
      %v1274 = vunpack.c.l.b16 %v280
      %v1275 = vunpack.c.l.b16 %v281
      %v1276 = vunpack.c.h.b16 %v281
      %v1277 = vunpack.c.l.b16 %v282
      %v1278 = vunpack.c.l.b16 %v283
      %v1279 = vunpack.c.h.b16 %v283
      %v1280 = vunpack.c.l.b16 %v284
      %v1281 = vunpack.c.l.b16 %v285
      %v1282 = vunpack.c.h.b16 %v285
      %v1283 = vunpack.c.l.b16 %v286
      %v1284 = vunpack.c.l.b16 %v287
      %v1285 = vunpack.c.h.b16 %v287
      %v1286 = vunpack.c.l.b16 %v288
      %v1287 = vunpack.c.l.b16 %v289
      %v1288 = vunpack.c.h.b16 %v289
      %v1289 = vunpack.c.l.b16 %v290
      %v1290 = vunpack.c.l.b16 %v291
      %v1291 = vunpack.c.h.b16 %v291
      %v1292 = vunpack.c.l.b16 %v292
      %v1293 = vunpack.c.l.b16 %v293
      %v1294 = vunpack.c.h.b16 %v293
      %v1295 = vunpack.c.l.b16 %v294
      %v1296 = vunpack.c.l.b16 %v295
      %v1297 = vunpack.c.h.b16 %v295
      %v1298 = vunpack.c.l.b16 %v296
      %v1299 = vunpack.c.l.b16 %v297
      %v1300 = vunpack.c.h.b16 %v297
      %v1301 = vunpack.c.l.b16 %v298
      %v1302 = vunpack.c.l.b16 %v299
      %v1303 = vunpack.c.h.b16 %v299
      %v1304 = vunpack.c.l.b16 %v300
      %v1305 = vunpack.c.l.b16 %v301
      %v1306 = vunpack.c.h.b16 %v301
      %v1307 = vunpack.c.l.b16 %v302
      %v1308 = vunpack.c.l.b16 %v303
      %v1309 = vunpack.c.h.b16 %v303
      %v1310 = vunpack.c.l.b16 %v304
      %v1311 = vunpack.c.l.b16 %v305
      %v1312 = vunpack.c.h.b16 %v305
      %v1313 = vunpack.c.l.b16 %v306
      %v1314 = vunpack.c.l.b16 %v307
      %v1315 = vunpack.c.h.b16 %v307
      %v1316 = vunpack.c.l.b16 %v308
      %v1317 = vunpack.c.l.b16 %v309
      %v1318 = vunpack.c.h.b16 %v309
      %v1319 = vunpack.c.l.b16 %v310
      %v1320 = vunpack.c.l.b16 %v311
      %v1321 = vunpack.c.h.b16 %v311
      %v1322 = vunpack.c.l.b16 %v312
      %v1323 = vunpack.c.l.b16 %v313
      %v1324 = vunpack.c.h.b16 %v313
      %v1325 = vunpack.c.l.b16 %v314
      %v1326 = vunpack.c.l.b16 %v315
      %v1327 = vunpack.c.h.b16 %v315
      %v1328 = vunpack.c.l.b16 %v316
      %v1329 = vunpack.c.l.b16 %v317
      %v1330 = vunpack.c.h.b16 %v317
      %v1331 = vunpack.c.l.b16 %v318
      %v1332 = vunpack.c.l.b16 %v319
      %v1333 = vunpack.c.h.b16 %v319
      %v1334 = vunpack.c.l.b16 %v320
      %v1335 = vunpack.c.l.b16 %v321
      %v1336 = vunpack.c.h.b16 %v321
      %v1337 = vunpack.c.l.b16 %v322
      %v1338 = vunpack.c.l.b16 %v323
      %v1339 = vunpack.c.h.b16 %v323
      %v1340 = vunpack.c.l.b16 %v324
      %v1341 = vunpack.c.l.b16 %v325
      %v1342 = vunpack.c.h.b16 %v325
      %v1343 = vunpack.c.l.b16 %v326
      %v1344 = vunpack.c.l.b16 %v327
      %v1345 = vunpack.c.h.b16 %v327
      %v1346 = vunpack.c.l.b16 %v328
      %v1347 = vunpack.c.l.b16 %v329
      %v1348 = vunpack.c.h.b16 %v329
      %v1349 = vunpack.c.l.b16 %v330
      %v1350 = vunpack.c.l.b16 %v331
      %v1351 = vunpack.c.h.b16 %v331
      %v1352 = vunpack.c.l.b16 %v332
      %v1353 = vunpack.c.l.b16 %v333
      %v1354 = vunpack.c.h.b16 %v333
      %v1355 = vunpack.c.l.b16 %v334
      %v1356 = vunpack.c.l.b16 %v335
      %v1357 = vunpack.c.h.b16 %v335
      %v1358 = vunpack.c.l.b16 %v336
      %v1359 = vunpack.c.l.b16 %v337
      %v1360 = vunpack.c.h.b16 %v337
      %v1361 = vunpack.c.l.b16 %v338
      %v1362 = vunpack.c.l.b16 %v339
      %v1363 = vunpack.c.h.b16 %v339
      %v1364 = vunpack.c.l.b16 %v340
      %v1365 = vunpack.c.l.b16 %v341
      %v1366 = vunpack.c.h.b16 %v341
      %v1367 = vunpack.c.l.b16 %v342
      %v1368 = vunpack.c.l.b16 %v343
      %v1369 = vunpack.c.h.b16 %v343
      %v1370 = vunpack.c.l.b16 %v344
      %v1371 = vunpack.c.l.b16 %v345
      %v1372 = vunpack.c.h.b16 %v345
      %v1373 = vunpack.c.l.b16 %v346
      %v1374 = vunpack.c.l.b16 %v347
      %v1375 = vunpack.c.h.b16 %v347
      %v1376 = vunpack.c.l.b16 %v348
      %v1377 = vunpack.c.l.b16 %v349
      %v1378 = vunpack.c.h.b16 %v349
      %v1379 = vunpack.c.l.b16 %v350
      %v1380 = vunpack.c.l.b16 %v351
      %v1381 = vunpack.c.h.b16 %v351
      %v1382 = vunpack.c.l.b16 %v352
      %v1383 = vunpack.c.l.b16 %v353
      %v1384 = vunpack.c.h.b16 %v353
      %v1385 = vunpack.c.l.b16 %v354
      %v1386 = vunpack.c.l.b16 %v355
      %v1387 = vunpack.c.h.b16 %v355
      %v1388 = vunpack.c.l.b16 %v356
      %v1389 = vunpack.c.l.b16 %v357
      %v1390 = vunpack.c.h.b16 %v357
      %v1391 = vunpack.c.l.b16 %v358
      %v1392 = vunpack.c.l.b16 %v359
      %v1393 = vunpack.c.h.b16 %v359
      %v1394 = vunpack.c.l.b16 %v360
      %v1395 = vunpack.c.l.b16 %v361
      %v1396 = vunpack.c.h.b16 %v361
      %v1397 = vunpack.c.l.b16 %v362
      %v1398 = vunpack.c.l.b16 %v363
      %v1399 = vunpack.c.h.b16 %v363
      %v1400 = vunpack.c.l.b16 %v364
      %v1401 = vunpack.c.l.b16 %v365
      %v1402 = vunpack.c.h.b16 %v365
      %v1403 = vunpack.c.l.b16 %v366
      %v1404 = vunpack.c.l.b16 %v367
      %v1405 = vunpack.c.h.b16 %v367
      %v1406 = vunpack.c.l.b16 %v368
      %v1407 = vunpack.c.l.b16 %v369
      %v1408 = vunpack.c.h.b16 %v369
      %v1409 = vunpack.c.l.b16 %v370
      %v1410 = vunpack.c.l.b16 %v371
      %v1411 = vunpack.c.h.b16 %v371
      %v1412 = vunpack.c.l.b16 %v372
      %v1413 = vunpack.c.l.b16 %v373
      %v1414 = vunpack.c.h.b16 %v373
      %v1415 = vunpack.c.l.b16 %v374
      %v1416 = vunpack.c.l.b16 %v375
      %v1417 = vunpack.c.h.b16 %v375
      %v1418 = vunpack.c.l.b16 %v376
      %v1419 = vunpack.c.l.b16 %v377
      %v1420 = vunpack.c.h.b16 %v377
      %v1421 = vunpack.c.l.b16 %v378
      %v1422 = vunpack.c.l.b16 %v379
      %v1423 = vunpack.c.h.b16 %v379
      %v1424 = vunpack.c.l.b16 %v380
      %v1425 = vunpack.c.l.b16 %v381
      %v1426 = vunpack.c.h.b16 %v381
      %v1427 = vunpack.c.l.b16 %v382
      %v1428 = vunpack.c.l.b16 %v383
      %v1429 = vunpack.c.h.b16 %v383
      %v1430 = vunpack.c.l.b16 %v384
      %v1431 = vunpack.c.l.b16 %v385
      %v1432 = vunpack.c.h.b16 %v385
      %v1433 = vunpack.c.l.b16 %v386
      %v1434 = vunpack.c.l.b16 %v387
      %v1435 = vunpack.c.h.b16 %v387
      %v1436 = vunpack.c.l.b16 %v388
      %v1437 = vunpack.c.l.b16 %v389
      %v1438 = vunpack.c.h.b16 %v389
      %v1439 = vunpack.c.l.b16 %v390
      %v1440 = vunpack.c.l.b16 %v391
      %v1441 = vunpack.c.h.b16 %v391
      %v1442 = vunpack.c.l.b16 %v392
      %v1443 = vpack.c.b16 %v1206, %v1203
      %v1444 = vpack.c.b16 %v1207, %v1204
      %v1445 = vpack.c.b16 %v1208, %v1205
      %v1446 = vpack.c.b16 %v1212, %v1209
      %v1447 = vpack.c.b16 %v1213, %v1210
      %v1448 = vpack.c.b16 %v1214, %v1211
      %v1449 = vpack.c.b16 %v1218, %v1215
      %v1450 = vpack.c.b16 %v1219, %v1216
      %v1451 = vpack.c.b16 %v1220, %v1217
      %v1452 = vpack.c.b16 %v1224, %v1221
      %v1453 = vpack.c.b16 %v1225, %v1222
      %v1454 = vpack.c.b16 %v1226, %v1223
      %v1455 = vpack.c.b16 %v1230, %v1227
      %v1456 = vpack.c.b16 %v1231, %v1228
      %v1457 = vpack.c.b16 %v1232, %v1229
      %v1458 = vpack.c.b16 %v1236, %v1233
      %v1459 = vpack.c.b16 %v1237, %v1234
      %v1460 = vpack.c.b16 %v1238, %v1235
      %v1461 = vpack.c.b16 %v1242, %v1239
      %v1462 = vpack.c.b16 %v1243, %v1240
      %v1463 = vpack.c.b16 %v1244, %v1241
      %v1464 = vpack.c.b16 %v1248, %v1245
      %v1465 = vpack.c.b16 %v1249, %v1246
      %v1466 = vpack.c.b16 %v1250, %v1247
      %v1467 = vpack.c.b16 %v1254, %v1251
      %v1468 = vpack.c.b16 %v1255, %v1252
      %v1469 = vpack.c.b16 %v1256, %v1253
      %v1470 = vpack.c.b16 %v1260, %v1257
      %v1471 = vpack.c.b16 %v1261, %v1258
      %v1472 = vpack.c.b16 %v1262, %v1259
      %v1473 = vpack.c.b16 %v1266, %v1263
      %v1474 = vpack.c.b16 %v1267, %v1264
      %v1475 = vpack.c.b16 %v1268, %v1265
      %v1476 = vpack.c.b16 %v1272, %v1269
      %v1477 = vpack.c.b16 %v1273, %v1270
      %v1478 = vpack.c.b16 %v1274, %v1271
      %v1479 = vpack.c.b16 %v1278, %v1275
      %v1480 = vpack.c.b16 %v1279, %v1276
      %v1481 = vpack.c.b16 %v1280, %v1277
      %v1482 = vpack.c.b16 %v1284, %v1281
      %v1483 = vpack.c.b16 %v1285, %v1282
      %v1484 = vpack.c.b16 %v1286, %v1283
      %v1485 = vpack.c.b16 %v1290, %v1287
      %v1486 = vpack.c.b16 %v1291, %v1288
      %v1487 = vpack.c.b16 %v1292, %v1289
      %v1488 = vpack.c.b16 %v1296, %v1293
      %v1489 = vpack.c.b16 %v1297, %v1294
      %v1490 = vpack.c.b16 %v1298, %v1295
      %v1491 = vpack.c.b16 %v1302, %v1299
      %v1492 = vpack.c.b16 %v1303, %v1300
      %v1493 = vpack.c.b16 %v1304, %v1301
      %v1494 = vpack.c.b16 %v1308, %v1305
      %v1495 = vpack.c.b16 %v1309, %v1306
      %v1496 = vpack.c.b16 %v1310, %v1307
      %v1497 = vpack.c.b16 %v1314, %v1311
      %v1498 = vpack.c.b16 %v1315, %v1312
      %v1499 = vpack.c.b16 %v1316, %v1313
      %v1500 = vpack.c.b16 %v1320, %v1317
      %v1501 = vpack.c.b16 %v1321, %v1318
      %v1502 = vpack.c.b16 %v1322, %v1319
      %v1503 = vpack.c.b16 %v1326, %v1323
      %v1504 = vpack.c.b16 %v1327, %v1324
      %v1505 = vpack.c.b16 %v1328, %v1325
      %v1506 = vpack.c.b16 %v1332, %v1329
      %v1507 = vpack.c.b16 %v1333, %v1330
      %v1508 = vpack.c.b16 %v1334, %v1331
      %v1509 = vpack.c.b16 %v1338, %v1335
      %v1510 = vpack.c.b16 %v1339, %v1336
      %v1511 = vpack.c.b16 %v1340, %v1337
      %v1512 = vpack.c.b16 %v1344, %v1341
      %v1513 = vpack.c.b16 %v1345, %v1342
      %v1514 = vpack.c.b16 %v1346, %v1343
      %v1515 = vpack.c.b16 %v1350, %v1347
      %v1516 = vpack.c.b16 %v1351, %v1348
      %v1517 = vpack.c.b16 %v1352, %v1349
      %v1518 = vpack.c.b16 %v1356, %v1353
      %v1519 = vpack.c.b16 %v1357, %v1354
      %v1520 = vpack.c.b16 %v1358, %v1355
      %v1521 = vpack.c.b16 %v1362, %v1359
      %v1522 = vpack.c.b16 %v1363, %v1360
      %v1523 = vpack.c.b16 %v1364, %v1361
      %v1524 = vpack.c.b16 %v1368, %v1365
      %v1525 = vpack.c.b16 %v1369, %v1366
      %v1526 = vpack.c.b16 %v1370, %v1367
      %v1527 = vpack.c.b16 %v1374, %v1371
      %v1528 = vpack.c.b16 %v1375, %v1372
      %v1529 = vpack.c.b16 %v1376, %v1373
      %v1530 = vpack.c.b16 %v1380, %v1377
      %v1531 = vpack.c.b16 %v1381, %v1378
      %v1532 = vpack.c.b16 %v1382, %v1379
      %v1533 = vpack.c.b16 %v1386, %v1383
      %v1534 = vpack.c.b16 %v1387, %v1384
      %v1535 = vpack.c.b16 %v1388, %v1385
      %v1536 = vpack.c.b16 %v1392, %v1389
      %v1537 = vpack.c.b16 %v1393, %v1390
      %v1538 = vpack.c.b16 %v1394, %v1391
      %v1539 = vpack.c.b16 %v1398, %v1395
      %v1540 = vpack.c.b16 %v1399, %v1396
      %v1541 = vpack.c.b16 %v1400, %v1397
      %v1542 = vpack.c.b16 %v1404, %v1401
      %v1543 = vpack.c.b16 %v1405, %v1402
      %v1544 = vpack.c.b16 %v1406, %v1403
      %v1545 = vpack.c.b16 %v1410, %v1407
      %v1546 = vpack.c.b16 %v1411, %v1408
      %v1547 = vpack.c.b16 %v1412, %v1409
      %v1548 = vpack.c.b16 %v1416, %v1413
      %v1549 = vpack.c.b16 %v1417, %v1414
      %v1550 = vpack.c.b16 %v1418, %v1415
      %v1551 = vpack.c.b16 %v1422, %v1419
      %v1552 = vpack.c.b16 %v1423, %v1420
      %v1553 = vpack.c.b16 %v1424, %v1421
      %v1554 = vpack.c.b16 %v1428, %v1425
      %v1555 = vpack.c.b16 %v1429, %v1426
      %v1556 = vpack.c.b16 %v1430, %v1427
      %v1557 = vpack.c.b16 %v1434, %v1431
      %v1558 = vpack.c.b16 %v1435, %v1432
      %v1559 = vpack.c.b16 %v1436, %v1433
      %v1560 = vpack.c.b16 %v1440, %v1437
      %v1561 = vpack.c.b16 %v1441, %v1438
      %v1562 = vpack.c.b16 %v1442, %v1439
      %1683 = vmatprep.subr.bf16.mxu0 %v1444
      %1684 = vmatpush1.bf16.msra.mxu0 %v1443
      %1685 = vmatprep.subr.bf16.mxu0 %v1447
      %1686 = vmatpush1.bf16.msra.mxu0 %v1446
      %1687 = vmatprep.subr.bf16.mxu0 %v1450
      %1688 = vmatpush1.bf16.msra.mxu0 %v1449
      %1689 = vmatprep.subr.bf16.mxu0 %v1453
      %1690 = vmatpush1.bf16.msra.mxu0 %v1452
      %1691 = vmatprep.subr.bf16.mxu0 %v1456
      %1692 = vmatpush1.bf16.msra.mxu0 %v1455
      %1693 = vmatprep.subr.bf16.mxu0 %v1459
      %1694 = vmatpush1.bf16.msra.mxu0 %v1458
      %1695 = vmatprep.subr.bf16.mxu0 %v1462
      %1696 = vmatpush1.bf16.msra.mxu0 %v1461
      %1697 = vmatprep.subr.bf16.mxu0 %v1465
      %1698 = vmatpush1.bf16.msra.mxu0 %v1464
      %1699 = vmatprep.subr.bf16.mxu0 %v1468
      %1700 = vmatpush1.bf16.msra.mxu0 %v1467
      %1701 = vmatprep.subr.bf16.mxu0 %v1471
      %1702 = vmatpush1.bf16.msra.mxu0 %v1470
      %1703 = vmatprep.subr.bf16.mxu0 %v1474
      %1704 = vmatpush1.bf16.msra.mxu0 %v1473
      %1705 = vmatprep.subr.bf16.mxu0 %v1477
      %1706 = vmatpush1.bf16.msra.mxu0 %v1476
      %1707 = vmatprep.subr.bf16.mxu0 %v1480
      %1708 = vmatpush1.bf16.msra.mxu0 %v1479
      %1709 = vmatprep.subr.bf16.mxu0 %v1483
      %1710 = vmatpush1.bf16.msra.mxu0 %v1482
      %1711 = vmatprep.subr.bf16.mxu0 %v1486
      %1712 = vmatpush1.bf16.msra.mxu0 %v1485
      %1713 = vmatprep.subr.bf16.mxu0 %v1489
      %1714 = vmatpush1.bf16.msra.mxu0 %v1488
      %1715 = vmatprep.mubr.bf16.mxu0 %v1039
      %1716 = vmatmul.mubr.bf16.gmra.mrb[0].mxu0 %v1038
      %v1717 = vpop.f32.mrb[0].mxu0
      %v1718 = vadd.f32 0.0, %v1717
      %v1719 = vpop.f32.mrb[0].mxu0
      %v1720 = vadd.f32 0.0, %v1719
      %v1721 = vpop.f32.mrb[0].mxu0
      %v1722 = vpop.f32.mrb[0].mxu0
      %1723 = vdwg.mxu0
      %1724 = vmatprep.subr.bf16.mxu0 %v1492
      %1725 = vmatpush1.bf16.msra.mxu0 %v1491
      %1726 = vmatprep.subr.bf16.mxu0 %v1495
      %1727 = vmatpush1.bf16.msra.mxu0 %v1494
      %1728 = vmatprep.subr.bf16.mxu0 %v1498
      %1729 = vmatpush1.bf16.msra.mxu0 %v1497
      %1730 = vmatprep.subr.bf16.mxu0 %v1501
      %1731 = vmatpush1.bf16.msra.mxu0 %v1500
      %1732 = vmatprep.subr.bf16.mxu0 %v1504
      %1733 = vmatpush1.bf16.msra.mxu0 %v1503
      %1734 = vmatprep.subr.bf16.mxu0 %v1507
      %1735 = vmatpush1.bf16.msra.mxu0 %v1506
      %1736 = vmatprep.subr.bf16.mxu0 %v1510
      %1737 = vmatpush1.bf16.msra.mxu0 %v1509
      %1738 = vmatprep.subr.bf16.mxu0 %v1513
      %1739 = vmatpush1.bf16.msra.mxu0 %v1512
      %1740 = vmatprep.subr.bf16.mxu0 %v1516
      %1741 = vmatpush1.bf16.msra.mxu0 %v1515
      %1742 = vmatprep.subr.bf16.mxu0 %v1519
      %1743 = vmatpush1.bf16.msra.mxu0 %v1518
      %1744 = vmatprep.subr.bf16.mxu0 %v1522
      %1745 = vmatpush1.bf16.msra.mxu0 %v1521
      %1746 = vmatprep.subr.bf16.mxu0 %v1525
      %1747 = vmatpush1.bf16.msra.mxu0 %v1524
      %1748 = vmatprep.subr.bf16.mxu0 %v1528
      %1749 = vmatpush1.bf16.msra.mxu0 %v1527
      %1750 = vmatprep.subr.bf16.mxu0 %v1531
      %1751 = vmatpush1.bf16.msra.mxu0 %v1530
      %1752 = vmatprep.subr.bf16.mxu0 %v1534
      %1753 = vmatpush1.bf16.msra.mxu0 %v1533
      %1754 = vmatprep.subr.bf16.mxu0 %v1537
      %1755 = vmatpush1.bf16.msra.mxu0 %v1536
      %1756 = vmatprep.mubr.bf16.mxu0 %v1041
      %1757 = vmatmul.mubr.bf16.gmra.mrb[0].mxu0 %v1040
      %v1758 = vpop.f32.mrb[0].mxu0
      %v1759 = vadd.f32 %v1718, %v1758
      %v1760 = vpop.f32.mrb[0].mxu0
      %v1761 = vadd.f32 %v1720, %v1760
      %v1762 = vpop.f32.mrb[0].mxu0
      %v1763 = vpop.f32.mrb[0].mxu0
      %1764 = vdwg.mxu0
      %1765 = vmatprep.subr.bf16.mxu0 %v1540
      %1766 = vmatpush1.bf16.msra.mxu0 %v1539
      %1767 = vmatprep.subr.bf16.mxu0 %v1543
      %1768 = vmatpush1.bf16.msra.mxu0 %v1542
      %1769 = vmatprep.subr.bf16.mxu0 %v1546
      %1770 = vmatpush1.bf16.msra.mxu0 %v1545
      %1771 = vmatprep.subr.bf16.mxu0 %v1549
      %1772 = vmatpush1.bf16.msra.mxu0 %v1548
      %1773 = vmatprep.subr.bf16.mxu0 %v1552
      %1774 = vmatpush1.bf16.msra.mxu0 %v1551
      %1775 = vmatprep.subr.bf16.mxu0 %v1555
      %1776 = vmatpush1.bf16.msra.mxu0 %v1554
      %1777 = vmatprep.subr.bf16.mxu0 %v1558
      %1778 = vmatpush1.bf16.msra.mxu0 %v1557
      %1779 = vmatprep.subr.bf16.mxu0 %v1561
      %1780 = vmatpush1.bf16.msra.mxu0 %v1560
      %1781 = vmatprep.subr.bf16.mxu0 0
      %1782 = vmatpush1.bf16.msra.mxu0 0
      %1783 = vmatprep.subr.bf16.mxu0 0
      %1784 = vmatpush1.bf16.msra.mxu0 0
      %1785 = vmatprep.subr.bf16.mxu0 0
      %1786 = vmatpush1.bf16.msra.mxu0 0
      %1787 = vmatprep.subr.bf16.mxu0 0
      %1788 = vmatpush1.bf16.msra.mxu0 0
      %1789 = vmatprep.subr.bf16.mxu0 0
      %1790 = vmatpush1.bf16.msra.mxu0 0
      %1791 = vmatprep.subr.bf16.mxu0 0
      %1792 = vmatpush1.bf16.msra.mxu0 0
      %1793 = vmatprep.subr.bf16.mxu0 0
      %1794 = vmatpush1.bf16.msra.mxu0 0
      %1795 = vmatprep.subr.bf16.mxu0 0
      %1796 = vmatpush1.bf16.msra.mxu0 0
      %1797 = vmatprep.mubr.bf16.mxu0 0
      %1798 = vmatmul.mubr.bf16.gmra.mrb[0].mxu0 %v1042
      %v1799 = vpop.f32.mrb[0].mxu0
      %v1800 = vadd.f32 %v1759, %v1799
      %v1801 = vpop.f32.mrb[0].mxu0
      %v1802 = vadd.f32 %v1761, %v1801
      %v1803 = vpop.f32.mrb[0].mxu0
      %v1804 = vpop.f32.mrb[0].mxu0
      %1805 = vdwg.mxu0
      %1806 = vmatprep.subr.bf16.mxu0 0
      %1807 = vmatpush1.bf16.msra.mxu0 %v1445
      %1808 = vmatprep.subr.bf16.mxu0 0
      %1809 = vmatpush1.bf16.msra.mxu0 %v1448
      %1810 = vmatprep.subr.bf16.mxu0 0
      %1811 = vmatpush1.bf16.msra.mxu0 %v1451
      %1812 = vmatprep.subr.bf16.mxu0 0
      %1813 = vmatpush1.bf16.msra.mxu0 %v1454
      %1814 = vmatprep.subr.bf16.mxu0 0
      %1815 = vmatpush1.bf16.msra.mxu0 %v1457
      %1816 = vmatprep.subr.bf16.mxu0 0
      %1817 = vmatpush1.bf16.msra.mxu0 %v1460
      %1818 = vmatprep.subr.bf16.mxu0 0
      %1819 = vmatpush1.bf16.msra.mxu0 %v1463
      %1820 = vmatprep.subr.bf16.mxu0 0
      %1821 = vmatpush1.bf16.msra.mxu0 %v1466
      %1822 = vmatprep.subr.bf16.mxu0 0
      %1823 = vmatpush1.bf16.msra.mxu0 %v1469
      %1824 = vmatprep.subr.bf16.mxu0 0
      %1825 = vmatpush1.bf16.msra.mxu0 %v1472
      %1826 = vmatprep.subr.bf16.mxu0 0
      %1827 = vmatpush1.bf16.msra.mxu0 %v1475
      %1828 = vmatprep.subr.bf16.mxu0 0
      %1829 = vmatpush1.bf16.msra.mxu0 %v1478
      %1830 = vmatprep.subr.bf16.mxu0 0
      %1831 = vmatpush1.bf16.msra.mxu0 %v1481
      %1832 = vmatprep.subr.bf16.mxu0 0
      %1833 = vmatpush1.bf16.msra.mxu0 %v1484
      %1834 = vmatprep.subr.bf16.mxu0 0
      %1835 = vmatpush1.bf16.msra.mxu0 %v1487
      %1836 = vmatprep.subr.bf16.mxu0 0
      %1837 = vmatpush1.bf16.msra.mxu0 %v1490
      %1838 = vmatprep.mubr.bf16.mxu0 %v1039
      %1839 = vmatmul.mubr.bf16.gmra.mrb[0].mxu0 %v1038
      %v1840 = vpop.f32.mrb[0].mxu0
      %v1841 = vadd.f32 0.0, %v1840
      %v1842 = vpop.f32.mrb[0].mxu0
      %v1843 = vpop.f32.mrb[0].mxu0
      %v1844 = vpop.f32.mrb[0].mxu0
      %1845 = vdwg.mxu0
      %1846 = vmatprep.subr.bf16.mxu0 0
      %1847 = vmatpush1.bf16.msra.mxu0 %v1493
      %1848 = vmatprep.subr.bf16.mxu0 0
      %1849 = vmatpush1.bf16.msra.mxu0 %v1496
      %1850 = vmatprep.subr.bf16.mxu0 0
      %1851 = vmatpush1.bf16.msra.mxu0 %v1499
      %1852 = vmatprep.subr.bf16.mxu0 0
      %1853 = vmatpush1.bf16.msra.mxu0 %v1502
      %1854 = vmatprep.subr.bf16.mxu0 0
      %1855 = vmatpush1.bf16.msra.mxu0 %v1505
      %1856 = vmatprep.subr.bf16.mxu0 0
      %1857 = vmatpush1.bf16.msra.mxu0 %v1508
      %1858 = vmatprep.subr.bf16.mxu0 0
      %1859 = vmatpush1.bf16.msra.mxu0 %v1511
      %1860 = vmatprep.subr.bf16.mxu0 0
      %1861 = vmatpush1.bf16.msra.mxu0 %v1514
      %1862 = vmatprep.subr.bf16.mxu0 0
      %1863 = vmatpush1.bf16.msra.mxu0 %v1517
      %1864 = vmatprep.subr.bf16.mxu0 0
      %1865 = vmatpush1.bf16.msra.mxu0 %v1520
      %1866 = vmatprep.subr.bf16.mxu0 0
      %1867 = vmatpush1.bf16.msra.mxu0 %v1523
      %1868 = vmatprep.subr.bf16.mxu0 0
      %1869 = vmatpush1.bf16.msra.mxu0 %v1526
      %1870 = vmatprep.subr.bf16.mxu0 0
      %1871 = vmatpush1.bf16.msra.mxu0 %v1529
      %1872 = vmatprep.subr.bf16.mxu0 0
      %1873 = vmatpush1.bf16.msra.mxu0 %v1532
      %1874 = vmatprep.subr.bf16.mxu0 0
      %1875 = vmatpush1.bf16.msra.mxu0 %v1535
      %1876 = vmatprep.subr.bf16.mxu0 0
      %1877 = vmatpush1.bf16.msra.mxu0 %v1538
      %1878 = vmatprep.mubr.bf16.mxu0 %v1041
      %1879 = vmatmul.mubr.bf16.gmra.mrb[0].mxu0 %v1040
      %v1880 = vpop.f32.mrb[0].mxu0
      %v1881 = vadd.f32 %v1841, %v1880
      %v1882 = vpop.f32.mrb[0].mxu0
      %v1883 = vpop.f32.mrb[0].mxu0
      %v1884 = vpop.f32.mrb[0].mxu0
      %1885 = vdwg.mxu0
      %1886 = vmatprep.subr.bf16.mxu0 0
      %1887 = vmatpush1.bf16.msra.mxu0 %v1541
      %1888 = vmatprep.subr.bf16.mxu0 0
      %1889 = vmatpush1.bf16.msra.mxu0 %v1544
      %1890 = vmatprep.subr.bf16.mxu0 0
      %1891 = vmatpush1.bf16.msra.mxu0 %v1547
      %1892 = vmatprep.subr.bf16.mxu0 0
      %1893 = vmatpush1.bf16.msra.mxu0 %v1550
      %1894 = vmatprep.subr.bf16.mxu0 0
      %1895 = vmatpush1.bf16.msra.mxu0 %v1553
      %1896 = vmatprep.subr.bf16.mxu0 0
      %1897 = vmatpush1.bf16.msra.mxu0 %v1556
      %1898 = vmatprep.subr.bf16.mxu0 0
      %1899 = vmatpush1.bf16.msra.mxu0 %v1559
      %1900 = vmatprep.subr.bf16.mxu0 0
      %1901 = vmatpush1.bf16.msra.mxu0 %v1562
      %1902 = vmatprep.subr.bf16.mxu0 0
      %1903 = vmatpush1.bf16.msra.mxu0 0
      %1904 = vmatprep.subr.bf16.mxu0 0
      %1905 = vmatpush1.bf16.msra.mxu0 0
      %1906 = vmatprep.subr.bf16.mxu0 0
      %1907 = vmatpush1.bf16.msra.mxu0 0
      %1908 = vmatprep.subr.bf16.mxu0 0
      %1909 = vmatpush1.bf16.msra.mxu0 0
      %1910 = vmatprep.subr.bf16.mxu0 0
      %1911 = vmatpush1.bf16.msra.mxu0 0
      %1912 = vmatprep.subr.bf16.mxu0 0
      %1913 = vmatpush1.bf16.msra.mxu0 0
      %1914 = vmatprep.subr.bf16.mxu0 0
      %1915 = vmatpush1.bf16.msra.mxu0 0
      %1916 = vmatprep.subr.bf16.mxu0 0
      %1917 = vmatpush1.bf16.msra.mxu0 0
      %1918 = vmatprep.mubr.bf16.mxu0 0
      %1919 = vmatmul.mubr.bf16.gmra.mrb[0].mxu0 %v1042
      %v1920 = vpop.f32.mrb[0].mxu0
      %v1921 = vadd.f32 %v1881, %v1920
      %v1922 = vpop.f32.mrb[0].mxu0
      %v1923 = vpop.f32.mrb[0].mxu0
      %v1924 = vpop.f32.mrb[0].mxu0
      %1925 = vdwg.mxu0
      %v2086 = vunpack.c.l.b16 %v394
      %v2087 = vunpack.c.h.b16 %v394
      %v2088 = vunpack.c.l.b16 %v395
      %v2089 = vunpack.c.l.b16 %v396
      %v2090 = vunpack.c.h.b16 %v396
      %v2091 = vunpack.c.l.b16 %v397
      %v2092 = vunpack.c.l.b16 %v398
      %v2093 = vunpack.c.h.b16 %v398
      %v2094 = vunpack.c.l.b16 %v399
      %v2095 = vunpack.c.l.b16 %v400
      %v2096 = vunpack.c.h.b16 %v400
      %v2097 = vunpack.c.l.b16 %v401
      %v2098 = vunpack.c.l.b16 %v402
      %v2099 = vunpack.c.h.b16 %v402
      %v2100 = vunpack.c.l.b16 %v403
      %v2101 = vunpack.c.l.b16 %v404
      %v2102 = vunpack.c.h.b16 %v404
      %v2103 = vunpack.c.l.b16 %v405
      %v2104 = vunpack.c.l.b16 %v406
      %v2105 = vunpack.c.h.b16 %v406
      %v2106 = vunpack.c.l.b16 %v407
      %v2107 = vunpack.c.l.b16 %v408
      %v2108 = vunpack.c.h.b16 %v408
      %v2109 = vunpack.c.l.b16 %v409
      %v2110 = vunpack.c.l.b16 %v410
      %v2111 = vunpack.c.h.b16 %v410
      %v2112 = vunpack.c.l.b16 %v411
      %v2113 = vunpack.c.l.b16 %v412
      %v2114 = vunpack.c.h.b16 %v412
      %v2115 = vunpack.c.l.b16 %v413
      %v2116 = vunpack.c.l.b16 %v414
      %v2117 = vunpack.c.h.b16 %v414
      %v2118 = vunpack.c.l.b16 %v415
      %v2119 = vunpack.c.l.b16 %v416
      %v2120 = vunpack.c.h.b16 %v416
      %v2121 = vunpack.c.l.b16 %v417
      %v2122 = vunpack.c.l.b16 %v418
      %v2123 = vunpack.c.h.b16 %v418
      %v2124 = vunpack.c.l.b16 %v419
      %v2125 = vunpack.c.l.b16 %v420
      %v2126 = vunpack.c.h.b16 %v420
      %v2127 = vunpack.c.l.b16 %v421
      %v2128 = vunpack.c.l.b16 %v422
      %v2129 = vunpack.c.h.b16 %v422
      %v2130 = vunpack.c.l.b16 %v423
      %v2131 = vunpack.c.l.b16 %v424
      %v2132 = vunpack.c.h.b16 %v424
      %v2133 = vunpack.c.l.b16 %v425
      %v2134 = vunpack.c.l.b16 %v426
      %v2135 = vunpack.c.h.b16 %v426
      %v2136 = vunpack.c.l.b16 %v427
      %v2137 = vunpack.c.l.b16 %v428
      %v2138 = vunpack.c.h.b16 %v428
      %v2139 = vunpack.c.l.b16 %v429
      %v2140 = vunpack.c.l.b16 %v430
      %v2141 = vunpack.c.h.b16 %v430
      %v2142 = vunpack.c.l.b16 %v431
      %v2143 = vunpack.c.l.b16 %v432
      %v2144 = vunpack.c.h.b16 %v432
      %v2145 = vunpack.c.l.b16 %v433
      %v2146 = vunpack.c.l.b16 %v434
      %v2147 = vunpack.c.h.b16 %v434
      %v2148 = vunpack.c.l.b16 %v435
      %v2149 = vunpack.c.l.b16 %v436
      %v2150 = vunpack.c.h.b16 %v436
      %v2151 = vunpack.c.l.b16 %v437
      %v2152 = vunpack.c.l.b16 %v438
      %v2153 = vunpack.c.h.b16 %v438
      %v2154 = vunpack.c.l.b16 %v439
      %v2155 = vunpack.c.l.b16 %v440
      %v2156 = vunpack.c.h.b16 %v440
      %v2157 = vunpack.c.l.b16 %v441
      %v2158 = vunpack.c.l.b16 %v442
      %v2159 = vunpack.c.h.b16 %v442
      %v2160 = vunpack.c.l.b16 %v443
      %v2161 = vunpack.c.l.b16 %v444
      %v2162 = vunpack.c.h.b16 %v444
      %v2163 = vunpack.c.l.b16 %v445
      %v2164 = vunpack.c.l.b16 %v446
      %v2165 = vunpack.c.h.b16 %v446
      %v2166 = vunpack.c.l.b16 %v447
      %v2167 = vunpack.c.l.b16 %v448
      %v2168 = vunpack.c.h.b16 %v448
      %v2169 = vunpack.c.l.b16 %v449
      %v2170 = vunpack.c.l.b16 %v450
      %v2171 = vunpack.c.h.b16 %v450
      %v2172 = vunpack.c.l.b16 %v451
      %v2173 = vunpack.c.l.b16 %v452
      %v2174 = vunpack.c.h.b16 %v452
      %v2175 = vunpack.c.l.b16 %v453
      %v2176 = vunpack.c.l.b16 %v454
      %v2177 = vunpack.c.h.b16 %v454
      %v2178 = vunpack.c.l.b16 %v455
      %v2179 = vunpack.c.l.b16 %v456
      %v2180 = vunpack.c.h.b16 %v456
      %v2181 = vunpack.c.l.b16 %v457
      %v2182 = vunpack.c.l.b16 %v458
      %v2183 = vunpack.c.h.b16 %v458
      %v2184 = vunpack.c.l.b16 %v459
      %v2185 = vunpack.c.l.b16 %v460
      %v2186 = vunpack.c.h.b16 %v460
      %v2187 = vunpack.c.l.b16 %v461
      %v2188 = vunpack.c.l.b16 %v462
      %v2189 = vunpack.c.h.b16 %v462
      %v2190 = vunpack.c.l.b16 %v463
      %v2191 = vunpack.c.l.b16 %v464
      %v2192 = vunpack.c.h.b16 %v464
      %v2193 = vunpack.c.l.b16 %v465
      %v2194 = vunpack.c.l.b16 %v466
      %v2195 = vunpack.c.h.b16 %v466
      %v2196 = vunpack.c.l.b16 %v467
      %v2197 = vunpack.c.l.b16 %v468
      %v2198 = vunpack.c.h.b16 %v468
      %v2199 = vunpack.c.l.b16 %v469
      %v2200 = vunpack.c.l.b16 %v470
      %v2201 = vunpack.c.h.b16 %v470
      %v2202 = vunpack.c.l.b16 %v471
      %v2203 = vunpack.c.l.b16 %v472
      %v2204 = vunpack.c.h.b16 %v472
      %v2205 = vunpack.c.l.b16 %v473
      %v2206 = vunpack.c.l.b16 %v474
      %v2207 = vunpack.c.h.b16 %v474
      %v2208 = vunpack.c.l.b16 %v475
      %v2209 = vunpack.c.l.b16 %v476
      %v2210 = vunpack.c.h.b16 %v476
      %v2211 = vunpack.c.l.b16 %v477
      %v2212 = vunpack.c.l.b16 %v478
      %v2213 = vunpack.c.h.b16 %v478
      %v2214 = vunpack.c.l.b16 %v479
      %v2215 = vunpack.c.l.b16 %v480
      %v2216 = vunpack.c.h.b16 %v480
      %v2217 = vunpack.c.l.b16 %v481
      %v2218 = vunpack.c.l.b16 %v482
      %v2219 = vunpack.c.h.b16 %v482
      %v2220 = vunpack.c.l.b16 %v483
      %v2221 = vunpack.c.l.b16 %v484
      %v2222 = vunpack.c.h.b16 %v484
      %v2223 = vunpack.c.l.b16 %v485
      %v2224 = vunpack.c.l.b16 %v486
      %v2225 = vunpack.c.h.b16 %v486
      %v2226 = vunpack.c.l.b16 %v487
      %v2227 = vunpack.c.l.b16 %v488
      %v2228 = vunpack.c.h.b16 %v488
      %v2229 = vunpack.c.l.b16 %v489
      %v2230 = vunpack.c.l.b16 %v490
      %v2231 = vunpack.c.h.b16 %v490
      %v2232 = vunpack.c.l.b16 %v491
      %v2233 = vunpack.c.l.b16 %v492
      %v2234 = vunpack.c.h.b16 %v492
      %v2235 = vunpack.c.l.b16 %v493
      %v2236 = vunpack.c.l.b16 %v494
      %v2237 = vunpack.c.h.b16 %v494
      %v2238 = vunpack.c.l.b16 %v495
      %v2239 = vunpack.c.l.b16 %v496
      %v2240 = vunpack.c.h.b16 %v496
      %v2241 = vunpack.c.l.b16 %v497
      %v2242 = vunpack.c.l.b16 %v498
      %v2243 = vunpack.c.h.b16 %v498
      %v2244 = vunpack.c.l.b16 %v499
      %v2245 = vunpack.c.l.b16 %v500
      %v2246 = vunpack.c.h.b16 %v500
      %v2247 = vunpack.c.l.b16 %v501
      %v2248 = vunpack.c.l.b16 %v502
      %v2249 = vunpack.c.h.b16 %v502
      %v2250 = vunpack.c.l.b16 %v503
      %v2251 = vunpack.c.l.b16 %v504
      %v2252 = vunpack.c.h.b16 %v504
      %v2253 = vunpack.c.l.b16 %v505
      %v2254 = vunpack.c.l.b16 %v506
      %v2255 = vunpack.c.h.b16 %v506
      %v2256 = vunpack.c.l.b16 %v507
      %v2257 = vunpack.c.l.b16 %v508
      %v2258 = vunpack.c.h.b16 %v508
      %v2259 = vunpack.c.l.b16 %v509
      %v2260 = vunpack.c.l.b16 %v510
      %v2261 = vunpack.c.h.b16 %v510
      %v2262 = vunpack.c.l.b16 %v511
      %v2263 = vunpack.c.l.b16 %v512
      %v2264 = vunpack.c.h.b16 %v512
      %v2265 = vunpack.c.l.b16 %v513
      %v2266 = vunpack.c.l.b16 %v514
      %v2267 = vunpack.c.h.b16 %v514
      %v2268 = vunpack.c.l.b16 %v515
      %v2269 = vunpack.c.l.b16 %v516
      %v2270 = vunpack.c.h.b16 %v516
      %v2271 = vunpack.c.l.b16 %v517
      %v2272 = vunpack.c.l.b16 %v518
      %v2273 = vunpack.c.h.b16 %v518
      %v2274 = vunpack.c.l.b16 %v519
      %v2275 = vunpack.c.l.b16 %v520
      %v2276 = vunpack.c.h.b16 %v520
      %v2277 = vunpack.c.l.b16 %v521
      %v2278 = vunpack.c.l.b16 %v522
      %v2279 = vunpack.c.h.b16 %v522
      %v2280 = vunpack.c.l.b16 %v523
      %v2281 = vunpack.c.l.b16 %v524
      %v2282 = vunpack.c.h.b16 %v524
      %v2283 = vunpack.c.l.b16 %v525
      %v2284 = vunpack.c.l.b16 %v526
      %v2285 = vunpack.c.h.b16 %v526
      %v2286 = vunpack.c.l.b16 %v527
      %v2287 = vunpack.c.l.b16 %v528
      %v2288 = vunpack.c.h.b16 %v528
      %v2289 = vunpack.c.l.b16 %v529
      %v2290 = vunpack.c.l.b16 %v530
      %v2291 = vunpack.c.h.b16 %v530
      %v2292 = vunpack.c.l.b16 %v531
      %v2293 = vunpack.c.l.b16 %v532
      %v2294 = vunpack.c.h.b16 %v532
      %v2295 = vunpack.c.l.b16 %v533
      %v2296 = vunpack.c.l.b16 %v534
      %v2297 = vunpack.c.h.b16 %v534
      %v2298 = vunpack.c.l.b16 %v535
      %v2299 = vunpack.c.l.b16 %v536
      %v2300 = vunpack.c.h.b16 %v536
      %v2301 = vunpack.c.l.b16 %v537
      %v2302 = vunpack.c.l.b16 %v538
      %v2303 = vunpack.c.h.b16 %v538
      %v2304 = vunpack.c.l.b16 %v539
      %v2305 = vunpack.c.l.b16 %v540
      %v2306 = vunpack.c.h.b16 %v540
      %v2307 = vunpack.c.l.b16 %v541
      %v2308 = vunpack.c.l.b16 %v542
      %v2309 = vunpack.c.h.b16 %v542
      %v2310 = vunpack.c.l.b16 %v543
      %v2311 = vunpack.c.l.b16 %v544
      %v2312 = vunpack.c.h.b16 %v544
      %v2313 = vunpack.c.l.b16 %v545
      %v2314 = vunpack.c.l.b16 %v546
      %v2315 = vunpack.c.h.b16 %v546
      %v2316 = vunpack.c.l.b16 %v547
      %v2317 = vunpack.c.l.b16 %v548
      %v2318 = vunpack.c.h.b16 %v548
      %v2319 = vunpack.c.l.b16 %v549
      %v2320 = vunpack.c.l.b16 %v550
      %v2321 = vunpack.c.h.b16 %v550
      %v2322 = vunpack.c.l.b16 %v551
      %v2323 = vunpack.c.l.b16 %v552
      %v2324 = vunpack.c.h.b16 %v552
      %v2325 = vunpack.c.l.b16 %v553
      %v2326 = vpack.c.b16 %v2089, %v2086
      %v2327 = vpack.c.b16 %v2090, %v2087
      %v2328 = vpack.c.b16 %v2091, %v2088
      %v2329 = vpack.c.b16 %v2095, %v2092
      %v2330 = vpack.c.b16 %v2096, %v2093
      %v2331 = vpack.c.b16 %v2097, %v2094
      %v2332 = vpack.c.b16 %v2101, %v2098
      %v2333 = vpack.c.b16 %v2102, %v2099
      %v2334 = vpack.c.b16 %v2103, %v2100
      %v2335 = vpack.c.b16 %v2107, %v2104
      %v2336 = vpack.c.b16 %v2108, %v2105
      %v2337 = vpack.c.b16 %v2109, %v2106
      %v2338 = vpack.c.b16 %v2113, %v2110
      %v2339 = vpack.c.b16 %v2114, %v2111
      %v2340 = vpack.c.b16 %v2115, %v2112
      %v2341 = vpack.c.b16 %v2119, %v2116
      %v2342 = vpack.c.b16 %v2120, %v2117
      %v2343 = vpack.c.b16 %v2121, %v2118
      %v2344 = vpack.c.b16 %v2125, %v2122
      %v2345 = vpack.c.b16 %v2126, %v2123
      %v2346 = vpack.c.b16 %v2127, %v2124
      %v2347 = vpack.c.b16 %v2131, %v2128
      %v2348 = vpack.c.b16 %v2132, %v2129
      %v2349 = vpack.c.b16 %v2133, %v2130
      %v2350 = vpack.c.b16 %v2137, %v2134
      %v2351 = vpack.c.b16 %v2138, %v2135
      %v2352 = vpack.c.b16 %v2139, %v2136
      %v2353 = vpack.c.b16 %v2143, %v2140
      %v2354 = vpack.c.b16 %v2144, %v2141
      %v2355 = vpack.c.b16 %v2145, %v2142
      %v2356 = vpack.c.b16 %v2149, %v2146
      %v2357 = vpack.c.b16 %v2150, %v2147
      %v2358 = vpack.c.b16 %v2151, %v2148
      %v2359 = vpack.c.b16 %v2155, %v2152
      %v2360 = vpack.c.b16 %v2156, %v2153
      %v2361 = vpack.c.b16 %v2157, %v2154
      %v2362 = vpack.c.b16 %v2161, %v2158
      %v2363 = vpack.c.b16 %v2162, %v2159
      %v2364 = vpack.c.b16 %v2163, %v2160
      %v2365 = vpack.c.b16 %v2167, %v2164
      %v2366 = vpack.c.b16 %v2168, %v2165
      %v2367 = vpack.c.b16 %v2169, %v2166
      %v2368 = vpack.c.b16 %v2173, %v2170
      %v2369 = vpack.c.b16 %v2174, %v2171
      %v2370 = vpack.c.b16 %v2175, %v2172
      %v2371 = vpack.c.b16 %v2179, %v2176
      %v2372 = vpack.c.b16 %v2180, %v2177
      %v2373 = vpack.c.b16 %v2181, %v2178
      %v2374 = vpack.c.b16 %v2185, %v2182
      %v2375 = vpack.c.b16 %v2186, %v2183
      %v2376 = vpack.c.b16 %v2187, %v2184
      %v2377 = vpack.c.b16 %v2191, %v2188
      %v2378 = vpack.c.b16 %v2192, %v2189
      %v2379 = vpack.c.b16 %v2193, %v2190
      %v2380 = vpack.c.b16 %v2197, %v2194
      %v2381 = vpack.c.b16 %v2198, %v2195
      %v2382 = vpack.c.b16 %v2199, %v2196
      %v2383 = vpack.c.b16 %v2203, %v2200
      %v2384 = vpack.c.b16 %v2204, %v2201
      %v2385 = vpack.c.b16 %v2205, %v2202
      %v2386 = vpack.c.b16 %v2209, %v2206
      %v2387 = vpack.c.b16 %v2210, %v2207
      %v2388 = vpack.c.b16 %v2211, %v2208
      %v2389 = vpack.c.b16 %v2215, %v2212
      %v2390 = vpack.c.b16 %v2216, %v2213
      %v2391 = vpack.c.b16 %v2217, %v2214
      %v2392 = vpack.c.b16 %v2221, %v2218
      %v2393 = vpack.c.b16 %v2222, %v2219
      %v2394 = vpack.c.b16 %v2223, %v2220
      %v2395 = vpack.c.b16 %v2227, %v2224
      %v2396 = vpack.c.b16 %v2228, %v2225
      %v2397 = vpack.c.b16 %v2229, %v2226
      %v2398 = vpack.c.b16 %v2233, %v2230
      %v2399 = vpack.c.b16 %v2234, %v2231
      %v2400 = vpack.c.b16 %v2235, %v2232
      %v2401 = vpack.c.b16 %v2239, %v2236
      %v2402 = vpack.c.b16 %v2240, %v2237
      %v2403 = vpack.c.b16 %v2241, %v2238
      %v2404 = vpack.c.b16 %v2245, %v2242
      %v2405 = vpack.c.b16 %v2246, %v2243
      %v2406 = vpack.c.b16 %v2247, %v2244
      %v2407 = vpack.c.b16 %v2251, %v2248
      %v2408 = vpack.c.b16 %v2252, %v2249
      %v2409 = vpack.c.b16 %v2253, %v2250
      %v2410 = vpack.c.b16 %v2257, %v2254
      %v2411 = vpack.c.b16 %v2258, %v2255
      %v2412 = vpack.c.b16 %v2259, %v2256
      %v2413 = vpack.c.b16 %v2263, %v2260
      %v2414 = vpack.c.b16 %v2264, %v2261
      %v2415 = vpack.c.b16 %v2265, %v2262
      %v2416 = vpack.c.b16 %v2269, %v2266
      %v2417 = vpack.c.b16 %v2270, %v2267
      %v2418 = vpack.c.b16 %v2271, %v2268
      %v2419 = vpack.c.b16 %v2275, %v2272
      %v2420 = vpack.c.b16 %v2276, %v2273
      %v2421 = vpack.c.b16 %v2277, %v2274
      %v2422 = vpack.c.b16 %v2281, %v2278
      %v2423 = vpack.c.b16 %v2282, %v2279
      %v2424 = vpack.c.b16 %v2283, %v2280
      %v2425 = vpack.c.b16 %v2287, %v2284
      %v2426 = vpack.c.b16 %v2288, %v2285
      %v2427 = vpack.c.b16 %v2289, %v2286
      %v2428 = vpack.c.b16 %v2293, %v2290
      %v2429 = vpack.c.b16 %v2294, %v2291
      %v2430 = vpack.c.b16 %v2295, %v2292
      %v2431 = vpack.c.b16 %v2299, %v2296
      %v2432 = vpack.c.b16 %v2300, %v2297
      %v2433 = vpack.c.b16 %v2301, %v2298
      %v2434 = vpack.c.b16 %v2305, %v2302
      %v2435 = vpack.c.b16 %v2306, %v2303
      %v2436 = vpack.c.b16 %v2307, %v2304
      %v2437 = vpack.c.b16 %v2311, %v2308
      %v2438 = vpack.c.b16 %v2312, %v2309
      %v2439 = vpack.c.b16 %v2313, %v2310
      %v2440 = vpack.c.b16 %v2317, %v2314
      %v2441 = vpack.c.b16 %v2318, %v2315
      %v2442 = vpack.c.b16 %v2319, %v2316
      %v2443 = vpack.c.b16 %v2323, %v2320
      %v2444 = vpack.c.b16 %v2324, %v2321
      %v2445 = vpack.c.b16 %v2325, %v2322
      %2566 = vmatprep.subr.bf16.mxu0 %v2327
      %2567 = vmatpush1.bf16.msra.mxu0 %v2326
      %2568 = vmatprep.subr.bf16.mxu0 %v2330
      %2569 = vmatpush1.bf16.msra.mxu0 %v2329
      %2570 = vmatprep.subr.bf16.mxu0 %v2333
      %2571 = vmatpush1.bf16.msra.mxu0 %v2332
      %2572 = vmatprep.subr.bf16.mxu0 %v2336
      %2573 = vmatpush1.bf16.msra.mxu0 %v2335
      %2574 = vmatprep.subr.bf16.mxu0 %v2339
      %2575 = vmatpush1.bf16.msra.mxu0 %v2338
      %2576 = vmatprep.subr.bf16.mxu0 %v2342
      %2577 = vmatpush1.bf16.msra.mxu0 %v2341
      %2578 = vmatprep.subr.bf16.mxu0 %v2345
      %2579 = vmatpush1.bf16.msra.mxu0 %v2344
      %2580 = vmatprep.subr.bf16.mxu0 %v2348
      %2581 = vmatpush1.bf16.msra.mxu0 %v2347
      %2582 = vmatprep.subr.bf16.mxu0 %v2351
      %2583 = vmatpush1.bf16.msra.mxu0 %v2350
      %2584 = vmatprep.subr.bf16.mxu0 %v2354
      %2585 = vmatpush1.bf16.msra.mxu0 %v2353
      %2586 = vmatprep.subr.bf16.mxu0 %v2357
      %2587 = vmatpush1.bf16.msra.mxu0 %v2356
      %2588 = vmatprep.subr.bf16.mxu0 %v2360
      %2589 = vmatpush1.bf16.msra.mxu0 %v2359
      %2590 = vmatprep.subr.bf16.mxu0 %v2363
      %2591 = vmatpush1.bf16.msra.mxu0 %v2362
      %2592 = vmatprep.subr.bf16.mxu0 %v2366
      %2593 = vmatpush1.bf16.msra.mxu0 %v2365
      %2594 = vmatprep.subr.bf16.mxu0 %v2369
      %2595 = vmatpush1.bf16.msra.mxu0 %v2368
      %2596 = vmatprep.subr.bf16.mxu0 %v2372
      %2597 = vmatpush1.bf16.msra.mxu0 %v2371
      %2598 = vmatprep.mubr.bf16.mxu0 %v1039
      %2599 = vmatmul.mubr.bf16.gmra.mrb[0].mxu0 %v1038
      %v2600 = vpop.f32.mrb[0].mxu0
      %v2601 = vadd.f32 0.0, %v2600
      %v2602 = vpop.f32.mrb[0].mxu0
      %v2603 = vadd.f32 0.0, %v2602
      %v2604 = vpop.f32.mrb[0].mxu0
      %v2605 = vpop.f32.mrb[0].mxu0
      %2606 = vdwg.mxu0
      %2607 = vmatprep.subr.bf16.mxu0 %v2375
      %2608 = vmatpush1.bf16.msra.mxu0 %v2374
      %2609 = vmatprep.subr.bf16.mxu0 %v2378
      %2610 = vmatpush1.bf16.msra.mxu0 %v2377
      %2611 = vmatprep.subr.bf16.mxu0 %v2381
      %2612 = vmatpush1.bf16.msra.mxu0 %v2380
      %2613 = vmatprep.subr.bf16.mxu0 %v2384
      %2614 = vmatpush1.bf16.msra.mxu0 %v2383
      %2615 = vmatprep.subr.bf16.mxu0 %v2387
      %2616 = vmatpush1.bf16.msra.mxu0 %v2386
      %2617 = vmatprep.subr.bf16.mxu0 %v2390
      %2618 = vmatpush1.bf16.msra.mxu0 %v2389
      %2619 = vmatprep.subr.bf16.mxu0 %v2393
      %2620 = vmatpush1.bf16.msra.mxu0 %v2392
      %2621 = vmatprep.subr.bf16.mxu0 %v2396
      %2622 = vmatpush1.bf16.msra.mxu0 %v2395
      %2623 = vmatprep.subr.bf16.mxu0 %v2399
      %2624 = vmatpush1.bf16.msra.mxu0 %v2398
      %2625 = vmatprep.subr.bf16.mxu0 %v2402
      %2626 = vmatpush1.bf16.msra.mxu0 %v2401
      %2627 = vmatprep.subr.bf16.mxu0 %v2405
      %2628 = vmatpush1.bf16.msra.mxu0 %v2404
      %2629 = vmatprep.subr.bf16.mxu0 %v2408
      %2630 = vmatpush1.bf16.msra.mxu0 %v2407
      %2631 = vmatprep.subr.bf16.mxu0 %v2411
      %2632 = vmatpush1.bf16.msra.mxu0 %v2410
      %2633 = vmatprep.subr.bf16.mxu0 %v2414
      %2634 = vmatpush1.bf16.msra.mxu0 %v2413
      %2635 = vmatprep.subr.bf16.mxu0 %v2417
      %2636 = vmatpush1.bf16.msra.mxu0 %v2416
      %2637 = vmatprep.subr.bf16.mxu0 %v2420
      %2638 = vmatpush1.bf16.msra.mxu0 %v2419
      %2639 = vmatprep.mubr.bf16.mxu0 %v1041
      %2640 = vmatmul.mubr.bf16.gmra.mrb[0].mxu0 %v1040
      %v2641 = vpop.f32.mrb[0].mxu0
      %v2642 = vadd.f32 %v2601, %v2641
      %v2643 = vpop.f32.mrb[0].mxu0
      %v2644 = vadd.f32 %v2603, %v2643
      %v2645 = vpop.f32.mrb[0].mxu0
      %v2646 = vpop.f32.mrb[0].mxu0
      %2647 = vdwg.mxu0
      %2648 = vmatprep.subr.bf16.mxu0 %v2423
      %2649 = vmatpush1.bf16.msra.mxu0 %v2422
      %2650 = vmatprep.subr.bf16.mxu0 %v2426
      %2651 = vmatpush1.bf16.msra.mxu0 %v2425
      %2652 = vmatprep.subr.bf16.mxu0 %v2429
      %2653 = vmatpush1.bf16.msra.mxu0 %v2428
      %2654 = vmatprep.subr.bf16.mxu0 %v2432
      %2655 = vmatpush1.bf16.msra.mxu0 %v2431
      %2656 = vmatprep.subr.bf16.mxu0 %v2435
      %2657 = vmatpush1.bf16.msra.mxu0 %v2434
      %2658 = vmatprep.subr.bf16.mxu0 %v2438
      %2659 = vmatpush1.bf16.msra.mxu0 %v2437
      %2660 = vmatprep.subr.bf16.mxu0 %v2441
      %2661 = vmatpush1.bf16.msra.mxu0 %v2440
      %2662 = vmatprep.subr.bf16.mxu0 %v2444
      %2663 = vmatpush1.bf16.msra.mxu0 %v2443
      %2664 = vmatprep.subr.bf16.mxu0 0
      %2665 = vmatpush1.bf16.msra.mxu0 0
      %2666 = vmatprep.subr.bf16.mxu0 0
      %2667 = vmatpush1.bf16.msra.mxu0 0
      %2668 = vmatprep.subr.bf16.mxu0 0
      %2669 = vmatpush1.bf16.msra.mxu0 0
      %2670 = vmatprep.subr.bf16.mxu0 0
      %2671 = vmatpush1.bf16.msra.mxu0 0
      %2672 = vmatprep.subr.bf16.mxu0 0
      %2673 = vmatpush1.bf16.msra.mxu0 0
      %2674 = vmatprep.subr.bf16.mxu0 0
      %2675 = vmatpush1.bf16.msra.mxu0 0
      %2676 = vmatprep.subr.bf16.mxu0 0
      %2677 = vmatpush1.bf16.msra.mxu0 0
      %2678 = vmatprep.subr.bf16.mxu0 0
      %2679 = vmatpush1.bf16.msra.mxu0 0
      %2680 = vmatprep.mubr.bf16.mxu0 0
      %2681 = vmatmul.mubr.bf16.gmra.mrb[0].mxu0 %v1042
      %v2682 = vpop.f32.mrb[0].mxu0
      %v2683 = vadd.f32 %v2642, %v2682
      %v2684 = vpop.f32.mrb[0].mxu0
      %v2685 = vadd.f32 %v2644, %v2684
      %v2686 = vpop.f32.mrb[0].mxu0
      %v2687 = vpop.f32.mrb[0].mxu0
      %2688 = vdwg.mxu0
      %2689 = vmatprep.subr.bf16.mxu0 0
      %2690 = vmatpush1.bf16.msra.mxu0 %v2328
      %2691 = vmatprep.subr.bf16.mxu0 0
      %2692 = vmatpush1.bf16.msra.mxu0 %v2331
      %2693 = vmatprep.subr.bf16.mxu0 0
      %2694 = vmatpush1.bf16.msra.mxu0 %v2334
      %2695 = vmatprep.subr.bf16.mxu0 0
      %2696 = vmatpush1.bf16.msra.mxu0 %v2337
      %2697 = vmatprep.subr.bf16.mxu0 0
      %2698 = vmatpush1.bf16.msra.mxu0 %v2340
      %2699 = vmatprep.subr.bf16.mxu0 0
      %2700 = vmatpush1.bf16.msra.mxu0 %v2343
      %2701 = vmatprep.subr.bf16.mxu0 0
      %2702 = vmatpush1.bf16.msra.mxu0 %v2346
      %2703 = vmatprep.subr.bf16.mxu0 0
      %2704 = vmatpush1.bf16.msra.mxu0 %v2349
      %2705 = vmatprep.subr.bf16.mxu0 0
      %2706 = vmatpush1.bf16.msra.mxu0 %v2352
      %2707 = vmatprep.subr.bf16.mxu0 0
      %2708 = vmatpush1.bf16.msra.mxu0 %v2355
      %2709 = vmatprep.subr.bf16.mxu0 0
      %2710 = vmatpush1.bf16.msra.mxu0 %v2358
      %2711 = vmatprep.subr.bf16.mxu0 0
      %2712 = vmatpush1.bf16.msra.mxu0 %v2361
      %2713 = vmatprep.subr.bf16.mxu0 0
      %2714 = vmatpush1.bf16.msra.mxu0 %v2364
      %2715 = vmatprep.subr.bf16.mxu0 0
      %2716 = vmatpush1.bf16.msra.mxu0 %v2367
      %2717 = vmatprep.subr.bf16.mxu0 0
      %2718 = vmatpush1.bf16.msra.mxu0 %v2370
      %2719 = vmatprep.subr.bf16.mxu0 0
      %2720 = vmatpush1.bf16.msra.mxu0 %v2373
      %2721 = vmatprep.mubr.bf16.mxu0 %v1039
      %2722 = vmatmul.mubr.bf16.gmra.mrb[0].mxu0 %v1038
      %v2723 = vpop.f32.mrb[0].mxu0
      %v2724 = vadd.f32 0.0, %v2723
      %v2725 = vpop.f32.mrb[0].mxu0
      %v2726 = vpop.f32.mrb[0].mxu0
      %v2727 = vpop.f32.mrb[0].mxu0
      %2728 = vdwg.mxu0
      %2729 = vmatprep.subr.bf16.mxu0 0
      %2730 = vmatpush1.bf16.msra.mxu0 %v2376
      %2731 = vmatprep.subr.bf16.mxu0 0
      %2732 = vmatpush1.bf16.msra.mxu0 %v2379
      %2733 = vmatprep.subr.bf16.mxu0 0
      %2734 = vmatpush1.bf16.msra.mxu0 %v2382
      %2735 = vmatprep.subr.bf16.mxu0 0
      %2736 = vmatpush1.bf16.msra.mxu0 %v2385
      %2737 = vmatprep.subr.bf16.mxu0 0
      %2738 = vmatpush1.bf16.msra.mxu0 %v2388
      %2739 = vmatprep.subr.bf16.mxu0 0
      %2740 = vmatpush1.bf16.msra.mxu0 %v2391
      %2741 = vmatprep.subr.bf16.mxu0 0
      %2742 = vmatpush1.bf16.msra.mxu0 %v2394
      %2743 = vmatprep.subr.bf16.mxu0 0
      %2744 = vmatpush1.bf16.msra.mxu0 %v2397
      %2745 = vmatprep.subr.bf16.mxu0 0
      %2746 = vmatpush1.bf16.msra.mxu0 %v2400
      %2747 = vmatprep.subr.bf16.mxu0 0
      %2748 = vmatpush1.bf16.msra.mxu0 %v2403
      %2749 = vmatprep.subr.bf16.mxu0 0
      %2750 = vmatpush1.bf16.msra.mxu0 %v2406
      %2751 = vmatprep.subr.bf16.mxu0 0
      %2752 = vmatpush1.bf16.msra.mxu0 %v2409
      %2753 = vmatprep.subr.bf16.mxu0 0
      %2754 = vmatpush1.bf16.msra.mxu0 %v2412
      %2755 = vmatprep.subr.bf16.mxu0 0
      %2756 = vmatpush1.bf16.msra.mxu0 %v2415
      %2757 = vmatprep.subr.bf16.mxu0 0
      %2758 = vmatpush1.bf16.msra.mxu0 %v2418
      %2759 = vmatprep.subr.bf16.mxu0 0
      %2760 = vmatpush1.bf16.msra.mxu0 %v2421
      %2761 = vmatprep.mubr.bf16.mxu0 %v1041
      %2762 = vmatmul.mubr.bf16.gmra.mrb[0].mxu0 %v1040
      %v2763 = vpop.f32.mrb[0].mxu0
      %v2764 = vadd.f32 %v2724, %v2763
      %v2765 = vpop.f32.mrb[0].mxu0
      %v2766 = vpop.f32.mrb[0].mxu0
      %v2767 = vpop.f32.mrb[0].mxu0
      %2768 = vdwg.mxu0
      %2769 = vmatprep.subr.bf16.mxu0 0
      %2770 = vmatpush1.bf16.msra.mxu0 %v2424
      %2771 = vmatprep.subr.bf16.mxu0 0
      %2772 = vmatpush1.bf16.msra.mxu0 %v2427
      %2773 = vmatprep.subr.bf16.mxu0 0
      %2774 = vmatpush1.bf16.msra.mxu0 %v2430
      %2775 = vmatprep.subr.bf16.mxu0 0
      %2776 = vmatpush1.bf16.msra.mxu0 %v2433
      %2777 = vmatprep.subr.bf16.mxu0 0
      %2778 = vmatpush1.bf16.msra.mxu0 %v2436
      %2779 = vmatprep.subr.bf16.mxu0 0
      %2780 = vmatpush1.bf16.msra.mxu0 %v2439
      %2781 = vmatprep.subr.bf16.mxu0 0
      %2782 = vmatpush1.bf16.msra.mxu0 %v2442
      %2783 = vmatprep.subr.bf16.mxu0 0
      %2784 = vmatpush1.bf16.msra.mxu0 %v2445
      %2785 = vmatprep.subr.bf16.mxu0 0
      %2786 = vmatpush1.bf16.msra.mxu0 0
      %2787 = vmatprep.subr.bf16.mxu0 0
      %2788 = vmatpush1.bf16.msra.mxu0 0
      %2789 = vmatprep.subr.bf16.mxu0 0
      %2790 = vmatpush1.bf16.msra.mxu0 0
      %2791 = vmatprep.subr.bf16.mxu0 0
      %2792 = vmatpush1.bf16.msra.mxu0 0
      %2793 = vmatprep.subr.bf16.mxu0 0
      %2794 = vmatpush1.bf16.msra.mxu0 0
      %2795 = vmatprep.subr.bf16.mxu0 0
      %2796 = vmatpush1.bf16.msra.mxu0 0
      %2797 = vmatprep.subr.bf16.mxu0 0
      %2798 = vmatpush1.bf16.msra.mxu0 0
      %2799 = vmatprep.subr.bf16.mxu0 0
      %2800 = vmatpush1.bf16.msra.mxu0 0
      %2801 = vmatprep.mubr.bf16.mxu0 0
      %2802 = vmatmul.mubr.bf16.gmra.mrb[0].mxu0 %v1042
      %v2803 = vpop.f32.mrb[0].mxu0
      %v2804 = vadd.f32 %v2764, %v2803
      %v2805 = vpop.f32.mrb[0].mxu0
      %v2806 = vpop.f32.mrb[0].mxu0
      %v2807 = vpop.f32.mrb[0].mxu0
      %2808 = vdwg.mxu0
      %v2809 = vmax.f32 %v1800, %v2683
      %v2810 = vmax.f32 %v1802, %v2685
      %v2811 = vmax.f32 %v1921, %v2804
      %v2813 = vrot.slane %v228, 1
      %v2815 = vpack.c.bf16 %v2813, %v2813
      %2816 = vmatprep.subr.bf16.mxu0 %v1444
      %2817 = vmatpush1.bf16.msra.mxu0 %v1443
      %2818 = vmatprep.subr.bf16.mxu0 %v1447
      %2819 = vmatpush1.bf16.msra.mxu0 %v1446
      %2820 = vmatprep.subr.bf16.mxu0 %v1450
      %2821 = vmatpush1.bf16.msra.mxu0 %v1449
      %2822 = vmatprep.subr.bf16.mxu0 %v1453
      %2823 = vmatpush1.bf16.msra.mxu0 %v1452
      %2824 = vmatprep.subr.bf16.mxu0 %v1456
      %2825 = vmatpush1.bf16.msra.mxu0 %v1455
      %2826 = vmatprep.subr.bf16.mxu0 %v1459
      %2827 = vmatpush1.bf16.msra.mxu0 %v1458
      %2828 = vmatprep.subr.bf16.mxu0 %v1462
      %2829 = vmatpush1.bf16.msra.mxu0 %v1461
      %2830 = vmatprep.subr.bf16.mxu0 %v1465
      %2831 = vmatpush1.bf16.msra.mxu0 %v1464
      %2832 = vmatprep.subr.bf16.mxu0 %v1468
      %2833 = vmatpush1.bf16.msra.mxu0 %v1467
      %2834 = vmatprep.subr.bf16.mxu0 %v1471
      %2835 = vmatpush1.bf16.msra.mxu0 %v1470
      %2836 = vmatprep.subr.bf16.mxu0 %v1474
      %2837 = vmatpush1.bf16.msra.mxu0 %v1473
      %2838 = vmatprep.subr.bf16.mxu0 %v1477
      %2839 = vmatpush1.bf16.msra.mxu0 %v1476
      %2840 = vmatprep.subr.bf16.mxu0 %v1480
      %2841 = vmatpush1.bf16.msra.mxu0 %v1479
      %2842 = vmatprep.subr.bf16.mxu0 %v1483
      %2843 = vmatpush1.bf16.msra.mxu0 %v1482
      %2844 = vmatprep.subr.bf16.mxu0 %v1486
      %2845 = vmatpush1.bf16.msra.mxu0 %v1485
      %2846 = vmatprep.subr.bf16.mxu0 %v1489
      %2847 = vmatpush1.bf16.msra.mxu0 %v1488
      %2848 = vmatprep.mubr.bf16.mxu0 %v1040
      %2849 = vmatmul.mubr.bf16.gmra.mrb[0].mxu0 %v1039
      %v2850 = vpop.f32.mrb[0].mxu0
      %v2851 = vadd.f32 0.0, %v2850
      %v2852 = vpop.f32.mrb[0].mxu0
      %v2853 = vadd.f32 0.0, %v2852
      %v2854 = vpop.f32.mrb[0].mxu0
      %v2855 = vpop.f32.mrb[0].mxu0
      %2856 = vdwg.mxu0
      %2857 = vmatprep.subr.bf16.mxu0 %v1492
      %2858 = vmatpush1.bf16.msra.mxu0 %v1491
      %2859 = vmatprep.subr.bf16.mxu0 %v1495
      %2860 = vmatpush1.bf16.msra.mxu0 %v1494
      %2861 = vmatprep.subr.bf16.mxu0 %v1498
      %2862 = vmatpush1.bf16.msra.mxu0 %v1497
      %2863 = vmatprep.subr.bf16.mxu0 %v1501
      %2864 = vmatpush1.bf16.msra.mxu0 %v1500
      %2865 = vmatprep.subr.bf16.mxu0 %v1504
      %2866 = vmatpush1.bf16.msra.mxu0 %v1503
      %2867 = vmatprep.subr.bf16.mxu0 %v1507
      %2868 = vmatpush1.bf16.msra.mxu0 %v1506
      %2869 = vmatprep.subr.bf16.mxu0 %v1510
      %2870 = vmatpush1.bf16.msra.mxu0 %v1509
      %2871 = vmatprep.subr.bf16.mxu0 %v1513
      %2872 = vmatpush1.bf16.msra.mxu0 %v1512
      %2873 = vmatprep.subr.bf16.mxu0 %v1516
      %2874 = vmatpush1.bf16.msra.mxu0 %v1515
      %2875 = vmatprep.subr.bf16.mxu0 %v1519
      %2876 = vmatpush1.bf16.msra.mxu0 %v1518
      %2877 = vmatprep.subr.bf16.mxu0 %v1522
      %2878 = vmatpush1.bf16.msra.mxu0 %v1521
      %2879 = vmatprep.subr.bf16.mxu0 %v1525
      %2880 = vmatpush1.bf16.msra.mxu0 %v1524
      %2881 = vmatprep.subr.bf16.mxu0 %v1528
      %2882 = vmatpush1.bf16.msra.mxu0 %v1527
      %2883 = vmatprep.subr.bf16.mxu0 %v1531
      %2884 = vmatpush1.bf16.msra.mxu0 %v1530
      %2885 = vmatprep.subr.bf16.mxu0 %v1534
      %2886 = vmatpush1.bf16.msra.mxu0 %v1533
      %2887 = vmatprep.subr.bf16.mxu0 %v1537
      %2888 = vmatpush1.bf16.msra.mxu0 %v1536
      %2889 = vmatprep.mubr.bf16.mxu0 %v1042
      %2890 = vmatmul.mubr.bf16.gmra.mrb[0].mxu0 %v1041
      %v2891 = vpop.f32.mrb[0].mxu0
      %v2892 = vadd.f32 %v2851, %v2891
      %v2893 = vpop.f32.mrb[0].mxu0
      %v2894 = vadd.f32 %v2853, %v2893
      %v2895 = vpop.f32.mrb[0].mxu0
      %v2896 = vpop.f32.mrb[0].mxu0
      %2897 = vdwg.mxu0
      %2898 = vmatprep.subr.bf16.mxu0 %v1540
      %2899 = vmatpush1.bf16.msra.mxu0 %v1539
      %2900 = vmatprep.subr.bf16.mxu0 %v1543
      %2901 = vmatpush1.bf16.msra.mxu0 %v1542
      %2902 = vmatprep.subr.bf16.mxu0 %v1546
      %2903 = vmatpush1.bf16.msra.mxu0 %v1545
      %2904 = vmatprep.subr.bf16.mxu0 %v1549
      %2905 = vmatpush1.bf16.msra.mxu0 %v1548
      %2906 = vmatprep.subr.bf16.mxu0 %v1552
      %2907 = vmatpush1.bf16.msra.mxu0 %v1551
      %2908 = vmatprep.subr.bf16.mxu0 %v1555
      %2909 = vmatpush1.bf16.msra.mxu0 %v1554
      %2910 = vmatprep.subr.bf16.mxu0 %v1558
      %2911 = vmatpush1.bf16.msra.mxu0 %v1557
      %2912 = vmatprep.subr.bf16.mxu0 %v1561
      %2913 = vmatpush1.bf16.msra.mxu0 %v1560
      %2914 = vmatprep.subr.bf16.mxu0 0
      %2915 = vmatpush1.bf16.msra.mxu0 0
      %2916 = vmatprep.subr.bf16.mxu0 0
      %2917 = vmatpush1.bf16.msra.mxu0 0
      %2918 = vmatprep.subr.bf16.mxu0 0
      %2919 = vmatpush1.bf16.msra.mxu0 0
      %2920 = vmatprep.subr.bf16.mxu0 0
      %2921 = vmatpush1.bf16.msra.mxu0 0
      %2922 = vmatprep.subr.bf16.mxu0 0
      %2923 = vmatpush1.bf16.msra.mxu0 0
      %2924 = vmatprep.subr.bf16.mxu0 0
      %2925 = vmatpush1.bf16.msra.mxu0 0
      %2926 = vmatprep.subr.bf16.mxu0 0
      %2927 = vmatpush1.bf16.msra.mxu0 0
      %2928 = vmatprep.subr.bf16.mxu0 0
      %2929 = vmatpush1.bf16.msra.mxu0 0
      %2930 = vmatprep.mubr.bf16.mxu0 0
      %2931 = vmatmul.mubr.bf16.gmra.mrb[0].mxu0 %v2815
      %v2932 = vpop.f32.mrb[0].mxu0
      %v2933 = vadd.f32 %v2892, %v2932
      %v2934 = vpop.f32.mrb[0].mxu0
      %v2935 = vadd.f32 %v2894, %v2934
      %v2936 = vpop.f32.mrb[0].mxu0
      %v2937 = vpop.f32.mrb[0].mxu0
      %2938 = vdwg.mxu0
      %2939 = vmatprep.subr.bf16.mxu0 0
      %2940 = vmatpush1.bf16.msra.mxu0 %v1445
      %2941 = vmatprep.subr.bf16.mxu0 0
      %2942 = vmatpush1.bf16.msra.mxu0 %v1448
      %2943 = vmatprep.subr.bf16.mxu0 0
      %2944 = vmatpush1.bf16.msra.mxu0 %v1451
      %2945 = vmatprep.subr.bf16.mxu0 0
      %2946 = vmatpush1.bf16.msra.mxu0 %v1454
      %2947 = vmatprep.subr.bf16.mxu0 0
      %2948 = vmatpush1.bf16.msra.mxu0 %v1457
      %2949 = vmatprep.subr.bf16.mxu0 0
      %2950 = vmatpush1.bf16.msra.mxu0 %v1460
      %2951 = vmatprep.subr.bf16.mxu0 0
      %2952 = vmatpush1.bf16.msra.mxu0 %v1463
      %2953 = vmatprep.subr.bf16.mxu0 0
      %2954 = vmatpush1.bf16.msra.mxu0 %v1466
      %2955 = vmatprep.subr.bf16.mxu0 0
      %2956 = vmatpush1.bf16.msra.mxu0 %v1469
      %2957 = vmatprep.subr.bf16.mxu0 0
      %2958 = vmatpush1.bf16.msra.mxu0 %v1472
      %2959 = vmatprep.subr.bf16.mxu0 0
      %2960 = vmatpush1.bf16.msra.mxu0 %v1475
      %2961 = vmatprep.subr.bf16.mxu0 0
      %2962 = vmatpush1.bf16.msra.mxu0 %v1478
      %2963 = vmatprep.subr.bf16.mxu0 0
      %2964 = vmatpush1.bf16.msra.mxu0 %v1481
      %2965 = vmatprep.subr.bf16.mxu0 0
      %2966 = vmatpush1.bf16.msra.mxu0 %v1484
      %2967 = vmatprep.subr.bf16.mxu0 0
      %2968 = vmatpush1.bf16.msra.mxu0 %v1487
      %2969 = vmatprep.subr.bf16.mxu0 0
      %2970 = vmatpush1.bf16.msra.mxu0 %v1490
      %2971 = vmatprep.mubr.bf16.mxu0 %v1040
      %2972 = vmatmul.mubr.bf16.gmra.mrb[0].mxu0 %v1039
      %v2973 = vpop.f32.mrb[0].mxu0
      %v2974 = vadd.f32 0.0, %v2973
      %v2975 = vpop.f32.mrb[0].mxu0
      %v2976 = vpop.f32.mrb[0].mxu0
      %v2977 = vpop.f32.mrb[0].mxu0
      %2978 = vdwg.mxu0
      %2979 = vmatprep.subr.bf16.mxu0 0
      %2980 = vmatpush1.bf16.msra.mxu0 %v1493
      %2981 = vmatprep.subr.bf16.mxu0 0
      %2982 = vmatpush1.bf16.msra.mxu0 %v1496
      %2983 = vmatprep.subr.bf16.mxu0 0
      %2984 = vmatpush1.bf16.msra.mxu0 %v1499
      %2985 = vmatprep.subr.bf16.mxu0 0
      %2986 = vmatpush1.bf16.msra.mxu0 %v1502
      %2987 = vmatprep.subr.bf16.mxu0 0
      %2988 = vmatpush1.bf16.msra.mxu0 %v1505
      %2989 = vmatprep.subr.bf16.mxu0 0
      %2990 = vmatpush1.bf16.msra.mxu0 %v1508
      %2991 = vmatprep.subr.bf16.mxu0 0
      %2992 = vmatpush1.bf16.msra.mxu0 %v1511
      %2993 = vmatprep.subr.bf16.mxu0 0
      %2994 = vmatpush1.bf16.msra.mxu0 %v1514
      %2995 = vmatprep.subr.bf16.mxu0 0
      %2996 = vmatpush1.bf16.msra.mxu0 %v1517
      %2997 = vmatprep.subr.bf16.mxu0 0
      %2998 = vmatpush1.bf16.msra.mxu0 %v1520
      %2999 = vmatprep.subr.bf16.mxu0 0
      %3000 = vmatpush1.bf16.msra.mxu0 %v1523
      %3001 = vmatprep.subr.bf16.mxu0 0
      %3002 = vmatpush1.bf16.msra.mxu0 %v1526
      %3003 = vmatprep.subr.bf16.mxu0 0
      %3004 = vmatpush1.bf16.msra.mxu0 %v1529
      %3005 = vmatprep.subr.bf16.mxu0 0
      %3006 = vmatpush1.bf16.msra.mxu0 %v1532
      %3007 = vmatprep.subr.bf16.mxu0 0
      %3008 = vmatpush1.bf16.msra.mxu0 %v1535
      %3009 = vmatprep.subr.bf16.mxu0 0
      %3010 = vmatpush1.bf16.msra.mxu0 %v1538
      %3011 = vmatprep.mubr.bf16.mxu0 %v1042
      %3012 = vmatmul.mubr.bf16.gmra.mrb[0].mxu0 %v1041
      %v3013 = vpop.f32.mrb[0].mxu0
      %v3014 = vadd.f32 %v2974, %v3013
      %v3015 = vpop.f32.mrb[0].mxu0
      %v3016 = vpop.f32.mrb[0].mxu0
      %v3017 = vpop.f32.mrb[0].mxu0
      %3018 = vdwg.mxu0
      %3019 = vmatprep.subr.bf16.mxu0 0
      %3020 = vmatpush1.bf16.msra.mxu0 %v1541
      %3021 = vmatprep.subr.bf16.mxu0 0
      %3022 = vmatpush1.bf16.msra.mxu0 %v1544
      %3023 = vmatprep.subr.bf16.mxu0 0
      %3024 = vmatpush1.bf16.msra.mxu0 %v1547
      %3025 = vmatprep.subr.bf16.mxu0 0
      %3026 = vmatpush1.bf16.msra.mxu0 %v1550
      %3027 = vmatprep.subr.bf16.mxu0 0
      %3028 = vmatpush1.bf16.msra.mxu0 %v1553
      %3029 = vmatprep.subr.bf16.mxu0 0
      %3030 = vmatpush1.bf16.msra.mxu0 %v1556
      %3031 = vmatprep.subr.bf16.mxu0 0
      %3032 = vmatpush1.bf16.msra.mxu0 %v1559
      %3033 = vmatprep.subr.bf16.mxu0 0
      %3034 = vmatpush1.bf16.msra.mxu0 %v1562
      %3035 = vmatprep.subr.bf16.mxu0 0
      %3036 = vmatpush1.bf16.msra.mxu0 0
      %3037 = vmatprep.subr.bf16.mxu0 0
      %3038 = vmatpush1.bf16.msra.mxu0 0
      %3039 = vmatprep.subr.bf16.mxu0 0
      %3040 = vmatpush1.bf16.msra.mxu0 0
      %3041 = vmatprep.subr.bf16.mxu0 0
      %3042 = vmatpush1.bf16.msra.mxu0 0
      %3043 = vmatprep.subr.bf16.mxu0 0
      %3044 = vmatpush1.bf16.msra.mxu0 0
      %3045 = vmatprep.subr.bf16.mxu0 0
      %3046 = vmatpush1.bf16.msra.mxu0 0
      %3047 = vmatprep.subr.bf16.mxu0 0
      %3048 = vmatpush1.bf16.msra.mxu0 0
      %3049 = vmatprep.subr.bf16.mxu0 0
      %3050 = vmatpush1.bf16.msra.mxu0 0
      %3051 = vmatprep.mubr.bf16.mxu0 0
      %3052 = vmatmul.mubr.bf16.gmra.mrb[0].mxu0 %v2815
      %v3053 = vpop.f32.mrb[0].mxu0
      %v3054 = vadd.f32 %v3014, %v3053
      %v3055 = vpop.f32.mrb[0].mxu0
      %v3056 = vpop.f32.mrb[0].mxu0
      %v3057 = vpop.f32.mrb[0].mxu0
      %3058 = vdwg.mxu0
      %v3059 = vmax.f32 %v2809, %v2933
      %v3060 = vmax.f32 %v2810, %v2935
      %v3061 = vmax.f32 %v2811, %v3054
      %3062 = vmatprep.subr.bf16.mxu0 %v2327
      %3063 = vmatpush1.bf16.msra.mxu0 %v2326
      %3064 = vmatprep.subr.bf16.mxu0 %v2330
      %3065 = vmatpush1.bf16.msra.mxu0 %v2329
      %3066 = vmatprep.subr.bf16.mxu0 %v2333
      %3067 = vmatpush1.bf16.msra.mxu0 %v2332
      %3068 = vmatprep.subr.bf16.mxu0 %v2336
      %3069 = vmatpush1.bf16.msra.mxu0 %v2335
      %3070 = vmatprep.subr.bf16.mxu0 %v2339
      %3071 = vmatpush1.bf16.msra.mxu0 %v2338
      %3072 = vmatprep.subr.bf16.mxu0 %v2342
      %3073 = vmatpush1.bf16.msra.mxu0 %v2341
      %3074 = vmatprep.subr.bf16.mxu0 %v2345
      %3075 = vmatpush1.bf16.msra.mxu0 %v2344
      %3076 = vmatprep.subr.bf16.mxu0 %v2348
      %3077 = vmatpush1.bf16.msra.mxu0 %v2347
      %3078 = vmatprep.subr.bf16.mxu0 %v2351
      %3079 = vmatpush1.bf16.msra.mxu0 %v2350
      %3080 = vmatprep.subr.bf16.mxu0 %v2354
      %3081 = vmatpush1.bf16.msra.mxu0 %v2353
      %3082 = vmatprep.subr.bf16.mxu0 %v2357
      %3083 = vmatpush1.bf16.msra.mxu0 %v2356
      %3084 = vmatprep.subr.bf16.mxu0 %v2360
      %3085 = vmatpush1.bf16.msra.mxu0 %v2359
      %3086 = vmatprep.subr.bf16.mxu0 %v2363
      %3087 = vmatpush1.bf16.msra.mxu0 %v2362
      %3088 = vmatprep.subr.bf16.mxu0 %v2366
      %3089 = vmatpush1.bf16.msra.mxu0 %v2365
      %3090 = vmatprep.subr.bf16.mxu0 %v2369
      %3091 = vmatpush1.bf16.msra.mxu0 %v2368
      %3092 = vmatprep.subr.bf16.mxu0 %v2372
      %3093 = vmatpush1.bf16.msra.mxu0 %v2371
      %3094 = vmatprep.mubr.bf16.mxu0 %v1040
      %3095 = vmatmul.mubr.bf16.gmra.mrb[0].mxu0 %v1039
      %v3096 = vpop.f32.mrb[0].mxu0
      %v3097 = vadd.f32 0.0, %v3096
      %v3098 = vpop.f32.mrb[0].mxu0
      %v3099 = vadd.f32 0.0, %v3098
      %v3100 = vpop.f32.mrb[0].mxu0
      %v3101 = vpop.f32.mrb[0].mxu0
      %3102 = vdwg.mxu0
      %3103 = vmatprep.subr.bf16.mxu0 %v2375
      %3104 = vmatpush1.bf16.msra.mxu0 %v2374
      %3105 = vmatprep.subr.bf16.mxu0 %v2378
      %3106 = vmatpush1.bf16.msra.mxu0 %v2377
      %3107 = vmatprep.subr.bf16.mxu0 %v2381
      %3108 = vmatpush1.bf16.msra.mxu0 %v2380
      %3109 = vmatprep.subr.bf16.mxu0 %v2384
      %3110 = vmatpush1.bf16.msra.mxu0 %v2383
      %3111 = vmatprep.subr.bf16.mxu0 %v2387
      %3112 = vmatpush1.bf16.msra.mxu0 %v2386
      %3113 = vmatprep.subr.bf16.mxu0 %v2390
      %3114 = vmatpush1.bf16.msra.mxu0 %v2389
      %3115 = vmatprep.subr.bf16.mxu0 %v2393
      %3116 = vmatpush1.bf16.msra.mxu0 %v2392
      %3117 = vmatprep.subr.bf16.mxu0 %v2396
      %3118 = vmatpush1.bf16.msra.mxu0 %v2395
      %3119 = vmatprep.subr.bf16.mxu0 %v2399
      %3120 = vmatpush1.bf16.msra.mxu0 %v2398
      %3121 = vmatprep.subr.bf16.mxu0 %v2402
      %3122 = vmatpush1.bf16.msra.mxu0 %v2401
      %3123 = vmatprep.subr.bf16.mxu0 %v2405
      %3124 = vmatpush1.bf16.msra.mxu0 %v2404
      %3125 = vmatprep.subr.bf16.mxu0 %v2408
      %3126 = vmatpush1.bf16.msra.mxu0 %v2407
      %3127 = vmatprep.subr.bf16.mxu0 %v2411
      %3128 = vmatpush1.bf16.msra.mxu0 %v2410
      %3129 = vmatprep.subr.bf16.mxu0 %v2414
      %3130 = vmatpush1.bf16.msra.mxu0 %v2413
      %3131 = vmatprep.subr.bf16.mxu0 %v2417
      %3132 = vmatpush1.bf16.msra.mxu0 %v2416
      %3133 = vmatprep.subr.bf16.mxu0 %v2420
      %3134 = vmatpush1.bf16.msra.mxu0 %v2419
      %3135 = vmatprep.mubr.bf16.mxu0 %v1042
      %3136 = vmatmul.mubr.bf16.gmra.mrb[0].mxu0 %v1041
      %v3137 = vpop.f32.mrb[0].mxu0
      %v3138 = vadd.f32 %v3097, %v3137
      %v3139 = vpop.f32.mrb[0].mxu0
      %v3140 = vadd.f32 %v3099, %v3139
      %v3141 = vpop.f32.mrb[0].mxu0
      %v3142 = vpop.f32.mrb[0].mxu0
      %3143 = vdwg.mxu0
      %3144 = vmatprep.subr.bf16.mxu0 %v2423
      %3145 = vmatpush1.bf16.msra.mxu0 %v2422
      %3146 = vmatprep.subr.bf16.mxu0 %v2426
      %3147 = vmatpush1.bf16.msra.mxu0 %v2425
      %3148 = vmatprep.subr.bf16.mxu0 %v2429
      %3149 = vmatpush1.bf16.msra.mxu0 %v2428
      %3150 = vmatprep.subr.bf16.mxu0 %v2432
      %3151 = vmatpush1.bf16.msra.mxu0 %v2431
      %3152 = vmatprep.subr.bf16.mxu0 %v2435
      %3153 = vmatpush1.bf16.msra.mxu0 %v2434
      %3154 = vmatprep.subr.bf16.mxu0 %v2438
      %3155 = vmatpush1.bf16.msra.mxu0 %v2437
      %3156 = vmatprep.subr.bf16.mxu0 %v2441
      %3157 = vmatpush1.bf16.msra.mxu0 %v2440
      %3158 = vmatprep.subr.bf16.mxu0 %v2444
      %3159 = vmatpush1.bf16.msra.mxu0 %v2443
      %3160 = vmatprep.subr.bf16.mxu0 0
      %3161 = vmatpush1.bf16.msra.mxu0 0
      %3162 = vmatprep.subr.bf16.mxu0 0
      %3163 = vmatpush1.bf16.msra.mxu0 0
      %3164 = vmatprep.subr.bf16.mxu0 0
      %3165 = vmatpush1.bf16.msra.mxu0 0
      %3166 = vmatprep.subr.bf16.mxu0 0
      %3167 = vmatpush1.bf16.msra.mxu0 0
      %3168 = vmatprep.subr.bf16.mxu0 0
      %3169 = vmatpush1.bf16.msra.mxu0 0
      %3170 = vmatprep.subr.bf16.mxu0 0
      %3171 = vmatpush1.bf16.msra.mxu0 0
      %3172 = vmatprep.subr.bf16.mxu0 0
      %3173 = vmatpush1.bf16.msra.mxu0 0
      %3174 = vmatprep.subr.bf16.mxu0 0
      %3175 = vmatpush1.bf16.msra.mxu0 0
      %3176 = vmatprep.mubr.bf16.mxu0 0
      %3177 = vmatmul.mubr.bf16.gmra.mrb[0].mxu0 %v2815
      %v3178 = vpop.f32.mrb[0].mxu0
      %v3179 = vadd.f32 %v3138, %v3178
      %v3180 = vpop.f32.mrb[0].mxu0
      %v3181 = vadd.f32 %v3140, %v3180
      %v3182 = vpop.f32.mrb[0].mxu0
      %v3183 = vpop.f32.mrb[0].mxu0
      %3184 = vdwg.mxu0
      %3185 = vmatprep.subr.bf16.mxu0 0
      %3186 = vmatpush1.bf16.msra.mxu0 %v2328
      %3187 = vmatprep.subr.bf16.mxu0 0
      %3188 = vmatpush1.bf16.msra.mxu0 %v2331
      %3189 = vmatprep.subr.bf16.mxu0 0
      %3190 = vmatpush1.bf16.msra.mxu0 %v2334
      %3191 = vmatprep.subr.bf16.mxu0 0
      %3192 = vmatpush1.bf16.msra.mxu0 %v2337
      %3193 = vmatprep.subr.bf16.mxu0 0
      %3194 = vmatpush1.bf16.msra.mxu0 %v2340
      %3195 = vmatprep.subr.bf16.mxu0 0
      %3196 = vmatpush1.bf16.msra.mxu0 %v2343
      %3197 = vmatprep.subr.bf16.mxu0 0
      %3198 = vmatpush1.bf16.msra.mxu0 %v2346
      %3199 = vmatprep.subr.bf16.mxu0 0
      %3200 = vmatpush1.bf16.msra.mxu0 %v2349
      %3201 = vmatprep.subr.bf16.mxu0 0
      %3202 = vmatpush1.bf16.msra.mxu0 %v2352
      %3203 = vmatprep.subr.bf16.mxu0 0
      %3204 = vmatpush1.bf16.msra.mxu0 %v2355
      %3205 = vmatprep.subr.bf16.mxu0 0
      %3206 = vmatpush1.bf16.msra.mxu0 %v2358
      %3207 = vmatprep.subr.bf16.mxu0 0
      %3208 = vmatpush1.bf16.msra.mxu0 %v2361
      %3209 = vmatprep.subr.bf16.mxu0 0
      %3210 = vmatpush1.bf16.msra.mxu0 %v2364
      %3211 = vmatprep.subr.bf16.mxu0 0
      %3212 = vmatpush1.bf16.msra.mxu0 %v2367
      %3213 = vmatprep.subr.bf16.mxu0 0
      %3214 = vmatpush1.bf16.msra.mxu0 %v2370
      %3215 = vmatprep.subr.bf16.mxu0 0
      %3216 = vmatpush1.bf16.msra.mxu0 %v2373
      %3217 = vmatprep.mubr.bf16.mxu0 %v1040
      %3218 = vmatmul.mubr.bf16.gmra.mrb[0].mxu0 %v1039
      %v3219 = vpop.f32.mrb[0].mxu0
      %v3220 = vadd.f32 0.0, %v3219
      %v3221 = vpop.f32.mrb[0].mxu0
      %v3222 = vpop.f32.mrb[0].mxu0
      %v3223 = vpop.f32.mrb[0].mxu0
      %3224 = vdwg.mxu0
      %3225 = vmatprep.subr.bf16.mxu0 0
      %3226 = vmatpush1.bf16.msra.mxu0 %v2376
      %3227 = vmatprep.subr.bf16.mxu0 0
      %3228 = vmatpush1.bf16.msra.mxu0 %v2379
      %3229 = vmatprep.subr.bf16.mxu0 0
      %3230 = vmatpush1.bf16.msra.mxu0 %v2382
      %3231 = vmatprep.subr.bf16.mxu0 0
      %3232 = vmatpush1.bf16.msra.mxu0 %v2385
      %3233 = vmatprep.subr.bf16.mxu0 0
      %3234 = vmatpush1.bf16.msra.mxu0 %v2388
      %3235 = vmatprep.subr.bf16.mxu0 0
      %3236 = vmatpush1.bf16.msra.mxu0 %v2391
      %3237 = vmatprep.subr.bf16.mxu0 0
      %3238 = vmatpush1.bf16.msra.mxu0 %v2394
      %3239 = vmatprep.subr.bf16.mxu0 0
      %3240 = vmatpush1.bf16.msra.mxu0 %v2397
      %3241 = vmatprep.subr.bf16.mxu0 0
      %3242 = vmatpush1.bf16.msra.mxu0 %v2400
      %3243 = vmatprep.subr.bf16.mxu0 0
      %3244 = vmatpush1.bf16.msra.mxu0 %v2403
      %3245 = vmatprep.subr.bf16.mxu0 0
      %3246 = vmatpush1.bf16.msra.mxu0 %v2406
      %3247 = vmatprep.subr.bf16.mxu0 0
      %3248 = vmatpush1.bf16.msra.mxu0 %v2409
      %3249 = vmatprep.subr.bf16.mxu0 0
      %3250 = vmatpush1.bf16.msra.mxu0 %v2412
      %3251 = vmatprep.subr.bf16.mxu0 0
      %3252 = vmatpush1.bf16.msra.mxu0 %v2415
      %3253 = vmatprep.subr.bf16.mxu0 0
      %3254 = vmatpush1.bf16.msra.mxu0 %v2418
      %3255 = vmatprep.subr.bf16.mxu0 0
      %3256 = vmatpush1.bf16.msra.mxu0 %v2421
      %3257 = vmatprep.mubr.bf16.mxu0 %v1042
      %3258 = vmatmul.mubr.bf16.gmra.mrb[0].mxu0 %v1041
      %v3259 = vpop.f32.mrb[0].mxu0
      %v3260 = vadd.f32 %v3220, %v3259
      %v3261 = vpop.f32.mrb[0].mxu0
      %v3262 = vpop.f32.mrb[0].mxu0
      %v3263 = vpop.f32.mrb[0].mxu0
      %3264 = vdwg.mxu0
      %3265 = vmatprep.subr.bf16.mxu0 0
      %3266 = vmatpush1.bf16.msra.mxu0 %v2424
      %3267 = vmatprep.subr.bf16.mxu0 0
      %3268 = vmatpush1.bf16.msra.mxu0 %v2427
      %3269 = vmatprep.subr.bf16.mxu0 0
      %3270 = vmatpush1.bf16.msra.mxu0 %v2430
      %3271 = vmatprep.subr.bf16.mxu0 0
      %3272 = vmatpush1.bf16.msra.mxu0 %v2433
      %3273 = vmatprep.subr.bf16.mxu0 0
      %3274 = vmatpush1.bf16.msra.mxu0 %v2436
      %3275 = vmatprep.subr.bf16.mxu0 0
      %3276 = vmatpush1.bf16.msra.mxu0 %v2439
      %3277 = vmatprep.subr.bf16.mxu0 0
      %3278 = vmatpush1.bf16.msra.mxu0 %v2442
      %3279 = vmatprep.subr.bf16.mxu0 0
      %3280 = vmatpush1.bf16.msra.mxu0 %v2445
      %3281 = vmatprep.subr.bf16.mxu0 0
      %3282 = vmatpush1.bf16.msra.mxu0 0
      %3283 = vmatprep.subr.bf16.mxu0 0
      %3284 = vmatpush1.bf16.msra.mxu0 0
      %3285 = vmatprep.subr.bf16.mxu0 0
      %3286 = vmatpush1.bf16.msra.mxu0 0
      %3287 = vmatprep.subr.bf16.mxu0 0
      %3288 = vmatpush1.bf16.msra.mxu0 0
      %3289 = vmatprep.subr.bf16.mxu0 0
      %3290 = vmatpush1.bf16.msra.mxu0 0
      %3291 = vmatprep.subr.bf16.mxu0 0
      %3292 = vmatpush1.bf16.msra.mxu0 0
      %3293 = vmatprep.subr.bf16.mxu0 0
      %3294 = vmatpush1.bf16.msra.mxu0 0
      %3295 = vmatprep.subr.bf16.mxu0 0
      %3296 = vmatpush1.bf16.msra.mxu0 0
      %3297 = vmatprep.mubr.bf16.mxu0 0
      %3298 = vmatmul.mubr.bf16.gmra.mrb[0].mxu0 %v2815
      %v3299 = vpop.f32.mrb[0].mxu0
      %v3300 = vadd.f32 %v3260, %v3299
      %v3301 = vpop.f32.mrb[0].mxu0
      %v3302 = vpop.f32.mrb[0].mxu0
      %v3303 = vpop.f32.mrb[0].mxu0
      %3304 = vdwg.mxu0
      %v3305 = vmax.f32 %v3059, %v3179
      %v3306 = vmax.f32 %v3060, %v3181
      %v3307 = vmax.f32 %v3061, %v3300
      %v3308 = vld [vmem:[%s3] sm:$0x7]
      %v3310 = vlaneseq
      %v3311 = vshrl.u32 %v3310, 7
      %v3312 = vsub.s32 0, %v3311
      %v3313 = vrot.slane %v3308, %v3312
      %v3314 = vlaneseq
      %v3315 = vshrl.u32 %v3314, 7
      %v3316 = vsub.s32 1, %v3315
      %v3317 = vrot.slane %v3308, %v3316
      %v3318 = vlaneseq
      %v3319 = vshrl.u32 %v3318, 7
      %v3320 = vsub.s32 2, %v3319
      %v3321 = vrot.slane %v3308, %v3320
      %v3325 = vadd.f32 %v3305, %v3313
      %v3326 = vadd.f32 %v3306, %v3317
      %v3327 = vadd.f32 %v3307, %v3321
      %v3328 = vmax.f32 %v3325, 0.0
      %v3329 = vmax.f32 %v3326, 0.0
      %v3330 = vmax.f32 %v3327, 0.0
      %v3332 = vrot.slane %v230, 1
      %v3334 = vpack.c.bf16 %v3332, %v3332
      %3335 = vmatprep.subr.bf16.mxu0 %v1444
      %3336 = vmatpush1.bf16.msra.mxu0 %v1443
      %3337 = vmatprep.subr.bf16.mxu0 %v1447
      %3338 = vmatpush1.bf16.msra.mxu0 %v1446
      %3339 = vmatprep.subr.bf16.mxu0 %v1450
      %3340 = vmatpush1.bf16.msra.mxu0 %v1449
      %3341 = vmatprep.subr.bf16.mxu0 %v1453
      %3342 = vmatpush1.bf16.msra.mxu0 %v1452
      %3343 = vmatprep.subr.bf16.mxu0 %v1456
      %3344 = vmatpush1.bf16.msra.mxu0 %v1455
      %3345 = vmatprep.subr.bf16.mxu0 %v1459
      %3346 = vmatpush1.bf16.msra.mxu0 %v1458
      %3347 = vmatprep.subr.bf16.mxu0 %v1462
      %3348 = vmatpush1.bf16.msra.mxu0 %v1461
      %3349 = vmatprep.subr.bf16.mxu0 %v1465
      %3350 = vmatpush1.bf16.msra.mxu0 %v1464
      %3351 = vmatprep.subr.bf16.mxu0 %v1468
      %3352 = vmatpush1.bf16.msra.mxu0 %v1467
      %3353 = vmatprep.subr.bf16.mxu0 %v1471
      %3354 = vmatpush1.bf16.msra.mxu0 %v1470
      %3355 = vmatprep.subr.bf16.mxu0 %v1474
      %3356 = vmatpush1.bf16.msra.mxu0 %v1473
      %3357 = vmatprep.subr.bf16.mxu0 %v1477
      %3358 = vmatpush1.bf16.msra.mxu0 %v1476
      %3359 = vmatprep.subr.bf16.mxu0 %v1480
      %3360 = vmatpush1.bf16.msra.mxu0 %v1479
      %3361 = vmatprep.subr.bf16.mxu0 %v1483
      %3362 = vmatpush1.bf16.msra.mxu0 %v1482
      %3363 = vmatprep.subr.bf16.mxu0 %v1486
      %3364 = vmatpush1.bf16.msra.mxu0 %v1485
      %3365 = vmatprep.subr.bf16.mxu0 %v1489
      %3366 = vmatpush1.bf16.msra.mxu0 %v1488
      %3367 = vmatprep.mubr.bf16.mxu0 %v1041
      %3368 = vmatmul.mubr.bf16.gmra.mrb[0].mxu0 %v1040
      %v3369 = vpop.f32.mrb[0].mxu0
      %v3370 = vadd.f32 0.0, %v3369
      %v3371 = vpop.f32.mrb[0].mxu0
      %v3372 = vadd.f32 0.0, %v3371
      %v3373 = vpop.f32.mrb[0].mxu0
      %v3374 = vpop.f32.mrb[0].mxu0
      %3375 = vdwg.mxu0
      %3376 = vmatprep.subr.bf16.mxu0 %v1492
      %3377 = vmatpush1.bf16.msra.mxu0 %v1491
      %3378 = vmatprep.subr.bf16.mxu0 %v1495
      %3379 = vmatpush1.bf16.msra.mxu0 %v1494
      %3380 = vmatprep.subr.bf16.mxu0 %v1498
      %3381 = vmatpush1.bf16.msra.mxu0 %v1497
      %3382 = vmatprep.subr.bf16.mxu0 %v1501
      %3383 = vmatpush1.bf16.msra.mxu0 %v1500
      %3384 = vmatprep.subr.bf16.mxu0 %v1504
      %3385 = vmatpush1.bf16.msra.mxu0 %v1503
      %3386 = vmatprep.subr.bf16.mxu0 %v1507
      %3387 = vmatpush1.bf16.msra.mxu0 %v1506
      %3388 = vmatprep.subr.bf16.mxu0 %v1510
      %3389 = vmatpush1.bf16.msra.mxu0 %v1509
      %3390 = vmatprep.subr.bf16.mxu0 %v1513
      %3391 = vmatpush1.bf16.msra.mxu0 %v1512
      %3392 = vmatprep.subr.bf16.mxu0 %v1516
      %3393 = vmatpush1.bf16.msra.mxu0 %v1515
      %3394 = vmatprep.subr.bf16.mxu0 %v1519
      %3395 = vmatpush1.bf16.msra.mxu0 %v1518
      %3396 = vmatprep.subr.bf16.mxu0 %v1522
      %3397 = vmatpush1.bf16.msra.mxu0 %v1521
      %3398 = vmatprep.subr.bf16.mxu0 %v1525
      %3399 = vmatpush1.bf16.msra.mxu0 %v1524
      %3400 = vmatprep.subr.bf16.mxu0 %v1528
      %3401 = vmatpush1.bf16.msra.mxu0 %v1527
      %3402 = vmatprep.subr.bf16.mxu0 %v1531
      %3403 = vmatpush1.bf16.msra.mxu0 %v1530
      %3404 = vmatprep.subr.bf16.mxu0 %v1534
      %3405 = vmatpush1.bf16.msra.mxu0 %v1533
      %3406 = vmatprep.subr.bf16.mxu0 %v1537
      %3407 = vmatpush1.bf16.msra.mxu0 %v1536
      %3408 = vmatprep.mubr.bf16.mxu0 %v2815
      %3409 = vmatmul.mubr.bf16.gmra.mrb[0].mxu0 %v1042
      %v3410 = vpop.f32.mrb[0].mxu0
      %v3411 = vadd.f32 %v3370, %v3410
      %v3412 = vpop.f32.mrb[0].mxu0
      %v3413 = vadd.f32 %v3372, %v3412
      %v3414 = vpop.f32.mrb[0].mxu0
      %v3415 = vpop.f32.mrb[0].mxu0
      %3416 = vdwg.mxu0
      %3417 = vmatprep.subr.bf16.mxu0 %v1540
      %3418 = vmatpush1.bf16.msra.mxu0 %v1539
      %3419 = vmatprep.subr.bf16.mxu0 %v1543
      %3420 = vmatpush1.bf16.msra.mxu0 %v1542
      %3421 = vmatprep.subr.bf16.mxu0 %v1546
      %3422 = vmatpush1.bf16.msra.mxu0 %v1545
      %3423 = vmatprep.subr.bf16.mxu0 %v1549
      %3424 = vmatpush1.bf16.msra.mxu0 %v1548
      %3425 = vmatprep.subr.bf16.mxu0 %v1552
      %3426 = vmatpush1.bf16.msra.mxu0 %v1551
      %3427 = vmatprep.subr.bf16.mxu0 %v1555
      %3428 = vmatpush1.bf16.msra.mxu0 %v1554
      %3429 = vmatprep.subr.bf16.mxu0 %v1558
      %3430 = vmatpush1.bf16.msra.mxu0 %v1557
      %3431 = vmatprep.subr.bf16.mxu0 %v1561
      %3432 = vmatpush1.bf16.msra.mxu0 %v1560
      %3433 = vmatprep.subr.bf16.mxu0 0
      %3434 = vmatpush1.bf16.msra.mxu0 0
      %3435 = vmatprep.subr.bf16.mxu0 0
      %3436 = vmatpush1.bf16.msra.mxu0 0
      %3437 = vmatprep.subr.bf16.mxu0 0
      %3438 = vmatpush1.bf16.msra.mxu0 0
      %3439 = vmatprep.subr.bf16.mxu0 0
      %3440 = vmatpush1.bf16.msra.mxu0 0
      %3441 = vmatprep.subr.bf16.mxu0 0
      %3442 = vmatpush1.bf16.msra.mxu0 0
      %3443 = vmatprep.subr.bf16.mxu0 0
      %3444 = vmatpush1.bf16.msra.mxu0 0
      %3445 = vmatprep.subr.bf16.mxu0 0
      %3446 = vmatpush1.bf16.msra.mxu0 0
      %3447 = vmatprep.subr.bf16.mxu0 0
      %3448 = vmatpush1.bf16.msra.mxu0 0
      %3449 = vmatprep.mubr.bf16.mxu0 0
      %3450 = vmatmul.mubr.bf16.gmra.mrb[0].mxu0 %v3334
      %v3451 = vpop.f32.mrb[0].mxu0
      %v3452 = vadd.f32 %v3411, %v3451
      %v3453 = vpop.f32.mrb[0].mxu0
      %v3454 = vadd.f32 %v3413, %v3453
      %v3455 = vpop.f32.mrb[0].mxu0
      %v3456 = vpop.f32.mrb[0].mxu0
      %3457 = vdwg.mxu0
      %3458 = vmatprep.subr.bf16.mxu0 0
      %3459 = vmatpush1.bf16.msra.mxu0 %v1445
      %3460 = vmatprep.subr.bf16.mxu0 0
      %3461 = vmatpush1.bf16.msra.mxu0 %v1448
      %3462 = vmatprep.subr.bf16.mxu0 0
      %3463 = vmatpush1.bf16.msra.mxu0 %v1451
      %3464 = vmatprep.subr.bf16.mxu0 0
      %3465 = vmatpush1.bf16.msra.mxu0 %v1454
      %3466 = vmatprep.subr.bf16.mxu0 0
      %3467 = vmatpush1.bf16.msra.mxu0 %v1457
      %3468 = vmatprep.subr.bf16.mxu0 0
      %3469 = vmatpush1.bf16.msra.mxu0 %v1460
      %3470 = vmatprep.subr.bf16.mxu0 0
      %3471 = vmatpush1.bf16.msra.mxu0 %v1463
      %3472 = vmatprep.subr.bf16.mxu0 0
      %3473 = vmatpush1.bf16.msra.mxu0 %v1466
      %3474 = vmatprep.subr.bf16.mxu0 0
      %3475 = vmatpush1.bf16.msra.mxu0 %v1469
      %3476 = vmatprep.subr.bf16.mxu0 0
      %3477 = vmatpush1.bf16.msra.mxu0 %v1472
      %3478 = vmatprep.subr.bf16.mxu0 0
      %3479 = vmatpush1.bf16.msra.mxu0 %v1475
      %3480 = vmatprep.subr.bf16.mxu0 0
      %3481 = vmatpush1.bf16.msra.mxu0 %v1478
      %3482 = vmatprep.subr.bf16.mxu0 0
      %3483 = vmatpush1.bf16.msra.mxu0 %v1481
      %3484 = vmatprep.subr.bf16.mxu0 0
      %3485 = vmatpush1.bf16.msra.mxu0 %v1484
      %3486 = vmatprep.subr.bf16.mxu0 0
      %3487 = vmatpush1.bf16.msra.mxu0 %v1487
      %3488 = vmatprep.subr.bf16.mxu0 0
      %3489 = vmatpush1.bf16.msra.mxu0 %v1490
      %3490 = vmatprep.mubr.bf16.mxu0 %v1041
      %3491 = vmatmul.mubr.bf16.gmra.mrb[0].mxu0 %v1040
      %v3492 = vpop.f32.mrb[0].mxu0
      %v3493 = vadd.f32 0.0, %v3492
      %v3494 = vpop.f32.mrb[0].mxu0
      %v3495 = vpop.f32.mrb[0].mxu0
      %v3496 = vpop.f32.mrb[0].mxu0
      %3497 = vdwg.mxu0
      %3498 = vmatprep.subr.bf16.mxu0 0
      %3499 = vmatpush1.bf16.msra.mxu0 %v1493
      %3500 = vmatprep.subr.bf16.mxu0 0
      %3501 = vmatpush1.bf16.msra.mxu0 %v1496
      %3502 = vmatprep.subr.bf16.mxu0 0
      %3503 = vmatpush1.bf16.msra.mxu0 %v1499
      %3504 = vmatprep.subr.bf16.mxu0 0
      %3505 = vmatpush1.bf16.msra.mxu0 %v1502
      %3506 = vmatprep.subr.bf16.mxu0 0
      %3507 = vmatpush1.bf16.msra.mxu0 %v1505
      %3508 = vmatprep.subr.bf16.mxu0 0
      %3509 = vmatpush1.bf16.msra.mxu0 %v1508
      %3510 = vmatprep.subr.bf16.mxu0 0
      %3511 = vmatpush1.bf16.msra.mxu0 %v1511
      %3512 = vmatprep.subr.bf16.mxu0 0
      %3513 = vmatpush1.bf16.msra.mxu0 %v1514
      %3514 = vmatprep.subr.bf16.mxu0 0
      %3515 = vmatpush1.bf16.msra.mxu0 %v1517
      %3516 = vmatprep.subr.bf16.mxu0 0
      %3517 = vmatpush1.bf16.msra.mxu0 %v1520
      %3518 = vmatprep.subr.bf16.mxu0 0
      %3519 = vmatpush1.bf16.msra.mxu0 %v1523
      %3520 = vmatprep.subr.bf16.mxu0 0
      %3521 = vmatpush1.bf16.msra.mxu0 %v1526
      %3522 = vmatprep.subr.bf16.mxu0 0
      %3523 = vmatpush1.bf16.msra.mxu0 %v1529
      %3524 = vmatprep.subr.bf16.mxu0 0
      %3525 = vmatpush1.bf16.msra.mxu0 %v1532
      %3526 = vmatprep.subr.bf16.mxu0 0
      %3527 = vmatpush1.bf16.msra.mxu0 %v1535
      %3528 = vmatprep.subr.bf16.mxu0 0
      %3529 = vmatpush1.bf16.msra.mxu0 %v1538
      %3530 = vmatprep.mubr.bf16.mxu0 %v2815
      %3531 = vmatmul.mubr.bf16.gmra.mrb[0].mxu0 %v1042
      %v3532 = vpop.f32.mrb[0].mxu0
      %v3533 = vadd.f32 %v3493, %v3532
      %v3534 = vpop.f32.mrb[0].mxu0
      %v3535 = vpop.f32.mrb[0].mxu0
      %v3536 = vpop.f32.mrb[0].mxu0
      %3537 = vdwg.mxu0
      %3538 = vmatprep.subr.bf16.mxu0 0
      %3539 = vmatpush1.bf16.msra.mxu0 %v1541
      %3540 = vmatprep.subr.bf16.mxu0 0
      %3541 = vmatpush1.bf16.msra.mxu0 %v1544
      %3542 = vmatprep.subr.bf16.mxu0 0
      %3543 = vmatpush1.bf16.msra.mxu0 %v1547
      %3544 = vmatprep.subr.bf16.mxu0 0
      %3545 = vmatpush1.bf16.msra.mxu0 %v1550
      %3546 = vmatprep.subr.bf16.mxu0 0
      %3547 = vmatpush1.bf16.msra.mxu0 %v1553
      %3548 = vmatprep.subr.bf16.mxu0 0
      %3549 = vmatpush1.bf16.msra.mxu0 %v1556
      %3550 = vmatprep.subr.bf16.mxu0 0
      %3551 = vmatpush1.bf16.msra.mxu0 %v1559
      %3552 = vmatprep.subr.bf16.mxu0 0
      %3553 = vmatpush1.bf16.msra.mxu0 %v1562
      %3554 = vmatprep.subr.bf16.mxu0 0
      %3555 = vmatpush1.bf16.msra.mxu0 0
      %3556 = vmatprep.subr.bf16.mxu0 0
      %3557 = vmatpush1.bf16.msra.mxu0 0
      %3558 = vmatprep.subr.bf16.mxu0 0
      %3559 = vmatpush1.bf16.msra.mxu0 0
      %3560 = vmatprep.subr.bf16.mxu0 0
      %3561 = vmatpush1.bf16.msra.mxu0 0
      %3562 = vmatprep.subr.bf16.mxu0 0
      %3563 = vmatpush1.bf16.msra.mxu0 0
      %3564 = vmatprep.subr.bf16.mxu0 0
      %3565 = vmatpush1.bf16.msra.mxu0 0
      %3566 = vmatprep.subr.bf16.mxu0 0
      %3567 = vmatpush1.bf16.msra.mxu0 0
      %3568 = vmatprep.subr.bf16.mxu0 0
      %3569 = vmatpush1.bf16.msra.mxu0 0
      %3570 = vmatprep.mubr.bf16.mxu0 0
      %3571 = vmatmul.mubr.bf16.gmra.mrb[0].mxu0 %v3334
      %v3572 = vpop.f32.mrb[0].mxu0
      %v3573 = vadd.f32 %v3533, %v3572
      %v3574 = vpop.f32.mrb[0].mxu0
      %v3575 = vpop.f32.mrb[0].mxu0
      %v3576 = vpop.f32.mrb[0].mxu0
      %3577 = vdwg.mxu0
      %3578 = vmatprep.subr.bf16.mxu0 %v2327
      %3579 = vmatpush1.bf16.msra.mxu0 %v2326
      %3580 = vmatprep.subr.bf16.mxu0 %v2330
      %3581 = vmatpush1.bf16.msra.mxu0 %v2329
      %3582 = vmatprep.subr.bf16.mxu0 %v2333
      %3583 = vmatpush1.bf16.msra.mxu0 %v2332
      %3584 = vmatprep.subr.bf16.mxu0 %v2336
      %3585 = vmatpush1.bf16.msra.mxu0 %v2335
      %3586 = vmatprep.subr.bf16.mxu0 %v2339
      %3587 = vmatpush1.bf16.msra.mxu0 %v2338
      %3588 = vmatprep.subr.bf16.mxu0 %v2342
      %3589 = vmatpush1.bf16.msra.mxu0 %v2341
      %3590 = vmatprep.subr.bf16.mxu0 %v2345
      %3591 = vmatpush1.bf16.msra.mxu0 %v2344
      %3592 = vmatprep.subr.bf16.mxu0 %v2348
      %3593 = vmatpush1.bf16.msra.mxu0 %v2347
      %3594 = vmatprep.subr.bf16.mxu0 %v2351
      %3595 = vmatpush1.bf16.msra.mxu0 %v2350
      %3596 = vmatprep.subr.bf16.mxu0 %v2354
      %3597 = vmatpush1.bf16.msra.mxu0 %v2353
      %3598 = vmatprep.subr.bf16.mxu0 %v2357
      %3599 = vmatpush1.bf16.msra.mxu0 %v2356
      %3600 = vmatprep.subr.bf16.mxu0 %v2360
      %3601 = vmatpush1.bf16.msra.mxu0 %v2359
      %3602 = vmatprep.subr.bf16.mxu0 %v2363
      %3603 = vmatpush1.bf16.msra.mxu0 %v2362
      %3604 = vmatprep.subr.bf16.mxu0 %v2366
      %3605 = vmatpush1.bf16.msra.mxu0 %v2365
      %3606 = vmatprep.subr.bf16.mxu0 %v2369
      %3607 = vmatpush1.bf16.msra.mxu0 %v2368
      %3608 = vmatprep.subr.bf16.mxu0 %v2372
      %3609 = vmatpush1.bf16.msra.mxu0 %v2371
      %3610 = vmatprep.mubr.bf16.mxu0 %v1041
      %3611 = vmatmul.mubr.bf16.gmra.mrb[0].mxu0 %v1040
      %v3612 = vpop.f32.mrb[0].mxu0
      %v3613 = vadd.f32 0.0, %v3612
      %v3614 = vpop.f32.mrb[0].mxu0
      %v3615 = vadd.f32 0.0, %v3614
      %v3616 = vpop.f32.mrb[0].mxu0
      %v3617 = vpop.f32.mrb[0].mxu0
      %3618 = vdwg.mxu0
      %3619 = vmatprep.subr.bf16.mxu0 %v2375
      %3620 = vmatpush1.bf16.msra.mxu0 %v2374
      %3621 = vmatprep.subr.bf16.mxu0 %v2378
      %3622 = vmatpush1.bf16.msra.mxu0 %v2377
      %3623 = vmatprep.subr.bf16.mxu0 %v2381
      %3624 = vmatpush1.bf16.msra.mxu0 %v2380
      %3625 = vmatprep.subr.bf16.mxu0 %v2384
      %3626 = vmatpush1.bf16.msra.mxu0 %v2383
      %3627 = vmatprep.subr.bf16.mxu0 %v2387
      %3628 = vmatpush1.bf16.msra.mxu0 %v2386
      %3629 = vmatprep.subr.bf16.mxu0 %v2390
      %3630 = vmatpush1.bf16.msra.mxu0 %v2389
      %3631 = vmatprep.subr.bf16.mxu0 %v2393
      %3632 = vmatpush1.bf16.msra.mxu0 %v2392
      %3633 = vmatprep.subr.bf16.mxu0 %v2396
      %3634 = vmatpush1.bf16.msra.mxu0 %v2395
      %3635 = vmatprep.subr.bf16.mxu0 %v2399
      %3636 = vmatpush1.bf16.msra.mxu0 %v2398
      %3637 = vmatprep.subr.bf16.mxu0 %v2402
      %3638 = vmatpush1.bf16.msra.mxu0 %v2401
      %3639 = vmatprep.subr.bf16.mxu0 %v2405
      %3640 = vmatpush1.bf16.msra.mxu0 %v2404
      %3641 = vmatprep.subr.bf16.mxu0 %v2408
      %3642 = vmatpush1.bf16.msra.mxu0 %v2407
      %3643 = vmatprep.subr.bf16.mxu0 %v2411
      %3644 = vmatpush1.bf16.msra.mxu0 %v2410
      %3645 = vmatprep.subr.bf16.mxu0 %v2414
      %3646 = vmatpush1.bf16.msra.mxu0 %v2413
      %3647 = vmatprep.subr.bf16.mxu0 %v2417
      %3648 = vmatpush1.bf16.msra.mxu0 %v2416
      %3649 = vmatprep.subr.bf16.mxu0 %v2420
      %3650 = vmatpush1.bf16.msra.mxu0 %v2419
      %3651 = vmatprep.mubr.bf16.mxu0 %v2815
      %3652 = vmatmul.mubr.bf16.gmra.mrb[0].mxu0 %v1042
      %v3653 = vpop.f32.mrb[0].mxu0
      %v3654 = vadd.f32 %v3613, %v3653
      %v3655 = vpop.f32.mrb[0].mxu0
      %v3656 = vadd.f32 %v3615, %v3655
      %v3657 = vpop.f32.mrb[0].mxu0
      %v3658 = vpop.f32.mrb[0].mxu0
      %3659 = vdwg.mxu0
      %3660 = vmatprep.subr.bf16.mxu0 %v2423
      %3661 = vmatpush1.bf16.msra.mxu0 %v2422
      %3662 = vmatprep.subr.bf16.mxu0 %v2426
      %3663 = vmatpush1.bf16.msra.mxu0 %v2425
      %3664 = vmatprep.subr.bf16.mxu0 %v2429
      %3665 = vmatpush1.bf16.msra.mxu0 %v2428
      %3666 = vmatprep.subr.bf16.mxu0 %v2432
      %3667 = vmatpush1.bf16.msra.mxu0 %v2431
      %3668 = vmatprep.subr.bf16.mxu0 %v2435
      %3669 = vmatpush1.bf16.msra.mxu0 %v2434
      %3670 = vmatprep.subr.bf16.mxu0 %v2438
      %3671 = vmatpush1.bf16.msra.mxu0 %v2437
      %3672 = vmatprep.subr.bf16.mxu0 %v2441
      %3673 = vmatpush1.bf16.msra.mxu0 %v2440
      %3674 = vmatprep.subr.bf16.mxu0 %v2444
      %3675 = vmatpush1.bf16.msra.mxu0 %v2443
      %3676 = vmatprep.subr.bf16.mxu0 0
      %3677 = vmatpush1.bf16.msra.mxu0 0
      %3678 = vmatprep.subr.bf16.mxu0 0
      %3679 = vmatpush1.bf16.msra.mxu0 0
      %3680 = vmatprep.subr.bf16.mxu0 0
      %3681 = vmatpush1.bf16.msra.mxu0 0
      %3682 = vmatprep.subr.bf16.mxu0 0
      %3683 = vmatpush1.bf16.msra.mxu0 0
      %3684 = vmatprep.subr.bf16.mxu0 0
      %3685 = vmatpush1.bf16.msra.mxu0 0
      %3686 = vmatprep.subr.bf16.mxu0 0
      %3687 = vmatpush1.bf16.msra.mxu0 0
      %3688 = vmatprep.subr.bf16.mxu0 0
      %3689 = vmatpush1.bf16.msra.mxu0 0
      %3690 = vmatprep.subr.bf16.mxu0 0
      %3691 = vmatpush1.bf16.msra.mxu0 0
      %3692 = vmatprep.mubr.bf16.mxu0 0
      %3693 = vmatmul.mubr.bf16.gmra.mrb[0].mxu0 %v3334
      %v3694 = vpop.f32.mrb[0].mxu0
      %v3695 = vadd.f32 %v3654, %v3694
      %v3696 = vpop.f32.mrb[0].mxu0
      %v3697 = vadd.f32 %v3656, %v3696
      %v3698 = vpop.f32.mrb[0].mxu0
      %v3699 = vpop.f32.mrb[0].mxu0
      %3700 = vdwg.mxu0
      %3701 = vmatprep.subr.bf16.mxu0 0
      %3702 = vmatpush1.bf16.msra.mxu0 %v2328
      %3703 = vmatprep.subr.bf16.mxu0 0
      %3704 = vmatpush1.bf16.msra.mxu0 %v2331
      %3705 = vmatprep.subr.bf16.mxu0 0
      %3706 = vmatpush1.bf16.msra.mxu0 %v2334
      %3707 = vmatprep.subr.bf16.mxu0 0
      %3708 = vmatpush1.bf16.msra.mxu0 %v2337
      %3709 = vmatprep.subr.bf16.mxu0 0
      %3710 = vmatpush1.bf16.msra.mxu0 %v2340
      %3711 = vmatprep.subr.bf16.mxu0 0
      %3712 = vmatpush1.bf16.msra.mxu0 %v2343
      %3713 = vmatprep.subr.bf16.mxu0 0
      %3714 = vmatpush1.bf16.msra.mxu0 %v2346
      %3715 = vmatprep.subr.bf16.mxu0 0
      %3716 = vmatpush1.bf16.msra.mxu0 %v2349
      %3717 = vmatprep.subr.bf16.mxu0 0
      %3718 = vmatpush1.bf16.msra.mxu0 %v2352
      %3719 = vmatprep.subr.bf16.mxu0 0
      %3720 = vmatpush1.bf16.msra.mxu0 %v2355
      %3721 = vmatprep.subr.bf16.mxu0 0
      %3722 = vmatpush1.bf16.msra.mxu0 %v2358
      %3723 = vmatprep.subr.bf16.mxu0 0
      %3724 = vmatpush1.bf16.msra.mxu0 %v2361
      %3725 = vmatprep.subr.bf16.mxu0 0
      %3726 = vmatpush1.bf16.msra.mxu0 %v2364
      %3727 = vmatprep.subr.bf16.mxu0 0
      %3728 = vmatpush1.bf16.msra.mxu0 %v2367
      %3729 = vmatprep.subr.bf16.mxu0 0
      %3730 = vmatpush1.bf16.msra.mxu0 %v2370
      %3731 = vmatprep.subr.bf16.mxu0 0
      %3732 = vmatpush1.bf16.msra.mxu0 %v2373
      %3733 = vmatprep.mubr.bf16.mxu0 %v1041
      %3734 = vmatmul.mubr.bf16.gmra.mrb[0].mxu0 %v1040
      %v3735 = vpop.f32.mrb[0].mxu0
      %v3736 = vadd.f32 0.0, %v3735
      %v3737 = vpop.f32.mrb[0].mxu0
      %v3738 = vpop.f32.mrb[0].mxu0
      %v3739 = vpop.f32.mrb[0].mxu0
      %3740 = vdwg.mxu0
      %3741 = vmatprep.subr.bf16.mxu0 0
      %3742 = vmatpush1.bf16.msra.mxu0 %v2376
      %3743 = vmatprep.subr.bf16.mxu0 0
      %3744 = vmatpush1.bf16.msra.mxu0 %v2379
      %3745 = vmatprep.subr.bf16.mxu0 0
      %3746 = vmatpush1.bf16.msra.mxu0 %v2382
      %3747 = vmatprep.subr.bf16.mxu0 0
      %3748 = vmatpush1.bf16.msra.mxu0 %v2385
      %3749 = vmatprep.subr.bf16.mxu0 0
      %3750 = vmatpush1.bf16.msra.mxu0 %v2388
      %3751 = vmatprep.subr.bf16.mxu0 0
      %3752 = vmatpush1.bf16.msra.mxu0 %v2391
      %3753 = vmatprep.subr.bf16.mxu0 0
      %3754 = vmatpush1.bf16.msra.mxu0 %v2394
      %3755 = vmatprep.subr.bf16.mxu0 0
      %3756 = vmatpush1.bf16.msra.mxu0 %v2397
      %3757 = vmatprep.subr.bf16.mxu0 0
      %3758 = vmatpush1.bf16.msra.mxu0 %v2400
      %3759 = vmatprep.subr.bf16.mxu0 0
      %3760 = vmatpush1.bf16.msra.mxu0 %v2403
      %3761 = vmatprep.subr.bf16.mxu0 0
      %3762 = vmatpush1.bf16.msra.mxu0 %v2406
      %3763 = vmatprep.subr.bf16.mxu0 0
      %3764 = vmatpush1.bf16.msra.mxu0 %v2409
      %3765 = vmatprep.subr.bf16.mxu0 0
      %3766 = vmatpush1.bf16.msra.mxu0 %v2412
      %3767 = vmatprep.subr.bf16.mxu0 0
      %3768 = vmatpush1.bf16.msra.mxu0 %v2415
      %3769 = vmatprep.subr.bf16.mxu0 0
      %3770 = vmatpush1.bf16.msra.mxu0 %v2418
      %3771 = vmatprep.subr.bf16.mxu0 0
      %3772 = vmatpush1.bf16.msra.mxu0 %v2421
      %3773 = vmatprep.mubr.bf16.mxu0 %v2815
      %3774 = vmatmul.mubr.bf16.gmra.mrb[0].mxu0 %v1042
      %v3775 = vpop.f32.mrb[0].mxu0
      %v3776 = vadd.f32 %v3736, %v3775
      %v3777 = vpop.f32.mrb[0].mxu0
      %v3778 = vpop.f32.mrb[0].mxu0
      %v3779 = vpop.f32.mrb[0].mxu0
      %3780 = vdwg.mxu0
      %3781 = vmatprep.subr.bf16.mxu0 0
      %3782 = vmatpush1.bf16.msra.mxu0 %v2424
      %3783 = vmatprep.subr.bf16.mxu0 0
      %3784 = vmatpush1.bf16.msra.mxu0 %v2427
      %3785 = vmatprep.subr.bf16.mxu0 0
      %3786 = vmatpush1.bf16.msra.mxu0 %v2430
      %3787 = vmatprep.subr.bf16.mxu0 0
      %3788 = vmatpush1.bf16.msra.mxu0 %v2433
      %3789 = vmatprep.subr.bf16.mxu0 0
      %3790 = vmatpush1.bf16.msra.mxu0 %v2436
      %3791 = vmatprep.subr.bf16.mxu0 0
      %3792 = vmatpush1.bf16.msra.mxu0 %v2439
      %3793 = vmatprep.subr.bf16.mxu0 0
      %3794 = vmatpush1.bf16.msra.mxu0 %v2442
      %3795 = vmatprep.subr.bf16.mxu0 0
      %3796 = vmatpush1.bf16.msra.mxu0 %v2445
      %3797 = vmatprep.subr.bf16.mxu0 0
      %3798 = vmatpush1.bf16.msra.mxu0 0
      %3799 = vmatprep.subr.bf16.mxu0 0
      %3800 = vmatpush1.bf16.msra.mxu0 0
      %3801 = vmatprep.subr.bf16.mxu0 0
      %3802 = vmatpush1.bf16.msra.mxu0 0
      %3803 = vmatprep.subr.bf16.mxu0 0
      %3804 = vmatpush1.bf16.msra.mxu0 0
      %3805 = vmatprep.subr.bf16.mxu0 0
      %3806 = vmatpush1.bf16.msra.mxu0 0
      %3807 = vmatprep.subr.bf16.mxu0 0
      %3808 = vmatpush1.bf16.msra.mxu0 0
      %3809 = vmatprep.subr.bf16.mxu0 0
      %3810 = vmatpush1.bf16.msra.mxu0 0
      %3811 = vmatprep.subr.bf16.mxu0 0
      %3812 = vmatpush1.bf16.msra.mxu0 0
      %3813 = vmatprep.mubr.bf16.mxu0 0
      %3814 = vmatmul.mubr.bf16.gmra.mrb[0].mxu0 %v3334
      %v3815 = vpop.f32.mrb[0].mxu0
      %v3816 = vadd.f32 %v3776, %v3815
      %v3817 = vpop.f32.mrb[0].mxu0
      %v3818 = vpop.f32.mrb[0].mxu0
      %v3819 = vpop.f32.mrb[0].mxu0
      %3820 = vdwg.mxu0
      %v3821 = vmax.f32 %v3452, %v3695
      %v3822 = vmax.f32 %v3454, %v3697
      %v3823 = vmax.f32 %v3573, %v3816
      %v3825 = vrot.slane %v232, 1
      %v3827 = vpack.c.bf16 %v3825, %v3825
      %3828 = vmatprep.subr.bf16.mxu0 %v1444
      %3829 = vmatpush1.bf16.msra.mxu0 %v1443
      %3830 = vmatprep.subr.bf16.mxu0 %v1447
      %3831 = vmatpush1.bf16.msra.mxu0 %v1446
      %3832 = vmatprep.subr.bf16.mxu0 %v1450
      %3833 = vmatpush1.bf16.msra.mxu0 %v1449
      %3834 = vmatprep.subr.bf16.mxu0 %v1453
      %3835 = vmatpush1.bf16.msra.mxu0 %v1452
      %3836 = vmatprep.subr.bf16.mxu0 %v1456
      %3837 = vmatpush1.bf16.msra.mxu0 %v1455
      %3838 = vmatprep.subr.bf16.mxu0 %v1459
      %3839 = vmatpush1.bf16.msra.mxu0 %v1458
      %3840 = vmatprep.subr.bf16.mxu0 %v1462
      %3841 = vmatpush1.bf16.msra.mxu0 %v1461
      %3842 = vmatprep.subr.bf16.mxu0 %v1465
      %3843 = vmatpush1.bf16.msra.mxu0 %v1464
      %3844 = vmatprep.subr.bf16.mxu0 %v1468
      %3845 = vmatpush1.bf16.msra.mxu0 %v1467
      %3846 = vmatprep.subr.bf16.mxu0 %v1471
      %3847 = vmatpush1.bf16.msra.mxu0 %v1470
      %3848 = vmatprep.subr.bf16.mxu0 %v1474
      %3849 = vmatpush1.bf16.msra.mxu0 %v1473
      %3850 = vmatprep.subr.bf16.mxu0 %v1477
      %3851 = vmatpush1.bf16.msra.mxu0 %v1476
      %3852 = vmatprep.subr.bf16.mxu0 %v1480
      %3853 = vmatpush1.bf16.msra.mxu0 %v1479
      %3854 = vmatprep.subr.bf16.mxu0 %v1483
      %3855 = vmatpush1.bf16.msra.mxu0 %v1482
      %3856 = vmatprep.subr.bf16.mxu0 %v1486
      %3857 = vmatpush1.bf16.msra.mxu0 %v1485
      %3858 = vmatprep.subr.bf16.mxu0 %v1489
      %3859 = vmatpush1.bf16.msra.mxu0 %v1488
      %3860 = vmatprep.mubr.bf16.mxu0 %v1042
      %3861 = vmatmul.mubr.bf16.gmra.mrb[0].mxu0 %v1041
      %v3862 = vpop.f32.mrb[0].mxu0
      %v3863 = vadd.f32 0.0, %v3862
      %v3864 = vpop.f32.mrb[0].mxu0
      %v3865 = vadd.f32 0.0, %v3864
      %v3866 = vpop.f32.mrb[0].mxu0
      %v3867 = vpop.f32.mrb[0].mxu0
      %3868 = vdwg.mxu0
      %3869 = vmatprep.subr.bf16.mxu0 %v1492
      %3870 = vmatpush1.bf16.msra.mxu0 %v1491
      %3871 = vmatprep.subr.bf16.mxu0 %v1495
      %3872 = vmatpush1.bf16.msra.mxu0 %v1494
      %3873 = vmatprep.subr.bf16.mxu0 %v1498
      %3874 = vmatpush1.bf16.msra.mxu0 %v1497
      %3875 = vmatprep.subr.bf16.mxu0 %v1501
      %3876 = vmatpush1.bf16.msra.mxu0 %v1500
      %3877 = vmatprep.subr.bf16.mxu0 %v1504
      %3878 = vmatpush1.bf16.msra.mxu0 %v1503
      %3879 = vmatprep.subr.bf16.mxu0 %v1507
      %3880 = vmatpush1.bf16.msra.mxu0 %v1506
      %3881 = vmatprep.subr.bf16.mxu0 %v1510
      %3882 = vmatpush1.bf16.msra.mxu0 %v1509
      %3883 = vmatprep.subr.bf16.mxu0 %v1513
      %3884 = vmatpush1.bf16.msra.mxu0 %v1512
      %3885 = vmatprep.subr.bf16.mxu0 %v1516
      %3886 = vmatpush1.bf16.msra.mxu0 %v1515
      %3887 = vmatprep.subr.bf16.mxu0 %v1519
      %3888 = vmatpush1.bf16.msra.mxu0 %v1518
      %3889 = vmatprep.subr.bf16.mxu0 %v1522
      %3890 = vmatpush1.bf16.msra.mxu0 %v1521
      %3891 = vmatprep.subr.bf16.mxu0 %v1525
      %3892 = vmatpush1.bf16.msra.mxu0 %v1524
      %3893 = vmatprep.subr.bf16.mxu0 %v1528
      %3894 = vmatpush1.bf16.msra.mxu0 %v1527
      %3895 = vmatprep.subr.bf16.mxu0 %v1531
      %3896 = vmatpush1.bf16.msra.mxu0 %v1530
      %3897 = vmatprep.subr.bf16.mxu0 %v1534
      %3898 = vmatpush1.bf16.msra.mxu0 %v1533
      %3899 = vmatprep.subr.bf16.mxu0 %v1537
      %3900 = vmatpush1.bf16.msra.mxu0 %v1536
      %3901 = vmatprep.mubr.bf16.mxu0 %v3334
      %3902 = vmatmul.mubr.bf16.gmra.mrb[0].mxu0 %v2815
      %v3903 = vpop.f32.mrb[0].mxu0
      %v3904 = vadd.f32 %v3863, %v3903
      %v3905 = vpop.f32.mrb[0].mxu0
      %v3906 = vadd.f32 %v3865, %v3905
      %v3907 = vpop.f32.mrb[0].mxu0
      %v3908 = vpop.f32.mrb[0].mxu0
      %3909 = vdwg.mxu0
      %3910 = vmatprep.subr.bf16.mxu0 %v1540
      %3911 = vmatpush1.bf16.msra.mxu0 %v1539
      %3912 = vmatprep.subr.bf16.mxu0 %v1543
      %3913 = vmatpush1.bf16.msra.mxu0 %v1542
      %3914 = vmatprep.subr.bf16.mxu0 %v1546
      %3915 = vmatpush1.bf16.msra.mxu0 %v1545
      %3916 = vmatprep.subr.bf16.mxu0 %v1549
      %3917 = vmatpush1.bf16.msra.mxu0 %v1548
      %3918 = vmatprep.subr.bf16.mxu0 %v1552
      %3919 = vmatpush1.bf16.msra.mxu0 %v1551
      %3920 = vmatprep.subr.bf16.mxu0 %v1555
      %3921 = vmatpush1.bf16.msra.mxu0 %v1554
      %3922 = vmatprep.subr.bf16.mxu0 %v1558
      %3923 = vmatpush1.bf16.msra.mxu0 %v1557
      %3924 = vmatprep.subr.bf16.mxu0 %v1561
      %3925 = vmatpush1.bf16.msra.mxu0 %v1560
      %3926 = vmatprep.subr.bf16.mxu0 0
      %3927 = vmatpush1.bf16.msra.mxu0 0
      %3928 = vmatprep.subr.bf16.mxu0 0
      %3929 = vmatpush1.bf16.msra.mxu0 0
      %3930 = vmatprep.subr.bf16.mxu0 0
      %3931 = vmatpush1.bf16.msra.mxu0 0
      %3932 = vmatprep.subr.bf16.mxu0 0
      %3933 = vmatpush1.bf16.msra.mxu0 0
      %3934 = vmatprep.subr.bf16.mxu0 0
      %3935 = vmatpush1.bf16.msra.mxu0 0
      %3936 = vmatprep.subr.bf16.mxu0 0
      %3937 = vmatpush1.bf16.msra.mxu0 0
      %3938 = vmatprep.subr.bf16.mxu0 0
      %3939 = vmatpush1.bf16.msra.mxu0 0
      %3940 = vmatprep.subr.bf16.mxu0 0
      %3941 = vmatpush1.bf16.msra.mxu0 0
      %3942 = vmatprep.mubr.bf16.mxu0 0
      %3943 = vmatmul.mubr.bf16.gmra.mrb[0].mxu0 %v3827
      %v3944 = vpop.f32.mrb[0].mxu0
      %v3945 = vadd.f32 %v3904, %v3944
      %v3946 = vpop.f32.mrb[0].mxu0
      %v3947 = vadd.f32 %v3906, %v3946
      %v3948 = vpop.f32.mrb[0].mxu0
      %v3949 = vpop.f32.mrb[0].mxu0
      %3950 = vdwg.mxu0
      %3951 = vmatprep.subr.bf16.mxu0 0
      %3952 = vmatpush1.bf16.msra.mxu0 %v1445
      %3953 = vmatprep.subr.bf16.mxu0 0
      %3954 = vmatpush1.bf16.msra.mxu0 %v1448
      %3955 = vmatprep.subr.bf16.mxu0 0
      %3956 = vmatpush1.bf16.msra.mxu0 %v1451
      %3957 = vmatprep.subr.bf16.mxu0 0
      %3958 = vmatpush1.bf16.msra.mxu0 %v1454
      %3959 = vmatprep.subr.bf16.mxu0 0
      %3960 = vmatpush1.bf16.msra.mxu0 %v1457
      %3961 = vmatprep.subr.bf16.mxu0 0
      %3962 = vmatpush1.bf16.msra.mxu0 %v1460
      %3963 = vmatprep.subr.bf16.mxu0 0
      %3964 = vmatpush1.bf16.msra.mxu0 %v1463
      %3965 = vmatprep.subr.bf16.mxu0 0
      %3966 = vmatpush1.bf16.msra.mxu0 %v1466
      %3967 = vmatprep.subr.bf16.mxu0 0
      %3968 = vmatpush1.bf16.msra.mxu0 %v1469
      %3969 = vmatprep.subr.bf16.mxu0 0
      %3970 = vmatpush1.bf16.msra.mxu0 %v1472
      %3971 = vmatprep.subr.bf16.mxu0 0
      %3972 = vmatpush1.bf16.msra.mxu0 %v1475
      %3973 = vmatprep.subr.bf16.mxu0 0
      %3974 = vmatpush1.bf16.msra.mxu0 %v1478
      %3975 = vmatprep.subr.bf16.mxu0 0
      %3976 = vmatpush1.bf16.msra.mxu0 %v1481
      %3977 = vmatprep.subr.bf16.mxu0 0
      %3978 = vmatpush1.bf16.msra.mxu0 %v1484
      %3979 = vmatprep.subr.bf16.mxu0 0
      %3980 = vmatpush1.bf16.msra.mxu0 %v1487
      %3981 = vmatprep.subr.bf16.mxu0 0
      %3982 = vmatpush1.bf16.msra.mxu0 %v1490
      %3983 = vmatprep.mubr.bf16.mxu0 %v1042
      %3984 = vmatmul.mubr.bf16.gmra.mrb[0].mxu0 %v1041
      %v3985 = vpop.f32.mrb[0].mxu0
      %v3986 = vadd.f32 0.0, %v3985
      %v3987 = vpop.f32.mrb[0].mxu0
      %v3988 = vpop.f32.mrb[0].mxu0
      %v3989 = vpop.f32.mrb[0].mxu0
      %3990 = vdwg.mxu0
      %3991 = vmatprep.subr.bf16.mxu0 0
      %3992 = vmatpush1.bf16.msra.mxu0 %v1493
      %3993 = vmatprep.subr.bf16.mxu0 0
      %3994 = vmatpush1.bf16.msra.mxu0 %v1496
      %3995 = vmatprep.subr.bf16.mxu0 0
      %3996 = vmatpush1.bf16.msra.mxu0 %v1499
      %3997 = vmatprep.subr.bf16.mxu0 0
      %3998 = vmatpush1.bf16.msra.mxu0 %v1502
      %3999 = vmatprep.subr.bf16.mxu0 0
      %4000 = vmatpush1.bf16.msra.mxu0 %v1505
      %4001 = vmatprep.subr.bf16.mxu0 0
      %4002 = vmatpush1.bf16.msra.mxu0 %v1508
      %4003 = vmatprep.subr.bf16.mxu0 0
      %4004 = vmatpush1.bf16.msra.mxu0 %v1511
      %4005 = vmatprep.subr.bf16.mxu0 0
      %4006 = vmatpush1.bf16.msra.mxu0 %v1514
      %4007 = vmatprep.subr.bf16.mxu0 0
      %4008 = vmatpush1.bf16.msra.mxu0 %v1517
      %4009 = vmatprep.subr.bf16.mxu0 0
      %4010 = vmatpush1.bf16.msra.mxu0 %v1520
      %4011 = vmatprep.subr.bf16.mxu0 0
      %4012 = vmatpush1.bf16.msra.mxu0 %v1523
      %4013 = vmatprep.subr.bf16.mxu0 0
      %4014 = vmatpush1.bf16.msra.mxu0 %v1526
      %4015 = vmatprep.subr.bf16.mxu0 0
      %4016 = vmatpush1.bf16.msra.mxu0 %v1529
      %4017 = vmatprep.subr.bf16.mxu0 0
      %4018 = vmatpush1.bf16.msra.mxu0 %v1532
      %4019 = vmatprep.subr.bf16.mxu0 0
      %4020 = vmatpush1.bf16.msra.mxu0 %v1535
      %4021 = vmatprep.subr.bf16.mxu0 0
      %4022 = vmatpush1.bf16.msra.mxu0 %v1538
      %4023 = vmatprep.mubr.bf16.mxu0 %v3334
      %4024 = vmatmul.mubr.bf16.gmra.mrb[0].mxu0 %v2815
      %v4025 = vpop.f32.mrb[0].mxu0
      %v4026 = vadd.f32 %v3986, %v4025
      %v4027 = vpop.f32.mrb[0].mxu0
      %v4028 = vpop.f32.mrb[0].mxu0
      %v4029 = vpop.f32.mrb[0].mxu0
      %4030 = vdwg.mxu0
      %4031 = vmatprep.subr.bf16.mxu0 0
      %4032 = vmatpush1.bf16.msra.mxu0 %v1541
      %4033 = vmatprep.subr.bf16.mxu0 0
      %4034 = vmatpush1.bf16.msra.mxu0 %v1544
      %4035 = vmatprep.subr.bf16.mxu0 0
      %4036 = vmatpush1.bf16.msra.mxu0 %v1547
      %4037 = vmatprep.subr.bf16.mxu0 0
      %4038 = vmatpush1.bf16.msra.mxu0 %v1550
      %4039 = vmatprep.subr.bf16.mxu0 0
      %4040 = vmatpush1.bf16.msra.mxu0 %v1553
      %4041 = vmatprep.subr.bf16.mxu0 0
      %4042 = vmatpush1.bf16.msra.mxu0 %v1556
      %4043 = vmatprep.subr.bf16.mxu0 0
      %4044 = vmatpush1.bf16.msra.mxu0 %v1559
      %4045 = vmatprep.subr.bf16.mxu0 0
      %4046 = vmatpush1.bf16.msra.mxu0 %v1562
      %4047 = vmatprep.subr.bf16.mxu0 0
      %4048 = vmatpush1.bf16.msra.mxu0 0
      %4049 = vmatprep.subr.bf16.mxu0 0
      %4050 = vmatpush1.bf16.msra.mxu0 0
      %4051 = vmatprep.subr.bf16.mxu0 0
      %4052 = vmatpush1.bf16.msra.mxu0 0
      %4053 = vmatprep.subr.bf16.mxu0 0
      %4054 = vmatpush1.bf16.msra.mxu0 0
      %4055 = vmatprep.subr.bf16.mxu0 0
      %4056 = vmatpush1.bf16.msra.mxu0 0
      %4057 = vmatprep.subr.bf16.mxu0 0
      %4058 = vmatpush1.bf16.msra.mxu0 0
      %4059 = vmatprep.subr.bf16.mxu0 0
      %4060 = vmatpush1.bf16.msra.mxu0 0
      %4061 = vmatprep.subr.bf16.mxu0 0
      %4062 = vmatpush1.bf16.msra.mxu0 0
      %4063 = vmatprep.mubr.bf16.mxu0 0
      %4064 = vmatmul.mubr.bf16.gmra.mrb[0].mxu0 %v3827
      %v4065 = vpop.f32.mrb[0].mxu0
      %v4066 = vadd.f32 %v4026, %v4065
      %v4067 = vpop.f32.mrb[0].mxu0
      %v4068 = vpop.f32.mrb[0].mxu0
      %v4069 = vpop.f32.mrb[0].mxu0
      %4070 = vdwg.mxu0
      %v4071 = vmax.f32 %v3821, %v3945
      %v4072 = vmax.f32 %v3822, %v3947
      %v4073 = vmax.f32 %v3823, %v4066
      %4074 = vmatprep.subr.bf16.mxu0 %v2327
      %4075 = vmatpush1.bf16.msra.mxu0 %v2326
      %4076 = vmatprep.subr.bf16.mxu0 %v2330
      %4077 = vmatpush1.bf16.msra.mxu0 %v2329
      %4078 = vmatprep.subr.bf16.mxu0 %v2333
      %4079 = vmatpush1.bf16.msra.mxu0 %v2332
      %4080 = vmatprep.subr.bf16.mxu0 %v2336
      %4081 = vmatpush1.bf16.msra.mxu0 %v2335
      %4082 = vmatprep.subr.bf16.mxu0 %v2339
      %4083 = vmatpush1.bf16.msra.mxu0 %v2338
      %4084 = vmatprep.subr.bf16.mxu0 %v2342
      %4085 = vmatpush1.bf16.msra.mxu0 %v2341
      %4086 = vmatprep.subr.bf16.mxu0 %v2345
      %4087 = vmatpush1.bf16.msra.mxu0 %v2344
      %4088 = vmatprep.subr.bf16.mxu0 %v2348
      %4089 = vmatpush1.bf16.msra.mxu0 %v2347
      %4090 = vmatprep.subr.bf16.mxu0 %v2351
      %4091 = vmatpush1.bf16.msra.mxu0 %v2350
      %4092 = vmatprep.subr.bf16.mxu0 %v2354
      %4093 = vmatpush1.bf16.msra.mxu0 %v2353
      %4094 = vmatprep.subr.bf16.mxu0 %v2357
      %4095 = vmatpush1.bf16.msra.mxu0 %v2356
      %4096 = vmatprep.subr.bf16.mxu0 %v2360
      %4097 = vmatpush1.bf16.msra.mxu0 %v2359
      %4098 = vmatprep.subr.bf16.mxu0 %v2363
      %4099 = vmatpush1.bf16.msra.mxu0 %v2362
      %4100 = vmatprep.subr.bf16.mxu0 %v2366
      %4101 = vmatpush1.bf16.msra.mxu0 %v2365
      %4102 = vmatprep.subr.bf16.mxu0 %v2369
      %4103 = vmatpush1.bf16.msra.mxu0 %v2368
      %4104 = vmatprep.subr.bf16.mxu0 %v2372
      %4105 = vmatpush1.bf16.msra.mxu0 %v2371
      %4106 = vmatprep.mubr.bf16.mxu0 %v1042
      %4107 = vmatmul.mubr.bf16.gmra.mrb[0].mxu0 %v1041
      %v4108 = vpop.f32.mrb[0].mxu0
      %v4109 = vadd.f32 0.0, %v4108
      %v4110 = vpop.f32.mrb[0].mxu0
      %v4111 = vadd.f32 0.0, %v4110
      %v4112 = vpop.f32.mrb[0].mxu0
      %v4113 = vpop.f32.mrb[0].mxu0
      %4114 = vdwg.mxu0
      %4115 = vmatprep.subr.bf16.mxu0 %v2375
      %4116 = vmatpush1.bf16.msra.mxu0 %v2374
      %4117 = vmatprep.subr.bf16.mxu0 %v2378
      %4118 = vmatpush1.bf16.msra.mxu0 %v2377
      %4119 = vmatprep.subr.bf16.mxu0 %v2381
      %4120 = vmatpush1.bf16.msra.mxu0 %v2380
      %4121 = vmatprep.subr.bf16.mxu0 %v2384
      %4122 = vmatpush1.bf16.msra.mxu0 %v2383
      %4123 = vmatprep.subr.bf16.mxu0 %v2387
      %4124 = vmatpush1.bf16.msra.mxu0 %v2386
      %4125 = vmatprep.subr.bf16.mxu0 %v2390
      %4126 = vmatpush1.bf16.msra.mxu0 %v2389
      %4127 = vmatprep.subr.bf16.mxu0 %v2393
      %4128 = vmatpush1.bf16.msra.mxu0 %v2392
      %4129 = vmatprep.subr.bf16.mxu0 %v2396
      %4130 = vmatpush1.bf16.msra.mxu0 %v2395
      %4131 = vmatprep.subr.bf16.mxu0 %v2399
      %4132 = vmatpush1.bf16.msra.mxu0 %v2398
      %4133 = vmatprep.subr.bf16.mxu0 %v2402
      %4134 = vmatpush1.bf16.msra.mxu0 %v2401
      %4135 = vmatprep.subr.bf16.mxu0 %v2405
      %4136 = vmatpush1.bf16.msra.mxu0 %v2404
      %4137 = vmatprep.subr.bf16.mxu0 %v2408
      %4138 = vmatpush1.bf16.msra.mxu0 %v2407
      %4139 = vmatprep.subr.bf16.mxu0 %v2411
      %4140 = vmatpush1.bf16.msra.mxu0 %v2410
      %4141 = vmatprep.subr.bf16.mxu0 %v2414
      %4142 = vmatpush1.bf16.msra.mxu0 %v2413
      %4143 = vmatprep.subr.bf16.mxu0 %v2417
      %4144 = vmatpush1.bf16.msra.mxu0 %v2416
      %4145 = vmatprep.subr.bf16.mxu0 %v2420
      %4146 = vmatpush1.bf16.msra.mxu0 %v2419
      %4147 = vmatprep.mubr.bf16.mxu0 %v3334
      %4148 = vmatmul.mubr.bf16.gmra.mrb[0].mxu0 %v2815
      %v4149 = vpop.f32.mrb[0].mxu0
      %v4150 = vadd.f32 %v4109, %v4149
      %v4151 = vpop.f32.mrb[0].mxu0
      %v4152 = vadd.f32 %v4111, %v4151
      %v4153 = vpop.f32.mrb[0].mxu0
      %v4154 = vpop.f32.mrb[0].mxu0
      %4155 = vdwg.mxu0
      %4156 = vmatprep.subr.bf16.mxu0 %v2423
      %4157 = vmatpush1.bf16.msra.mxu0 %v2422
      %4158 = vmatprep.subr.bf16.mxu0 %v2426
      %4159 = vmatpush1.bf16.msra.mxu0 %v2425
      %4160 = vmatprep.subr.bf16.mxu0 %v2429
      %4161 = vmatpush1.bf16.msra.mxu0 %v2428
      %4162 = vmatprep.subr.bf16.mxu0 %v2432
      %4163 = vmatpush1.bf16.msra.mxu0 %v2431
      %4164 = vmatprep.subr.bf16.mxu0 %v2435
      %4165 = vmatpush1.bf16.msra.mxu0 %v2434
      %4166 = vmatprep.subr.bf16.mxu0 %v2438
      %4167 = vmatpush1.bf16.msra.mxu0 %v2437
      %4168 = vmatprep.subr.bf16.mxu0 %v2441
      %4169 = vmatpush1.bf16.msra.mxu0 %v2440
      %4170 = vmatprep.subr.bf16.mxu0 %v2444
      %4171 = vmatpush1.bf16.msra.mxu0 %v2443
      %4172 = vmatprep.subr.bf16.mxu0 0
      %4173 = vmatpush1.bf16.msra.mxu0 0
      %4174 = vmatprep.subr.bf16.mxu0 0
      %4175 = vmatpush1.bf16.msra.mxu0 0
      %4176 = vmatprep.subr.bf16.mxu0 0
      %4177 = vmatpush1.bf16.msra.mxu0 0
      %4178 = vmatprep.subr.bf16.mxu0 0
      %4179 = vmatpush1.bf16.msra.mxu0 0
      %4180 = vmatprep.subr.bf16.mxu0 0
      %4181 = vmatpush1.bf16.msra.mxu0 0
      %4182 = vmatprep.subr.bf16.mxu0 0
      %4183 = vmatpush1.bf16.msra.mxu0 0
      %4184 = vmatprep.subr.bf16.mxu0 0
      %4185 = vmatpush1.bf16.msra.mxu0 0
      %4186 = vmatprep.subr.bf16.mxu0 0
      %4187 = vmatpush1.bf16.msra.mxu0 0
      %4188 = vmatprep.mubr.bf16.mxu0 0
      %4189 = vmatmul.mubr.bf16.gmra.mrb[0].mxu0 %v3827
      %v4190 = vpop.f32.mrb[0].mxu0
      %v4191 = vadd.f32 %v4150, %v4190
      %v4192 = vpop.f32.mrb[0].mxu0
      %v4193 = vadd.f32 %v4152, %v4192
      %v4194 = vpop.f32.mrb[0].mxu0
      %v4195 = vpop.f32.mrb[0].mxu0
      %4196 = vdwg.mxu0
      %4197 = vmatprep.subr.bf16.mxu0 0
      %4198 = vmatpush1.bf16.msra.mxu0 %v2328
      %4199 = vmatprep.subr.bf16.mxu0 0
      %4200 = vmatpush1.bf16.msra.mxu0 %v2331
      %4201 = vmatprep.subr.bf16.mxu0 0
      %4202 = vmatpush1.bf16.msra.mxu0 %v2334
      %4203 = vmatprep.subr.bf16.mxu0 0
      %4204 = vmatpush1.bf16.msra.mxu0 %v2337
      %4205 = vmatprep.subr.bf16.mxu0 0
      %4206 = vmatpush1.bf16.msra.mxu0 %v2340
      %4207 = vmatprep.subr.bf16.mxu0 0
      %4208 = vmatpush1.bf16.msra.mxu0 %v2343
      %4209 = vmatprep.subr.bf16.mxu0 0
      %4210 = vmatpush1.bf16.msra.mxu0 %v2346
      %4211 = vmatprep.subr.bf16.mxu0 0
      %4212 = vmatpush1.bf16.msra.mxu0 %v2349
      %4213 = vmatprep.subr.bf16.mxu0 0
      %4214 = vmatpush1.bf16.msra.mxu0 %v2352
      %4215 = vmatprep.subr.bf16.mxu0 0
      %4216 = vmatpush1.bf16.msra.mxu0 %v2355
      %4217 = vmatprep.subr.bf16.mxu0 0
      %4218 = vmatpush1.bf16.msra.mxu0 %v2358
      %4219 = vmatprep.subr.bf16.mxu0 0
      %4220 = vmatpush1.bf16.msra.mxu0 %v2361
      %4221 = vmatprep.subr.bf16.mxu0 0
      %4222 = vmatpush1.bf16.msra.mxu0 %v2364
      %4223 = vmatprep.subr.bf16.mxu0 0
      %4224 = vmatpush1.bf16.msra.mxu0 %v2367
      %4225 = vmatprep.subr.bf16.mxu0 0
      %4226 = vmatpush1.bf16.msra.mxu0 %v2370
      %4227 = vmatprep.subr.bf16.mxu0 0
      %4228 = vmatpush1.bf16.msra.mxu0 %v2373
      %4229 = vmatprep.mubr.bf16.mxu0 %v1042
      %4230 = vmatmul.mubr.bf16.gmra.mrb[0].mxu0 %v1041
      %v4231 = vpop.f32.mrb[0].mxu0
      %v4232 = vadd.f32 0.0, %v4231
      %v4233 = vpop.f32.mrb[0].mxu0
      %v4234 = vpop.f32.mrb[0].mxu0
      %v4235 = vpop.f32.mrb[0].mxu0
      %4236 = vdwg.mxu0
      %4237 = vmatprep.subr.bf16.mxu0 0
      %4238 = vmatpush1.bf16.msra.mxu0 %v2376
      %4239 = vmatprep.subr.bf16.mxu0 0
      %4240 = vmatpush1.bf16.msra.mxu0 %v2379
      %4241 = vmatprep.subr.bf16.mxu0 0
      %4242 = vmatpush1.bf16.msra.mxu0 %v2382
      %4243 = vmatprep.subr.bf16.mxu0 0
      %4244 = vmatpush1.bf16.msra.mxu0 %v2385
      %4245 = vmatprep.subr.bf16.mxu0 0
      %4246 = vmatpush1.bf16.msra.mxu0 %v2388
      %4247 = vmatprep.subr.bf16.mxu0 0
      %4248 = vmatpush1.bf16.msra.mxu0 %v2391
      %4249 = vmatprep.subr.bf16.mxu0 0
      %4250 = vmatpush1.bf16.msra.mxu0 %v2394
      %4251 = vmatprep.subr.bf16.mxu0 0
      %4252 = vmatpush1.bf16.msra.mxu0 %v2397
      %4253 = vmatprep.subr.bf16.mxu0 0
      %4254 = vmatpush1.bf16.msra.mxu0 %v2400
      %4255 = vmatprep.subr.bf16.mxu0 0
      %4256 = vmatpush1.bf16.msra.mxu0 %v2403
      %4257 = vmatprep.subr.bf16.mxu0 0
      %4258 = vmatpush1.bf16.msra.mxu0 %v2406
      %4259 = vmatprep.subr.bf16.mxu0 0
      %4260 = vmatpush1.bf16.msra.mxu0 %v2409
      %4261 = vmatprep.subr.bf16.mxu0 0
      %4262 = vmatpush1.bf16.msra.mxu0 %v2412
      %4263 = vmatprep.subr.bf16.mxu0 0
      %4264 = vmatpush1.bf16.msra.mxu0 %v2415
      %4265 = vmatprep.subr.bf16.mxu0 0
      %4266 = vmatpush1.bf16.msra.mxu0 %v2418
      %4267 = vmatprep.subr.bf16.mxu0 0
      %4268 = vmatpush1.bf16.msra.mxu0 %v2421
      %4269 = vmatprep.mubr.bf16.mxu0 %v3334
      %4270 = vmatmul.mubr.bf16.gmra.mrb[0].mxu0 %v2815
      %v4271 = vpop.f32.mrb[0].mxu0
      %v4272 = vadd.f32 %v4232, %v4271
      %v4273 = vpop.f32.mrb[0].mxu0
      %v4274 = vpop.f32.mrb[0].mxu0
      %v4275 = vpop.f32.mrb[0].mxu0
      %4276 = vdwg.mxu0
      %4277 = vmatprep.subr.bf16.mxu0 0
      %4278 = vmatpush1.bf16.msra.mxu0 %v2424
      %4279 = vmatprep.subr.bf16.mxu0 0
      %4280 = vmatpush1.bf16.msra.mxu0 %v2427
      %4281 = vmatprep.subr.bf16.mxu0 0
      %4282 = vmatpush1.bf16.msra.mxu0 %v2430
      %4283 = vmatprep.subr.bf16.mxu0 0
      %4284 = vmatpush1.bf16.msra.mxu0 %v2433
      %4285 = vmatprep.subr.bf16.mxu0 0
      %4286 = vmatpush1.bf16.msra.mxu0 %v2436
      %4287 = vmatprep.subr.bf16.mxu0 0
      %4288 = vmatpush1.bf16.msra.mxu0 %v2439
      %4289 = vmatprep.subr.bf16.mxu0 0
      %4290 = vmatpush1.bf16.msra.mxu0 %v2442
      %4291 = vmatprep.subr.bf16.mxu0 0
      %4292 = vmatpush1.bf16.msra.mxu0 %v2445
      %4293 = vmatprep.subr.bf16.mxu0 0
      %4294 = vmatpush1.bf16.msra.mxu0 0
      %4295 = vmatprep.subr.bf16.mxu0 0
      %4296 = vmatpush1.bf16.msra.mxu0 0
      %4297 = vmatprep.subr.bf16.mxu0 0
      %4298 = vmatpush1.bf16.msra.mxu0 0
      %4299 = vmatprep.subr.bf16.mxu0 0
      %4300 = vmatpush1.bf16.msra.mxu0 0
      %4301 = vmatprep.subr.bf16.mxu0 0
      %4302 = vmatpush1.bf16.msra.mxu0 0
      %4303 = vmatprep.subr.bf16.mxu0 0
      %4304 = vmatpush1.bf16.msra.mxu0 0
      %4305 = vmatprep.subr.bf16.mxu0 0
      %4306 = vmatpush1.bf16.msra.mxu0 0
      %4307 = vmatprep.subr.bf16.mxu0 0
      %4308 = vmatpush1.bf16.msra.mxu0 0
      %4309 = vmatprep.mubr.bf16.mxu0 0
      %4310 = vmatmul.mubr.bf16.gmra.mrb[0].mxu0 %v3827
      %v4311 = vpop.f32.mrb[0].mxu0
      %v4312 = vadd.f32 %v4272, %v4311
      %v4313 = vpop.f32.mrb[0].mxu0
      %v4314 = vpop.f32.mrb[0].mxu0
      %v4315 = vpop.f32.mrb[0].mxu0
      %4316 = vdwg.mxu0
      %v4317 = vmax.f32 %v4071, %v4191
      %v4318 = vmax.f32 %v4072, %v4193
      %v4319 = vmax.f32 %v4073, %v4312
      %v4320 = vadd.f32 %v4317, %v3313
      %v4321 = vadd.f32 %v4318, %v3317
      %v4322 = vadd.f32 %v4319, %v3321
      %v4323 = vmax.f32 %v4320, 0.0
      %v4324 = vmax.f32 %v4321, 0.0
      %v4325 = vmax.f32 %v4322, 0.0
      %v4329 = vrot.slane %v3328, 1
      %v4330 = vrot.slane %v3329, 1
      %v4331 = vrot.slane %v3330, 1
      %v4338 = vrot.slane %v4323, 1
      %v4339 = vrot.slane %v4324, 1
      %v4340 = vrot.slane %v4325, 1
      %v4344 = vrot.slane %v3328, 2
      %v4345 = vrot.slane %v3329, 2
      %v4346 = vrot.slane %v3330, 2
      %v4350 = vpack.c.bf16 %v3328, %v3328
      %v4351 = vpack.c.bf16 %v3329, %v3329
      %v4352 = vpack.c.bf16 %v3330, %v3330
      %v4353 = vpack.c.bf16 %v4323, %v4323
      %v4354 = vpack.c.bf16 %v4324, %v4324
      %v4355 = vpack.c.bf16 %v4325, %v4325
      %v4356 = vpack.c.bf16 %v4329, %v4329
      %v4357 = vpack.c.bf16 %v4330, %v4330
      %v4358 = vpack.c.bf16 %v4331, %v4331
      %v4359 = vpack.c.bf16 %v4338, %v4338
      %v4360 = vpack.c.bf16 %v4339, %v4339
      %v4361 = vpack.c.bf16 %v4340, %v4340
      %v4362 = vpack.c.bf16 %v4344, %v4344
      %v4363 = vpack.c.bf16 %v4345, %v4345
      %v4364 = vpack.c.bf16 %v4346, %v4346
      %v4605 = vunpack.c.l.b16 %v554
      %v4606 = vunpack.c.h.b16 %v554
      %v4607 = vunpack.c.l.b16 %v555
      %v4608 = vunpack.c.h.b16 %v555
      %v4609 = vunpack.c.l.b16 %v556
      %v4610 = vunpack.c.h.b16 %v556
      %v4611 = vunpack.c.l.b16 %v557
      %v4612 = vunpack.c.h.b16 %v557
      %v4613 = vunpack.c.l.b16 %v558
      %v4614 = vunpack.c.h.b16 %v558
      %v4615 = vunpack.c.l.b16 %v559
      %v4616 = vunpack.c.h.b16 %v559
      %v4617 = vunpack.c.l.b16 %v560
      %v4618 = vunpack.c.h.b16 %v560
      %v4619 = vunpack.c.l.b16 %v561
      %v4620 = vunpack.c.h.b16 %v561
      %v4621 = vunpack.c.l.b16 %v562
      %v4622 = vunpack.c.h.b16 %v562
      %v4623 = vunpack.c.l.b16 %v563
      %v4624 = vunpack.c.h.b16 %v563
      %v4625 = vunpack.c.l.b16 %v564
      %v4626 = vunpack.c.h.b16 %v564
      %v4627 = vunpack.c.l.b16 %v565
      %v4628 = vunpack.c.h.b16 %v565
      %v4629 = vunpack.c.l.b16 %v566
      %v4630 = vunpack.c.h.b16 %v566
      %v4631 = vunpack.c.l.b16 %v567
      %v4632 = vunpack.c.h.b16 %v567
      %v4633 = vunpack.c.l.b16 %v568
      %v4634 = vunpack.c.h.b16 %v568
      %v4635 = vunpack.c.l.b16 %v569
      %v4636 = vunpack.c.h.b16 %v569
      %v4637 = vunpack.c.l.b16 %v570
      %v4638 = vunpack.c.h.b16 %v570
      %v4639 = vunpack.c.l.b16 %v571
      %v4640 = vunpack.c.h.b16 %v571
      %v4641 = vunpack.c.l.b16 %v572
      %v4642 = vunpack.c.h.b16 %v572
      %v4643 = vunpack.c.l.b16 %v573
      %v4644 = vunpack.c.h.b16 %v573
      %v4645 = vunpack.c.l.b16 %v574
      %v4646 = vunpack.c.h.b16 %v574
      %v4647 = vunpack.c.l.b16 %v575
      %v4648 = vunpack.c.h.b16 %v575
      %v4649 = vunpack.c.l.b16 %v576
      %v4650 = vunpack.c.h.b16 %v576
      %v4651 = vunpack.c.l.b16 %v577
      %v4652 = vunpack.c.h.b16 %v577
      %v4653 = vunpack.c.l.b16 %v578
      %v4654 = vunpack.c.h.b16 %v578
      %v4655 = vunpack.c.l.b16 %v579
      %v4656 = vunpack.c.h.b16 %v579
      %v4657 = vunpack.c.l.b16 %v580
      %v4658 = vunpack.c.h.b16 %v580
      %v4659 = vunpack.c.l.b16 %v581
      %v4660 = vunpack.c.h.b16 %v581
      %v4661 = vunpack.c.l.b16 %v582
      %v4662 = vunpack.c.h.b16 %v582
      %v4663 = vunpack.c.l.b16 %v583
      %v4664 = vunpack.c.h.b16 %v583
      %v4665 = vunpack.c.l.b16 %v584
      %v4666 = vunpack.c.h.b16 %v584
      %v4667 = vunpack.c.l.b16 %v585
      %v4668 = vunpack.c.h.b16 %v585
      %v4669 = vunpack.c.l.b16 %v586
      %v4670 = vunpack.c.h.b16 %v586
      %v4671 = vunpack.c.l.b16 %v587
      %v4672 = vunpack.c.h.b16 %v587
      %v4673 = vunpack.c.l.b16 %v588
      %v4674 = vunpack.c.h.b16 %v588
      %v4675 = vunpack.c.l.b16 %v589
      %v4676 = vunpack.c.h.b16 %v589
      %v4677 = vunpack.c.l.b16 %v590
      %v4678 = vunpack.c.h.b16 %v590
      %v4679 = vunpack.c.l.b16 %v591
      %v4680 = vunpack.c.h.b16 %v591
      %v4681 = vunpack.c.l.b16 %v592
      %v4682 = vunpack.c.h.b16 %v592
      %v4683 = vunpack.c.l.b16 %v593
      %v4684 = vunpack.c.h.b16 %v593
      %v4685 = vunpack.c.l.b16 %v594
      %v4686 = vunpack.c.h.b16 %v594
      %v4687 = vunpack.c.l.b16 %v595
      %v4688 = vunpack.c.h.b16 %v595
      %v4689 = vunpack.c.l.b16 %v596
      %v4690 = vunpack.c.h.b16 %v596
      %v4691 = vunpack.c.l.b16 %v597
      %v4692 = vunpack.c.h.b16 %v597
      %v4693 = vunpack.c.l.b16 %v598
      %v4694 = vunpack.c.h.b16 %v598
      %v4695 = vunpack.c.l.b16 %v599
      %v4696 = vunpack.c.h.b16 %v599
      %v4697 = vunpack.c.l.b16 %v600
      %v4698 = vunpack.c.h.b16 %v600
      %v4699 = vunpack.c.l.b16 %v601
      %v4700 = vunpack.c.h.b16 %v601
      %v4701 = vunpack.c.l.b16 %v602
      %v4702 = vunpack.c.h.b16 %v602
      %v4703 = vunpack.c.l.b16 %v603
      %v4704 = vunpack.c.h.b16 %v603
      %v4705 = vunpack.c.l.b16 %v604
      %v4706 = vunpack.c.h.b16 %v604
      %v4707 = vunpack.c.l.b16 %v605
      %v4708 = vunpack.c.h.b16 %v605
      %v4709 = vunpack.c.l.b16 %v606
      %v4710 = vunpack.c.h.b16 %v606
      %v4711 = vunpack.c.l.b16 %v607
      %v4712 = vunpack.c.h.b16 %v607
      %v4713 = vunpack.c.l.b16 %v608
      %v4714 = vunpack.c.h.b16 %v608
      %v4715 = vunpack.c.l.b16 %v609
      %v4716 = vunpack.c.h.b16 %v609
      %v4717 = vunpack.c.l.b16 %v610
      %v4718 = vunpack.c.h.b16 %v610
      %v4719 = vunpack.c.l.b16 %v611
      %v4720 = vunpack.c.h.b16 %v611
      %v4721 = vunpack.c.l.b16 %v612
      %v4722 = vunpack.c.h.b16 %v612
      %v4723 = vunpack.c.l.b16 %v613
      %v4724 = vunpack.c.h.b16 %v613
      %v4725 = vunpack.c.l.b16 %v614
      %v4726 = vunpack.c.h.b16 %v614
      %v4727 = vunpack.c.l.b16 %v615
      %v4728 = vunpack.c.h.b16 %v615
      %v4729 = vunpack.c.l.b16 %v616
      %v4730 = vunpack.c.h.b16 %v616
      %v4731 = vunpack.c.l.b16 %v617
      %v4732 = vunpack.c.h.b16 %v617
      %v4733 = vunpack.c.l.b16 %v618
      %v4734 = vunpack.c.h.b16 %v618
      %v4735 = vunpack.c.l.b16 %v619
      %v4736 = vunpack.c.h.b16 %v619
      %v4737 = vunpack.c.l.b16 %v620
      %v4738 = vunpack.c.h.b16 %v620
      %v4739 = vunpack.c.l.b16 %v621
      %v4740 = vunpack.c.h.b16 %v621
      %v4741 = vunpack.c.l.b16 %v622
      %v4742 = vunpack.c.h.b16 %v622
      %v4743 = vunpack.c.l.b16 %v623
      %v4744 = vunpack.c.h.b16 %v623
      %v4745 = vunpack.c.l.b16 %v624
      %v4746 = vunpack.c.h.b16 %v624
      %v4747 = vunpack.c.l.b16 %v625
      %v4748 = vunpack.c.h.b16 %v625
      %v4749 = vunpack.c.l.b16 %v626
      %v4750 = vunpack.c.h.b16 %v626
      %v4751 = vunpack.c.l.b16 %v627
      %v4752 = vunpack.c.h.b16 %v627
      %v4753 = vunpack.c.l.b16 %v628
      %v4754 = vunpack.c.h.b16 %v628
      %v4755 = vunpack.c.l.b16 %v629
      %v4756 = vunpack.c.h.b16 %v629
      %v4757 = vunpack.c.l.b16 %v630
      %v4758 = vunpack.c.h.b16 %v630
      %v4759 = vunpack.c.l.b16 %v631
      %v4760 = vunpack.c.h.b16 %v631
      %v4761 = vunpack.c.l.b16 %v632
      %v4762 = vunpack.c.h.b16 %v632
      %v4763 = vunpack.c.l.b16 %v633
      %v4764 = vunpack.c.h.b16 %v633
      %v4765 = vunpack.c.l.b16 %v634
      %v4766 = vunpack.c.h.b16 %v634
      %v4767 = vunpack.c.l.b16 %v635
      %v4768 = vunpack.c.h.b16 %v635
      %v4769 = vunpack.c.l.b16 %v636
      %v4770 = vunpack.c.h.b16 %v636
      %v4771 = vunpack.c.l.b16 %v637
      %v4772 = vunpack.c.h.b16 %v637
      %v4773 = vunpack.c.l.b16 %v638
      %v4774 = vunpack.c.h.b16 %v638
      %v4775 = vunpack.c.l.b16 %v639
      %v4776 = vunpack.c.h.b16 %v639
      %v4777 = vunpack.c.l.b16 %v640
      %v4778 = vunpack.c.h.b16 %v640
      %v4779 = vunpack.c.l.b16 %v641
      %v4780 = vunpack.c.h.b16 %v641
      %v4781 = vunpack.c.l.b16 %v642
      %v4782 = vunpack.c.h.b16 %v642
      %v4783 = vunpack.c.l.b16 %v643
      %v4784 = vunpack.c.h.b16 %v643
      %v4785 = vunpack.c.l.b16 %v644
      %v4786 = vunpack.c.h.b16 %v644
      %v4787 = vunpack.c.l.b16 %v645
      %v4788 = vunpack.c.h.b16 %v645
      %v4789 = vunpack.c.l.b16 %v646
      %v4790 = vunpack.c.h.b16 %v646
      %v4791 = vunpack.c.l.b16 %v647
      %v4792 = vunpack.c.h.b16 %v647
      %v4793 = vunpack.c.l.b16 %v648
      %v4794 = vunpack.c.h.b16 %v648
      %v4795 = vunpack.c.l.b16 %v649
      %v4796 = vunpack.c.h.b16 %v649
      %v4797 = vunpack.c.l.b16 %v650
      %v4798 = vunpack.c.h.b16 %v650
      %v4799 = vunpack.c.l.b16 %v651
      %v4800 = vunpack.c.h.b16 %v651
      %v4801 = vunpack.c.l.b16 %v652
      %v4802 = vunpack.c.h.b16 %v652
      %v4803 = vunpack.c.l.b16 %v653
      %v4804 = vunpack.c.h.b16 %v653
      %v4805 = vunpack.c.l.b16 %v654
      %v4806 = vunpack.c.h.b16 %v654
      %v4807 = vunpack.c.l.b16 %v655
      %v4808 = vunpack.c.h.b16 %v655
      %v4809 = vunpack.c.l.b16 %v656
      %v4810 = vunpack.c.h.b16 %v656
      %v4811 = vunpack.c.l.b16 %v657
      %v4812 = vunpack.c.h.b16 %v657
      %v4813 = vunpack.c.l.b16 %v658
      %v4814 = vunpack.c.h.b16 %v658
      %v4815 = vunpack.c.l.b16 %v659
      %v4816 = vunpack.c.h.b16 %v659
      %v4817 = vunpack.c.l.b16 %v660
      %v4818 = vunpack.c.h.b16 %v660
      %v4819 = vunpack.c.l.b16 %v661
      %v4820 = vunpack.c.h.b16 %v661
      %v4821 = vunpack.c.l.b16 %v662
      %v4822 = vunpack.c.h.b16 %v662
      %v4823 = vunpack.c.l.b16 %v663
      %v4824 = vunpack.c.h.b16 %v663
      %v4825 = vunpack.c.l.b16 %v664
      %v4826 = vunpack.c.h.b16 %v664
      %v4827 = vunpack.c.l.b16 %v665
      %v4828 = vunpack.c.h.b16 %v665
      %v4829 = vunpack.c.l.b16 %v666
      %v4830 = vunpack.c.h.b16 %v666
      %v4831 = vunpack.c.l.b16 %v667
      %v4832 = vunpack.c.h.b16 %v667
      %v4833 = vunpack.c.l.b16 %v668
      %v4834 = vunpack.c.h.b16 %v668
      %v4835 = vunpack.c.l.b16 %v669
      %v4836 = vunpack.c.h.b16 %v669
      %v4837 = vunpack.c.l.b16 %v670
      %v4838 = vunpack.c.h.b16 %v670
      %v4839 = vunpack.c.l.b16 %v671
      %v4840 = vunpack.c.h.b16 %v671
      %v4841 = vunpack.c.l.b16 %v672
      %v4842 = vunpack.c.h.b16 %v672
      %v4843 = vunpack.c.l.b16 %v673
      %v4844 = vunpack.c.h.b16 %v673
      %v4845 = vunpack.c.l.b16 %v674
      %v4846 = vunpack.c.h.b16 %v674
      %v4847 = vunpack.c.l.b16 %v675
      %v4848 = vunpack.c.h.b16 %v675
      %v4849 = vunpack.c.l.b16 %v676
      %v4850 = vunpack.c.h.b16 %v676
      %v4851 = vunpack.c.l.b16 %v677
      %v4852 = vunpack.c.h.b16 %v677
      %v4853 = vunpack.c.l.b16 %v678
      %v4854 = vunpack.c.h.b16 %v678
      %v4855 = vunpack.c.l.b16 %v679
      %v4856 = vunpack.c.h.b16 %v679
      %v4857 = vunpack.c.l.b16 %v680
      %v4858 = vunpack.c.h.b16 %v680
      %v4859 = vunpack.c.l.b16 %v681
      %v4860 = vunpack.c.h.b16 %v681
      %v4861 = vunpack.c.l.b16 %v682
      %v4862 = vunpack.c.h.b16 %v682
      %v4863 = vunpack.c.l.b16 %v683
      %v4864 = vunpack.c.h.b16 %v683
      %v4865 = vunpack.c.l.b16 %v684
      %v4866 = vunpack.c.h.b16 %v684
      %v4867 = vunpack.c.l.b16 %v685
      %v4868 = vunpack.c.h.b16 %v685
      %v4869 = vunpack.c.l.b16 %v686
      %v4870 = vunpack.c.h.b16 %v686
      %v4871 = vunpack.c.l.b16 %v687
      %v4872 = vunpack.c.h.b16 %v687
      %v4873 = vunpack.c.l.b16 %v688
      %v4874 = vunpack.c.h.b16 %v688
      %v4875 = vunpack.c.l.b16 %v689
      %v4876 = vunpack.c.h.b16 %v689
      %v4877 = vunpack.c.l.b16 %v690
      %v4878 = vunpack.c.h.b16 %v690
      %v4879 = vunpack.c.l.b16 %v691
      %v4880 = vunpack.c.h.b16 %v691
      %v4881 = vunpack.c.l.b16 %v692
      %v4882 = vunpack.c.h.b16 %v692
      %v4883 = vunpack.c.l.b16 %v693
      %v4884 = vunpack.c.h.b16 %v693
      %v4885 = vunpack.c.l.b16 %v694
      %v4886 = vunpack.c.h.b16 %v694
      %v4887 = vunpack.c.l.b16 %v695
      %v4888 = vunpack.c.h.b16 %v695
      %v4889 = vunpack.c.l.b16 %v696
      %v4890 = vunpack.c.h.b16 %v696
      %v4891 = vunpack.c.l.b16 %v697
      %v4892 = vunpack.c.h.b16 %v697
      %v4893 = vunpack.c.l.b16 %v698
      %v4894 = vunpack.c.h.b16 %v698
      %v4895 = vunpack.c.l.b16 %v699
      %v4896 = vunpack.c.h.b16 %v699
      %v4897 = vunpack.c.l.b16 %v700
      %v4898 = vunpack.c.h.b16 %v700
      %v4899 = vunpack.c.l.b16 %v701
      %v4900 = vunpack.c.h.b16 %v701
      %v4901 = vunpack.c.l.b16 %v702
      %v4902 = vunpack.c.h.b16 %v702
      %v4903 = vunpack.c.l.b16 %v703
      %v4904 = vunpack.c.h.b16 %v703
      %v4905 = vunpack.c.l.b16 %v704
      %v4906 = vunpack.c.h.b16 %v704
      %v4907 = vunpack.c.l.b16 %v705
      %v4908 = vunpack.c.h.b16 %v705
      %v4909 = vunpack.c.l.b16 %v706
      %v4910 = vunpack.c.h.b16 %v706
      %v4911 = vunpack.c.l.b16 %v707
      %v4912 = vunpack.c.h.b16 %v707
      %v4913 = vunpack.c.l.b16 %v708
      %v4914 = vunpack.c.h.b16 %v708
      %v4915 = vunpack.c.l.b16 %v709
      %v4916 = vunpack.c.h.b16 %v709
      %v4917 = vunpack.c.l.b16 %v710
      %v4918 = vunpack.c.h.b16 %v710
      %v4919 = vunpack.c.l.b16 %v711
      %v4920 = vunpack.c.h.b16 %v711
      %v4921 = vunpack.c.l.b16 %v712
      %v4922 = vunpack.c.h.b16 %v712
      %v4923 = vunpack.c.l.b16 %v713
      %v4924 = vunpack.c.h.b16 %v713
      %v4925 = vunpack.c.l.b16 %v714
      %v4926 = vunpack.c.h.b16 %v714
      %v4927 = vunpack.c.l.b16 %v715
      %v4928 = vunpack.c.h.b16 %v715
      %v4929 = vunpack.c.l.b16 %v716
      %v4930 = vunpack.c.h.b16 %v716
      %v4931 = vunpack.c.l.b16 %v717
      %v4932 = vunpack.c.h.b16 %v717
      %v4933 = vunpack.c.l.b16 %v718
      %v4934 = vunpack.c.h.b16 %v718
      %v4935 = vunpack.c.l.b16 %v719
      %v4936 = vunpack.c.h.b16 %v719
      %v4937 = vunpack.c.l.b16 %v720
      %v4938 = vunpack.c.h.b16 %v720
      %v4939 = vunpack.c.l.b16 %v721
      %v4940 = vunpack.c.h.b16 %v721
      %v4941 = vunpack.c.l.b16 %v722
      %v4942 = vunpack.c.h.b16 %v722
      %v4943 = vunpack.c.l.b16 %v723
      %v4944 = vunpack.c.h.b16 %v723
      %v4945 = vunpack.c.l.b16 %v724
      %v4946 = vunpack.c.h.b16 %v724
      %v4947 = vunpack.c.l.b16 %v725
      %v4948 = vunpack.c.h.b16 %v725
      %v4949 = vunpack.c.l.b16 %v726
      %v4950 = vunpack.c.h.b16 %v726
      %v4951 = vunpack.c.l.b16 %v727
      %v4952 = vunpack.c.h.b16 %v727
      %v4953 = vunpack.c.l.b16 %v728
      %v4954 = vunpack.c.h.b16 %v728
      %v4955 = vunpack.c.l.b16 %v729
      %v4956 = vunpack.c.h.b16 %v729
      %v4957 = vunpack.c.l.b16 %v730
      %v4958 = vunpack.c.h.b16 %v730
      %v4959 = vunpack.c.l.b16 %v731
      %v4960 = vunpack.c.h.b16 %v731
      %v4961 = vunpack.c.l.b16 %v732
      %v4962 = vunpack.c.h.b16 %v732
      %v4963 = vunpack.c.l.b16 %v733
      %v4964 = vunpack.c.h.b16 %v733
      %v4965 = vunpack.c.l.b16 %v734
      %v4966 = vunpack.c.h.b16 %v734
      %v4967 = vunpack.c.l.b16 %v735
      %v4968 = vunpack.c.h.b16 %v735
      %v4969 = vunpack.c.l.b16 %v736
      %v4970 = vunpack.c.h.b16 %v736
      %v4971 = vunpack.c.l.b16 %v737
      %v4972 = vunpack.c.h.b16 %v737
      %v4973 = vunpack.c.l.b16 %v738
      %v4974 = vunpack.c.h.b16 %v738
      %v4975 = vunpack.c.l.b16 %v739
      %v4976 = vunpack.c.h.b16 %v739
      %v4977 = vunpack.c.l.b16 %v740
      %v4978 = vunpack.c.h.b16 %v740
      %v4979 = vunpack.c.l.b16 %v741
      %v4980 = vunpack.c.h.b16 %v741
      %v4981 = vunpack.c.l.b16 %v742
      %v4982 = vunpack.c.h.b16 %v742
      %v4983 = vunpack.c.l.b16 %v743
      %v4984 = vunpack.c.h.b16 %v743
      %v4985 = vunpack.c.l.b16 %v744
      %v4986 = vunpack.c.h.b16 %v744
      %v4987 = vunpack.c.l.b16 %v745
      %v4988 = vunpack.c.h.b16 %v745
      %v4989 = vunpack.c.l.b16 %v746
      %v4990 = vunpack.c.h.b16 %v746
      %v4991 = vunpack.c.l.b16 %v747
      %v4992 = vunpack.c.h.b16 %v747
      %v4993 = vunpack.c.l.b16 %v748
      %v4994 = vunpack.c.h.b16 %v748
      %v4995 = vunpack.c.l.b16 %v749
      %v4996 = vunpack.c.h.b16 %v749
      %v4997 = vunpack.c.l.b16 %v750
      %v4998 = vunpack.c.h.b16 %v750
      %v4999 = vunpack.c.l.b16 %v751
      %v5000 = vunpack.c.h.b16 %v751
      %v5001 = vunpack.c.l.b16 %v752
      %v5002 = vunpack.c.h.b16 %v752
      %v5003 = vunpack.c.l.b16 %v753
      %v5004 = vunpack.c.h.b16 %v753
      %v5005 = vunpack.c.l.b16 %v754
      %v5006 = vunpack.c.h.b16 %v754
      %v5007 = vunpack.c.l.b16 %v755
      %v5008 = vunpack.c.h.b16 %v755
      %v5009 = vunpack.c.l.b16 %v756
      %v5010 = vunpack.c.h.b16 %v756
      %v5011 = vunpack.c.l.b16 %v757
      %v5012 = vunpack.c.h.b16 %v757
      %v5013 = vunpack.c.l.b16 %v758
      %v5014 = vunpack.c.h.b16 %v758
      %v5015 = vunpack.c.l.b16 %v759
      %v5016 = vunpack.c.h.b16 %v759
      %v5017 = vunpack.c.l.b16 %v760
      %v5018 = vunpack.c.h.b16 %v760
      %v5019 = vunpack.c.l.b16 %v761
      %v5020 = vunpack.c.h.b16 %v761
      %v5021 = vunpack.c.l.b16 %v762
      %v5022 = vunpack.c.h.b16 %v762
      %v5023 = vunpack.c.l.b16 %v763
      %v5024 = vunpack.c.h.b16 %v763
      %v5025 = vunpack.c.l.b16 %v764
      %v5026 = vunpack.c.h.b16 %v764
      %v5027 = vunpack.c.l.b16 %v765
      %v5028 = vunpack.c.h.b16 %v765
      %v5029 = vunpack.c.l.b16 %v766
      %v5030 = vunpack.c.h.b16 %v766
      %v5031 = vunpack.c.l.b16 %v767
      %v5032 = vunpack.c.h.b16 %v767
      %v5033 = vunpack.c.l.b16 %v768
      %v5034 = vunpack.c.h.b16 %v768
      %v5035 = vunpack.c.l.b16 %v769
      %v5036 = vunpack.c.h.b16 %v769
      %v5037 = vunpack.c.l.b16 %v770
      %v5038 = vunpack.c.h.b16 %v770
      %v5039 = vunpack.c.l.b16 %v771
      %v5040 = vunpack.c.h.b16 %v771
      %v5041 = vunpack.c.l.b16 %v772
      %v5042 = vunpack.c.h.b16 %v772
      %v5043 = vunpack.c.l.b16 %v773
      %v5044 = vunpack.c.h.b16 %v773
      %v5045 = vunpack.c.l.b16 %v774
      %v5046 = vunpack.c.h.b16 %v774
      %v5047 = vunpack.c.l.b16 %v775
      %v5048 = vunpack.c.h.b16 %v775
      %v5049 = vunpack.c.l.b16 %v776
      %v5050 = vunpack.c.h.b16 %v776
      %v5051 = vunpack.c.l.b16 %v777
      %v5052 = vunpack.c.h.b16 %v777
      %v5053 = vunpack.c.l.b16 %v778
      %v5054 = vunpack.c.h.b16 %v778
      %v5055 = vunpack.c.l.b16 %v779
      %v5056 = vunpack.c.h.b16 %v779
      %v5057 = vunpack.c.l.b16 %v780
      %v5058 = vunpack.c.h.b16 %v780
      %v5059 = vunpack.c.l.b16 %v781
      %v5060 = vunpack.c.h.b16 %v781
      %v5061 = vunpack.c.l.b16 %v782
      %v5062 = vunpack.c.h.b16 %v782
      %v5063 = vunpack.c.l.b16 %v783
      %v5064 = vunpack.c.h.b16 %v783
      %v5065 = vunpack.c.l.b16 %v784
      %v5066 = vunpack.c.h.b16 %v784
      %v5067 = vunpack.c.l.b16 %v785
      %v5068 = vunpack.c.h.b16 %v785
      %v5069 = vunpack.c.l.b16 %v786
      %v5070 = vunpack.c.h.b16 %v786
      %v5071 = vunpack.c.l.b16 %v787
      %v5072 = vunpack.c.h.b16 %v787
      %v5073 = vunpack.c.l.b16 %v788
      %v5074 = vunpack.c.h.b16 %v788
      %v5075 = vunpack.c.l.b16 %v789
      %v5076 = vunpack.c.h.b16 %v789
      %v5077 = vunpack.c.l.b16 %v790
      %v5078 = vunpack.c.h.b16 %v790
      %v5079 = vunpack.c.l.b16 %v791
      %v5080 = vunpack.c.h.b16 %v791
      %v5081 = vunpack.c.l.b16 %v792
      %v5082 = vunpack.c.h.b16 %v792
      %v5083 = vunpack.c.l.b16 %v793
      %v5084 = vunpack.c.h.b16 %v793
      %v5085 = vpack.c.b16 %v4607, %v4605
      %v5086 = vpack.c.b16 %v4608, %v4606
      %v5087 = vpack.c.b16 %v4611, %v4609
      %v5088 = vpack.c.b16 %v4612, %v4610
      %v5089 = vpack.c.b16 %v4615, %v4613
      %v5090 = vpack.c.b16 %v4616, %v4614
      %v5091 = vpack.c.b16 %v4619, %v4617
      %v5092 = vpack.c.b16 %v4620, %v4618
      %v5093 = vpack.c.b16 %v4623, %v4621
      %v5094 = vpack.c.b16 %v4624, %v4622
      %v5095 = vpack.c.b16 %v4627, %v4625
      %v5096 = vpack.c.b16 %v4628, %v4626
      %v5097 = vpack.c.b16 %v4631, %v4629
      %v5098 = vpack.c.b16 %v4632, %v4630
      %v5099 = vpack.c.b16 %v4635, %v4633
      %v5100 = vpack.c.b16 %v4636, %v4634
      %v5101 = vpack.c.b16 %v4639, %v4637
      %v5102 = vpack.c.b16 %v4640, %v4638
      %v5103 = vpack.c.b16 %v4643, %v4641
      %v5104 = vpack.c.b16 %v4644, %v4642
      %v5105 = vpack.c.b16 %v4647, %v4645
      %v5106 = vpack.c.b16 %v4648, %v4646
      %v5107 = vpack.c.b16 %v4651, %v4649
      %v5108 = vpack.c.b16 %v4652, %v4650
      %v5109 = vpack.c.b16 %v4655, %v4653
      %v5110 = vpack.c.b16 %v4656, %v4654
      %v5111 = vpack.c.b16 %v4659, %v4657
      %v5112 = vpack.c.b16 %v4660, %v4658
      %v5113 = vpack.c.b16 %v4663, %v4661
      %v5114 = vpack.c.b16 %v4664, %v4662
      %v5115 = vpack.c.b16 %v4667, %v4665
      %v5116 = vpack.c.b16 %v4668, %v4666
      %v5117 = vpack.c.b16 %v4671, %v4669
      %v5118 = vpack.c.b16 %v4672, %v4670
      %v5119 = vpack.c.b16 %v4675, %v4673
      %v5120 = vpack.c.b16 %v4676, %v4674
      %v5121 = vpack.c.b16 %v4679, %v4677
      %v5122 = vpack.c.b16 %v4680, %v4678
      %v5123 = vpack.c.b16 %v4683, %v4681
      %v5124 = vpack.c.b16 %v4684, %v4682
      %v5125 = vpack.c.b16 %v4687, %v4685
      %v5126 = vpack.c.b16 %v4688, %v4686
      %v5127 = vpack.c.b16 %v4691, %v4689
      %v5128 = vpack.c.b16 %v4692, %v4690
      %v5129 = vpack.c.b16 %v4695, %v4693
      %v5130 = vpack.c.b16 %v4696, %v4694
      %v5131 = vpack.c.b16 %v4699, %v4697
      %v5132 = vpack.c.b16 %v4700, %v4698
      %v5133 = vpack.c.b16 %v4703, %v4701
      %v5134 = vpack.c.b16 %v4704, %v4702
      %v5135 = vpack.c.b16 %v4707, %v4705
      %v5136 = vpack.c.b16 %v4708, %v4706
      %v5137 = vpack.c.b16 %v4711, %v4709
      %v5138 = vpack.c.b16 %v4712, %v4710
      %v5139 = vpack.c.b16 %v4715, %v4713
      %v5140 = vpack.c.b16 %v4716, %v4714
      %v5141 = vpack.c.b16 %v4719, %v4717
      %v5142 = vpack.c.b16 %v4720, %v4718
      %v5143 = vpack.c.b16 %v4723, %v4721
      %v5144 = vpack.c.b16 %v4724, %v4722
      %v5145 = vpack.c.b16 %v4727, %v4725
      %v5146 = vpack.c.b16 %v4728, %v4726
      %v5147 = vpack.c.b16 %v4731, %v4729
      %v5148 = vpack.c.b16 %v4732, %v4730
      %v5149 = vpack.c.b16 %v4735, %v4733
      %v5150 = vpack.c.b16 %v4736, %v4734
      %v5151 = vpack.c.b16 %v4739, %v4737
      %v5152 = vpack.c.b16 %v4740, %v4738
      %v5153 = vpack.c.b16 %v4743, %v4741
      %v5154 = vpack.c.b16 %v4744, %v4742
      %v5155 = vpack.c.b16 %v4747, %v4745
      %v5156 = vpack.c.b16 %v4748, %v4746
      %v5157 = vpack.c.b16 %v4751, %v4749
      %v5158 = vpack.c.b16 %v4752, %v4750
      %v5159 = vpack.c.b16 %v4755, %v4753
      %v5160 = vpack.c.b16 %v4756, %v4754
      %v5161 = vpack.c.b16 %v4759, %v4757
      %v5162 = vpack.c.b16 %v4760, %v4758
      %v5163 = vpack.c.b16 %v4763, %v4761
      %v5164 = vpack.c.b16 %v4764, %v4762
      %v5165 = vpack.c.b16 %v4767, %v4765
      %v5166 = vpack.c.b16 %v4768, %v4766
      %v5167 = vpack.c.b16 %v4771, %v4769
      %v5168 = vpack.c.b16 %v4772, %v4770
      %v5169 = vpack.c.b16 %v4775, %v4773
      %v5170 = vpack.c.b16 %v4776, %v4774
      %v5171 = vpack.c.b16 %v4779, %v4777
      %v5172 = vpack.c.b16 %v4780, %v4778
      %v5173 = vpack.c.b16 %v4783, %v4781
      %v5174 = vpack.c.b16 %v4784, %v4782
      %v5175 = vpack.c.b16 %v4787, %v4785
      %v5176 = vpack.c.b16 %v4788, %v4786
      %v5177 = vpack.c.b16 %v4791, %v4789
      %v5178 = vpack.c.b16 %v4792, %v4790
      %v5179 = vpack.c.b16 %v4795, %v4793
      %v5180 = vpack.c.b16 %v4796, %v4794
      %v5181 = vpack.c.b16 %v4799, %v4797
      %v5182 = vpack.c.b16 %v4800, %v4798
      %v5183 = vpack.c.b16 %v4803, %v4801
      %v5184 = vpack.c.b16 %v4804, %v4802
      %v5185 = vpack.c.b16 %v4807, %v4805
      %v5186 = vpack.c.b16 %v4808, %v4806
      %v5187 = vpack.c.b16 %v4811, %v4809
      %v5188 = vpack.c.b16 %v4812, %v4810
      %v5189 = vpack.c.b16 %v4815, %v4813
      %v5190 = vpack.c.b16 %v4816, %v4814
      %v5191 = vpack.c.b16 %v4819, %v4817
      %v5192 = vpack.c.b16 %v4820, %v4818
      %v5193 = vpack.c.b16 %v4823, %v4821
      %v5194 = vpack.c.b16 %v4824, %v4822
      %v5195 = vpack.c.b16 %v4827, %v4825
      %v5196 = vpack.c.b16 %v4828, %v4826
      %v5197 = vpack.c.b16 %v4831, %v4829
      %v5198 = vpack.c.b16 %v4832, %v4830
      %v5199 = vpack.c.b16 %v4835, %v4833
      %v5200 = vpack.c.b16 %v4836, %v4834
      %v5201 = vpack.c.b16 %v4839, %v4837
      %v5202 = vpack.c.b16 %v4840, %v4838
      %v5203 = vpack.c.b16 %v4843, %v4841
      %v5204 = vpack.c.b16 %v4844, %v4842
      %v5205 = vpack.c.b16 %v4847, %v4845
      %v5206 = vpack.c.b16 %v4848, %v4846
      %v5207 = vpack.c.b16 %v4851, %v4849
      %v5208 = vpack.c.b16 %v4852, %v4850
      %v5209 = vpack.c.b16 %v4855, %v4853
      %v5210 = vpack.c.b16 %v4856, %v4854
      %v5211 = vpack.c.b16 %v4859, %v4857
      %v5212 = vpack.c.b16 %v4860, %v4858
      %v5213 = vpack.c.b16 %v4863, %v4861
      %v5214 = vpack.c.b16 %v4864, %v4862
      %v5215 = vpack.c.b16 %v4867, %v4865
      %v5216 = vpack.c.b16 %v4868, %v4866
      %v5217 = vpack.c.b16 %v4871, %v4869
      %v5218 = vpack.c.b16 %v4872, %v4870
      %v5219 = vpack.c.b16 %v4875, %v4873
      %v5220 = vpack.c.b16 %v4876, %v4874
      %v5221 = vpack.c.b16 %v4879, %v4877
      %v5222 = vpack.c.b16 %v4880, %v4878
      %v5223 = vpack.c.b16 %v4883, %v4881
      %v5224 = vpack.c.b16 %v4884, %v4882
      %v5225 = vpack.c.b16 %v4887, %v4885
      %v5226 = vpack.c.b16 %v4888, %v4886
      %v5227 = vpack.c.b16 %v4891, %v4889
      %v5228 = vpack.c.b16 %v4892, %v4890
      %v5229 = vpack.c.b16 %v4895, %v4893
      %v5230 = vpack.c.b16 %v4896, %v4894
      %v5231 = vpack.c.b16 %v4899, %v4897
      %v5232 = vpack.c.b16 %v4900, %v4898
      %v5233 = vpack.c.b16 %v4903, %v4901
      %v5234 = vpack.c.b16 %v4904, %v4902
      %v5235 = vpack.c.b16 %v4907, %v4905
      %v5236 = vpack.c.b16 %v4908, %v4906
      %v5237 = vpack.c.b16 %v4911, %v4909
      %v5238 = vpack.c.b16 %v4912, %v4910
      %v5239 = vpack.c.b16 %v4915, %v4913
      %v5240 = vpack.c.b16 %v4916, %v4914
      %v5241 = vpack.c.b16 %v4919, %v4917
      %v5242 = vpack.c.b16 %v4920, %v4918
      %v5243 = vpack.c.b16 %v4923, %v4921
      %v5244 = vpack.c.b16 %v4924, %v4922
      %v5245 = vpack.c.b16 %v4927, %v4925
      %v5246 = vpack.c.b16 %v4928, %v4926
      %v5247 = vpack.c.b16 %v4931, %v4929
      %v5248 = vpack.c.b16 %v4932, %v4930
      %v5249 = vpack.c.b16 %v4935, %v4933
      %v5250 = vpack.c.b16 %v4936, %v4934
      %v5251 = vpack.c.b16 %v4939, %v4937
      %v5252 = vpack.c.b16 %v4940, %v4938
      %v5253 = vpack.c.b16 %v4943, %v4941
      %v5254 = vpack.c.b16 %v4944, %v4942
      %v5255 = vpack.c.b16 %v4947, %v4945
      %v5256 = vpack.c.b16 %v4948, %v4946
      %v5257 = vpack.c.b16 %v4951, %v4949
      %v5258 = vpack.c.b16 %v4952, %v4950
      %v5259 = vpack.c.b16 %v4955, %v4953
      %v5260 = vpack.c.b16 %v4956, %v4954
      %v5261 = vpack.c.b16 %v4959, %v4957
      %v5262 = vpack.c.b16 %v4960, %v4958
      %v5263 = vpack.c.b16 %v4963, %v4961
      %v5264 = vpack.c.b16 %v4964, %v4962
      %v5265 = vpack.c.b16 %v4967, %v4965
      %v5266 = vpack.c.b16 %v4968, %v4966
      %v5267 = vpack.c.b16 %v4971, %v4969
      %v5268 = vpack.c.b16 %v4972, %v4970
      %v5269 = vpack.c.b16 %v4975, %v4973
      %v5270 = vpack.c.b16 %v4976, %v4974
      %v5271 = vpack.c.b16 %v4979, %v4977
      %v5272 = vpack.c.b16 %v4980, %v4978
      %v5273 = vpack.c.b16 %v4983, %v4981
      %v5274 = vpack.c.b16 %v4984, %v4982
      %v5275 = vpack.c.b16 %v4987, %v4985
      %v5276 = vpack.c.b16 %v4988, %v4986
      %v5277 = vpack.c.b16 %v4991, %v4989
      %v5278 = vpack.c.b16 %v4992, %v4990
      %v5279 = vpack.c.b16 %v4995, %v4993
      %v5280 = vpack.c.b16 %v4996, %v4994
      %v5281 = vpack.c.b16 %v4999, %v4997
      %v5282 = vpack.c.b16 %v5000, %v4998
      %v5283 = vpack.c.b16 %v5003, %v5001
      %v5284 = vpack.c.b16 %v5004, %v5002
      %v5285 = vpack.c.b16 %v5007, %v5005
      %v5286 = vpack.c.b16 %v5008, %v5006
      %v5287 = vpack.c.b16 %v5011, %v5009
      %v5288 = vpack.c.b16 %v5012, %v5010
      %v5289 = vpack.c.b16 %v5015, %v5013
      %v5290 = vpack.c.b16 %v5016, %v5014
      %v5291 = vpack.c.b16 %v5019, %v5017
      %v5292 = vpack.c.b16 %v5020, %v5018
      %v5293 = vpack.c.b16 %v5023, %v5021
      %v5294 = vpack.c.b16 %v5024, %v5022
      %v5295 = vpack.c.b16 %v5027, %v5025
      %v5296 = vpack.c.b16 %v5028, %v5026
      %v5297 = vpack.c.b16 %v5031, %v5029
      %v5298 = vpack.c.b16 %v5032, %v5030
      %v5299 = vpack.c.b16 %v5035, %v5033
      %v5300 = vpack.c.b16 %v5036, %v5034
      %v5301 = vpack.c.b16 %v5039, %v5037
      %v5302 = vpack.c.b16 %v5040, %v5038
      %v5303 = vpack.c.b16 %v5043, %v5041
      %v5304 = vpack.c.b16 %v5044, %v5042
      %v5305 = vpack.c.b16 %v5047, %v5045
      %v5306 = vpack.c.b16 %v5048, %v5046
      %v5307 = vpack.c.b16 %v5051, %v5049
      %v5308 = vpack.c.b16 %v5052, %v5050
      %v5309 = vpack.c.b16 %v5055, %v5053
      %v5310 = vpack.c.b16 %v5056, %v5054
      %v5311 = vpack.c.b16 %v5059, %v5057
      %v5312 = vpack.c.b16 %v5060, %v5058
      %v5313 = vpack.c.b16 %v5063, %v5061
      %v5314 = vpack.c.b16 %v5064, %v5062
      %v5315 = vpack.c.b16 %v5067, %v5065
      %v5316 = vpack.c.b16 %v5068, %v5066
      %v5317 = vpack.c.b16 %v5071, %v5069
      %v5318 = vpack.c.b16 %v5072, %v5070
      %v5319 = vpack.c.b16 %v5075, %v5073
      %v5320 = vpack.c.b16 %v5076, %v5074
      %v5321 = vpack.c.b16 %v5079, %v5077
      %v5322 = vpack.c.b16 %v5080, %v5078
      %v5323 = vpack.c.b16 %v5083, %v5081
      %v5324 = vpack.c.b16 %v5084, %v5082
      %5565 = vmatprep.subr.bf16.mxu0 %v5086
      %5566 = vmatpush1.bf16.msra.mxu0 %v5085
      %5567 = vmatprep.subr.bf16.mxu0 %v5088
      %5568 = vmatpush1.bf16.msra.mxu0 %v5087
      %5569 = vmatprep.subr.bf16.mxu0 %v5090
      %5570 = vmatpush1.bf16.msra.mxu0 %v5089
      %5571 = vmatprep.subr.bf16.mxu0 %v5092
      %5572 = vmatpush1.bf16.msra.mxu0 %v5091
      %5573 = vmatprep.subr.bf16.mxu0 %v5094
      %5574 = vmatpush1.bf16.msra.mxu0 %v5093
      %5575 = vmatprep.subr.bf16.mxu0 %v5096
      %5576 = vmatpush1.bf16.msra.mxu0 %v5095
      %5577 = vmatprep.subr.bf16.mxu0 %v5098
      %5578 = vmatpush1.bf16.msra.mxu0 %v5097
      %5579 = vmatprep.subr.bf16.mxu0 %v5100
      %5580 = vmatpush1.bf16.msra.mxu0 %v5099
      %5581 = vmatprep.subr.bf16.mxu0 %v5102
      %5582 = vmatpush1.bf16.msra.mxu0 %v5101
      %5583 = vmatprep.subr.bf16.mxu0 %v5104
      %5584 = vmatpush1.bf16.msra.mxu0 %v5103
      %5585 = vmatprep.subr.bf16.mxu0 %v5106
      %5586 = vmatpush1.bf16.msra.mxu0 %v5105
      %5587 = vmatprep.subr.bf16.mxu0 %v5108
      %5588 = vmatpush1.bf16.msra.mxu0 %v5107
      %5589 = vmatprep.subr.bf16.mxu0 %v5110
      %5590 = vmatpush1.bf16.msra.mxu0 %v5109
      %5591 = vmatprep.subr.bf16.mxu0 %v5112
      %5592 = vmatpush1.bf16.msra.mxu0 %v5111
      %5593 = vmatprep.subr.bf16.mxu0 %v5114
      %5594 = vmatpush1.bf16.msra.mxu0 %v5113
      %5595 = vmatprep.subr.bf16.mxu0 %v5116
      %5596 = vmatpush1.bf16.msra.mxu0 %v5115
      %5597 = vmatprep.mubr.bf16.mxu0 %v4351
      %5598 = vmatmul.mubr.bf16.gmra.mrb[0].mxu0 %v4350
      %v5599 = vpop.f32.mrb[0].mxu0
      %v5600 = vadd.f32 0.0, %v5599
      %v5601 = vpop.f32.mrb[0].mxu0
      %v5602 = vadd.f32 0.0, %v5601
      %v5603 = vpop.f32.mrb[0].mxu0
      %v5604 = vpop.f32.mrb[0].mxu0
      %5605 = vdwg.mxu0
      %5606 = vmatprep.subr.bf16.mxu0 %v5118
      %5607 = vmatpush1.bf16.msra.mxu0 %v5117
      %5608 = vmatprep.subr.bf16.mxu0 %v5120
      %5609 = vmatpush1.bf16.msra.mxu0 %v5119
      %5610 = vmatprep.subr.bf16.mxu0 %v5122
      %5611 = vmatpush1.bf16.msra.mxu0 %v5121
      %5612 = vmatprep.subr.bf16.mxu0 %v5124
      %5613 = vmatpush1.bf16.msra.mxu0 %v5123
      %5614 = vmatprep.subr.bf16.mxu0 %v5126
      %5615 = vmatpush1.bf16.msra.mxu0 %v5125
      %5616 = vmatprep.subr.bf16.mxu0 %v5128
      %5617 = vmatpush1.bf16.msra.mxu0 %v5127
      %5618 = vmatprep.subr.bf16.mxu0 %v5130
      %5619 = vmatpush1.bf16.msra.mxu0 %v5129
      %5620 = vmatprep.subr.bf16.mxu0 %v5132
      %5621 = vmatpush1.bf16.msra.mxu0 %v5131
      %5622 = vmatprep.subr.bf16.mxu0 %v5134
      %5623 = vmatpush1.bf16.msra.mxu0 %v5133
      %5624 = vmatprep.subr.bf16.mxu0 %v5136
      %5625 = vmatpush1.bf16.msra.mxu0 %v5135
      %5626 = vmatprep.subr.bf16.mxu0 %v5138
      %5627 = vmatpush1.bf16.msra.mxu0 %v5137
      %5628 = vmatprep.subr.bf16.mxu0 %v5140
      %5629 = vmatpush1.bf16.msra.mxu0 %v5139
      %5630 = vmatprep.subr.bf16.mxu0 %v5142
      %5631 = vmatpush1.bf16.msra.mxu0 %v5141
      %5632 = vmatprep.subr.bf16.mxu0 %v5144
      %5633 = vmatpush1.bf16.msra.mxu0 %v5143
      %5634 = vmatprep.subr.bf16.mxu0 %v5146
      %5635 = vmatpush1.bf16.msra.mxu0 %v5145
      %5636 = vmatprep.subr.bf16.mxu0 %v5148
      %5637 = vmatpush1.bf16.msra.mxu0 %v5147
      %5638 = vmatprep.mubr.bf16.mxu0 %v4353
      %5639 = vmatmul.mubr.bf16.gmra.mrb[0].mxu0 %v4352
      %v5640 = vpop.f32.mrb[0].mxu0
      %v5641 = vadd.f32 %v5600, %v5640
      %v5642 = vpop.f32.mrb[0].mxu0
      %v5643 = vadd.f32 %v5602, %v5642
      %v5644 = vpop.f32.mrb[0].mxu0
      %v5645 = vpop.f32.mrb[0].mxu0
      %5646 = vdwg.mxu0
      %5647 = vmatprep.subr.bf16.mxu0 %v5150
      %5648 = vmatpush1.bf16.msra.mxu0 %v5149
      %5649 = vmatprep.subr.bf16.mxu0 %v5152
      %5650 = vmatpush1.bf16.msra.mxu0 %v5151
      %5651 = vmatprep.subr.bf16.mxu0 %v5154
      %5652 = vmatpush1.bf16.msra.mxu0 %v5153
      %5653 = vmatprep.subr.bf16.mxu0 %v5156
      %5654 = vmatpush1.bf16.msra.mxu0 %v5155
      %5655 = vmatprep.subr.bf16.mxu0 %v5158
      %5656 = vmatpush1.bf16.msra.mxu0 %v5157
      %5657 = vmatprep.subr.bf16.mxu0 %v5160
      %5658 = vmatpush1.bf16.msra.mxu0 %v5159
      %5659 = vmatprep.subr.bf16.mxu0 %v5162
      %5660 = vmatpush1.bf16.msra.mxu0 %v5161
      %5661 = vmatprep.subr.bf16.mxu0 %v5164
      %5662 = vmatpush1.bf16.msra.mxu0 %v5163
      %5663 = vmatprep.subr.bf16.mxu0 %v5166
      %5664 = vmatpush1.bf16.msra.mxu0 %v5165
      %5665 = vmatprep.subr.bf16.mxu0 %v5168
      %5666 = vmatpush1.bf16.msra.mxu0 %v5167
      %5667 = vmatprep.subr.bf16.mxu0 %v5170
      %5668 = vmatpush1.bf16.msra.mxu0 %v5169
      %5669 = vmatprep.subr.bf16.mxu0 %v5172
      %5670 = vmatpush1.bf16.msra.mxu0 %v5171
      %5671 = vmatprep.subr.bf16.mxu0 %v5174
      %5672 = vmatpush1.bf16.msra.mxu0 %v5173
      %5673 = vmatprep.subr.bf16.mxu0 %v5176
      %5674 = vmatpush1.bf16.msra.mxu0 %v5175
      %5675 = vmatprep.subr.bf16.mxu0 %v5178
      %5676 = vmatpush1.bf16.msra.mxu0 %v5177
      %5677 = vmatprep.subr.bf16.mxu0 %v5180
      %5678 = vmatpush1.bf16.msra.mxu0 %v5179
      %5679 = vmatprep.mubr.bf16.mxu0 %v4355
      %5680 = vmatmul.mubr.bf16.gmra.mrb[0].mxu0 %v4354
      %v5681 = vpop.f32.mrb[0].mxu0
      %v5682 = vadd.f32 %v5641, %v5681
      %v5683 = vpop.f32.mrb[0].mxu0
      %v5684 = vadd.f32 %v5643, %v5683
      %v5685 = vpop.f32.mrb[0].mxu0
      %v5686 = vpop.f32.mrb[0].mxu0
      %5687 = vdwg.mxu0
      %5688 = vmatprep.subr.bf16.mxu0 %v5182
      %5689 = vmatpush1.bf16.msra.mxu0 %v5181
      %5690 = vmatprep.subr.bf16.mxu0 %v5184
      %5691 = vmatpush1.bf16.msra.mxu0 %v5183
      %5692 = vmatprep.subr.bf16.mxu0 %v5186
      %5693 = vmatpush1.bf16.msra.mxu0 %v5185
      %5694 = vmatprep.subr.bf16.mxu0 %v5188
      %5695 = vmatpush1.bf16.msra.mxu0 %v5187
      %5696 = vmatprep.subr.bf16.mxu0 %v5190
      %5697 = vmatpush1.bf16.msra.mxu0 %v5189
      %5698 = vmatprep.subr.bf16.mxu0 %v5192
      %5699 = vmatpush1.bf16.msra.mxu0 %v5191
      %5700 = vmatprep.subr.bf16.mxu0 %v5194
      %5701 = vmatpush1.bf16.msra.mxu0 %v5193
      %5702 = vmatprep.subr.bf16.mxu0 %v5196
      %5703 = vmatpush1.bf16.msra.mxu0 %v5195
      %5704 = vmatprep.subr.bf16.mxu0 %v5198
      %5705 = vmatpush1.bf16.msra.mxu0 %v5197
      %5706 = vmatprep.subr.bf16.mxu0 %v5200
      %5707 = vmatpush1.bf16.msra.mxu0 %v5199
      %5708 = vmatprep.subr.bf16.mxu0 %v5202
      %5709 = vmatpush1.bf16.msra.mxu0 %v5201
      %5710 = vmatprep.subr.bf16.mxu0 %v5204
      %5711 = vmatpush1.bf16.msra.mxu0 %v5203
      %5712 = vmatprep.subr.bf16.mxu0 %v5206
      %5713 = vmatpush1.bf16.msra.mxu0 %v5205
      %5714 = vmatprep.subr.bf16.mxu0 %v5208
      %5715 = vmatpush1.bf16.msra.mxu0 %v5207
      %5716 = vmatprep.subr.bf16.mxu0 %v5210
      %5717 = vmatpush1.bf16.msra.mxu0 %v5209
      %5718 = vmatprep.subr.bf16.mxu0 %v5212
      %5719 = vmatpush1.bf16.msra.mxu0 %v5211
      %5720 = vmatprep.mubr.bf16.mxu0 %v4357
      %5721 = vmatmul.mubr.bf16.gmra.mrb[0].mxu0 %v4356
      %v5722 = vpop.f32.mrb[0].mxu0
      %v5723 = vadd.f32 %v5682, %v5722
      %v5724 = vpop.f32.mrb[0].mxu0
      %v5725 = vadd.f32 %v5684, %v5724
      %v5726 = vpop.f32.mrb[0].mxu0
      %v5727 = vpop.f32.mrb[0].mxu0
      %5728 = vdwg.mxu0
      %5729 = vmatprep.subr.bf16.mxu0 %v5214
      %5730 = vmatpush1.bf16.msra.mxu0 %v5213
      %5731 = vmatprep.subr.bf16.mxu0 %v5216
      %5732 = vmatpush1.bf16.msra.mxu0 %v5215
      %5733 = vmatprep.subr.bf16.mxu0 %v5218
      %5734 = vmatpush1.bf16.msra.mxu0 %v5217
      %5735 = vmatprep.subr.bf16.mxu0 %v5220
      %5736 = vmatpush1.bf16.msra.mxu0 %v5219
      %5737 = vmatprep.subr.bf16.mxu0 %v5222
      %5738 = vmatpush1.bf16.msra.mxu0 %v5221
      %5739 = vmatprep.subr.bf16.mxu0 %v5224
      %5740 = vmatpush1.bf16.msra.mxu0 %v5223
      %5741 = vmatprep.subr.bf16.mxu0 %v5226
      %5742 = vmatpush1.bf16.msra.mxu0 %v5225
      %5743 = vmatprep.subr.bf16.mxu0 %v5228
      %5744 = vmatpush1.bf16.msra.mxu0 %v5227
      %5745 = vmatprep.subr.bf16.mxu0 %v5230
      %5746 = vmatpush1.bf16.msra.mxu0 %v5229
      %5747 = vmatprep.subr.bf16.mxu0 %v5232
      %5748 = vmatpush1.bf16.msra.mxu0 %v5231
      %5749 = vmatprep.subr.bf16.mxu0 %v5234
      %5750 = vmatpush1.bf16.msra.mxu0 %v5233
      %5751 = vmatprep.subr.bf16.mxu0 %v5236
      %5752 = vmatpush1.bf16.msra.mxu0 %v5235
      %5753 = vmatprep.subr.bf16.mxu0 %v5238
      %5754 = vmatpush1.bf16.msra.mxu0 %v5237
      %5755 = vmatprep.subr.bf16.mxu0 %v5240
      %5756 = vmatpush1.bf16.msra.mxu0 %v5239
      %5757 = vmatprep.subr.bf16.mxu0 %v5242
      %5758 = vmatpush1.bf16.msra.mxu0 %v5241
      %5759 = vmatprep.subr.bf16.mxu0 %v5244
      %5760 = vmatpush1.bf16.msra.mxu0 %v5243
      %5761 = vmatprep.mubr.bf16.mxu0 %v4359
      %5762 = vmatmul.mubr.bf16.gmra.mrb[0].mxu0 %v4358
      %v5763 = vpop.f32.mrb[0].mxu0
      %v5764 = vadd.f32 %v5723, %v5763
      %v5765 = vpop.f32.mrb[0].mxu0
      %v5766 = vadd.f32 %v5725, %v5765
      %v5767 = vpop.f32.mrb[0].mxu0
      %v5768 = vpop.f32.mrb[0].mxu0
      %5769 = vdwg.mxu0
      %5770 = vmatprep.subr.bf16.mxu0 %v5246
      %5771 = vmatpush1.bf16.msra.mxu0 %v5245
      %5772 = vmatprep.subr.bf16.mxu0 %v5248
      %5773 = vmatpush1.bf16.msra.mxu0 %v5247
      %5774 = vmatprep.subr.bf16.mxu0 %v5250
      %5775 = vmatpush1.bf16.msra.mxu0 %v5249
      %5776 = vmatprep.subr.bf16.mxu0 %v5252
      %5777 = vmatpush1.bf16.msra.mxu0 %v5251
      %5778 = vmatprep.subr.bf16.mxu0 %v5254
      %5779 = vmatpush1.bf16.msra.mxu0 %v5253
      %5780 = vmatprep.subr.bf16.mxu0 %v5256
      %5781 = vmatpush1.bf16.msra.mxu0 %v5255
      %5782 = vmatprep.subr.bf16.mxu0 %v5258
      %5783 = vmatpush1.bf16.msra.mxu0 %v5257
      %5784 = vmatprep.subr.bf16.mxu0 %v5260
      %5785 = vmatpush1.bf16.msra.mxu0 %v5259
      %5786 = vmatprep.subr.bf16.mxu0 %v5262
      %5787 = vmatpush1.bf16.msra.mxu0 %v5261
      %5788 = vmatprep.subr.bf16.mxu0 %v5264
      %5789 = vmatpush1.bf16.msra.mxu0 %v5263
      %5790 = vmatprep.subr.bf16.mxu0 %v5266
      %5791 = vmatpush1.bf16.msra.mxu0 %v5265
      %5792 = vmatprep.subr.bf16.mxu0 %v5268
      %5793 = vmatpush1.bf16.msra.mxu0 %v5267
      %5794 = vmatprep.subr.bf16.mxu0 %v5270
      %5795 = vmatpush1.bf16.msra.mxu0 %v5269
      %5796 = vmatprep.subr.bf16.mxu0 %v5272
      %5797 = vmatpush1.bf16.msra.mxu0 %v5271
      %5798 = vmatprep.subr.bf16.mxu0 %v5274
      %5799 = vmatpush1.bf16.msra.mxu0 %v5273
      %5800 = vmatprep.subr.bf16.mxu0 %v5276
      %5801 = vmatpush1.bf16.msra.mxu0 %v5275
      %5802 = vmatprep.mubr.bf16.mxu0 %v4361
      %5803 = vmatmul.mubr.bf16.gmra.mrb[0].mxu0 %v4360
      %v5804 = vpop.f32.mrb[0].mxu0
      %v5805 = vadd.f32 %v5764, %v5804
      %v5806 = vpop.f32.mrb[0].mxu0
      %v5807 = vadd.f32 %v5766, %v5806
      %v5808 = vpop.f32.mrb[0].mxu0
      %v5809 = vpop.f32.mrb[0].mxu0
      %5810 = vdwg.mxu0
      %5811 = vmatprep.subr.bf16.mxu0 %v5278
      %5812 = vmatpush1.bf16.msra.mxu0 %v5277
      %5813 = vmatprep.subr.bf16.mxu0 %v5280
      %5814 = vmatpush1.bf16.msra.mxu0 %v5279
      %5815 = vmatprep.subr.bf16.mxu0 %v5282
      %5816 = vmatpush1.bf16.msra.mxu0 %v5281
      %5817 = vmatprep.subr.bf16.mxu0 %v5284
      %5818 = vmatpush1.bf16.msra.mxu0 %v5283
      %5819 = vmatprep.subr.bf16.mxu0 %v5286
      %5820 = vmatpush1.bf16.msra.mxu0 %v5285
      %5821 = vmatprep.subr.bf16.mxu0 %v5288
      %5822 = vmatpush1.bf16.msra.mxu0 %v5287
      %5823 = vmatprep.subr.bf16.mxu0 %v5290
      %5824 = vmatpush1.bf16.msra.mxu0 %v5289
      %5825 = vmatprep.subr.bf16.mxu0 %v5292
      %5826 = vmatpush1.bf16.msra.mxu0 %v5291
      %5827 = vmatprep.subr.bf16.mxu0 %v5294
      %5828 = vmatpush1.bf16.msra.mxu0 %v5293
      %5829 = vmatprep.subr.bf16.mxu0 %v5296
      %5830 = vmatpush1.bf16.msra.mxu0 %v5295
      %5831 = vmatprep.subr.bf16.mxu0 %v5298
      %5832 = vmatpush1.bf16.msra.mxu0 %v5297
      %5833 = vmatprep.subr.bf16.mxu0 %v5300
      %5834 = vmatpush1.bf16.msra.mxu0 %v5299
      %5835 = vmatprep.subr.bf16.mxu0 %v5302
      %5836 = vmatpush1.bf16.msra.mxu0 %v5301
      %5837 = vmatprep.subr.bf16.mxu0 %v5304
      %5838 = vmatpush1.bf16.msra.mxu0 %v5303
      %5839 = vmatprep.subr.bf16.mxu0 %v5306
      %5840 = vmatpush1.bf16.msra.mxu0 %v5305
      %5841 = vmatprep.subr.bf16.mxu0 %v5308
      %5842 = vmatpush1.bf16.msra.mxu0 %v5307
      %5843 = vmatprep.mubr.bf16.mxu0 %v4363
      %5844 = vmatmul.mubr.bf16.gmra.mrb[0].mxu0 %v4362
      %v5845 = vpop.f32.mrb[0].mxu0
      %v5846 = vadd.f32 %v5805, %v5845
      %v5847 = vpop.f32.mrb[0].mxu0
      %v5848 = vadd.f32 %v5807, %v5847
      %v5849 = vpop.f32.mrb[0].mxu0
      %v5850 = vpop.f32.mrb[0].mxu0
      %5851 = vdwg.mxu0
      %5852 = vmatprep.subr.bf16.mxu0 %v5310
      %5853 = vmatpush1.bf16.msra.mxu0 %v5309
      %5854 = vmatprep.subr.bf16.mxu0 %v5312
      %5855 = vmatpush1.bf16.msra.mxu0 %v5311
      %5856 = vmatprep.subr.bf16.mxu0 %v5314
      %5857 = vmatpush1.bf16.msra.mxu0 %v5313
      %5858 = vmatprep.subr.bf16.mxu0 %v5316
      %5859 = vmatpush1.bf16.msra.mxu0 %v5315
      %5860 = vmatprep.subr.bf16.mxu0 %v5318
      %5861 = vmatpush1.bf16.msra.mxu0 %v5317
      %5862 = vmatprep.subr.bf16.mxu0 %v5320
      %5863 = vmatpush1.bf16.msra.mxu0 %v5319
      %5864 = vmatprep.subr.bf16.mxu0 %v5322
      %5865 = vmatpush1.bf16.msra.mxu0 %v5321
      %5866 = vmatprep.subr.bf16.mxu0 %v5324
      %5867 = vmatpush1.bf16.msra.mxu0 %v5323
      %5868 = vmatprep.subr.bf16.mxu0 0
      %5869 = vmatpush1.bf16.msra.mxu0 0
      %5870 = vmatprep.subr.bf16.mxu0 0
      %5871 = vmatpush1.bf16.msra.mxu0 0
      %5872 = vmatprep.subr.bf16.mxu0 0
      %5873 = vmatpush1.bf16.msra.mxu0 0
      %5874 = vmatprep.subr.bf16.mxu0 0
      %5875 = vmatpush1.bf16.msra.mxu0 0
      %5876 = vmatprep.subr.bf16.mxu0 0
      %5877 = vmatpush1.bf16.msra.mxu0 0
      %5878 = vmatprep.subr.bf16.mxu0 0
      %5879 = vmatpush1.bf16.msra.mxu0 0
      %5880 = vmatprep.subr.bf16.mxu0 0
      %5881 = vmatpush1.bf16.msra.mxu0 0
      %5882 = vmatprep.subr.bf16.mxu0 0
      %5883 = vmatpush1.bf16.msra.mxu0 0
      %5884 = vmatprep.mubr.bf16.mxu0 0
      %5885 = vmatmul.mubr.bf16.gmra.mrb[0].mxu0 %v4364
      %v5886 = vpop.f32.mrb[0].mxu0
      %v5887 = vadd.f32 %v5846, %v5886
      %v5888 = vpop.f32.mrb[0].mxu0
      %v5889 = vadd.f32 %v5848, %v5888
      %v5890 = vpop.f32.mrb[0].mxu0
      %v5891 = vpop.f32.mrb[0].mxu0
      %5892 = vdwg.mxu0
      %v6133 = vunpack.c.l.b16 %v795
      %v6134 = vunpack.c.h.b16 %v795
      %v6135 = vunpack.c.l.b16 %v796
      %v6136 = vunpack.c.h.b16 %v796
      %v6137 = vunpack.c.l.b16 %v797
      %v6138 = vunpack.c.h.b16 %v797
      %v6139 = vunpack.c.l.b16 %v798
      %v6140 = vunpack.c.h.b16 %v798
      %v6141 = vunpack.c.l.b16 %v799
      %v6142 = vunpack.c.h.b16 %v799
      %v6143 = vunpack.c.l.b16 %v800
      %v6144 = vunpack.c.h.b16 %v800
      %v6145 = vunpack.c.l.b16 %v801
      %v6146 = vunpack.c.h.b16 %v801
      %v6147 = vunpack.c.l.b16 %v802
      %v6148 = vunpack.c.h.b16 %v802
      %v6149 = vunpack.c.l.b16 %v803
      %v6150 = vunpack.c.h.b16 %v803
      %v6151 = vunpack.c.l.b16 %v804
      %v6152 = vunpack.c.h.b16 %v804
      %v6153 = vunpack.c.l.b16 %v805
      %v6154 = vunpack.c.h.b16 %v805
      %v6155 = vunpack.c.l.b16 %v806
      %v6156 = vunpack.c.h.b16 %v806
      %v6157 = vunpack.c.l.b16 %v807
      %v6158 = vunpack.c.h.b16 %v807
      %v6159 = vunpack.c.l.b16 %v808
      %v6160 = vunpack.c.h.b16 %v808
      %v6161 = vunpack.c.l.b16 %v809
      %v6162 = vunpack.c.h.b16 %v809
      %v6163 = vunpack.c.l.b16 %v810
      %v6164 = vunpack.c.h.b16 %v810
      %v6165 = vunpack.c.l.b16 %v811
      %v6166 = vunpack.c.h.b16 %v811
      %v6167 = vunpack.c.l.b16 %v812
      %v6168 = vunpack.c.h.b16 %v812
      %v6169 = vunpack.c.l.b16 %v813
      %v6170 = vunpack.c.h.b16 %v813
      %v6171 = vunpack.c.l.b16 %v814
      %v6172 = vunpack.c.h.b16 %v814
      %v6173 = vunpack.c.l.b16 %v815
      %v6174 = vunpack.c.h.b16 %v815
      %v6175 = vunpack.c.l.b16 %v816
      %v6176 = vunpack.c.h.b16 %v816
      %v6177 = vunpack.c.l.b16 %v817
      %v6178 = vunpack.c.h.b16 %v817
      %v6179 = vunpack.c.l.b16 %v818
      %v6180 = vunpack.c.h.b16 %v818
      %v6181 = vunpack.c.l.b16 %v819
      %v6182 = vunpack.c.h.b16 %v819
      %v6183 = vunpack.c.l.b16 %v820
      %v6184 = vunpack.c.h.b16 %v820
      %v6185 = vunpack.c.l.b16 %v821
      %v6186 = vunpack.c.h.b16 %v821
      %v6187 = vunpack.c.l.b16 %v822
      %v6188 = vunpack.c.h.b16 %v822
      %v6189 = vunpack.c.l.b16 %v823
      %v6190 = vunpack.c.h.b16 %v823
      %v6191 = vunpack.c.l.b16 %v824
      %v6192 = vunpack.c.h.b16 %v824
      %v6193 = vunpack.c.l.b16 %v825
      %v6194 = vunpack.c.h.b16 %v825
      %v6195 = vunpack.c.l.b16 %v826
      %v6196 = vunpack.c.h.b16 %v826
      %v6197 = vunpack.c.l.b16 %v827
      %v6198 = vunpack.c.h.b16 %v827
      %v6199 = vunpack.c.l.b16 %v828
      %v6200 = vunpack.c.h.b16 %v828
      %v6201 = vunpack.c.l.b16 %v829
      %v6202 = vunpack.c.h.b16 %v829
      %v6203 = vunpack.c.l.b16 %v830
      %v6204 = vunpack.c.h.b16 %v830
      %v6205 = vunpack.c.l.b16 %v831
      %v6206 = vunpack.c.h.b16 %v831
      %v6207 = vunpack.c.l.b16 %v832
      %v6208 = vunpack.c.h.b16 %v832
      %v6209 = vunpack.c.l.b16 %v833
      %v6210 = vunpack.c.h.b16 %v833
      %v6211 = vunpack.c.l.b16 %v834
      %v6212 = vunpack.c.h.b16 %v834
      %v6213 = vunpack.c.l.b16 %v835
      %v6214 = vunpack.c.h.b16 %v835
      %v6215 = vunpack.c.l.b16 %v836
      %v6216 = vunpack.c.h.b16 %v836
      %v6217 = vunpack.c.l.b16 %v837
      %v6218 = vunpack.c.h.b16 %v837
      %v6219 = vunpack.c.l.b16 %v838
      %v6220 = vunpack.c.h.b16 %v838
      %v6221 = vunpack.c.l.b16 %v839
      %v6222 = vunpack.c.h.b16 %v839
      %v6223 = vunpack.c.l.b16 %v840
      %v6224 = vunpack.c.h.b16 %v840
      %v6225 = vunpack.c.l.b16 %v841
      %v6226 = vunpack.c.h.b16 %v841
      %v6227 = vunpack.c.l.b16 %v842
      %v6228 = vunpack.c.h.b16 %v842
      %v6229 = vunpack.c.l.b16 %v843
      %v6230 = vunpack.c.h.b16 %v843
      %v6231 = vunpack.c.l.b16 %v844
      %v6232 = vunpack.c.h.b16 %v844
      %v6233 = vunpack.c.l.b16 %v845
      %v6234 = vunpack.c.h.b16 %v845
      %v6235 = vunpack.c.l.b16 %v846
      %v6236 = vunpack.c.h.b16 %v846
      %v6237 = vunpack.c.l.b16 %v847
      %v6238 = vunpack.c.h.b16 %v847
      %v6239 = vunpack.c.l.b16 %v848
      %v6240 = vunpack.c.h.b16 %v848
      %v6241 = vunpack.c.l.b16 %v849
      %v6242 = vunpack.c.h.b16 %v849
      %v6243 = vunpack.c.l.b16 %v850
      %v6244 = vunpack.c.h.b16 %v850
      %v6245 = vunpack.c.l.b16 %v851
      %v6246 = vunpack.c.h.b16 %v851
      %v6247 = vunpack.c.l.b16 %v852
      %v6248 = vunpack.c.h.b16 %v852
      %v6249 = vunpack.c.l.b16 %v853
      %v6250 = vunpack.c.h.b16 %v853
      %v6251 = vunpack.c.l.b16 %v854
      %v6252 = vunpack.c.h.b16 %v854
      %v6253 = vunpack.c.l.b16 %v855
      %v6254 = vunpack.c.h.b16 %v855
      %v6255 = vunpack.c.l.b16 %v856
      %v6256 = vunpack.c.h.b16 %v856
      %v6257 = vunpack.c.l.b16 %v857
      %v6258 = vunpack.c.h.b16 %v857
      %v6259 = vunpack.c.l.b16 %v858
      %v6260 = vunpack.c.h.b16 %v858
      %v6261 = vunpack.c.l.b16 %v859
      %v6262 = vunpack.c.h.b16 %v859
      %v6263 = vunpack.c.l.b16 %v860
      %v6264 = vunpack.c.h.b16 %v860
      %v6265 = vunpack.c.l.b16 %v861
      %v6266 = vunpack.c.h.b16 %v861
      %v6267 = vunpack.c.l.b16 %v862
      %v6268 = vunpack.c.h.b16 %v862
      %v6269 = vunpack.c.l.b16 %v863
      %v6270 = vunpack.c.h.b16 %v863
      %v6271 = vunpack.c.l.b16 %v864
      %v6272 = vunpack.c.h.b16 %v864
      %v6273 = vunpack.c.l.b16 %v865
      %v6274 = vunpack.c.h.b16 %v865
      %v6275 = vunpack.c.l.b16 %v866
      %v6276 = vunpack.c.h.b16 %v866
      %v6277 = vunpack.c.l.b16 %v867
      %v6278 = vunpack.c.h.b16 %v867
      %v6279 = vunpack.c.l.b16 %v868
      %v6280 = vunpack.c.h.b16 %v868
      %v6281 = vunpack.c.l.b16 %v869
      %v6282 = vunpack.c.h.b16 %v869
      %v6283 = vunpack.c.l.b16 %v870
      %v6284 = vunpack.c.h.b16 %v870
      %v6285 = vunpack.c.l.b16 %v871
      %v6286 = vunpack.c.h.b16 %v871
      %v6287 = vunpack.c.l.b16 %v872
      %v6288 = vunpack.c.h.b16 %v872
      %v6289 = vunpack.c.l.b16 %v873
      %v6290 = vunpack.c.h.b16 %v873
      %v6291 = vunpack.c.l.b16 %v874
      %v6292 = vunpack.c.h.b16 %v874
      %v6293 = vunpack.c.l.b16 %v875
      %v6294 = vunpack.c.h.b16 %v875
      %v6295 = vunpack.c.l.b16 %v876
      %v6296 = vunpack.c.h.b16 %v876
      %v6297 = vunpack.c.l.b16 %v877
      %v6298 = vunpack.c.h.b16 %v877
      %v6299 = vunpack.c.l.b16 %v878
      %v6300 = vunpack.c.h.b16 %v878
      %v6301 = vunpack.c.l.b16 %v879
      %v6302 = vunpack.c.h.b16 %v879
      %v6303 = vunpack.c.l.b16 %v880
      %v6304 = vunpack.c.h.b16 %v880
      %v6305 = vunpack.c.l.b16 %v881
      %v6306 = vunpack.c.h.b16 %v881
      %v6307 = vunpack.c.l.b16 %v882
      %v6308 = vunpack.c.h.b16 %v882
      %v6309 = vunpack.c.l.b16 %v883
      %v6310 = vunpack.c.h.b16 %v883
      %v6311 = vunpack.c.l.b16 %v884
      %v6312 = vunpack.c.h.b16 %v884
      %v6313 = vunpack.c.l.b16 %v885
      %v6314 = vunpack.c.h.b16 %v885
      %v6315 = vunpack.c.l.b16 %v886
      %v6316 = vunpack.c.h.b16 %v886
      %v6317 = vunpack.c.l.b16 %v887
      %v6318 = vunpack.c.h.b16 %v887
      %v6319 = vunpack.c.l.b16 %v888
      %v6320 = vunpack.c.h.b16 %v888
      %v6321 = vunpack.c.l.b16 %v889
      %v6322 = vunpack.c.h.b16 %v889
      %v6323 = vunpack.c.l.b16 %v890
      %v6324 = vunpack.c.h.b16 %v890
      %v6325 = vunpack.c.l.b16 %v891
      %v6326 = vunpack.c.h.b16 %v891
      %v6327 = vunpack.c.l.b16 %v892
      %v6328 = vunpack.c.h.b16 %v892
      %v6329 = vunpack.c.l.b16 %v893
      %v6330 = vunpack.c.h.b16 %v893
      %v6331 = vunpack.c.l.b16 %v894
      %v6332 = vunpack.c.h.b16 %v894
      %v6333 = vunpack.c.l.b16 %v895
      %v6334 = vunpack.c.h.b16 %v895
      %v6335 = vunpack.c.l.b16 %v896
      %v6336 = vunpack.c.h.b16 %v896
      %v6337 = vunpack.c.l.b16 %v897
      %v6338 = vunpack.c.h.b16 %v897
      %v6339 = vunpack.c.l.b16 %v898
      %v6340 = vunpack.c.h.b16 %v898
      %v6341 = vunpack.c.l.b16 %v899
      %v6342 = vunpack.c.h.b16 %v899
      %v6343 = vunpack.c.l.b16 %v900
      %v6344 = vunpack.c.h.b16 %v900
      %v6345 = vunpack.c.l.b16 %v901
      %v6346 = vunpack.c.h.b16 %v901
      %v6347 = vunpack.c.l.b16 %v902
      %v6348 = vunpack.c.h.b16 %v902
      %v6349 = vunpack.c.l.b16 %v903
      %v6350 = vunpack.c.h.b16 %v903
      %v6351 = vunpack.c.l.b16 %v904
      %v6352 = vunpack.c.h.b16 %v904
      %v6353 = vunpack.c.l.b16 %v905
      %v6354 = vunpack.c.h.b16 %v905
      %v6355 = vunpack.c.l.b16 %v906
      %v6356 = vunpack.c.h.b16 %v906
      %v6357 = vunpack.c.l.b16 %v907
      %v6358 = vunpack.c.h.b16 %v907
      %v6359 = vunpack.c.l.b16 %v908
      %v6360 = vunpack.c.h.b16 %v908
      %v6361 = vunpack.c.l.b16 %v909
      %v6362 = vunpack.c.h.b16 %v909
      %v6363 = vunpack.c.l.b16 %v910
      %v6364 = vunpack.c.h.b16 %v910
      %v6365 = vunpack.c.l.b16 %v911
      %v6366 = vunpack.c.h.b16 %v911
      %v6367 = vunpack.c.l.b16 %v912
      %v6368 = vunpack.c.h.b16 %v912
      %v6369 = vunpack.c.l.b16 %v913
      %v6370 = vunpack.c.h.b16 %v913
      %v6371 = vunpack.c.l.b16 %v914
      %v6372 = vunpack.c.h.b16 %v914
      %v6373 = vunpack.c.l.b16 %v915
      %v6374 = vunpack.c.h.b16 %v915
      %v6375 = vunpack.c.l.b16 %v916
      %v6376 = vunpack.c.h.b16 %v916
      %v6377 = vunpack.c.l.b16 %v917
      %v6378 = vunpack.c.h.b16 %v917
      %v6379 = vunpack.c.l.b16 %v918
      %v6380 = vunpack.c.h.b16 %v918
      %v6381 = vunpack.c.l.b16 %v919
      %v6382 = vunpack.c.h.b16 %v919
      %v6383 = vunpack.c.l.b16 %v920
      %v6384 = vunpack.c.h.b16 %v920
      %v6385 = vunpack.c.l.b16 %v921
      %v6386 = vunpack.c.h.b16 %v921
      %v6387 = vunpack.c.l.b16 %v922
      %v6388 = vunpack.c.h.b16 %v922
      %v6389 = vunpack.c.l.b16 %v923
      %v6390 = vunpack.c.h.b16 %v923
      %v6391 = vunpack.c.l.b16 %v924
      %v6392 = vunpack.c.h.b16 %v924
      %v6393 = vunpack.c.l.b16 %v925
      %v6394 = vunpack.c.h.b16 %v925
      %v6395 = vunpack.c.l.b16 %v926
      %v6396 = vunpack.c.h.b16 %v926
      %v6397 = vunpack.c.l.b16 %v927
      %v6398 = vunpack.c.h.b16 %v927
      %v6399 = vunpack.c.l.b16 %v928
      %v6400 = vunpack.c.h.b16 %v928
      %v6401 = vunpack.c.l.b16 %v929
      %v6402 = vunpack.c.h.b16 %v929
      %v6403 = vunpack.c.l.b16 %v930
      %v6404 = vunpack.c.h.b16 %v930
      %v6405 = vunpack.c.l.b16 %v931
      %v6406 = vunpack.c.h.b16 %v931
      %v6407 = vunpack.c.l.b16 %v932
      %v6408 = vunpack.c.h.b16 %v932
      %v6409 = vunpack.c.l.b16 %v933
      %v6410 = vunpack.c.h.b16 %v933
      %v6411 = vunpack.c.l.b16 %v934
      %v6412 = vunpack.c.h.b16 %v934
      %v6413 = vunpack.c.l.b16 %v935
      %v6414 = vunpack.c.h.b16 %v935
      %v6415 = vunpack.c.l.b16 %v936
      %v6416 = vunpack.c.h.b16 %v936
      %v6417 = vunpack.c.l.b16 %v937
      %v6418 = vunpack.c.h.b16 %v937
      %v6419 = vunpack.c.l.b16 %v938
      %v6420 = vunpack.c.h.b16 %v938
      %v6421 = vunpack.c.l.b16 %v939
      %v6422 = vunpack.c.h.b16 %v939
      %v6423 = vunpack.c.l.b16 %v940
      %v6424 = vunpack.c.h.b16 %v940
      %v6425 = vunpack.c.l.b16 %v941
      %v6426 = vunpack.c.h.b16 %v941
      %v6427 = vunpack.c.l.b16 %v942
      %v6428 = vunpack.c.h.b16 %v942
      %v6429 = vunpack.c.l.b16 %v943
      %v6430 = vunpack.c.h.b16 %v943
      %v6431 = vunpack.c.l.b16 %v944
      %v6432 = vunpack.c.h.b16 %v944
      %v6433 = vunpack.c.l.b16 %v945
      %v6434 = vunpack.c.h.b16 %v945
      %v6435 = vunpack.c.l.b16 %v946
      %v6436 = vunpack.c.h.b16 %v946
      %v6437 = vunpack.c.l.b16 %v947
      %v6438 = vunpack.c.h.b16 %v947
      %v6439 = vunpack.c.l.b16 %v948
      %v6440 = vunpack.c.h.b16 %v948
      %v6441 = vunpack.c.l.b16 %v949
      %v6442 = vunpack.c.h.b16 %v949
      %v6443 = vunpack.c.l.b16 %v950
      %v6444 = vunpack.c.h.b16 %v950
      %v6445 = vunpack.c.l.b16 %v951
      %v6446 = vunpack.c.h.b16 %v951
      %v6447 = vunpack.c.l.b16 %v952
      %v6448 = vunpack.c.h.b16 %v952
      %v6449 = vunpack.c.l.b16 %v953
      %v6450 = vunpack.c.h.b16 %v953
      %v6451 = vunpack.c.l.b16 %v954
      %v6452 = vunpack.c.h.b16 %v954
      %v6453 = vunpack.c.l.b16 %v955
      %v6454 = vunpack.c.h.b16 %v955
      %v6455 = vunpack.c.l.b16 %v956
      %v6456 = vunpack.c.h.b16 %v956
      %v6457 = vunpack.c.l.b16 %v957
      %v6458 = vunpack.c.h.b16 %v957
      %v6459 = vunpack.c.l.b16 %v958
      %v6460 = vunpack.c.h.b16 %v958
      %v6461 = vunpack.c.l.b16 %v959
      %v6462 = vunpack.c.h.b16 %v959
      %v6463 = vunpack.c.l.b16 %v960
      %v6464 = vunpack.c.h.b16 %v960
      %v6465 = vunpack.c.l.b16 %v961
      %v6466 = vunpack.c.h.b16 %v961
      %v6467 = vunpack.c.l.b16 %v962
      %v6468 = vunpack.c.h.b16 %v962
      %v6469 = vunpack.c.l.b16 %v963
      %v6470 = vunpack.c.h.b16 %v963
      %v6471 = vunpack.c.l.b16 %v964
      %v6472 = vunpack.c.h.b16 %v964
      %v6473 = vunpack.c.l.b16 %v965
      %v6474 = vunpack.c.h.b16 %v965
      %v6475 = vunpack.c.l.b16 %v966
      %v6476 = vunpack.c.h.b16 %v966
      %v6477 = vunpack.c.l.b16 %v967
      %v6478 = vunpack.c.h.b16 %v967
      %v6479 = vunpack.c.l.b16 %v968
      %v6480 = vunpack.c.h.b16 %v968
      %v6481 = vunpack.c.l.b16 %v969
      %v6482 = vunpack.c.h.b16 %v969
      %v6483 = vunpack.c.l.b16 %v970
      %v6484 = vunpack.c.h.b16 %v970
      %v6485 = vunpack.c.l.b16 %v971
      %v6486 = vunpack.c.h.b16 %v971
      %v6487 = vunpack.c.l.b16 %v972
      %v6488 = vunpack.c.h.b16 %v972
      %v6489 = vunpack.c.l.b16 %v973
      %v6490 = vunpack.c.h.b16 %v973
      %v6491 = vunpack.c.l.b16 %v974
      %v6492 = vunpack.c.h.b16 %v974
      %v6493 = vunpack.c.l.b16 %v975
      %v6494 = vunpack.c.h.b16 %v975
      %v6495 = vunpack.c.l.b16 %v976
      %v6496 = vunpack.c.h.b16 %v976
      %v6497 = vunpack.c.l.b16 %v977
      %v6498 = vunpack.c.h.b16 %v977
      %v6499 = vunpack.c.l.b16 %v978
      %v6500 = vunpack.c.h.b16 %v978
      %v6501 = vunpack.c.l.b16 %v979
      %v6502 = vunpack.c.h.b16 %v979
      %v6503 = vunpack.c.l.b16 %v980
      %v6504 = vunpack.c.h.b16 %v980
      %v6505 = vunpack.c.l.b16 %v981
      %v6506 = vunpack.c.h.b16 %v981
      %v6507 = vunpack.c.l.b16 %v982
      %v6508 = vunpack.c.h.b16 %v982
      %v6509 = vunpack.c.l.b16 %v983
      %v6510 = vunpack.c.h.b16 %v983
      %v6511 = vunpack.c.l.b16 %v984
      %v6512 = vunpack.c.h.b16 %v984
      %v6513 = vunpack.c.l.b16 %v985
      %v6514 = vunpack.c.h.b16 %v985
      %v6515 = vunpack.c.l.b16 %v986
      %v6516 = vunpack.c.h.b16 %v986
      %v6517 = vunpack.c.l.b16 %v987
      %v6518 = vunpack.c.h.b16 %v987
      %v6519 = vunpack.c.l.b16 %v988
      %v6520 = vunpack.c.h.b16 %v988
      %v6521 = vunpack.c.l.b16 %v989
      %v6522 = vunpack.c.h.b16 %v989
      %v6523 = vunpack.c.l.b16 %v990
      %v6524 = vunpack.c.h.b16 %v990
      %v6525 = vunpack.c.l.b16 %v991
      %v6526 = vunpack.c.h.b16 %v991
      %v6527 = vunpack.c.l.b16 %v992
      %v6528 = vunpack.c.h.b16 %v992
      %v6529 = vunpack.c.l.b16 %v993
      %v6530 = vunpack.c.h.b16 %v993
      %v6531 = vunpack.c.l.b16 %v994
      %v6532 = vunpack.c.h.b16 %v994
      %v6533 = vunpack.c.l.b16 %v995
      %v6534 = vunpack.c.h.b16 %v995
      %v6535 = vunpack.c.l.b16 %v996
      %v6536 = vunpack.c.h.b16 %v996
      %v6537 = vunpack.c.l.b16 %v997
      %v6538 = vunpack.c.h.b16 %v997
      %v6539 = vunpack.c.l.b16 %v998
      %v6540 = vunpack.c.h.b16 %v998
      %v6541 = vunpack.c.l.b16 %v999
      %v6542 = vunpack.c.h.b16 %v999
      %v6543 = vunpack.c.l.b16 %v1000
      %v6544 = vunpack.c.h.b16 %v1000
      %v6545 = vunpack.c.l.b16 %v1001
      %v6546 = vunpack.c.h.b16 %v1001
      %v6547 = vunpack.c.l.b16 %v1002
      %v6548 = vunpack.c.h.b16 %v1002
      %v6549 = vunpack.c.l.b16 %v1003
      %v6550 = vunpack.c.h.b16 %v1003
      %v6551 = vunpack.c.l.b16 %v1004
      %v6552 = vunpack.c.h.b16 %v1004
      %v6553 = vunpack.c.l.b16 %v1005
      %v6554 = vunpack.c.h.b16 %v1005
      %v6555 = vunpack.c.l.b16 %v1006
      %v6556 = vunpack.c.h.b16 %v1006
      %v6557 = vunpack.c.l.b16 %v1007
      %v6558 = vunpack.c.h.b16 %v1007
      %v6559 = vunpack.c.l.b16 %v1008
      %v6560 = vunpack.c.h.b16 %v1008
      %v6561 = vunpack.c.l.b16 %v1009
      %v6562 = vunpack.c.h.b16 %v1009
      %v6563 = vunpack.c.l.b16 %v1010
      %v6564 = vunpack.c.h.b16 %v1010
      %v6565 = vunpack.c.l.b16 %v1011
      %v6566 = vunpack.c.h.b16 %v1011
      %v6567 = vunpack.c.l.b16 %v1012
      %v6568 = vunpack.c.h.b16 %v1012
      %v6569 = vunpack.c.l.b16 %v1013
      %v6570 = vunpack.c.h.b16 %v1013
      %v6571 = vunpack.c.l.b16 %v1014
      %v6572 = vunpack.c.h.b16 %v1014
      %v6573 = vunpack.c.l.b16 %v1015
      %v6574 = vunpack.c.h.b16 %v1015
      %v6575 = vunpack.c.l.b16 %v1016
      %v6576 = vunpack.c.h.b16 %v1016
      %v6577 = vunpack.c.l.b16 %v1017
      %v6578 = vunpack.c.h.b16 %v1017
      %v6579 = vunpack.c.l.b16 %v1018
      %v6580 = vunpack.c.h.b16 %v1018
      %v6581 = vunpack.c.l.b16 %v1019
      %v6582 = vunpack.c.h.b16 %v1019
      %v6583 = vunpack.c.l.b16 %v1020
      %v6584 = vunpack.c.h.b16 %v1020
      %v6585 = vunpack.c.l.b16 %v1021
      %v6586 = vunpack.c.h.b16 %v1021
      %v6587 = vunpack.c.l.b16 %v1022
      %v6588 = vunpack.c.h.b16 %v1022
      %v6589 = vunpack.c.l.b16 %v1023
      %v6590 = vunpack.c.h.b16 %v1023
      %v6591 = vunpack.c.l.b16 %v1024
      %v6592 = vunpack.c.h.b16 %v1024
      %v6593 = vunpack.c.l.b16 %v1025
      %v6594 = vunpack.c.h.b16 %v1025
      %v6595 = vunpack.c.l.b16 %v1026
      %v6596 = vunpack.c.h.b16 %v1026
      %v6597 = vunpack.c.l.b16 %v1027
      %v6598 = vunpack.c.h.b16 %v1027
      %v6599 = vunpack.c.l.b16 %v1028
      %v6600 = vunpack.c.h.b16 %v1028
      %v6601 = vunpack.c.l.b16 %v1029
      %v6602 = vunpack.c.h.b16 %v1029
      %v6603 = vunpack.c.l.b16 %v1030
      %v6604 = vunpack.c.h.b16 %v1030
      %v6605 = vunpack.c.l.b16 %v1031
      %v6606 = vunpack.c.h.b16 %v1031
      %v6607 = vunpack.c.l.b16 %v1032
      %v6608 = vunpack.c.h.b16 %v1032
      %v6609 = vunpack.c.l.b16 %v1033
      %v6610 = vunpack.c.h.b16 %v1033
      %v6611 = vunpack.c.l.b16 %v1034
      %v6612 = vunpack.c.h.b16 %v1034
      %v6613 = vpack.c.b16 %v6135, %v6133
      %v6614 = vpack.c.b16 %v6136, %v6134
      %v6615 = vpack.c.b16 %v6139, %v6137
      %v6616 = vpack.c.b16 %v6140, %v6138
      %v6617 = vpack.c.b16 %v6143, %v6141
      %v6618 = vpack.c.b16 %v6144, %v6142
      %v6619 = vpack.c.b16 %v6147, %v6145
      %v6620 = vpack.c.b16 %v6148, %v6146
      %v6621 = vpack.c.b16 %v6151, %v6149
      %v6622 = vpack.c.b16 %v6152, %v6150
      %v6623 = vpack.c.b16 %v6155, %v6153
      %v6624 = vpack.c.b16 %v6156, %v6154
      %v6625 = vpack.c.b16 %v6159, %v6157
      %v6626 = vpack.c.b16 %v6160, %v6158
      %v6627 = vpack.c.b16 %v6163, %v6161
      %v6628 = vpack.c.b16 %v6164, %v6162
      %v6629 = vpack.c.b16 %v6167, %v6165
      %v6630 = vpack.c.b16 %v6168, %v6166
      %v6631 = vpack.c.b16 %v6171, %v6169
      %v6632 = vpack.c.b16 %v6172, %v6170
      %v6633 = vpack.c.b16 %v6175, %v6173
      %v6634 = vpack.c.b16 %v6176, %v6174
      %v6635 = vpack.c.b16 %v6179, %v6177
      %v6636 = vpack.c.b16 %v6180, %v6178
      %v6637 = vpack.c.b16 %v6183, %v6181
      %v6638 = vpack.c.b16 %v6184, %v6182
      %v6639 = vpack.c.b16 %v6187, %v6185
      %v6640 = vpack.c.b16 %v6188, %v6186
      %v6641 = vpack.c.b16 %v6191, %v6189
      %v6642 = vpack.c.b16 %v6192, %v6190
      %v6643 = vpack.c.b16 %v6195, %v6193
      %v6644 = vpack.c.b16 %v6196, %v6194
      %v6645 = vpack.c.b16 %v6199, %v6197
      %v6646 = vpack.c.b16 %v6200, %v6198
      %v6647 = vpack.c.b16 %v6203, %v6201
      %v6648 = vpack.c.b16 %v6204, %v6202
      %v6649 = vpack.c.b16 %v6207, %v6205
      %v6650 = vpack.c.b16 %v6208, %v6206
      %v6651 = vpack.c.b16 %v6211, %v6209
      %v6652 = vpack.c.b16 %v6212, %v6210
      %v6653 = vpack.c.b16 %v6215, %v6213
      %v6654 = vpack.c.b16 %v6216, %v6214
      %v6655 = vpack.c.b16 %v6219, %v6217
      %v6656 = vpack.c.b16 %v6220, %v6218
      %v6657 = vpack.c.b16 %v6223, %v6221
      %v6658 = vpack.c.b16 %v6224, %v6222
      %v6659 = vpack.c.b16 %v6227, %v6225
      %v6660 = vpack.c.b16 %v6228, %v6226
      %v6661 = vpack.c.b16 %v6231, %v6229
      %v6662 = vpack.c.b16 %v6232, %v6230
      %v6663 = vpack.c.b16 %v6235, %v6233
      %v6664 = vpack.c.b16 %v6236, %v6234
      %v6665 = vpack.c.b16 %v6239, %v6237
      %v6666 = vpack.c.b16 %v6240, %v6238
      %v6667 = vpack.c.b16 %v6243, %v6241
      %v6668 = vpack.c.b16 %v6244, %v6242
      %v6669 = vpack.c.b16 %v6247, %v6245
      %v6670 = vpack.c.b16 %v6248, %v6246
      %v6671 = vpack.c.b16 %v6251, %v6249
      %v6672 = vpack.c.b16 %v6252, %v6250
      %v6673 = vpack.c.b16 %v6255, %v6253
      %v6674 = vpack.c.b16 %v6256, %v6254
      %v6675 = vpack.c.b16 %v6259, %v6257
      %v6676 = vpack.c.b16 %v6260, %v6258
      %v6677 = vpack.c.b16 %v6263, %v6261
      %v6678 = vpack.c.b16 %v6264, %v6262
      %v6679 = vpack.c.b16 %v6267, %v6265
      %v6680 = vpack.c.b16 %v6268, %v6266
      %v6681 = vpack.c.b16 %v6271, %v6269
      %v6682 = vpack.c.b16 %v6272, %v6270
      %v6683 = vpack.c.b16 %v6275, %v6273
      %v6684 = vpack.c.b16 %v6276, %v6274
      %v6685 = vpack.c.b16 %v6279, %v6277
      %v6686 = vpack.c.b16 %v6280, %v6278
      %v6687 = vpack.c.b16 %v6283, %v6281
      %v6688 = vpack.c.b16 %v6284, %v6282
      %v6689 = vpack.c.b16 %v6287, %v6285
      %v6690 = vpack.c.b16 %v6288, %v6286
      %v6691 = vpack.c.b16 %v6291, %v6289
      %v6692 = vpack.c.b16 %v6292, %v6290
      %v6693 = vpack.c.b16 %v6295, %v6293
      %v6694 = vpack.c.b16 %v6296, %v6294
      %v6695 = vpack.c.b16 %v6299, %v6297
      %v6696 = vpack.c.b16 %v6300, %v6298
      %v6697 = vpack.c.b16 %v6303, %v6301
      %v6698 = vpack.c.b16 %v6304, %v6302
      %v6699 = vpack.c.b16 %v6307, %v6305
      %v6700 = vpack.c.b16 %v6308, %v6306
      %v6701 = vpack.c.b16 %v6311, %v6309
      %v6702 = vpack.c.b16 %v6312, %v6310
      %v6703 = vpack.c.b16 %v6315, %v6313
      %v6704 = vpack.c.b16 %v6316, %v6314
      %v6705 = vpack.c.b16 %v6319, %v6317
      %v6706 = vpack.c.b16 %v6320, %v6318
      %v6707 = vpack.c.b16 %v6323, %v6321
      %v6708 = vpack.c.b16 %v6324, %v6322
      %v6709 = vpack.c.b16 %v6327, %v6325
      %v6710 = vpack.c.b16 %v6328, %v6326
      %v6711 = vpack.c.b16 %v6331, %v6329
      %v6712 = vpack.c.b16 %v6332, %v6330
      %v6713 = vpack.c.b16 %v6335, %v6333
      %v6714 = vpack.c.b16 %v6336, %v6334
      %v6715 = vpack.c.b16 %v6339, %v6337
      %v6716 = vpack.c.b16 %v6340, %v6338
      %v6717 = vpack.c.b16 %v6343, %v6341
      %v6718 = vpack.c.b16 %v6344, %v6342
      %v6719 = vpack.c.b16 %v6347, %v6345
      %v6720 = vpack.c.b16 %v6348, %v6346
      %v6721 = vpack.c.b16 %v6351, %v6349
      %v6722 = vpack.c.b16 %v6352, %v6350
      %v6723 = vpack.c.b16 %v6355, %v6353
      %v6724 = vpack.c.b16 %v6356, %v6354
      %v6725 = vpack.c.b16 %v6359, %v6357
      %v6726 = vpack.c.b16 %v6360, %v6358
      %v6727 = vpack.c.b16 %v6363, %v6361
      %v6728 = vpack.c.b16 %v6364, %v6362
      %v6729 = vpack.c.b16 %v6367, %v6365
      %v6730 = vpack.c.b16 %v6368, %v6366
      %v6731 = vpack.c.b16 %v6371, %v6369
      %v6732 = vpack.c.b16 %v6372, %v6370
      %v6733 = vpack.c.b16 %v6375, %v6373
      %v6734 = vpack.c.b16 %v6376, %v6374
      %v6735 = vpack.c.b16 %v6379, %v6377
      %v6736 = vpack.c.b16 %v6380, %v6378
      %v6737 = vpack.c.b16 %v6383, %v6381
      %v6738 = vpack.c.b16 %v6384, %v6382
      %v6739 = vpack.c.b16 %v6387, %v6385
      %v6740 = vpack.c.b16 %v6388, %v6386
      %v6741 = vpack.c.b16 %v6391, %v6389
      %v6742 = vpack.c.b16 %v6392, %v6390
      %v6743 = vpack.c.b16 %v6395, %v6393
      %v6744 = vpack.c.b16 %v6396, %v6394
      %v6745 = vpack.c.b16 %v6399, %v6397
      %v6746 = vpack.c.b16 %v6400, %v6398
      %v6747 = vpack.c.b16 %v6403, %v6401
      %v6748 = vpack.c.b16 %v6404, %v6402
      %v6749 = vpack.c.b16 %v6407, %v6405
      %v6750 = vpack.c.b16 %v6408, %v6406
      %v6751 = vpack.c.b16 %v6411, %v6409
      %v6752 = vpack.c.b16 %v6412, %v6410
      %v6753 = vpack.c.b16 %v6415, %v6413
      %v6754 = vpack.c.b16 %v6416, %v6414
      %v6755 = vpack.c.b16 %v6419, %v6417
      %v6756 = vpack.c.b16 %v6420, %v6418
      %v6757 = vpack.c.b16 %v6423, %v6421
      %v6758 = vpack.c.b16 %v6424, %v6422
      %v6759 = vpack.c.b16 %v6427, %v6425
      %v6760 = vpack.c.b16 %v6428, %v6426
      %v6761 = vpack.c.b16 %v6431, %v6429
      %v6762 = vpack.c.b16 %v6432, %v6430
      %v6763 = vpack.c.b16 %v6435, %v6433
      %v6764 = vpack.c.b16 %v6436, %v6434
      %v6765 = vpack.c.b16 %v6439, %v6437
      %v6766 = vpack.c.b16 %v6440, %v6438
      %v6767 = vpack.c.b16 %v6443, %v6441
      %v6768 = vpack.c.b16 %v6444, %v6442
      %v6769 = vpack.c.b16 %v6447, %v6445
      %v6770 = vpack.c.b16 %v6448, %v6446
      %v6771 = vpack.c.b16 %v6451, %v6449
      %v6772 = vpack.c.b16 %v6452, %v6450
      %v6773 = vpack.c.b16 %v6455, %v6453
      %v6774 = vpack.c.b16 %v6456, %v6454
      %v6775 = vpack.c.b16 %v6459, %v6457
      %v6776 = vpack.c.b16 %v6460, %v6458
      %v6777 = vpack.c.b16 %v6463, %v6461
      %v6778 = vpack.c.b16 %v6464, %v6462
      %v6779 = vpack.c.b16 %v6467, %v6465
      %v6780 = vpack.c.b16 %v6468, %v6466
      %v6781 = vpack.c.b16 %v6471, %v6469
      %v6782 = vpack.c.b16 %v6472, %v6470
      %v6783 = vpack.c.b16 %v6475, %v6473
      %v6784 = vpack.c.b16 %v6476, %v6474
      %v6785 = vpack.c.b16 %v6479, %v6477
      %v6786 = vpack.c.b16 %v6480, %v6478
      %v6787 = vpack.c.b16 %v6483, %v6481
      %v6788 = vpack.c.b16 %v6484, %v6482
      %v6789 = vpack.c.b16 %v6487, %v6485
      %v6790 = vpack.c.b16 %v6488, %v6486
      %v6791 = vpack.c.b16 %v6491, %v6489
      %v6792 = vpack.c.b16 %v6492, %v6490
      %v6793 = vpack.c.b16 %v6495, %v6493
      %v6794 = vpack.c.b16 %v6496, %v6494
      %v6795 = vpack.c.b16 %v6499, %v6497
      %v6796 = vpack.c.b16 %v6500, %v6498
      %v6797 = vpack.c.b16 %v6503, %v6501
      %v6798 = vpack.c.b16 %v6504, %v6502
      %v6799 = vpack.c.b16 %v6507, %v6505
      %v6800 = vpack.c.b16 %v6508, %v6506
      %v6801 = vpack.c.b16 %v6511, %v6509
      %v6802 = vpack.c.b16 %v6512, %v6510
      %v6803 = vpack.c.b16 %v6515, %v6513
      %v6804 = vpack.c.b16 %v6516, %v6514
      %v6805 = vpack.c.b16 %v6519, %v6517
      %v6806 = vpack.c.b16 %v6520, %v6518
      %v6807 = vpack.c.b16 %v6523, %v6521
      %v6808 = vpack.c.b16 %v6524, %v6522
      %v6809 = vpack.c.b16 %v6527, %v6525
      %v6810 = vpack.c.b16 %v6528, %v6526
      %v6811 = vpack.c.b16 %v6531, %v6529
      %v6812 = vpack.c.b16 %v6532, %v6530
      %v6813 = vpack.c.b16 %v6535, %v6533
      %v6814 = vpack.c.b16 %v6536, %v6534
      %v6815 = vpack.c.b16 %v6539, %v6537
      %v6816 = vpack.c.b16 %v6540, %v6538
      %v6817 = vpack.c.b16 %v6543, %v6541
      %v6818 = vpack.c.b16 %v6544, %v6542
      %v6819 = vpack.c.b16 %v6547, %v6545
      %v6820 = vpack.c.b16 %v6548, %v6546
      %v6821 = vpack.c.b16 %v6551, %v6549
      %v6822 = vpack.c.b16 %v6552, %v6550
      %v6823 = vpack.c.b16 %v6555, %v6553
      %v6824 = vpack.c.b16 %v6556, %v6554
      %v6825 = vpack.c.b16 %v6559, %v6557
      %v6826 = vpack.c.b16 %v6560, %v6558
      %v6827 = vpack.c.b16 %v6563, %v6561
      %v6828 = vpack.c.b16 %v6564, %v6562
      %v6829 = vpack.c.b16 %v6567, %v6565
      %v6830 = vpack.c.b16 %v6568, %v6566
      %v6831 = vpack.c.b16 %v6571, %v6569
      %v6832 = vpack.c.b16 %v6572, %v6570
      %v6833 = vpack.c.b16 %v6575, %v6573
      %v6834 = vpack.c.b16 %v6576, %v6574
      %v6835 = vpack.c.b16 %v6579, %v6577
      %v6836 = vpack.c.b16 %v6580, %v6578
      %v6837 = vpack.c.b16 %v6583, %v6581
      %v6838 = vpack.c.b16 %v6584, %v6582
      %v6839 = vpack.c.b16 %v6587, %v6585
      %v6840 = vpack.c.b16 %v6588, %v6586
      %v6841 = vpack.c.b16 %v6591, %v6589
      %v6842 = vpack.c.b16 %v6592, %v6590
      %v6843 = vpack.c.b16 %v6595, %v6593
      %v6844 = vpack.c.b16 %v6596, %v6594
      %v6845 = vpack.c.b16 %v6599, %v6597
      %v6846 = vpack.c.b16 %v6600, %v6598
      %v6847 = vpack.c.b16 %v6603, %v6601
      %v6848 = vpack.c.b16 %v6604, %v6602
      %v6849 = vpack.c.b16 %v6607, %v6605
      %v6850 = vpack.c.b16 %v6608, %v6606
      %v6851 = vpack.c.b16 %v6611, %v6609
      %v6852 = vpack.c.b16 %v6612, %v6610
      %7093 = vmatprep.subr.bf16.mxu0 %v6614
      %7094 = vmatpush1.bf16.msra.mxu0 %v6613
      %7095 = vmatprep.subr.bf16.mxu0 %v6616
      %7096 = vmatpush1.bf16.msra.mxu0 %v6615
      %7097 = vmatprep.subr.bf16.mxu0 %v6618
      %7098 = vmatpush1.bf16.msra.mxu0 %v6617
      %7099 = vmatprep.subr.bf16.mxu0 %v6620
      %7100 = vmatpush1.bf16.msra.mxu0 %v6619
      %7101 = vmatprep.subr.bf16.mxu0 %v6622
      %7102 = vmatpush1.bf16.msra.mxu0 %v6621
      %7103 = vmatprep.subr.bf16.mxu0 %v6624
      %7104 = vmatpush1.bf16.msra.mxu0 %v6623
      %7105 = vmatprep.subr.bf16.mxu0 %v6626
      %7106 = vmatpush1.bf16.msra.mxu0 %v6625
      %7107 = vmatprep.subr.bf16.mxu0 %v6628
      %7108 = vmatpush1.bf16.msra.mxu0 %v6627
      %7109 = vmatprep.subr.bf16.mxu0 %v6630
      %7110 = vmatpush1.bf16.msra.mxu0 %v6629
      %7111 = vmatprep.subr.bf16.mxu0 %v6632
      %7112 = vmatpush1.bf16.msra.mxu0 %v6631
      %7113 = vmatprep.subr.bf16.mxu0 %v6634
      %7114 = vmatpush1.bf16.msra.mxu0 %v6633
      %7115 = vmatprep.subr.bf16.mxu0 %v6636
      %7116 = vmatpush1.bf16.msra.mxu0 %v6635
      %7117 = vmatprep.subr.bf16.mxu0 %v6638
      %7118 = vmatpush1.bf16.msra.mxu0 %v6637
      %7119 = vmatprep.subr.bf16.mxu0 %v6640
      %7120 = vmatpush1.bf16.msra.mxu0 %v6639
      %7121 = vmatprep.subr.bf16.mxu0 %v6642
      %7122 = vmatpush1.bf16.msra.mxu0 %v6641
      %7123 = vmatprep.subr.bf16.mxu0 %v6644
      %7124 = vmatpush1.bf16.msra.mxu0 %v6643
      %7125 = vmatprep.mubr.bf16.mxu0 %v4351
      %7126 = vmatmul.mubr.bf16.gmra.mrb[0].mxu0 %v4350
      %v7127 = vpop.f32.mrb[0].mxu0
      %v7128 = vadd.f32 0.0, %v7127
      %v7129 = vpop.f32.mrb[0].mxu0
      %v7130 = vadd.f32 0.0, %v7129
      %v7131 = vpop.f32.mrb[0].mxu0
      %v7132 = vpop.f32.mrb[0].mxu0
      %7133 = vdwg.mxu0
      %7134 = vmatprep.subr.bf16.mxu0 %v6646
      %7135 = vmatpush1.bf16.msra.mxu0 %v6645
      %7136 = vmatprep.subr.bf16.mxu0 %v6648
      %7137 = vmatpush1.bf16.msra.mxu0 %v6647
      %7138 = vmatprep.subr.bf16.mxu0 %v6650
      %7139 = vmatpush1.bf16.msra.mxu0 %v6649
      %7140 = vmatprep.subr.bf16.mxu0 %v6652
      %7141 = vmatpush1.bf16.msra.mxu0 %v6651
      %7142 = vmatprep.subr.bf16.mxu0 %v6654
      %7143 = vmatpush1.bf16.msra.mxu0 %v6653
      %7144 = vmatprep.subr.bf16.mxu0 %v6656
      %7145 = vmatpush1.bf16.msra.mxu0 %v6655
      %7146 = vmatprep.subr.bf16.mxu0 %v6658
      %7147 = vmatpush1.bf16.msra.mxu0 %v6657
      %7148 = vmatprep.subr.bf16.mxu0 %v6660
      %7149 = vmatpush1.bf16.msra.mxu0 %v6659
      %7150 = vmatprep.subr.bf16.mxu0 %v6662
      %7151 = vmatpush1.bf16.msra.mxu0 %v6661
      %7152 = vmatprep.subr.bf16.mxu0 %v6664
      %7153 = vmatpush1.bf16.msra.mxu0 %v6663
      %7154 = vmatprep.subr.bf16.mxu0 %v6666
      %7155 = vmatpush1.bf16.msra.mxu0 %v6665
      %7156 = vmatprep.subr.bf16.mxu0 %v6668
      %7157 = vmatpush1.bf16.msra.mxu0 %v6667
      %7158 = vmatprep.subr.bf16.mxu0 %v6670
      %7159 = vmatpush1.bf16.msra.mxu0 %v6669
      %7160 = vmatprep.subr.bf16.mxu0 %v6672
      %7161 = vmatpush1.bf16.msra.mxu0 %v6671
      %7162 = vmatprep.subr.bf16.mxu0 %v6674
      %7163 = vmatpush1.bf16.msra.mxu0 %v6673
      %7164 = vmatprep.subr.bf16.mxu0 %v6676
      %7165 = vmatpush1.bf16.msra.mxu0 %v6675
      %7166 = vmatprep.mubr.bf16.mxu0 %v4353
      %7167 = vmatmul.mubr.bf16.gmra.mrb[0].mxu0 %v4352
      %v7168 = vpop.f32.mrb[0].mxu0
      %v7169 = vadd.f32 %v7128, %v7168
      %v7170 = vpop.f32.mrb[0].mxu0
      %v7171 = vadd.f32 %v7130, %v7170
      %v7172 = vpop.f32.mrb[0].mxu0
      %v7173 = vpop.f32.mrb[0].mxu0
      %7174 = vdwg.mxu0
      %7175 = vmatprep.subr.bf16.mxu0 %v6678
      %7176 = vmatpush1.bf16.msra.mxu0 %v6677
      %7177 = vmatprep.subr.bf16.mxu0 %v6680
      %7178 = vmatpush1.bf16.msra.mxu0 %v6679
      %7179 = vmatprep.subr.bf16.mxu0 %v6682
      %7180 = vmatpush1.bf16.msra.mxu0 %v6681
      %7181 = vmatprep.subr.bf16.mxu0 %v6684
      %7182 = vmatpush1.bf16.msra.mxu0 %v6683
      %7183 = vmatprep.subr.bf16.mxu0 %v6686
      %7184 = vmatpush1.bf16.msra.mxu0 %v6685
      %7185 = vmatprep.subr.bf16.mxu0 %v6688
      %7186 = vmatpush1.bf16.msra.mxu0 %v6687
      %7187 = vmatprep.subr.bf16.mxu0 %v6690
      %7188 = vmatpush1.bf16.msra.mxu0 %v6689
      %7189 = vmatprep.subr.bf16.mxu0 %v6692
      %7190 = vmatpush1.bf16.msra.mxu0 %v6691
      %7191 = vmatprep.subr.bf16.mxu0 %v6694
      %7192 = vmatpush1.bf16.msra.mxu0 %v6693
      %7193 = vmatprep.subr.bf16.mxu0 %v6696
      %7194 = vmatpush1.bf16.msra.mxu0 %v6695
      %7195 = vmatprep.subr.bf16.mxu0 %v6698
      %7196 = vmatpush1.bf16.msra.mxu0 %v6697
      %7197 = vmatprep.subr.bf16.mxu0 %v6700
      %7198 = vmatpush1.bf16.msra.mxu0 %v6699
      %7199 = vmatprep.subr.bf16.mxu0 %v6702
      %7200 = vmatpush1.bf16.msra.mxu0 %v6701
      %7201 = vmatprep.subr.bf16.mxu0 %v6704
      %7202 = vmatpush1.bf16.msra.mxu0 %v6703
      %7203 = vmatprep.subr.bf16.mxu0 %v6706
      %7204 = vmatpush1.bf16.msra.mxu0 %v6705
      %7205 = vmatprep.subr.bf16.mxu0 %v6708
      %7206 = vmatpush1.bf16.msra.mxu0 %v6707
      %7207 = vmatprep.mubr.bf16.mxu0 %v4355
      %7208 = vmatmul.mubr.bf16.gmra.mrb[0].mxu0 %v4354
      %v7209 = vpop.f32.mrb[0].mxu0
      %v7210 = vadd.f32 %v7169, %v7209
      %v7211 = vpop.f32.mrb[0].mxu0
      %v7212 = vadd.f32 %v7171, %v7211
      %v7213 = vpop.f32.mrb[0].mxu0
      %v7214 = vpop.f32.mrb[0].mxu0
      %7215 = vdwg.mxu0
      %7216 = vmatprep.subr.bf16.mxu0 %v6710
      %7217 = vmatpush1.bf16.msra.mxu0 %v6709
      %7218 = vmatprep.subr.bf16.mxu0 %v6712
      %7219 = vmatpush1.bf16.msra.mxu0 %v6711
      %7220 = vmatprep.subr.bf16.mxu0 %v6714
      %7221 = vmatpush1.bf16.msra.mxu0 %v6713
      %7222 = vmatprep.subr.bf16.mxu0 %v6716
      %7223 = vmatpush1.bf16.msra.mxu0 %v6715
      %7224 = vmatprep.subr.bf16.mxu0 %v6718
      %7225 = vmatpush1.bf16.msra.mxu0 %v6717
      %7226 = vmatprep.subr.bf16.mxu0 %v6720
      %7227 = vmatpush1.bf16.msra.mxu0 %v6719
      %7228 = vmatprep.subr.bf16.mxu0 %v6722
      %7229 = vmatpush1.bf16.msra.mxu0 %v6721
      %7230 = vmatprep.subr.bf16.mxu0 %v6724
      %7231 = vmatpush1.bf16.msra.mxu0 %v6723
      %7232 = vmatprep.subr.bf16.mxu0 %v6726
      %7233 = vmatpush1.bf16.msra.mxu0 %v6725
      %7234 = vmatprep.subr.bf16.mxu0 %v6728
      %7235 = vmatpush1.bf16.msra.mxu0 %v6727
      %7236 = vmatprep.subr.bf16.mxu0 %v6730
      %7237 = vmatpush1.bf16.msra.mxu0 %v6729
      %7238 = vmatprep.subr.bf16.mxu0 %v6732
      %7239 = vmatpush1.bf16.msra.mxu0 %v6731
      %7240 = vmatprep.subr.bf16.mxu0 %v6734
      %7241 = vmatpush1.bf16.msra.mxu0 %v6733
      %7242 = vmatprep.subr.bf16.mxu0 %v6736
      %7243 = vmatpush1.bf16.msra.mxu0 %v6735
      %7244 = vmatprep.subr.bf16.mxu0 %v6738
      %7245 = vmatpush1.bf16.msra.mxu0 %v6737
      %7246 = vmatprep.subr.bf16.mxu0 %v6740
      %7247 = vmatpush1.bf16.msra.mxu0 %v6739
      %7248 = vmatprep.mubr.bf16.mxu0 %v4357
      %7249 = vmatmul.mubr.bf16.gmra.mrb[0].mxu0 %v4356
      %v7250 = vpop.f32.mrb[0].mxu0
      %v7251 = vadd.f32 %v7210, %v7250
      %v7252 = vpop.f32.mrb[0].mxu0
      %v7253 = vadd.f32 %v7212, %v7252
      %v7254 = vpop.f32.mrb[0].mxu0
      %v7255 = vpop.f32.mrb[0].mxu0
      %7256 = vdwg.mxu0
      %7257 = vmatprep.subr.bf16.mxu0 %v6742
      %7258 = vmatpush1.bf16.msra.mxu0 %v6741
      %7259 = vmatprep.subr.bf16.mxu0 %v6744
      %7260 = vmatpush1.bf16.msra.mxu0 %v6743
      %7261 = vmatprep.subr.bf16.mxu0 %v6746
      %7262 = vmatpush1.bf16.msra.mxu0 %v6745
      %7263 = vmatprep.subr.bf16.mxu0 %v6748
      %7264 = vmatpush1.bf16.msra.mxu0 %v6747
      %7265 = vmatprep.subr.bf16.mxu0 %v6750
      %7266 = vmatpush1.bf16.msra.mxu0 %v6749
      %7267 = vmatprep.subr.bf16.mxu0 %v6752
      %7268 = vmatpush1.bf16.msra.mxu0 %v6751
      %7269 = vmatprep.subr.bf16.mxu0 %v6754
      %7270 = vmatpush1.bf16.msra.mxu0 %v6753
      %7271 = vmatprep.subr.bf16.mxu0 %v6756
      %7272 = vmatpush1.bf16.msra.mxu0 %v6755
      %7273 = vmatprep.subr.bf16.mxu0 %v6758
      %7274 = vmatpush1.bf16.msra.mxu0 %v6757
      %7275 = vmatprep.subr.bf16.mxu0 %v6760
      %7276 = vmatpush1.bf16.msra.mxu0 %v6759
      %7277 = vmatprep.subr.bf16.mxu0 %v6762
      %7278 = vmatpush1.bf16.msra.mxu0 %v6761
      %7279 = vmatprep.subr.bf16.mxu0 %v6764
      %7280 = vmatpush1.bf16.msra.mxu0 %v6763
      %7281 = vmatprep.subr.bf16.mxu0 %v6766
      %7282 = vmatpush1.bf16.msra.mxu0 %v6765
      %7283 = vmatprep.subr.bf16.mxu0 %v6768
      %7284 = vmatpush1.bf16.msra.mxu0 %v6767
      %7285 = vmatprep.subr.bf16.mxu0 %v6770
      %7286 = vmatpush1.bf16.msra.mxu0 %v6769
      %7287 = vmatprep.subr.bf16.mxu0 %v6772
      %7288 = vmatpush1.bf16.msra.mxu0 %v6771
      %7289 = vmatprep.mubr.bf16.mxu0 %v4359
      %7290 = vmatmul.mubr.bf16.gmra.mrb[0].mxu0 %v4358
      %v7291 = vpop.f32.mrb[0].mxu0
      %v7292 = vadd.f32 %v7251, %v7291
      %v7293 = vpop.f32.mrb[0].mxu0
      %v7294 = vadd.f32 %v7253, %v7293
      %v7295 = vpop.f32.mrb[0].mxu0
      %v7296 = vpop.f32.mrb[0].mxu0
      %7297 = vdwg.mxu0
      %7298 = vmatprep.subr.bf16.mxu0 %v6774
      %7299 = vmatpush1.bf16.msra.mxu0 %v6773
      %7300 = vmatprep.subr.bf16.mxu0 %v6776
      %7301 = vmatpush1.bf16.msra.mxu0 %v6775
      %7302 = vmatprep.subr.bf16.mxu0 %v6778
      %7303 = vmatpush1.bf16.msra.mxu0 %v6777
      %7304 = vmatprep.subr.bf16.mxu0 %v6780
      %7305 = vmatpush1.bf16.msra.mxu0 %v6779
      %7306 = vmatprep.subr.bf16.mxu0 %v6782
      %7307 = vmatpush1.bf16.msra.mxu0 %v6781
      %7308 = vmatprep.subr.bf16.mxu0 %v6784
      %7309 = vmatpush1.bf16.msra.mxu0 %v6783
      %7310 = vmatprep.subr.bf16.mxu0 %v6786
      %7311 = vmatpush1.bf16.msra.mxu0 %v6785
      %7312 = vmatprep.subr.bf16.mxu0 %v6788
      %7313 = vmatpush1.bf16.msra.mxu0 %v6787
      %7314 = vmatprep.subr.bf16.mxu0 %v6790
      %7315 = vmatpush1.bf16.msra.mxu0 %v6789
      %7316 = vmatprep.subr.bf16.mxu0 %v6792
      %7317 = vmatpush1.bf16.msra.mxu0 %v6791
      %7318 = vmatprep.subr.bf16.mxu0 %v6794
      %7319 = vmatpush1.bf16.msra.mxu0 %v6793
      %7320 = vmatprep.subr.bf16.mxu0 %v6796
      %7321 = vmatpush1.bf16.msra.mxu0 %v6795
      %7322 = vmatprep.subr.bf16.mxu0 %v6798
      %7323 = vmatpush1.bf16.msra.mxu0 %v6797
      %7324 = vmatprep.subr.bf16.mxu0 %v6800
      %7325 = vmatpush1.bf16.msra.mxu0 %v6799
      %7326 = vmatprep.subr.bf16.mxu0 %v6802
      %7327 = vmatpush1.bf16.msra.mxu0 %v6801
      %7328 = vmatprep.subr.bf16.mxu0 %v6804
      %7329 = vmatpush1.bf16.msra.mxu0 %v6803
      %7330 = vmatprep.mubr.bf16.mxu0 %v4361
      %7331 = vmatmul.mubr.bf16.gmra.mrb[0].mxu0 %v4360
      %v7332 = vpop.f32.mrb[0].mxu0
      %v7333 = vadd.f32 %v7292, %v7332
      %v7334 = vpop.f32.mrb[0].mxu0
      %v7335 = vadd.f32 %v7294, %v7334
      %v7336 = vpop.f32.mrb[0].mxu0
      %v7337 = vpop.f32.mrb[0].mxu0
      %7338 = vdwg.mxu0
      %7339 = vmatprep.subr.bf16.mxu0 %v6806
      %7340 = vmatpush1.bf16.msra.mxu0 %v6805
      %7341 = vmatprep.subr.bf16.mxu0 %v6808
      %7342 = vmatpush1.bf16.msra.mxu0 %v6807
      %7343 = vmatprep.subr.bf16.mxu0 %v6810
      %7344 = vmatpush1.bf16.msra.mxu0 %v6809
      %7345 = vmatprep.subr.bf16.mxu0 %v6812
      %7346 = vmatpush1.bf16.msra.mxu0 %v6811
      %7347 = vmatprep.subr.bf16.mxu0 %v6814
      %7348 = vmatpush1.bf16.msra.mxu0 %v6813
      %7349 = vmatprep.subr.bf16.mxu0 %v6816
      %7350 = vmatpush1.bf16.msra.mxu0 %v6815
      %7351 = vmatprep.subr.bf16.mxu0 %v6818
      %7352 = vmatpush1.bf16.msra.mxu0 %v6817
      %7353 = vmatprep.subr.bf16.mxu0 %v6820
      %7354 = vmatpush1.bf16.msra.mxu0 %v6819
      %7355 = vmatprep.subr.bf16.mxu0 %v6822
      %7356 = vmatpush1.bf16.msra.mxu0 %v6821
      %7357 = vmatprep.subr.bf16.mxu0 %v6824
      %7358 = vmatpush1.bf16.msra.mxu0 %v6823
      %7359 = vmatprep.subr.bf16.mxu0 %v6826
      %7360 = vmatpush1.bf16.msra.mxu0 %v6825
      %7361 = vmatprep.subr.bf16.mxu0 %v6828
      %7362 = vmatpush1.bf16.msra.mxu0 %v6827
      %7363 = vmatprep.subr.bf16.mxu0 %v6830
      %7364 = vmatpush1.bf16.msra.mxu0 %v6829
      %7365 = vmatprep.subr.bf16.mxu0 %v6832
      %7366 = vmatpush1.bf16.msra.mxu0 %v6831
      %7367 = vmatprep.subr.bf16.mxu0 %v6834
      %7368 = vmatpush1.bf16.msra.mxu0 %v6833
      %7369 = vmatprep.subr.bf16.mxu0 %v6836
      %7370 = vmatpush1.bf16.msra.mxu0 %v6835
      %7371 = vmatprep.mubr.bf16.mxu0 %v4363
      %7372 = vmatmul.mubr.bf16.gmra.mrb[0].mxu0 %v4362
      %v7373 = vpop.f32.mrb[0].mxu0
      %v7374 = vadd.f32 %v7333, %v7373
      %v7375 = vpop.f32.mrb[0].mxu0
      %v7376 = vadd.f32 %v7335, %v7375
      %v7377 = vpop.f32.mrb[0].mxu0
      %v7378 = vpop.f32.mrb[0].mxu0
      %7379 = vdwg.mxu0
      %7380 = vmatprep.subr.bf16.mxu0 %v6838
      %7381 = vmatpush1.bf16.msra.mxu0 %v6837
      %7382 = vmatprep.subr.bf16.mxu0 %v6840
      %7383 = vmatpush1.bf16.msra.mxu0 %v6839
      %7384 = vmatprep.subr.bf16.mxu0 %v6842
      %7385 = vmatpush1.bf16.msra.mxu0 %v6841
      %7386 = vmatprep.subr.bf16.mxu0 %v6844
      %7387 = vmatpush1.bf16.msra.mxu0 %v6843
      %7388 = vmatprep.subr.bf16.mxu0 %v6846
      %7389 = vmatpush1.bf16.msra.mxu0 %v6845
      %7390 = vmatprep.subr.bf16.mxu0 %v6848
      %7391 = vmatpush1.bf16.msra.mxu0 %v6847
      %7392 = vmatprep.subr.bf16.mxu0 %v6850
      %7393 = vmatpush1.bf16.msra.mxu0 %v6849
      %7394 = vmatprep.subr.bf16.mxu0 %v6852
      %7395 = vmatpush1.bf16.msra.mxu0 %v6851
      %7396 = vmatprep.subr.bf16.mxu0 0
      %7397 = vmatpush1.bf16.msra.mxu0 0
      %7398 = vmatprep.subr.bf16.mxu0 0
      %7399 = vmatpush1.bf16.msra.mxu0 0
      %7400 = vmatprep.subr.bf16.mxu0 0
      %7401 = vmatpush1.bf16.msra.mxu0 0
      %7402 = vmatprep.subr.bf16.mxu0 0
      %7403 = vmatpush1.bf16.msra.mxu0 0
      %7404 = vmatprep.subr.bf16.mxu0 0
      %7405 = vmatpush1.bf16.msra.mxu0 0
      %7406 = vmatprep.subr.bf16.mxu0 0
      %7407 = vmatpush1.bf16.msra.mxu0 0
      %7408 = vmatprep.subr.bf16.mxu0 0
      %7409 = vmatpush1.bf16.msra.mxu0 0
      %7410 = vmatprep.subr.bf16.mxu0 0
      %7411 = vmatpush1.bf16.msra.mxu0 0
      %7412 = vmatprep.mubr.bf16.mxu0 0
      %7413 = vmatmul.mubr.bf16.gmra.mrb[0].mxu0 %v4364
      %v7414 = vpop.f32.mrb[0].mxu0
      %v7415 = vadd.f32 %v7374, %v7414
      %v7416 = vpop.f32.mrb[0].mxu0
      %v7417 = vadd.f32 %v7376, %v7416
      %v7418 = vpop.f32.mrb[0].mxu0
      %v7419 = vpop.f32.mrb[0].mxu0
      %7420 = vdwg.mxu0
      %v7421 = vmax.f32 %v5887, %v7415
      %v7422 = vmax.f32 %v5889, %v7417
      %v7423 = vrot.slane %v4323, 2
      %v7424 = vrot.slane %v4324, 2
      %v7425 = vrot.slane %v4325, 2
      %v7429 = vpack.c.bf16 %v7423, %v7423
      %v7430 = vpack.c.bf16 %v7424, %v7424
      %v7431 = vpack.c.bf16 %v7425, %v7425
      %7432 = vmatprep.subr.bf16.mxu0 %v5086
      %7433 = vmatpush1.bf16.msra.mxu0 %v5085
      %7434 = vmatprep.subr.bf16.mxu0 %v5088
      %7435 = vmatpush1.bf16.msra.mxu0 %v5087
      %7436 = vmatprep.subr.bf16.mxu0 %v5090
      %7437 = vmatpush1.bf16.msra.mxu0 %v5089
      %7438 = vmatprep.subr.bf16.mxu0 %v5092
      %7439 = vmatpush1.bf16.msra.mxu0 %v5091
      %7440 = vmatprep.subr.bf16.mxu0 %v5094
      %7441 = vmatpush1.bf16.msra.mxu0 %v5093
      %7442 = vmatprep.subr.bf16.mxu0 %v5096
      %7443 = vmatpush1.bf16.msra.mxu0 %v5095
      %7444 = vmatprep.subr.bf16.mxu0 %v5098
      %7445 = vmatpush1.bf16.msra.mxu0 %v5097
      %7446 = vmatprep.subr.bf16.mxu0 %v5100
      %7447 = vmatpush1.bf16.msra.mxu0 %v5099
      %7448 = vmatprep.subr.bf16.mxu0 %v5102
      %7449 = vmatpush1.bf16.msra.mxu0 %v5101
      %7450 = vmatprep.subr.bf16.mxu0 %v5104
      %7451 = vmatpush1.bf16.msra.mxu0 %v5103
      %7452 = vmatprep.subr.bf16.mxu0 %v5106
      %7453 = vmatpush1.bf16.msra.mxu0 %v5105
      %7454 = vmatprep.subr.bf16.mxu0 %v5108
      %7455 = vmatpush1.bf16.msra.mxu0 %v5107
      %7456 = vmatprep.subr.bf16.mxu0 %v5110
      %7457 = vmatpush1.bf16.msra.mxu0 %v5109
      %7458 = vmatprep.subr.bf16.mxu0 %v5112
      %7459 = vmatpush1.bf16.msra.mxu0 %v5111
      %7460 = vmatprep.subr.bf16.mxu0 %v5114
      %7461 = vmatpush1.bf16.msra.mxu0 %v5113
      %7462 = vmatprep.subr.bf16.mxu0 %v5116
      %7463 = vmatpush1.bf16.msra.mxu0 %v5115
      %7464 = vmatprep.mubr.bf16.mxu0 %v4354
      %7465 = vmatmul.mubr.bf16.gmra.mrb[0].mxu0 %v4353
      %v7466 = vpop.f32.mrb[0].mxu0
      %v7467 = vadd.f32 0.0, %v7466
      %v7468 = vpop.f32.mrb[0].mxu0
      %v7469 = vadd.f32 0.0, %v7468
      %v7470 = vpop.f32.mrb[0].mxu0
      %v7471 = vpop.f32.mrb[0].mxu0
      %7472 = vdwg.mxu0
      %7473 = vmatprep.subr.bf16.mxu0 %v5118
      %7474 = vmatpush1.bf16.msra.mxu0 %v5117
      %7475 = vmatprep.subr.bf16.mxu0 %v5120
      %7476 = vmatpush1.bf16.msra.mxu0 %v5119
      %7477 = vmatprep.subr.bf16.mxu0 %v5122
      %7478 = vmatpush1.bf16.msra.mxu0 %v5121
      %7479 = vmatprep.subr.bf16.mxu0 %v5124
      %7480 = vmatpush1.bf16.msra.mxu0 %v5123
      %7481 = vmatprep.subr.bf16.mxu0 %v5126
      %7482 = vmatpush1.bf16.msra.mxu0 %v5125
      %7483 = vmatprep.subr.bf16.mxu0 %v5128
      %7484 = vmatpush1.bf16.msra.mxu0 %v5127
      %7485 = vmatprep.subr.bf16.mxu0 %v5130
      %7486 = vmatpush1.bf16.msra.mxu0 %v5129
      %7487 = vmatprep.subr.bf16.mxu0 %v5132
      %7488 = vmatpush1.bf16.msra.mxu0 %v5131
      %7489 = vmatprep.subr.bf16.mxu0 %v5134
      %7490 = vmatpush1.bf16.msra.mxu0 %v5133
      %7491 = vmatprep.subr.bf16.mxu0 %v5136
      %7492 = vmatpush1.bf16.msra.mxu0 %v5135
      %7493 = vmatprep.subr.bf16.mxu0 %v5138
      %7494 = vmatpush1.bf16.msra.mxu0 %v5137
      %7495 = vmatprep.subr.bf16.mxu0 %v5140
      %7496 = vmatpush1.bf16.msra.mxu0 %v5139
      %7497 = vmatprep.subr.bf16.mxu0 %v5142
      %7498 = vmatpush1.bf16.msra.mxu0 %v5141
      %7499 = vmatprep.subr.bf16.mxu0 %v5144
      %7500 = vmatpush1.bf16.msra.mxu0 %v5143
      %7501 = vmatprep.subr.bf16.mxu0 %v5146
      %7502 = vmatpush1.bf16.msra.mxu0 %v5145
      %7503 = vmatprep.subr.bf16.mxu0 %v5148
      %7504 = vmatpush1.bf16.msra.mxu0 %v5147
      %7505 = vmatprep.mubr.bf16.mxu0 %v4356
      %7506 = vmatmul.mubr.bf16.gmra.mrb[0].mxu0 %v4355
      %v7507 = vpop.f32.mrb[0].mxu0
      %v7508 = vadd.f32 %v7467, %v7507
      %v7509 = vpop.f32.mrb[0].mxu0
      %v7510 = vadd.f32 %v7469, %v7509
      %v7511 = vpop.f32.mrb[0].mxu0
      %v7512 = vpop.f32.mrb[0].mxu0
      %7513 = vdwg.mxu0
      %7514 = vmatprep.subr.bf16.mxu0 %v5150
      %7515 = vmatpush1.bf16.msra.mxu0 %v5149
      %7516 = vmatprep.subr.bf16.mxu0 %v5152
      %7517 = vmatpush1.bf16.msra.mxu0 %v5151
      %7518 = vmatprep.subr.bf16.mxu0 %v5154
      %7519 = vmatpush1.bf16.msra.mxu0 %v5153
      %7520 = vmatprep.subr.bf16.mxu0 %v5156
      %7521 = vmatpush1.bf16.msra.mxu0 %v5155
      %7522 = vmatprep.subr.bf16.mxu0 %v5158
      %7523 = vmatpush1.bf16.msra.mxu0 %v5157
      %7524 = vmatprep.subr.bf16.mxu0 %v5160
      %7525 = vmatpush1.bf16.msra.mxu0 %v5159
      %7526 = vmatprep.subr.bf16.mxu0 %v5162
      %7527 = vmatpush1.bf16.msra.mxu0 %v5161
      %7528 = vmatprep.subr.bf16.mxu0 %v5164
      %7529 = vmatpush1.bf16.msra.mxu0 %v5163
      %7530 = vmatprep.subr.bf16.mxu0 %v5166
      %7531 = vmatpush1.bf16.msra.mxu0 %v5165
      %7532 = vmatprep.subr.bf16.mxu0 %v5168
      %7533 = vmatpush1.bf16.msra.mxu0 %v5167
      %7534 = vmatprep.subr.bf16.mxu0 %v5170
      %7535 = vmatpush1.bf16.msra.mxu0 %v5169
      %7536 = vmatprep.subr.bf16.mxu0 %v5172
      %7537 = vmatpush1.bf16.msra.mxu0 %v5171
      %7538 = vmatprep.subr.bf16.mxu0 %v5174
      %7539 = vmatpush1.bf16.msra.mxu0 %v5173
      %7540 = vmatprep.subr.bf16.mxu0 %v5176
      %7541 = vmatpush1.bf16.msra.mxu0 %v5175
      %7542 = vmatprep.subr.bf16.mxu0 %v5178
      %7543 = vmatpush1.bf16.msra.mxu0 %v5177
      %7544 = vmatprep.subr.bf16.mxu0 %v5180
      %7545 = vmatpush1.bf16.msra.mxu0 %v5179
      %7546 = vmatprep.mubr.bf16.mxu0 %v4358
      %7547 = vmatmul.mubr.bf16.gmra.mrb[0].mxu0 %v4357
      %v7548 = vpop.f32.mrb[0].mxu0
      %v7549 = vadd.f32 %v7508, %v7548
      %v7550 = vpop.f32.mrb[0].mxu0
      %v7551 = vadd.f32 %v7510, %v7550
      %v7552 = vpop.f32.mrb[0].mxu0
      %v7553 = vpop.f32.mrb[0].mxu0
      %7554 = vdwg.mxu0
      %7555 = vmatprep.subr.bf16.mxu0 %v5182
      %7556 = vmatpush1.bf16.msra.mxu0 %v5181
      %7557 = vmatprep.subr.bf16.mxu0 %v5184
      %7558 = vmatpush1.bf16.msra.mxu0 %v5183
      %7559 = vmatprep.subr.bf16.mxu0 %v5186
      %7560 = vmatpush1.bf16.msra.mxu0 %v5185
      %7561 = vmatprep.subr.bf16.mxu0 %v5188
      %7562 = vmatpush1.bf16.msra.mxu0 %v5187
      %7563 = vmatprep.subr.bf16.mxu0 %v5190
      %7564 = vmatpush1.bf16.msra.mxu0 %v5189
      %7565 = vmatprep.subr.bf16.mxu0 %v5192
      %7566 = vmatpush1.bf16.msra.mxu0 %v5191
      %7567 = vmatprep.subr.bf16.mxu0 %v5194
      %7568 = vmatpush1.bf16.msra.mxu0 %v5193
      %7569 = vmatprep.subr.bf16.mxu0 %v5196
      %7570 = vmatpush1.bf16.msra.mxu0 %v5195
      %7571 = vmatprep.subr.bf16.mxu0 %v5198
      %7572 = vmatpush1.bf16.msra.mxu0 %v5197
      %7573 = vmatprep.subr.bf16.mxu0 %v5200
      %7574 = vmatpush1.bf16.msra.mxu0 %v5199
      %7575 = vmatprep.subr.bf16.mxu0 %v5202
      %7576 = vmatpush1.bf16.msra.mxu0 %v5201
      %7577 = vmatprep.subr.bf16.mxu0 %v5204
      %7578 = vmatpush1.bf16.msra.mxu0 %v5203
      %7579 = vmatprep.subr.bf16.mxu0 %v5206
      %7580 = vmatpush1.bf16.msra.mxu0 %v5205
      %7581 = vmatprep.subr.bf16.mxu0 %v5208
      %7582 = vmatpush1.bf16.msra.mxu0 %v5207
      %7583 = vmatprep.subr.bf16.mxu0 %v5210
      %7584 = vmatpush1.bf16.msra.mxu0 %v5209
      %7585 = vmatprep.subr.bf16.mxu0 %v5212
      %7586 = vmatpush1.bf16.msra.mxu0 %v5211
      %7587 = vmatprep.mubr.bf16.mxu0 %v4360
      %7588 = vmatmul.mubr.bf16.gmra.mrb[0].mxu0 %v4359
      %v7589 = vpop.f32.mrb[0].mxu0
      %v7590 = vadd.f32 %v7549, %v7589
      %v7591 = vpop.f32.mrb[0].mxu0
      %v7592 = vadd.f32 %v7551, %v7591
      %v7593 = vpop.f32.mrb[0].mxu0
      %v7594 = vpop.f32.mrb[0].mxu0
      %7595 = vdwg.mxu0
      %7596 = vmatprep.subr.bf16.mxu0 %v5214
      %7597 = vmatpush1.bf16.msra.mxu0 %v5213
      %7598 = vmatprep.subr.bf16.mxu0 %v5216
      %7599 = vmatpush1.bf16.msra.mxu0 %v5215
      %7600 = vmatprep.subr.bf16.mxu0 %v5218
      %7601 = vmatpush1.bf16.msra.mxu0 %v5217
      %7602 = vmatprep.subr.bf16.mxu0 %v5220
      %7603 = vmatpush1.bf16.msra.mxu0 %v5219
      %7604 = vmatprep.subr.bf16.mxu0 %v5222
      %7605 = vmatpush1.bf16.msra.mxu0 %v5221
      %7606 = vmatprep.subr.bf16.mxu0 %v5224
      %7607 = vmatpush1.bf16.msra.mxu0 %v5223
      %7608 = vmatprep.subr.bf16.mxu0 %v5226
      %7609 = vmatpush1.bf16.msra.mxu0 %v5225
      %7610 = vmatprep.subr.bf16.mxu0 %v5228
      %7611 = vmatpush1.bf16.msra.mxu0 %v5227
      %7612 = vmatprep.subr.bf16.mxu0 %v5230
      %7613 = vmatpush1.bf16.msra.mxu0 %v5229
      %7614 = vmatprep.subr.bf16.mxu0 %v5232
      %7615 = vmatpush1.bf16.msra.mxu0 %v5231
      %7616 = vmatprep.subr.bf16.mxu0 %v5234
      %7617 = vmatpush1.bf16.msra.mxu0 %v5233
      %7618 = vmatprep.subr.bf16.mxu0 %v5236
      %7619 = vmatpush1.bf16.msra.mxu0 %v5235
      %7620 = vmatprep.subr.bf16.mxu0 %v5238
      %7621 = vmatpush1.bf16.msra.mxu0 %v5237
      %7622 = vmatprep.subr.bf16.mxu0 %v5240
      %7623 = vmatpush1.bf16.msra.mxu0 %v5239
      %7624 = vmatprep.subr.bf16.mxu0 %v5242
      %7625 = vmatpush1.bf16.msra.mxu0 %v5241
      %7626 = vmatprep.subr.bf16.mxu0 %v5244
      %7627 = vmatpush1.bf16.msra.mxu0 %v5243
      %7628 = vmatprep.mubr.bf16.mxu0 %v4362
      %7629 = vmatmul.mubr.bf16.gmra.mrb[0].mxu0 %v4361
      %v7630 = vpop.f32.mrb[0].mxu0
      %v7631 = vadd.f32 %v7590, %v7630
      %v7632 = vpop.f32.mrb[0].mxu0
      %v7633 = vadd.f32 %v7592, %v7632
      %v7634 = vpop.f32.mrb[0].mxu0
      %v7635 = vpop.f32.mrb[0].mxu0
      %7636 = vdwg.mxu0
      %7637 = vmatprep.subr.bf16.mxu0 %v5246
      %7638 = vmatpush1.bf16.msra.mxu0 %v5245
      %7639 = vmatprep.subr.bf16.mxu0 %v5248
      %7640 = vmatpush1.bf16.msra.mxu0 %v5247
      %7641 = vmatprep.subr.bf16.mxu0 %v5250
      %7642 = vmatpush1.bf16.msra.mxu0 %v5249
      %7643 = vmatprep.subr.bf16.mxu0 %v5252
      %7644 = vmatpush1.bf16.msra.mxu0 %v5251
      %7645 = vmatprep.subr.bf16.mxu0 %v5254
      %7646 = vmatpush1.bf16.msra.mxu0 %v5253
      %7647 = vmatprep.subr.bf16.mxu0 %v5256
      %7648 = vmatpush1.bf16.msra.mxu0 %v5255
      %7649 = vmatprep.subr.bf16.mxu0 %v5258
      %7650 = vmatpush1.bf16.msra.mxu0 %v5257
      %7651 = vmatprep.subr.bf16.mxu0 %v5260
      %7652 = vmatpush1.bf16.msra.mxu0 %v5259
      %7653 = vmatprep.subr.bf16.mxu0 %v5262
      %7654 = vmatpush1.bf16.msra.mxu0 %v5261
      %7655 = vmatprep.subr.bf16.mxu0 %v5264
      %7656 = vmatpush1.bf16.msra.mxu0 %v5263
      %7657 = vmatprep.subr.bf16.mxu0 %v5266
      %7658 = vmatpush1.bf16.msra.mxu0 %v5265
      %7659 = vmatprep.subr.bf16.mxu0 %v5268
      %7660 = vmatpush1.bf16.msra.mxu0 %v5267
      %7661 = vmatprep.subr.bf16.mxu0 %v5270
      %7662 = vmatpush1.bf16.msra.mxu0 %v5269
      %7663 = vmatprep.subr.bf16.mxu0 %v5272
      %7664 = vmatpush1.bf16.msra.mxu0 %v5271
      %7665 = vmatprep.subr.bf16.mxu0 %v5274
      %7666 = vmatpush1.bf16.msra.mxu0 %v5273
      %7667 = vmatprep.subr.bf16.mxu0 %v5276
      %7668 = vmatpush1.bf16.msra.mxu0 %v5275
      %7669 = vmatprep.mubr.bf16.mxu0 %v4364
      %7670 = vmatmul.mubr.bf16.gmra.mrb[0].mxu0 %v4363
      %v7671 = vpop.f32.mrb[0].mxu0
      %v7672 = vadd.f32 %v7631, %v7671
      %v7673 = vpop.f32.mrb[0].mxu0
      %v7674 = vadd.f32 %v7633, %v7673
      %v7675 = vpop.f32.mrb[0].mxu0
      %v7676 = vpop.f32.mrb[0].mxu0
      %7677 = vdwg.mxu0
      %7678 = vmatprep.subr.bf16.mxu0 %v5278
      %7679 = vmatpush1.bf16.msra.mxu0 %v5277
      %7680 = vmatprep.subr.bf16.mxu0 %v5280
      %7681 = vmatpush1.bf16.msra.mxu0 %v5279
      %7682 = vmatprep.subr.bf16.mxu0 %v5282
      %7683 = vmatpush1.bf16.msra.mxu0 %v5281
      %7684 = vmatprep.subr.bf16.mxu0 %v5284
      %7685 = vmatpush1.bf16.msra.mxu0 %v5283
      %7686 = vmatprep.subr.bf16.mxu0 %v5286
      %7687 = vmatpush1.bf16.msra.mxu0 %v5285
      %7688 = vmatprep.subr.bf16.mxu0 %v5288
      %7689 = vmatpush1.bf16.msra.mxu0 %v5287
      %7690 = vmatprep.subr.bf16.mxu0 %v5290
      %7691 = vmatpush1.bf16.msra.mxu0 %v5289
      %7692 = vmatprep.subr.bf16.mxu0 %v5292
      %7693 = vmatpush1.bf16.msra.mxu0 %v5291
      %7694 = vmatprep.subr.bf16.mxu0 %v5294
      %7695 = vmatpush1.bf16.msra.mxu0 %v5293
      %7696 = vmatprep.subr.bf16.mxu0 %v5296
      %7697 = vmatpush1.bf16.msra.mxu0 %v5295
      %7698 = vmatprep.subr.bf16.mxu0 %v5298
      %7699 = vmatpush1.bf16.msra.mxu0 %v5297
      %7700 = vmatprep.subr.bf16.mxu0 %v5300
      %7701 = vmatpush1.bf16.msra.mxu0 %v5299
      %7702 = vmatprep.subr.bf16.mxu0 %v5302
      %7703 = vmatpush1.bf16.msra.mxu0 %v5301
      %7704 = vmatprep.subr.bf16.mxu0 %v5304
      %7705 = vmatpush1.bf16.msra.mxu0 %v5303
      %7706 = vmatprep.subr.bf16.mxu0 %v5306
      %7707 = vmatpush1.bf16.msra.mxu0 %v5305
      %7708 = vmatprep.subr.bf16.mxu0 %v5308
      %7709 = vmatpush1.bf16.msra.mxu0 %v5307
      %7710 = vmatprep.mubr.bf16.mxu0 %v7430
      %7711 = vmatmul.mubr.bf16.gmra.mrb[0].mxu0 %v7429
      %v7712 = vpop.f32.mrb[0].mxu0
      %v7713 = vadd.f32 %v7672, %v7712
      %v7714 = vpop.f32.mrb[0].mxu0
      %v7715 = vadd.f32 %v7674, %v7714
      %v7716 = vpop.f32.mrb[0].mxu0
      %v7717 = vpop.f32.mrb[0].mxu0
      %7718 = vdwg.mxu0
      %7719 = vmatprep.subr.bf16.mxu0 %v5310
      %7720 = vmatpush1.bf16.msra.mxu0 %v5309
      %7721 = vmatprep.subr.bf16.mxu0 %v5312
      %7722 = vmatpush1.bf16.msra.mxu0 %v5311
      %7723 = vmatprep.subr.bf16.mxu0 %v5314
      %7724 = vmatpush1.bf16.msra.mxu0 %v5313
      %7725 = vmatprep.subr.bf16.mxu0 %v5316
      %7726 = vmatpush1.bf16.msra.mxu0 %v5315
      %7727 = vmatprep.subr.bf16.mxu0 %v5318
      %7728 = vmatpush1.bf16.msra.mxu0 %v5317
      %7729 = vmatprep.subr.bf16.mxu0 %v5320
      %7730 = vmatpush1.bf16.msra.mxu0 %v5319
      %7731 = vmatprep.subr.bf16.mxu0 %v5322
      %7732 = vmatpush1.bf16.msra.mxu0 %v5321
      %7733 = vmatprep.subr.bf16.mxu0 %v5324
      %7734 = vmatpush1.bf16.msra.mxu0 %v5323
      %7735 = vmatprep.subr.bf16.mxu0 0
      %7736 = vmatpush1.bf16.msra.mxu0 0
      %7737 = vmatprep.subr.bf16.mxu0 0
      %7738 = vmatpush1.bf16.msra.mxu0 0
      %7739 = vmatprep.subr.bf16.mxu0 0
      %7740 = vmatpush1.bf16.msra.mxu0 0
      %7741 = vmatprep.subr.bf16.mxu0 0
      %7742 = vmatpush1.bf16.msra.mxu0 0
      %7743 = vmatprep.subr.bf16.mxu0 0
      %7744 = vmatpush1.bf16.msra.mxu0 0
      %7745 = vmatprep.subr.bf16.mxu0 0
      %7746 = vmatpush1.bf16.msra.mxu0 0
      %7747 = vmatprep.subr.bf16.mxu0 0
      %7748 = vmatpush1.bf16.msra.mxu0 0
      %7749 = vmatprep.subr.bf16.mxu0 0
      %7750 = vmatpush1.bf16.msra.mxu0 0
      %7751 = vmatprep.mubr.bf16.mxu0 0
      %7752 = vmatmul.mubr.bf16.gmra.mrb[0].mxu0 %v7431
      %v7753 = vpop.f32.mrb[0].mxu0
      %v7754 = vadd.f32 %v7713, %v7753
      %v7755 = vpop.f32.mrb[0].mxu0
      %v7756 = vadd.f32 %v7715, %v7755
      %v7757 = vpop.f32.mrb[0].mxu0
      %v7758 = vpop.f32.mrb[0].mxu0
      %7759 = vdwg.mxu0
      %v7760 = vmax.f32 %v7421, %v7754
      %v7761 = vmax.f32 %v7422, %v7756
      %7762 = vmatprep.subr.bf16.mxu0 %v6614
      %7763 = vmatpush1.bf16.msra.mxu0 %v6613
      %7764 = vmatprep.subr.bf16.mxu0 %v6616
      %7765 = vmatpush1.bf16.msra.mxu0 %v6615
      %7766 = vmatprep.subr.bf16.mxu0 %v6618
      %7767 = vmatpush1.bf16.msra.mxu0 %v6617
      %7768 = vmatprep.subr.bf16.mxu0 %v6620
      %7769 = vmatpush1.bf16.msra.mxu0 %v6619
      %7770 = vmatprep.subr.bf16.mxu0 %v6622
      %7771 = vmatpush1.bf16.msra.mxu0 %v6621
      %7772 = vmatprep.subr.bf16.mxu0 %v6624
      %7773 = vmatpush1.bf16.msra.mxu0 %v6623
      %7774 = vmatprep.subr.bf16.mxu0 %v6626
      %7775 = vmatpush1.bf16.msra.mxu0 %v6625
      %7776 = vmatprep.subr.bf16.mxu0 %v6628
      %7777 = vmatpush1.bf16.msra.mxu0 %v6627
      %7778 = vmatprep.subr.bf16.mxu0 %v6630
      %7779 = vmatpush1.bf16.msra.mxu0 %v6629
      %7780 = vmatprep.subr.bf16.mxu0 %v6632
      %7781 = vmatpush1.bf16.msra.mxu0 %v6631
      %7782 = vmatprep.subr.bf16.mxu0 %v6634
      %7783 = vmatpush1.bf16.msra.mxu0 %v6633
      %7784 = vmatprep.subr.bf16.mxu0 %v6636
      %7785 = vmatpush1.bf16.msra.mxu0 %v6635
      %7786 = vmatprep.subr.bf16.mxu0 %v6638
      %7787 = vmatpush1.bf16.msra.mxu0 %v6637
      %7788 = vmatprep.subr.bf16.mxu0 %v6640
      %7789 = vmatpush1.bf16.msra.mxu0 %v6639
      %7790 = vmatprep.subr.bf16.mxu0 %v6642
      %7791 = vmatpush1.bf16.msra.mxu0 %v6641
      %7792 = vmatprep.subr.bf16.mxu0 %v6644
      %7793 = vmatpush1.bf16.msra.mxu0 %v6643
      %7794 = vmatprep.mubr.bf16.mxu0 %v4354
      %7795 = vmatmul.mubr.bf16.gmra.mrb[0].mxu0 %v4353
      %v7796 = vpop.f32.mrb[0].mxu0
      %v7797 = vadd.f32 0.0, %v7796
      %v7798 = vpop.f32.mrb[0].mxu0
      %v7799 = vadd.f32 0.0, %v7798
      %v7800 = vpop.f32.mrb[0].mxu0
      %v7801 = vpop.f32.mrb[0].mxu0
      %7802 = vdwg.mxu0
      %7803 = vmatprep.subr.bf16.mxu0 %v6646
      %7804 = vmatpush1.bf16.msra.mxu0 %v6645
      %7805 = vmatprep.subr.bf16.mxu0 %v6648
      %7806 = vmatpush1.bf16.msra.mxu0 %v6647
      %7807 = vmatprep.subr.bf16.mxu0 %v6650
      %7808 = vmatpush1.bf16.msra.mxu0 %v6649
      %7809 = vmatprep.subr.bf16.mxu0 %v6652
      %7810 = vmatpush1.bf16.msra.mxu0 %v6651
      %7811 = vmatprep.subr.bf16.mxu0 %v6654
      %7812 = vmatpush1.bf16.msra.mxu0 %v6653
      %7813 = vmatprep.subr.bf16.mxu0 %v6656
      %7814 = vmatpush1.bf16.msra.mxu0 %v6655
      %7815 = vmatprep.subr.bf16.mxu0 %v6658
      %7816 = vmatpush1.bf16.msra.mxu0 %v6657
      %7817 = vmatprep.subr.bf16.mxu0 %v6660
      %7818 = vmatpush1.bf16.msra.mxu0 %v6659
      %7819 = vmatprep.subr.bf16.mxu0 %v6662
      %7820 = vmatpush1.bf16.msra.mxu0 %v6661
      %7821 = vmatprep.subr.bf16.mxu0 %v6664
      %7822 = vmatpush1.bf16.msra.mxu0 %v6663
      %7823 = vmatprep.subr.bf16.mxu0 %v6666
      %7824 = vmatpush1.bf16.msra.mxu0 %v6665
      %7825 = vmatprep.subr.bf16.mxu0 %v6668
      %7826 = vmatpush1.bf16.msra.mxu0 %v6667
      %7827 = vmatprep.subr.bf16.mxu0 %v6670
      %7828 = vmatpush1.bf16.msra.mxu0 %v6669
      %7829 = vmatprep.subr.bf16.mxu0 %v6672
      %7830 = vmatpush1.bf16.msra.mxu0 %v6671
      %7831 = vmatprep.subr.bf16.mxu0 %v6674
      %7832 = vmatpush1.bf16.msra.mxu0 %v6673
      %7833 = vmatprep.subr.bf16.mxu0 %v6676
      %7834 = vmatpush1.bf16.msra.mxu0 %v6675
      %7835 = vmatprep.mubr.bf16.mxu0 %v4356
      %7836 = vmatmul.mubr.bf16.gmra.mrb[0].mxu0 %v4355
      %v7837 = vpop.f32.mrb[0].mxu0
      %v7838 = vadd.f32 %v7797, %v7837
      %v7839 = vpop.f32.mrb[0].mxu0
      %v7840 = vadd.f32 %v7799, %v7839
      %v7841 = vpop.f32.mrb[0].mxu0
      %v7842 = vpop.f32.mrb[0].mxu0
      %7843 = vdwg.mxu0
      %7844 = vmatprep.subr.bf16.mxu0 %v6678
      %7845 = vmatpush1.bf16.msra.mxu0 %v6677
      %7846 = vmatprep.subr.bf16.mxu0 %v6680
      %7847 = vmatpush1.bf16.msra.mxu0 %v6679
      %7848 = vmatprep.subr.bf16.mxu0 %v6682
      %7849 = vmatpush1.bf16.msra.mxu0 %v6681
      %7850 = vmatprep.subr.bf16.mxu0 %v6684
      %7851 = vmatpush1.bf16.msra.mxu0 %v6683
      %7852 = vmatprep.subr.bf16.mxu0 %v6686
      %7853 = vmatpush1.bf16.msra.mxu0 %v6685
      %7854 = vmatprep.subr.bf16.mxu0 %v6688
      %7855 = vmatpush1.bf16.msra.mxu0 %v6687
      %7856 = vmatprep.subr.bf16.mxu0 %v6690
      %7857 = vmatpush1.bf16.msra.mxu0 %v6689
      %7858 = vmatprep.subr.bf16.mxu0 %v6692
      %7859 = vmatpush1.bf16.msra.mxu0 %v6691
      %7860 = vmatprep.subr.bf16.mxu0 %v6694
      %7861 = vmatpush1.bf16.msra.mxu0 %v6693
      %7862 = vmatprep.subr.bf16.mxu0 %v6696
      %7863 = vmatpush1.bf16.msra.mxu0 %v6695
      %7864 = vmatprep.subr.bf16.mxu0 %v6698
      %7865 = vmatpush1.bf16.msra.mxu0 %v6697
      %7866 = vmatprep.subr.bf16.mxu0 %v6700
      %7867 = vmatpush1.bf16.msra.mxu0 %v6699
      %7868 = vmatprep.subr.bf16.mxu0 %v6702
      %7869 = vmatpush1.bf16.msra.mxu0 %v6701
      %7870 = vmatprep.subr.bf16.mxu0 %v6704
      %7871 = vmatpush1.bf16.msra.mxu0 %v6703
      %7872 = vmatprep.subr.bf16.mxu0 %v6706
      %7873 = vmatpush1.bf16.msra.mxu0 %v6705
      %7874 = vmatprep.subr.bf16.mxu0 %v6708
      %7875 = vmatpush1.bf16.msra.mxu0 %v6707
      %7876 = vmatprep.mubr.bf16.mxu0 %v4358
      %7877 = vmatmul.mubr.bf16.gmra.mrb[0].mxu0 %v4357
      %v7878 = vpop.f32.mrb[0].mxu0
      %v7879 = vadd.f32 %v7838, %v7878
      %v7880 = vpop.f32.mrb[0].mxu0
      %v7881 = vadd.f32 %v7840, %v7880
      %v7882 = vpop.f32.mrb[0].mxu0
      %v7883 = vpop.f32.mrb[0].mxu0
      %7884 = vdwg.mxu0
      %7885 = vmatprep.subr.bf16.mxu0 %v6710
      %7886 = vmatpush1.bf16.msra.mxu0 %v6709
      %7887 = vmatprep.subr.bf16.mxu0 %v6712
      %7888 = vmatpush1.bf16.msra.mxu0 %v6711
      %7889 = vmatprep.subr.bf16.mxu0 %v6714
      %7890 = vmatpush1.bf16.msra.mxu0 %v6713
      %7891 = vmatprep.subr.bf16.mxu0 %v6716
      %7892 = vmatpush1.bf16.msra.mxu0 %v6715
      %7893 = vmatprep.subr.bf16.mxu0 %v6718
      %7894 = vmatpush1.bf16.msra.mxu0 %v6717
      %7895 = vmatprep.subr.bf16.mxu0 %v6720
      %7896 = vmatpush1.bf16.msra.mxu0 %v6719
      %7897 = vmatprep.subr.bf16.mxu0 %v6722
      %7898 = vmatpush1.bf16.msra.mxu0 %v6721
      %7899 = vmatprep.subr.bf16.mxu0 %v6724
      %7900 = vmatpush1.bf16.msra.mxu0 %v6723
      %7901 = vmatprep.subr.bf16.mxu0 %v6726
      %7902 = vmatpush1.bf16.msra.mxu0 %v6725
      %7903 = vmatprep.subr.bf16.mxu0 %v6728
      %7904 = vmatpush1.bf16.msra.mxu0 %v6727
      %7905 = vmatprep.subr.bf16.mxu0 %v6730
      %7906 = vmatpush1.bf16.msra.mxu0 %v6729
      %7907 = vmatprep.subr.bf16.mxu0 %v6732
      %7908 = vmatpush1.bf16.msra.mxu0 %v6731
      %7909 = vmatprep.subr.bf16.mxu0 %v6734
      %7910 = vmatpush1.bf16.msra.mxu0 %v6733
      %7911 = vmatprep.subr.bf16.mxu0 %v6736
      %7912 = vmatpush1.bf16.msra.mxu0 %v6735
      %7913 = vmatprep.subr.bf16.mxu0 %v6738
      %7914 = vmatpush1.bf16.msra.mxu0 %v6737
      %7915 = vmatprep.subr.bf16.mxu0 %v6740
      %7916 = vmatpush1.bf16.msra.mxu0 %v6739
      %7917 = vmatprep.mubr.bf16.mxu0 %v4360
      %7918 = vmatmul.mubr.bf16.gmra.mrb[0].mxu0 %v4359
      %v7919 = vpop.f32.mrb[0].mxu0
      %v7920 = vadd.f32 %v7879, %v7919
      %v7921 = vpop.f32.mrb[0].mxu0
      %v7922 = vadd.f32 %v7881, %v7921
      %v7923 = vpop.f32.mrb[0].mxu0
      %v7924 = vpop.f32.mrb[0].mxu0
      %7925 = vdwg.mxu0
      %7926 = vmatprep.subr.bf16.mxu0 %v6742
      %7927 = vmatpush1.bf16.msra.mxu0 %v6741
      %7928 = vmatprep.subr.bf16.mxu0 %v6744
      %7929 = vmatpush1.bf16.msra.mxu0 %v6743
      %7930 = vmatprep.subr.bf16.mxu0 %v6746
      %7931 = vmatpush1.bf16.msra.mxu0 %v6745
      %7932 = vmatprep.subr.bf16.mxu0 %v6748
      %7933 = vmatpush1.bf16.msra.mxu0 %v6747
      %7934 = vmatprep.subr.bf16.mxu0 %v6750
      %7935 = vmatpush1.bf16.msra.mxu0 %v6749
      %7936 = vmatprep.subr.bf16.mxu0 %v6752
      %7937 = vmatpush1.bf16.msra.mxu0 %v6751
      %7938 = vmatprep.subr.bf16.mxu0 %v6754
      %7939 = vmatpush1.bf16.msra.mxu0 %v6753
      %7940 = vmatprep.subr.bf16.mxu0 %v6756
      %7941 = vmatpush1.bf16.msra.mxu0 %v6755
      %7942 = vmatprep.subr.bf16.mxu0 %v6758
      %7943 = vmatpush1.bf16.msra.mxu0 %v6757
      %7944 = vmatprep.subr.bf16.mxu0 %v6760
      %7945 = vmatpush1.bf16.msra.mxu0 %v6759
      %7946 = vmatprep.subr.bf16.mxu0 %v6762
      %7947 = vmatpush1.bf16.msra.mxu0 %v6761
      %7948 = vmatprep.subr.bf16.mxu0 %v6764
      %7949 = vmatpush1.bf16.msra.mxu0 %v6763
      %7950 = vmatprep.subr.bf16.mxu0 %v6766
      %7951 = vmatpush1.bf16.msra.mxu0 %v6765
      %7952 = vmatprep.subr.bf16.mxu0 %v6768
      %7953 = vmatpush1.bf16.msra.mxu0 %v6767
      %7954 = vmatprep.subr.bf16.mxu0 %v6770
      %7955 = vmatpush1.bf16.msra.mxu0 %v6769
      %7956 = vmatprep.subr.bf16.mxu0 %v6772
      %7957 = vmatpush1.bf16.msra.mxu0 %v6771
      %7958 = vmatprep.mubr.bf16.mxu0 %v4362
      %7959 = vmatmul.mubr.bf16.gmra.mrb[0].mxu0 %v4361
      %v7960 = vpop.f32.mrb[0].mxu0
      %v7961 = vadd.f32 %v7920, %v7960
      %v7962 = vpop.f32.mrb[0].mxu0
      %v7963 = vadd.f32 %v7922, %v7962
      %v7964 = vpop.f32.mrb[0].mxu0
      %v7965 = vpop.f32.mrb[0].mxu0
      %7966 = vdwg.mxu0
      %7967 = vmatprep.subr.bf16.mxu0 %v6774
      %7968 = vmatpush1.bf16.msra.mxu0 %v6773
      %7969 = vmatprep.subr.bf16.mxu0 %v6776
      %7970 = vmatpush1.bf16.msra.mxu0 %v6775
      %7971 = vmatprep.subr.bf16.mxu0 %v6778
      %7972 = vmatpush1.bf16.msra.mxu0 %v6777
      %7973 = vmatprep.subr.bf16.mxu0 %v6780
      %7974 = vmatpush1.bf16.msra.mxu0 %v6779
      %7975 = vmatprep.subr.bf16.mxu0 %v6782
      %7976 = vmatpush1.bf16.msra.mxu0 %v6781
      %7977 = vmatprep.subr.bf16.mxu0 %v6784
      %7978 = vmatpush1.bf16.msra.mxu0 %v6783
      %7979 = vmatprep.subr.bf16.mxu0 %v6786
      %7980 = vmatpush1.bf16.msra.mxu0 %v6785
      %7981 = vmatprep.subr.bf16.mxu0 %v6788
      %7982 = vmatpush1.bf16.msra.mxu0 %v6787
      %7983 = vmatprep.subr.bf16.mxu0 %v6790
      %7984 = vmatpush1.bf16.msra.mxu0 %v6789
      %7985 = vmatprep.subr.bf16.mxu0 %v6792
      %7986 = vmatpush1.bf16.msra.mxu0 %v6791
      %7987 = vmatprep.subr.bf16.mxu0 %v6794
      %7988 = vmatpush1.bf16.msra.mxu0 %v6793
      %7989 = vmatprep.subr.bf16.mxu0 %v6796
      %7990 = vmatpush1.bf16.msra.mxu0 %v6795
      %7991 = vmatprep.subr.bf16.mxu0 %v6798
      %7992 = vmatpush1.bf16.msra.mxu0 %v6797
      %7993 = vmatprep.subr.bf16.mxu0 %v6800
      %7994 = vmatpush1.bf16.msra.mxu0 %v6799
      %7995 = vmatprep.subr.bf16.mxu0 %v6802
      %7996 = vmatpush1.bf16.msra.mxu0 %v6801
      %7997 = vmatprep.subr.bf16.mxu0 %v6804
      %7998 = vmatpush1.bf16.msra.mxu0 %v6803
      %7999 = vmatprep.mubr.bf16.mxu0 %v4364
      %8000 = vmatmul.mubr.bf16.gmra.mrb[0].mxu0 %v4363
      %v8001 = vpop.f32.mrb[0].mxu0
      %v8002 = vadd.f32 %v7961, %v8001
      %v8003 = vpop.f32.mrb[0].mxu0
      %v8004 = vadd.f32 %v7963, %v8003
      %v8005 = vpop.f32.mrb[0].mxu0
      %v8006 = vpop.f32.mrb[0].mxu0
      %8007 = vdwg.mxu0
      %8008 = vmatprep.subr.bf16.mxu0 %v6806
      %8009 = vmatpush1.bf16.msra.mxu0 %v6805
      %8010 = vmatprep.subr.bf16.mxu0 %v6808
      %8011 = vmatpush1.bf16.msra.mxu0 %v6807
      %8012 = vmatprep.subr.bf16.mxu0 %v6810
      %8013 = vmatpush1.bf16.msra.mxu0 %v6809
      %8014 = vmatprep.subr.bf16.mxu0 %v6812
      %8015 = vmatpush1.bf16.msra.mxu0 %v6811
      %8016 = vmatprep.subr.bf16.mxu0 %v6814
      %8017 = vmatpush1.bf16.msra.mxu0 %v6813
      %8018 = vmatprep.subr.bf16.mxu0 %v6816
      %8019 = vmatpush1.bf16.msra.mxu0 %v6815
      %8020 = vmatprep.subr.bf16.mxu0 %v6818
      %8021 = vmatpush1.bf16.msra.mxu0 %v6817
      %8022 = vmatprep.subr.bf16.mxu0 %v6820
      %8023 = vmatpush1.bf16.msra.mxu0 %v6819
      %8024 = vmatprep.subr.bf16.mxu0 %v6822
      %8025 = vmatpush1.bf16.msra.mxu0 %v6821
      %8026 = vmatprep.subr.bf16.mxu0 %v6824
      %8027 = vmatpush1.bf16.msra.mxu0 %v6823
      %8028 = vmatprep.subr.bf16.mxu0 %v6826
      %8029 = vmatpush1.bf16.msra.mxu0 %v6825
      %8030 = vmatprep.subr.bf16.mxu0 %v6828
      %8031 = vmatpush1.bf16.msra.mxu0 %v6827
      %8032 = vmatprep.subr.bf16.mxu0 %v6830
      %8033 = vmatpush1.bf16.msra.mxu0 %v6829
      %8034 = vmatprep.subr.bf16.mxu0 %v6832
      %8035 = vmatpush1.bf16.msra.mxu0 %v6831
      %8036 = vmatprep.subr.bf16.mxu0 %v6834
      %8037 = vmatpush1.bf16.msra.mxu0 %v6833
      %8038 = vmatprep.subr.bf16.mxu0 %v6836
      %8039 = vmatpush1.bf16.msra.mxu0 %v6835
      %8040 = vmatprep.mubr.bf16.mxu0 %v7430
      %8041 = vmatmul.mubr.bf16.gmra.mrb[0].mxu0 %v7429
      %v8042 = vpop.f32.mrb[0].mxu0
      %v8043 = vadd.f32 %v8002, %v8042
      %v8044 = vpop.f32.mrb[0].mxu0
      %v8045 = vadd.f32 %v8004, %v8044
      %v8046 = vpop.f32.mrb[0].mxu0
      %v8047 = vpop.f32.mrb[0].mxu0
      %8048 = vdwg.mxu0
      %8049 = vmatprep.subr.bf16.mxu0 %v6838
      %8050 = vmatpush1.bf16.msra.mxu0 %v6837
      %8051 = vmatprep.subr.bf16.mxu0 %v6840
      %8052 = vmatpush1.bf16.msra.mxu0 %v6839
      %8053 = vmatprep.subr.bf16.mxu0 %v6842
      %8054 = vmatpush1.bf16.msra.mxu0 %v6841
      %8055 = vmatprep.subr.bf16.mxu0 %v6844
      %8056 = vmatpush1.bf16.msra.mxu0 %v6843
      %8057 = vmatprep.subr.bf16.mxu0 %v6846
      %8058 = vmatpush1.bf16.msra.mxu0 %v6845
      %8059 = vmatprep.subr.bf16.mxu0 %v6848
      %8060 = vmatpush1.bf16.msra.mxu0 %v6847
      %8061 = vmatprep.subr.bf16.mxu0 %v6850
      %8062 = vmatpush1.bf16.msra.mxu0 %v6849
      %8063 = vmatprep.subr.bf16.mxu0 %v6852
      %8064 = vmatpush1.bf16.msra.mxu0 %v6851
      %8065 = vmatprep.subr.bf16.mxu0 0
      %8066 = vmatpush1.bf16.msra.mxu0 0
      %8067 = vmatprep.subr.bf16.mxu0 0
      %8068 = vmatpush1.bf16.msra.mxu0 0
      %8069 = vmatprep.subr.bf16.mxu0 0
      %8070 = vmatpush1.bf16.msra.mxu0 0
      %8071 = vmatprep.subr.bf16.mxu0 0
      %8072 = vmatpush1.bf16.msra.mxu0 0
      %8073 = vmatprep.subr.bf16.mxu0 0
      %8074 = vmatpush1.bf16.msra.mxu0 0
      %8075 = vmatprep.subr.bf16.mxu0 0
      %8076 = vmatpush1.bf16.msra.mxu0 0
      %8077 = vmatprep.subr.bf16.mxu0 0
      %8078 = vmatpush1.bf16.msra.mxu0 0
      %8079 = vmatprep.subr.bf16.mxu0 0
      %8080 = vmatpush1.bf16.msra.mxu0 0
      %8081 = vmatprep.mubr.bf16.mxu0 0
      %8082 = vmatmul.mubr.bf16.gmra.mrb[0].mxu0 %v7431
      %v8083 = vpop.f32.mrb[0].mxu0
      %v8084 = vadd.f32 %v8043, %v8083
      %v8085 = vpop.f32.mrb[0].mxu0
      %v8086 = vadd.f32 %v8045, %v8085
      %v8087 = vpop.f32.mrb[0].mxu0
      %v8088 = vpop.f32.mrb[0].mxu0
      %8089 = vdwg.mxu0
      %v8090 = vmax.f32 %v7760, %v8084
      %v8091 = vmax.f32 %v7761, %v8086
      %v8092 = vld [vmem:[%s4] sm:$0x3]
      %v8094 = vlaneseq
      %v8095 = vshrl.u32 %v8094, 7
      %v8096 = vsub.s32 0, %v8095
      %v8097 = vrot.slane %v8092, %v8096
      %v8098 = vlaneseq
      %v8099 = vshrl.u32 %v8098, 7
      %v8100 = vsub.s32 1, %v8099
      %v8101 = vrot.slane %v8092, %v8100
      %v8104 = vadd.f32 %v8090, %v8097
      %v8105 = vadd.f32 %v8091, %v8101
      %v8106 = vmax.f32 %v8104, 0.0
      %v8107 = vmax.f32 %v8105, 0.0
      %v8110 = vcombine.low %v8106, %v8107
      %8112 = vst [vmem:[%s224] sm:$0xff] %v8110
      %p8113 = scmp.lt.s32.totalorder %s16, 1
      %s8114 = scalar_select %p8113, %s16, 1
      %s8115 = smul.addr %s8114, 2
      %s8116 = smul.addr %s8115, 4
      %s8117 = scalar_lea.vmem %s5, %s8116
      // Predicated region
      $region41: #{simnet_forward.1} parent=39 // pred_check
        %p8118 = pneg %p144
      $region42: #{simnet_forward.1} parent=39 // pred_check_branch
        %8120 = sbr.rel (%p8118) target = $region44
      $region43: #{simnet_forward.1} parent=39 // pred_region
        _
      $region44: #{simnet_forward.1} parent=39 // pred_fallthru
        _
    $region40: #{simnet_forward.1} parent=5 // pred_fallthru
      _
    %p8121 = scmp.le.s32.totalorder 2, %s11
    // Predicated region
    $region45: #{simnet_forward.1} parent=5 // pred_check
      %p8122 = pneg %p8121
    $region46: #{simnet_forward.1} parent=5 // pred_check_branch
      %8124 = sbr.rel (%p8122) target = $region48
    $region47: #{simnet_forward.1} parent=5 // pred_region
      %s8125 = ssub.s32 %s11, 2
      // Predicated region
      $region49: #{simnet_forward.1} parent=47 // pred_check
        %p8126 = pneg %p150
      $region50: #{simnet_forward.1} parent=47 // pred_check_branch
        %8128 = sbr.rel (%p8126) target = $region52
      $region51: #{simnet_forward.1} parent=47 // pred_region
        %p8129 = scmp.lt.s32.totalorder %s17, 1
        %s8130 = scalar_select %p8129, %s17, 1
        %s8131 = smul.addr %s8130, 2
        %s8132 = smul.addr %s8131, 4
        %s8133 = scalar_lea.vmem %s5, %s8132
      $region52: #{simnet_forward.1} parent=47 // pred_fallthru
        _
    $region48: #{simnet_forward.1} parent=5 // pred_fallthru
      _
  $region6: #{simnet_forward.1} parent=0 // loop_footer
    %s15 = sadd.s32 1, %s11
  $region7: #{simnet_forward.1} parent=0 // loop_footer_branch
    %10 = sbr.rel target = $region3
  $region8: #{simnet_forward.1} parent=0 // loop_exit
    _

</llo_original>
